<compile_context>
chip_gen: v6e
topology: v6e:2x2x1
jax: 0.10.0
libtpu: 0.0.40
codegen_flags: <defaults>
</compile_context>

<pallas_src>
import math
import functools

import jax
import jax.numpy as jnp
from jax import lax
from jax.experimental import pallas as pl
from jax.experimental.pallas import tpu as pltpu

D_MODEL = 512   # fixed by the module (nn.LayerNorm(512))


# ---------------------------------------------------------------------------
# In-kernel helpers
# ---------------------------------------------------------------------------
def _layernorm(x, g, b, eps=1e-5):
    mu = jnp.mean(x, axis=-1, keepdims=True)
    xc = x - mu
    var = jnp.mean(xc * xc, axis=-1, keepdims=True)
    return xc * lax.rsqrt(var + eps) * g + b


# ---------------------------------------------------------------------------
# Fused HanLayer kernel:  cm_attn + self_attn + residual + LN + FFN + LN
# (+ optional trailing GlobalSelfAttn LayerNorm), one batch-block per grid step.
# ---------------------------------------------------------------------------
def han_layer_kernel(x_ref, w_in_ref, b_in_ref, wo_ref, bo_ref,
                     w1_ref, b1_ref, w2_ref, b2_ref, ln_ref, o_ref,
                     *, nhead, apply_final_norm):
    Bb, T, D = x_ref.shape
    hd = D // nhead
    H2 = 2 * nhead          # (branch, head) pairs: branch0 = cm_attn, branch1 = self_attn
    M = Bb * T              # all tokens of the batch block share one GEMM M dimension

    # ---- token-flattened activations: every GEMM below runs with M = Bb*T rows ------
    x = x_ref[...].astype(jnp.float32).reshape(M, D)
    xb = x.astype(jnp.bfloat16)

    # ---- fused Q/K/V projection for BOTH attention branches: one (M,D)@(D,6D) matmul.
    # Column layout of w_in: [Q1 Q2 | K1 K2 | V1 V2]; 1/sqrt(hd) pre-folded into Q cols.
    qkv = jnp.dot(xb, w_in_ref[...], preferred_element_type=jnp.float32) + b_in_ref[...]

    q_all = qkv[:, 0 * 2 * D:1 * 2 * D]         # (M, 2D)  already scaled
    k_all = qkv[:, 1 * 2 * D:2 * 2 * D]         # (M, 2D)
    v_all = qkv[:, 2 * 2 * D:3 * 2 * D]         # (M, 2D)

    # ---- attention, batched over the Bb samples for each (branch, head) pair.
    # Head slices are lane-aligned 128-wide columns; no per-sample Python unroll.
    ctx = []
    for j in range(H2):                          # small static constant (2*nhead)
        lo = j * hd
        qh = q_all[:, lo:lo + hd].reshape(Bb, T, hd).astype(jnp.bfloat16)
        kh = k_all[:, lo:lo + hd].reshape(Bb, T, hd).astype(jnp.bfloat16)
        vh = v_all[:, lo:lo + hd].reshape(Bb, T, hd).astype(jnp.bfloat16)
        s = jnp.einsum('btd,bsd->bts', qh, kh,
                       preferred_element_type=jnp.float32)          # (Bb, T, T)
        s = s - jnp.max(s, axis=-1, keepdims=True)
        p = jnp.exp(s)
        p = p / jnp.sum(p, axis=-1, keepdims=True)                  # exact softmax
        ctx.append(jnp.einsum('bts,bsd->btd', p.astype(jnp.bfloat16), vh,
                              preferred_element_type=jnp.float32))  # (Bb, T, hd)

    # [ctx_branch0 heads | ctx_branch1 heads] -> (M, 2D); fused out-projection of both
    # branches in one (M,2D)@(2D,D) matmul; result = src1 + src2 (+ bo1 + bo2).
    ctx_cat = jnp.concatenate(ctx, axis=-1).reshape(M, 2 * D).astype(jnp.bfloat16)
    attn = jnp.dot(ctx_cat, wo_ref[...], preferred_element_type=jnp.float32) + bo_ref[...]

    g1, be1 = ln_ref[0:1, :], ln_ref[1:2, :]
    g2, be2 = ln_ref[2:3, :], ln_ref[3:4, :]

    y = _layernorm(x + attn, g1, be1)                                # norm1

    h = jnp.dot(y.astype(jnp.bfloat16), w1_ref[...],
                preferred_element_type=jnp.float32) + b1_ref[...]    # linear1
    h = jnp.maximum(h, 0.0)                                          # ReLU
    ffn = jnp.dot(h.astype(jnp.bfloat16), w2_ref[...],
                  preferred_element_type=jnp.float32) + b2_ref[...]  # linear2

    y = _layernorm(y + ffn, g2, be2)                                 # norm2 (layer)

    if apply_final_norm:        # GlobalSelfAttn.norm2 (only when `norm` is truthy)
        y = _layernorm(y, ln_ref[4:5, :], ln_ref[5:6, :])

    o_ref[...] = y.reshape(Bb, T, D).astype(o_ref.dtype)             # lane-dense store


# ---------------------------------------------------------------------------
# Wrappers
# ---------------------------------------------------------------------------
def _choose_bblk(B, T):
    # ~256 GEMM rows per grid step (fills the 256x256 MXU on v6e/v7x, two 128-row
    # passes on v5e), but keep >= 2 grid steps whenever B > 1 so the "parallel" grid
    # axis can shard across v7x's two TensorCores.
    bblk = max(1, min(B, 256 // max(T, 1)))
    if B > 1 and pl.cdiv(B, bblk) < 2:
        bblk = pl.cdiv(B, 2)
    return bblk


def _han_layer_pallas(x, lp, *, nhead, apply_final_norm, bblk=None,
                      out_dtype=jnp.float32):
    B, T, D = x.shape
    FF = lp["w1"].shape[1]
    if bblk is None:
        bblk = _choose_bblk(B, T)
    nblk = pl.cdiv(B, bblk)
    B_pad = nblk * bblk
    if B_pad != B:                       # ragged batch: zero-pad, slice after the call
        x = jnp.pad(x, ((0, B_pad - B), (0, 0), (0, 0)))

    kernel = functools.partial(han_layer_kernel, nhead=nhead,
                               apply_final_norm=apply_final_norm)
    out = pl.pallas_call(
        kernel,
        out_shape=jax.ShapeDtypeStruct((B_pad, T, D), out_dtype),
        grid=(nblk,),
        in_specs=[
            pl.BlockSpec((bblk, T, D), lambda i: (i, 0, 0)),
            # grid-invariant weights: constant index_map -> DMA'd once, never refetched
            pl.BlockSpec((D, 6 * D), lambda i: (0, 0)),
            pl.BlockSpec((1, 6 * D), lambda i: (0, 0)),
            pl.BlockSpec((2 * D, D), lambda i: (0, 0)),
            pl.BlockSpec((1, D), lambda i: (0, 0)),
            pl.BlockSpec((D, FF), lambda i: (0, 0)),
            pl.BlockSpec((1, FF), lambda i: (0, 0)),
            pl.BlockSpec((FF, D), lambda i: (0, 0)),
            pl.BlockSpec((1, D), lambda i: (0, 0)),
            pl.BlockSpec((6, D), lambda i: (0, 0)),
        ],
        out_specs=pl.BlockSpec((bblk, T, D), lambda i: (i, 0, 0)),
        compiler_params=pltpu.CompilerParams(
            dimension_semantics=("parallel",),
            vmem_limit_bytes=32 * 1024 * 1024,
        ),
    )(x, lp["w_in"], lp["b_in"], lp["w_o"], lp["b_o"],
      lp["w1"], lp["b1"], lp["w2"], lp["b2"], lp["ln"])
    return out[:B] if B_pad != B else out


def global_self_attn_forward(src_v, layers_packed, *, nhead, use_norm,
                             bblk=None, out_dtype=jnp.float32):
    # The reference loop feeds the ORIGINAL src_v to every cloned layer, so only
    # layers[-1] influences the output; evaluate just that layer and fuse the optional
    # trailing LayerNorm(512) into the same kernel (identical result, fewer launches).
    # TODO(synk): at tiny B*T the ~5 MiB weight DMA dominates; amortize it by batching
    # more clips per call or by a cross-call weight prefetch (semaphore/VMEM outputs).
    return _han_layer_pallas(src_v, layers_packed[-1], nhead=nhead,
                             apply_final_norm=use_norm, bblk=bblk, out_dtype=out_dtype)


# ---------------------------------------------------------------------------
# Parameter init (PyTorch-shaped, synthetic) and packing into kernel layout
# ---------------------------------------------------------------------------
def init_layer_params(key, D, FF):
    ks = jax.random.split(key, 16)
    n = lambda k, shape: 0.02 * jax.random.normal(k, shape, jnp.float32)
    return {
        "cm_ipw": n(ks[0], (3 * D, D)), "cm_ipb": n(ks[1], (3 * D,)),
        "cm_ow": n(ks[2], (D, D)),      "cm_ob": n(ks[3], (D,)),
        "sa_ipw": n(ks[4], (3 * D, D)), "sa_ipb": n(ks[5], (3 * D,)),
        "sa_ow": n(ks[6], (D, D)),      "sa_ob": n(ks[7], (D,)),
        "l1_w": n(ks[8], (FF, D)),      "l1_b": n(ks[9], (FF,)),
        "l2_w": n(ks[10], (D, FF)),     "l2_b": n(ks[11], (D,)),
        "n1_g": 1.0 + 0.1 * jax.random.normal(ks[12], (D,), jnp.float32),
        "n1_b": n(ks[13], (D,)),
        "n2_g": 1.0 + 0.1 * jax.random.normal(ks[14], (D,), jnp.float32),
        "n2_b": n(ks[15], (D,)),
    }


def pack_layer(p, gnorm_g, gnorm_b, nhead):
    # Pre-transpose / pre-concatenate once (hoisted out of the kernel); store matmul
    # weights as bf16 to halve HBM->VMEM traffic; biases & LN params stay f32.
    # Column layout of w_in: [Q1 Q2 | K1 K2 | V1 V2]; the softmax scale 1/sqrt(hd) is
    # folded into the Q weights/biases at pack time (numerically identical transform).
    D = p["cm_ob"].shape[0]
    hd = D // nhead
    scale = 1.0 / math.sqrt(hd)

    def split3(w, b):
        return (w[:D], w[D:2 * D], w[2 * D:]), (b[:D], b[D:2 * D], b[2 * D:])

    (q1, k1, v1), (bq1, bk1, bv1) = split3(p["cm_ipw"], p["cm_ipb"])
    (q2, k2, v2), (bq2, bk2, bv2) = split3(p["sa_ipw"], p["sa_ipb"])
    q1, bq1 = q1 * scale, bq1 * scale
    q2, bq2 = q2 * scale, bq2 * scale

    w_in = jnp.concatenate([q1.T, q2.T, k1.T, k2.T, v1.T, v2.T],
                           axis=1).astype(jnp.bfloat16)                   # (D, 6D)
    b_in = jnp.concatenate([bq1, bq2, bk1, bk2, bv1, bv2])[None, :].astype(jnp.float32)
    w_o = jnp.concatenate([p["cm_ow"].T, p["sa_ow"].T], axis=0).astype(jnp.bfloat16)
    b_o = (p["cm_ob"] + p["sa_ob"])[None, :].astype(jnp.float32)
    ln = jnp.stack([p["n1_g"], p["n1_b"], p["n2_g"], p["n2_b"],
                    gnorm_g, gnorm_b], axis=0).astype(jnp.float32)
    return {
        "w_in": w_in, "b_in": b_in, "w_o": w_o, "b_o": b_o,
        "w1": p["l1_w"].T.astype(jnp.bfloat16), "b1": p["l1_b"][None, :].astype(jnp.float32),
        "w2": p["l2_w"].T.astype(jnp.bfloat16), "b2": p["l2_b"][None, :].astype(jnp.float32),
        "ln": ln,
    }


# ---------------------------------------------------------------------------
# Pure-JAX reference (faithful to the PyTorch forward) for a correctness check
# ---------------------------------------------------------------------------
def _ref_ln(x, g, b, eps=1e-5):
    mu = x.mean(-1, keepdims=True)
    var = ((x - mu) ** 2).mean(-1, keepdims=True)
    return (x - mu) / jnp.sqrt(var + eps) * g + b


def _ref_mha(x, ipw, ipb, ow, ob, nhead):
    B, T, D = x.shape
    hd = D // nhead
    qkv = jnp.einsum('btd,ed->bte', x, ipw) + ipb
    q, k, v = qkv[..., :D], qkv[..., D:2 * D], qkv[..., 2 * D:]
    split = lambda t: t.reshape(B, T, nhead, hd).transpose(0, 2, 1, 3)
    q, k, v = split(q), split(k), split(v)
    s = jnp.einsum('bhqd,bhkd->bhqk', q, k) / math.sqrt(hd)
    p = jax.nn.softmax(s, axis=-1)
    ctx = jnp.einsum('bhqk,bhkd->bhqd', p, v).transpose(0, 2, 1, 3).reshape(B, T, D)
    return jnp.einsum('btd,ed->bte', ctx, ow) + ob


def _ref_han_layer(x, p, nhead):
    src1 = _ref_mha(x, p["cm_ipw"], p["cm_ipb"], p["cm_ow"], p["cm_ob"], nhead)
    src2 = _ref_mha(x, p["sa_ipw"], p["sa_ipb"], p["sa_ow"], p["sa_ob"], nhead)
    y = _ref_ln(x + src1 + src2, p["n1_g"], p["n1_b"])
    ffn = jnp.maximum(jnp.einsum('btd,fd->btf', y, p["l1_w"]) + p["l1_b"], 0.0)
    ffn = jnp.einsum('btf,df->btd', ffn, p["l2_w"]) + p["l2_b"]
    return _ref_ln(y + ffn, p["n2_g"], p["n2_b"])


def _ref_global_self_attn(src_v, layers_pt, gnorm_g, gnorm_b, nhead, use_norm):
    out = src_v
    for p in layers_pt:               # faithful reference: every layer reads src_v
        out = _ref_han_layer(src_v, p, nhead)
    if use_norm:
        out = _ref_ln(out, gnorm_g, gnorm_b)
    return out


# ---------------------------------------------------------------------------
if __name__ == "__main__":
    B, T, D, FF = 2, 8, D_MODEL, 512          # small seq/batch; D=512 fixed by module
    NHEAD, NUM_LAYERS, USE_NORM = 4, 2, True  # encoder_layer = PSTP-Net HanLayer

    root = jax.random.PRNGKey(0)
    kx, kn, *kl = jax.random.split(root, 2 + NUM_LAYERS)
    src_v = jax.random.normal(kx, (B, T, D), jnp.float32)
    kg1, kg2 = jax.random.split(kn)
    gnorm_g = 1.0 + 0.1 * jax.random.normal(kg1, (D,), jnp.float32)
    gnorm_b = 0.02 * jax.random.normal(kg2, (D,), jnp.float32)

    layers_pt = [init_layer_params(k, D, FF) for k in kl]
    layers_packed = [pack_layer(p, gnorm_g, gnorm_b, NHEAD) for p in layers_pt]

    fwd = jax.jit(functools.partial(global_self_attn_forward,
                                    nhead=NHEAD, use_norm=USE_NORM))
    out = fwd(src_v, layers_packed)
    jax.block_until_ready(out)
    assert out.shape == (B, T, D)

    ref = _ref_global_self_attn(src_v, layers_pt, gnorm_g, gnorm_b, NHEAD, USE_NORM)
    err = float(jnp.max(jnp.abs(out - ref)))
    assert err < 5e-2, f"max abs err {err}"
    print("KERNEL_OK")
</pallas_src>

<mosaic_0001>
module attributes {stable_mosaic.version = 11 : i64} {
  func.func @han_layer_kernel(%arg0: i32, %arg1: memref<1x8x512xf32, #tpu.memory_space<vmem>>, %arg2: memref<512x3072xbf16, #tpu.memory_space<vmem>>, %arg3: memref<1x3072xf32, #tpu.memory_space<vmem>>, %arg4: memref<1024x512xbf16, #tpu.memory_space<vmem>>, %arg5: memref<1x512xf32, #tpu.memory_space<vmem>>, %arg6: memref<512x512xbf16, #tpu.memory_space<vmem>>, %arg7: memref<1x512xf32, #tpu.memory_space<vmem>>, %arg8: memref<512x512xbf16, #tpu.memory_space<vmem>>, %arg9: memref<1x512xf32, #tpu.memory_space<vmem>>, %arg10: memref<6x512xf32, #tpu.memory_space<vmem>>, %arg11: memref<1x8x512xf32, #tpu.memory_space<vmem>>) attributes {dimension_semantics = [#tpu.dimension_semantics<parallel>], iteration_bounds = array<i64: 2>, scalar_prefetch = 0 : i64, scratch_operands = 0 : i64, tpu.core_type = #tpu.core_type<tc>, window_params = [{transform_indices = @transform_0, window_bounds = array<i64: 1, 8, 512>}, {pipeline_mode = #tpu.pipeline_mode<synchronous>, transform_indices = @transform_1, window_bounds = array<i64: 512, 3072>}, {pipeline_mode = #tpu.pipeline_mode<synchronous>, transform_indices = @transform_2, window_bounds = array<i64: 1, 3072>}, {pipeline_mode = #tpu.pipeline_mode<synchronous>, transform_indices = @transform_3, window_bounds = array<i64: 1024, 512>}, {pipeline_mode = #tpu.pipeline_mode<synchronous>, transform_indices = @transform_4, window_bounds = array<i64: 1, 512>}, {pipeline_mode = #tpu.pipeline_mode<synchronous>, transform_indices = @transform_5, window_bounds = array<i64: 512, 512>}, {pipeline_mode = #tpu.pipeline_mode<synchronous>, transform_indices = @transform_6, window_bounds = array<i64: 1, 512>}, {pipeline_mode = #tpu.pipeline_mode<synchronous>, transform_indices = @transform_7, window_bounds = array<i64: 512, 512>}, {pipeline_mode = #tpu.pipeline_mode<synchronous>, transform_indices = @transform_8, window_bounds = array<i64: 1, 512>}, {pipeline_mode = #tpu.pipeline_mode<synchronous>, transform_indices = @transform_9, window_bounds = array<i64: 6, 512>}, {transform_indices = @transform_10, window_bounds = array<i64: 1, 8, 512>}]} {
    %c0 = arith.constant 0 : index
    %c0_0 = arith.constant 0 : index
    %c0_1 = arith.constant 0 : index
    %0 = vector.load %arg1[%c0, %c0_0, %c0_1] : memref<1x8x512xf32, #tpu.memory_space<vmem>>, vector<1x8x512xf32>
    %1 = vector.shape_cast %0 : vector<1x8x512xf32> to vector<8x512xf32>
    %2 = arith.truncf %1 : vector<8x512xf32> to vector<8x512xbf16>
    %c0_2 = arith.constant 0 : index
    %c0_3 = arith.constant 0 : index
    %3 = vector.load %arg2[%c0_2, %c0_3] : memref<512x3072xbf16, #tpu.memory_space<vmem>>, vector<512x3072xbf16>
    %cst = arith.constant dense<0.000000e+00> : vector<8x3072xf32>
    %4 = tpu.matmul %2, %3, %cst {dimension_numbers = #tpu.dot_dimension_numbers<[1], [0], [0], [1], [0, 0, 1, 1], [], []>} : vector<8x512xbf16>, vector<512x3072xbf16>, vector<8x3072xf32> -> vector<8x3072xf32>
    %c0_4 = arith.constant 0 : index
    %c0_5 = arith.constant 0 : index
    %5 = vector.load %arg3[%c0_4, %c0_5] : memref<1x3072xf32, #tpu.memory_space<vmem>>, vector<1x3072xf32>
    %6 = vector.broadcast %5 : vector<1x3072xf32> to vector<8x3072xf32>
    %7 = arith.addf %4, %6 : vector<8x3072xf32>
    %8 = vector.extract_strided_slice %7 {offsets = [0, 0], sizes = [8, 1024], strides = [1, 1]} : vector<8x3072xf32> to vector<8x1024xf32>
    %9 = vector.extract_strided_slice %7 {offsets = [0, 1024], sizes = [8, 1024], strides = [1, 1]} : vector<8x3072xf32> to vector<8x1024xf32>
    %10 = vector.extract_strided_slice %7 {offsets = [0, 2048], sizes = [8, 1024], strides = [1, 1]} : vector<8x3072xf32> to vector<8x1024xf32>
    %11 = vector.extract_strided_slice %8 {offsets = [0, 0], sizes = [8, 128], strides = [1, 1]} : vector<8x1024xf32> to vector<8x128xf32>
    %12 = vector.shape_cast %11 : vector<8x128xf32> to vector<1x8x128xf32>
    %13 = arith.truncf %12 : vector<1x8x128xf32> to vector<1x8x128xbf16>
    %14 = vector.extract_strided_slice %9 {offsets = [0, 0], sizes = [8, 128], strides = [1, 1]} : vector<8x1024xf32> to vector<8x128xf32>
    %15 = vector.shape_cast %14 : vector<8x128xf32> to vector<1x8x128xf32>
    %16 = arith.truncf %15 : vector<1x8x128xf32> to vector<1x8x128xbf16>
    %17 = vector.extract_strided_slice %10 {offsets = [0, 0], sizes = [8, 128], strides = [1, 1]} : vector<8x1024xf32> to vector<8x128xf32>
    %18 = vector.shape_cast %17 : vector<8x128xf32> to vector<1x8x128xf32>
    %19 = arith.truncf %18 : vector<1x8x128xf32> to vector<1x8x128xbf16>
    "tpu.trace_start"() <{level = 10 : i32, message = "btd,bsd->bts"}> : () -> ()
    %cst_6 = arith.constant dense<0.000000e+00> : vector<1x8x8xf32>
    %20 = tpu.matmul %13, %16, %cst_6 {dimension_numbers = #tpu.dot_dimension_numbers<[2], [2], [1], [1], [0, 0, 0, 1, 1, 1], [0], [0]>} : vector<1x8x128xbf16>, vector<1x8x128xbf16>, vector<1x8x8xf32> -> vector<1x8x8xf32>
    "tpu.trace_stop"() : () -> ()
    %cst_7 = arith.constant dense<0xFF800000> : vector<1x8xf32>
    %21 = vector.multi_reduction <maximumf>, %20, %cst_7 [2] : vector<1x8x8xf32> to vector<1x8xf32>
    %22 = vector.shape_cast %21 : vector<1x8xf32> to vector<1x8x1xf32>
    %23 = vector.broadcast %22 : vector<1x8x1xf32> to vector<1x8x8xf32>
    %24 = arith.subf %20, %23 : vector<1x8x8xf32>
    %25 = math.exp %24 : vector<1x8x8xf32>
    %cst_8 = arith.constant dense<0.000000e+00> : vector<1x8xf32>
    %26 = vector.multi_reduction <add>, %25, %cst_8 [2] : vector<1x8x8xf32> to vector<1x8xf32>
    %27 = vector.shape_cast %26 : vector<1x8xf32> to vector<1x8x1xf32>
    %28 = vector.broadcast %27 : vector<1x8x1xf32> to vector<1x8x8xf32>
    %29 = arith.divf %25, %28 : vector<1x8x8xf32>
    %30 = arith.truncf %29 : vector<1x8x8xf32> to vector<1x8x8xbf16>
    "tpu.trace_start"() <{level = 10 : i32, message = "bts,bsd->btd"}> : () -> ()
    %cst_9 = arith.constant dense<0.000000e+00> : vector<1x8x128xf32>
    %31 = tpu.matmul %30, %19, %cst_9 {dimension_numbers = #tpu.dot_dimension_numbers<[2], [1], [1], [2], [0, 0, 0, 1, 1, 2], [0], [0]>} : vector<1x8x8xbf16>, vector<1x8x128xbf16>, vector<1x8x128xf32> -> vector<1x8x128xf32>
    "tpu.trace_stop"() : () -> ()
    %32 = vector.extract_strided_slice %8 {offsets = [0, 128], sizes = [8, 128], strides = [1, 1]} : vector<8x1024xf32> to vector<8x128xf32>
    %33 = vector.shape_cast %32 : vector<8x128xf32> to vector<1x8x128xf32>
    %34 = arith.truncf %33 : vector<1x8x128xf32> to vector<1x8x128xbf16>
    %35 = vector.extract_strided_slice %9 {offsets = [0, 128], sizes = [8, 128], strides = [1, 1]} : vector<8x1024xf32> to vector<8x128xf32>
    %36 = vector.shape_cast %35 : vector<8x128xf32> to vector<1x8x128xf32>
    %37 = arith.truncf %36 : vector<1x8x128xf32> to vector<1x8x128xbf16>
    %38 = vector.extract_strided_slice %10 {offsets = [0, 128], sizes = [8, 128], strides = [1, 1]} : vector<8x1024xf32> to vector<8x128xf32>
    %39 = vector.shape_cast %38 : vector<8x128xf32> to vector<1x8x128xf32>
    %40 = arith.truncf %39 : vector<1x8x128xf32> to vector<1x8x128xbf16>
    "tpu.trace_start"() <{level = 10 : i32, message = "btd,bsd->bts"}> : () -> ()
    %cst_10 = arith.constant dense<0.000000e+00> : vector<1x8x8xf32>
    %41 = tpu.matmul %34, %37, %cst_10 {dimension_numbers = #tpu.dot_dimension_numbers<[2], [2], [1], [1], [0, 0, 0, 1, 1, 1], [0], [0]>} : vector<1x8x128xbf16>, vector<1x8x128xbf16>, vector<1x8x8xf32> -> vector<1x8x8xf32>
    "tpu.trace_stop"() : () -> ()
    %cst_11 = arith.constant dense<0xFF800000> : vector<1x8xf32>
    %42 = vector.multi_reduction <maximumf>, %41, %cst_11 [2] : vector<1x8x8xf32> to vector<1x8xf32>
    %43 = vector.shape_cast %42 : vector<1x8xf32> to vector<1x8x1xf32>
    %44 = vector.broadcast %43 : vector<1x8x1xf32> to vector<1x8x8xf32>
    %45 = arith.subf %41, %44 : vector<1x8x8xf32>
    %46 = math.exp %45 : vector<1x8x8xf32>
    %cst_12 = arith.constant dense<0.000000e+00> : vector<1x8xf32>
    %47 = vector.multi_reduction <add>, %46, %cst_12 [2] : vector<1x8x8xf32> to vector<1x8xf32>
    %48 = vector.shape_cast %47 : vector<1x8xf32> to vector<1x8x1xf32>
    %49 = vector.broadcast %48 : vector<1x8x1xf32> to vector<1x8x8xf32>
    %50 = arith.divf %46, %49 : vector<1x8x8xf32>
    %51 = arith.truncf %50 : vector<1x8x8xf32> to vector<1x8x8xbf16>
    "tpu.trace_start"() <{level = 10 : i32, message = "bts,bsd->btd"}> : () -> ()
    %cst_13 = arith.constant dense<0.000000e+00> : vector<1x8x128xf32>
    %52 = tpu.matmul %51, %40, %cst_13 {dimension_numbers = #tpu.dot_dimension_numbers<[2], [1], [1], [2], [0, 0, 0, 1, 1, 2], [0], [0]>} : vector<1x8x8xbf16>, vector<1x8x128xbf16>, vector<1x8x128xf32> -> vector<1x8x128xf32>
    "tpu.trace_stop"() : () -> ()
    %53 = vector.extract_strided_slice %8 {offsets = [0, 256], sizes = [8, 128], strides = [1, 1]} : vector<8x1024xf32> to vector<8x128xf32>
    %54 = vector.shape_cast %53 : vector<8x128xf32> to vector<1x8x128xf32>
    %55 = arith.truncf %54 : vector<1x8x128xf32> to vector<1x8x128xbf16>
    %56 = vector.extract_strided_slice %9 {offsets = [0, 256], sizes = [8, 128], strides = [1, 1]} : vector<8x1024xf32> to vector<8x128xf32>
    %57 = vector.shape_cast %56 : vector<8x128xf32> to vector<1x8x128xf32>
    %58 = arith.truncf %57 : vector<1x8x128xf32> to vector<1x8x128xbf16>
    %59 = vector.extract_strided_slice %10 {offsets = [0, 256], sizes = [8, 128], strides = [1, 1]} : vector<8x1024xf32> to vector<8x128xf32>
    %60 = vector.shape_cast %59 : vector<8x128xf32> to vector<1x8x128xf32>
    %61 = arith.truncf %60 : vector<1x8x128xf32> to vector<1x8x128xbf16>
    "tpu.trace_start"() <{level = 10 : i32, message = "btd,bsd->bts"}> : () -> ()
    %cst_14 = arith.constant dense<0.000000e+00> : vector<1x8x8xf32>
    %62 = tpu.matmul %55, %58, %cst_14 {dimension_numbers = #tpu.dot_dimension_numbers<[2], [2], [1], [1], [0, 0, 0, 1, 1, 1], [0], [0]>} : vector<1x8x128xbf16>, vector<1x8x128xbf16>, vector<1x8x8xf32> -> vector<1x8x8xf32>
    "tpu.trace_stop"() : () -> ()
    %cst_15 = arith.constant dense<0xFF800000> : vector<1x8xf32>
    %63 = vector.multi_reduction <maximumf>, %62, %cst_15 [2] : vector<1x8x8xf32> to vector<1x8xf32>
    %64 = vector.shape_cast %63 : vector<1x8xf32> to vector<1x8x1xf32>
    %65 = vector.broadcast %64 : vector<1x8x1xf32> to vector<1x8x8xf32>
    %66 = arith.subf %62, %65 : vector<1x8x8xf32>
    %67 = math.exp %66 : vector<1x8x8xf32>
    %cst_16 = arith.constant dense<0.000000e+00> : vector<1x8xf32>
    %68 = vector.multi_reduction <add>, %67, %cst_16 [2] : vector<1x8x8xf32> to vector<1x8xf32>
    %69 = vector.shape_cast %68 : vector<1x8xf32> to vector<1x8x1xf32>
    %70 = vector.broadcast %69 : vector<1x8x1xf32> to vector<1x8x8xf32>
    %71 = arith.divf %67, %70 : vector<1x8x8xf32>
    %72 = arith.truncf %71 : vector<1x8x8xf32> to vector<1x8x8xbf16>
    "tpu.trace_start"() <{level = 10 : i32, message = "bts,bsd->btd"}> : () -> ()
    %cst_17 = arith.constant dense<0.000000e+00> : vector<1x8x128xf32>
    %73 = tpu.matmul %72, %61, %cst_17 {dimension_numbers = #tpu.dot_dimension_numbers<[2], [1], [1], [2], [0, 0, 0, 1, 1, 2], [0], [0]>} : vector<1x8x8xbf16>, vector<1x8x128xbf16>, vector<1x8x128xf32> -> vector<1x8x128xf32>
    "tpu.trace_stop"() : () -> ()
    %74 = vector.extract_strided_slice %8 {offsets = [0, 384], sizes = [8, 128], strides = [1, 1]} : vector<8x1024xf32> to vector<8x128xf32>
    %75 = vector.shape_cast %74 : vector<8x128xf32> to vector<1x8x128xf32>
    %76 = arith.truncf %75 : vector<1x8x128xf32> to vector<1x8x128xbf16>
    %77 = vector.extract_strided_slice %9 {offsets = [0, 384], sizes = [8, 128], strides = [1, 1]} : vector<8x1024xf32> to vector<8x128xf32>
    %78 = vector.shape_cast %77 : vector<8x128xf32> to vector<1x8x128xf32>
    %79 = arith.truncf %78 : vector<1x8x128xf32> to vector<1x8x128xbf16>
    %80 = vector.extract_strided_slice %10 {offsets = [0, 384], sizes = [8, 128], strides = [1, 1]} : vector<8x1024xf32> to vector<8x128xf32>
    %81 = vector.shape_cast %80 : vector<8x128xf32> to vector<1x8x128xf32>
    %82 = arith.truncf %81 : vector<1x8x128xf32> to vector<1x8x128xbf16>
    "tpu.trace_start"() <{level = 10 : i32, message = "btd,bsd->bts"}> : () -> ()
    %cst_18 = arith.constant dense<0.000000e+00> : vector<1x8x8xf32>
    %83 = tpu.matmul %76, %79, %cst_18 {dimension_numbers = #tpu.dot_dimension_numbers<[2], [2], [1], [1], [0, 0, 0, 1, 1, 1], [0], [0]>} : vector<1x8x128xbf16>, vector<1x8x128xbf16>, vector<1x8x8xf32> -> vector<1x8x8xf32>
    "tpu.trace_stop"() : () -> ()
    %cst_19 = arith.constant dense<0xFF800000> : vector<1x8xf32>
    %84 = vector.multi_reduction <maximumf>, %83, %cst_19 [2] : vector<1x8x8xf32> to vector<1x8xf32>
    %85 = vector.shape_cast %84 : vector<1x8xf32> to vector<1x8x1xf32>
    %86 = vector.broadcast %85 : vector<1x8x1xf32> to vector<1x8x8xf32>
    %87 = arith.subf %83, %86 : vector<1x8x8xf32>
    %88 = math.exp %87 : vector<1x8x8xf32>
    %cst_20 = arith.constant dense<0.000000e+00> : vector<1x8xf32>
    %89 = vector.multi_reduction <add>, %88, %cst_20 [2] : vector<1x8x8xf32> to vector<1x8xf32>
    %90 = vector.shape_cast %89 : vector<1x8xf32> to vector<1x8x1xf32>
    %91 = vector.broadcast %90 : vector<1x8x1xf32> to vector<1x8x8xf32>
    %92 = arith.divf %88, %91 : vector<1x8x8xf32>
    %93 = arith.truncf %92 : vector<1x8x8xf32> to vector<1x8x8xbf16>
    "tpu.trace_start"() <{level = 10 : i32, message = "bts,bsd->btd"}> : () -> ()
    %cst_21 = arith.constant dense<0.000000e+00> : vector<1x8x128xf32>
    %94 = tpu.matmul %93, %82, %cst_21 {dimension_numbers = #tpu.dot_dimension_numbers<[2], [1], [1], [2], [0, 0, 0, 1, 1, 2], [0], [0]>} : vector<1x8x8xbf16>, vector<1x8x128xbf16>, vector<1x8x128xf32> -> vector<1x8x128xf32>
    "tpu.trace_stop"() : () -> ()
    %95 = vector.extract_strided_slice %8 {offsets = [0, 512], sizes = [8, 128], strides = [1, 1]} : vector<8x1024xf32> to vector<8x128xf32>
    %96 = vector.shape_cast %95 : vector<8x128xf32> to vector<1x8x128xf32>
    %97 = arith.truncf %96 : vector<1x8x128xf32> to vector<1x8x128xbf16>
    %98 = vector.extract_strided_slice %9 {offsets = [0, 512], sizes = [8, 128], strides = [1, 1]} : vector<8x1024xf32> to vector<8x128xf32>
    %99 = vector.shape_cast %98 : vector<8x128xf32> to vector<1x8x128xf32>
    %100 = arith.truncf %99 : vector<1x8x128xf32> to vector<1x8x128xbf16>
    %101 = vector.extract_strided_slice %10 {offsets = [0, 512], sizes = [8, 128], strides = [1, 1]} : vector<8x1024xf32> to vector<8x128xf32>
    %102 = vector.shape_cast %101 : vector<8x128xf32> to vector<1x8x128xf32>
    %103 = arith.truncf %102 : vector<1x8x128xf32> to vector<1x8x128xbf16>
    "tpu.trace_start"() <{level = 10 : i32, message = "btd,bsd->bts"}> : () -> ()
    %cst_22 = arith.constant dense<0.000000e+00> : vector<1x8x8xf32>
    %104 = tpu.matmul %97, %100, %cst_22 {dimension_numbers = #tpu.dot_dimension_numbers<[2], [2], [1], [1], [0, 0, 0, 1, 1, 1], [0], [0]>} : vector<1x8x128xbf16>, vector<1x8x128xbf16>, vector<1x8x8xf32> -> vector<1x8x8xf32>
    "tpu.trace_stop"() : () -> ()
    %cst_23 = arith.constant dense<0xFF800000> : vector<1x8xf32>
    %105 = vector.multi_reduction <maximumf>, %104, %cst_23 [2] : vector<1x8x8xf32> to vector<1x8xf32>
    %106 = vector.shape_cast %105 : vector<1x8xf32> to vector<1x8x1xf32>
    %107 = vector.broadcast %106 : vector<1x8x1xf32> to vector<1x8x8xf32>
    %108 = arith.subf %104, %107 : vector<1x8x8xf32>
    %109 = math.exp %108 : vector<1x8x8xf32>
    %cst_24 = arith.constant dense<0.000000e+00> : vector<1x8xf32>
    %110 = vector.multi_reduction <add>, %109, %cst_24 [2] : vector<1x8x8xf32> to vector<1x8xf32>
    %111 = vector.shape_cast %110 : vector<1x8xf32> to vector<1x8x1xf32>
    %112 = vector.broadcast %111 : vector<1x8x1xf32> to vector<1x8x8xf32>
    %113 = arith.divf %109, %112 : vector<1x8x8xf32>
    %114 = arith.truncf %113 : vector<1x8x8xf32> to vector<1x8x8xbf16>
    "tpu.trace_start"() <{level = 10 : i32, message = "bts,bsd->btd"}> : () -> ()
    %cst_25 = arith.constant dense<0.000000e+00> : vector<1x8x128xf32>
    %115 = tpu.matmul %114, %103, %cst_25 {dimension_numbers = #tpu.dot_dimension_numbers<[2], [1], [1], [2], [0, 0, 0, 1, 1, 2], [0], [0]>} : vector<1x8x8xbf16>, vector<1x8x128xbf16>, vector<1x8x128xf32> -> vector<1x8x128xf32>
    "tpu.trace_stop"() : () -> ()
    %116 = vector.extract_strided_slice %8 {offsets = [0, 640], sizes = [8, 128], strides = [1, 1]} : vector<8x1024xf32> to vector<8x128xf32>
    %117 = vector.shape_cast %116 : vector<8x128xf32> to vector<1x8x128xf32>
    %118 = arith.truncf %117 : vector<1x8x128xf32> to vector<1x8x128xbf16>
    %119 = vector.extract_strided_slice %9 {offsets = [0, 640], sizes = [8, 128], strides = [1, 1]} : vector<8x1024xf32> to vector<8x128xf32>
    %120 = vector.shape_cast %119 : vector<8x128xf32> to vector<1x8x128xf32>
    %121 = arith.truncf %120 : vector<1x8x128xf32> to vector<1x8x128xbf16>
    %122 = vector.extract_strided_slice %10 {offsets = [0, 640], sizes = [8, 128], strides = [1, 1]} : vector<8x1024xf32> to vector<8x128xf32>
    %123 = vector.shape_cast %122 : vector<8x128xf32> to vector<1x8x128xf32>
    %124 = arith.truncf %123 : vector<1x8x128xf32> to vector<1x8x128xbf16>
    "tpu.trace_start"() <{level = 10 : i32, message = "btd,bsd->bts"}> : () -> ()
    %cst_26 = arith.constant dense<0.000000e+00> : vector<1x8x8xf32>
    %125 = tpu.matmul %118, %121, %cst_26 {dimension_numbers = #tpu.dot_dimension_numbers<[2], [2], [1], [1], [0, 0, 0, 1, 1, 1], [0], [0]>} : vector<1x8x128xbf16>, vector<1x8x128xbf16>, vector<1x8x8xf32> -> vector<1x8x8xf32>
    "tpu.trace_stop"() : () -> ()
    %cst_27 = arith.constant dense<0xFF800000> : vector<1x8xf32>
    %126 = vector.multi_reduction <maximumf>, %125, %cst_27 [2] : vector<1x8x8xf32> to vector<1x8xf32>
    %127 = vector.shape_cast %126 : vector<1x8xf32> to vector<1x8x1xf32>
    %128 = vector.broadcast %127 : vector<1x8x1xf32> to vector<1x8x8xf32>
    %129 = arith.subf %125, %128 : vector<1x8x8xf32>
    %130 = math.exp %129 : vector<1x8x8xf32>
    %cst_28 = arith.constant dense<0.000000e+00> : vector<1x8xf32>
    %131 = vector.multi_reduction <add>, %130, %cst_28 [2] : vector<1x8x8xf32> to vector<1x8xf32>
    %132 = vector.shape_cast %131 : vector<1x8xf32> to vector<1x8x1xf32>
    %133 = vector.broadcast %132 : vector<1x8x1xf32> to vector<1x8x8xf32>
    %134 = arith.divf %130, %133 : vector<1x8x8xf32>
    %135 = arith.truncf %134 : vector<1x8x8xf32> to vector<1x8x8xbf16>
    "tpu.trace_start"() <{level = 10 : i32, message = "bts,bsd->btd"}> : () -> ()
    %cst_29 = arith.constant dense<0.000000e+00> : vector<1x8x128xf32>
    %136 = tpu.matmul %135, %124, %cst_29 {dimension_numbers = #tpu.dot_dimension_numbers<[2], [1], [1], [2], [0, 0, 0, 1, 1, 2], [0], [0]>} : vector<1x8x8xbf16>, vector<1x8x128xbf16>, vector<1x8x128xf32> -> vector<1x8x128xf32>
    "tpu.trace_stop"() : () -> ()
    %137 = vector.extract_strided_slice %8 {offsets = [0, 768], sizes = [8, 128], strides = [1, 1]} : vector<8x1024xf32> to vector<8x128xf32>
    %138 = vector.shape_cast %137 : vector<8x128xf32> to vector<1x8x128xf32>
    %139 = arith.truncf %138 : vector<1x8x128xf32> to vector<1x8x128xbf16>
    %140 = vector.extract_strided_slice %9 {offsets = [0, 768], sizes = [8, 128], strides = [1, 1]} : vector<8x1024xf32> to vector<8x128xf32>
    %141 = vector.shape_cast %140 : vector<8x128xf32> to vector<1x8x128xf32>
    %142 = arith.truncf %141 : vector<1x8x128xf32> to vector<1x8x128xbf16>
    %143 = vector.extract_strided_slice %10 {offsets = [0, 768], sizes = [8, 128], strides = [1, 1]} : vector<8x1024xf32> to vector<8x128xf32>
    %144 = vector.shape_cast %143 : vector<8x128xf32> to vector<1x8x128xf32>
    %145 = arith.truncf %144 : vector<1x8x128xf32> to vector<1x8x128xbf16>
    "tpu.trace_start"() <{level = 10 : i32, message = "btd,bsd->bts"}> : () -> ()
    %cst_30 = arith.constant dense<0.000000e+00> : vector<1x8x8xf32>
    %146 = tpu.matmul %139, %142, %cst_30 {dimension_numbers = #tpu.dot_dimension_numbers<[2], [2], [1], [1], [0, 0, 0, 1, 1, 1], [0], [0]>} : vector<1x8x128xbf16>, vector<1x8x128xbf16>, vector<1x8x8xf32> -> vector<1x8x8xf32>
    "tpu.trace_stop"() : () -> ()
    %cst_31 = arith.constant dense<0xFF800000> : vector<1x8xf32>
    %147 = vector.multi_reduction <maximumf>, %146, %cst_31 [2] : vector<1x8x8xf32> to vector<1x8xf32>
    %148 = vector.shape_cast %147 : vector<1x8xf32> to vector<1x8x1xf32>
    %149 = vector.broadcast %148 : vector<1x8x1xf32> to vector<1x8x8xf32>
    %150 = arith.subf %146, %149 : vector<1x8x8xf32>
    %151 = math.exp %150 : vector<1x8x8xf32>
    %cst_32 = arith.constant dense<0.000000e+00> : vector<1x8xf32>
    %152 = vector.multi_reduction <add>, %151, %cst_32 [2] : vector<1x8x8xf32> to vector<1x8xf32>
    %153 = vector.shape_cast %152 : vector<1x8xf32> to vector<1x8x1xf32>
    %154 = vector.broadcast %153 : vector<1x8x1xf32> to vector<1x8x8xf32>
    %155 = arith.divf %151, %154 : vector<1x8x8xf32>
    %156 = arith.truncf %155 : vector<1x8x8xf32> to vector<1x8x8xbf16>
    "tpu.trace_start"() <{level = 10 : i32, message = "bts,bsd->btd"}> : () -> ()
    %cst_33 = arith.constant dense<0.000000e+00> : vector<1x8x128xf32>
    %157 = tpu.matmul %156, %145, %cst_33 {dimension_numbers = #tpu.dot_dimension_numbers<[2], [1], [1], [2], [0, 0, 0, 1, 1, 2], [0], [0]>} : vector<1x8x8xbf16>, vector<1x8x128xbf16>, vector<1x8x128xf32> -> vector<1x8x128xf32>
    "tpu.trace_stop"() : () -> ()
    %158 = vector.extract_strided_slice %8 {offsets = [0, 896], sizes = [8, 128], strides = [1, 1]} : vector<8x1024xf32> to vector<8x128xf32>
    %159 = vector.shape_cast %158 : vector<8x128xf32> to vector<1x8x128xf32>
    %160 = arith.truncf %159 : vector<1x8x128xf32> to vector<1x8x128xbf16>
    %161 = vector.extract_strided_slice %9 {offsets = [0, 896], sizes = [8, 128], strides = [1, 1]} : vector<8x1024xf32> to vector<8x128xf32>
    %162 = vector.shape_cast %161 : vector<8x128xf32> to vector<1x8x128xf32>
    %163 = arith.truncf %162 : vector<1x8x128xf32> to vector<1x8x128xbf16>
    %164 = vector.extract_strided_slice %10 {offsets = [0, 896], sizes = [8, 128], strides = [1, 1]} : vector<8x1024xf32> to vector<8x128xf32>
    %165 = vector.shape_cast %164 : vector<8x128xf32> to vector<1x8x128xf32>
    %166 = arith.truncf %165 : vector<1x8x128xf32> to vector<1x8x128xbf16>
    "tpu.trace_start"() <{level = 10 : i32, message = "btd,bsd->bts"}> : () -> ()
    %cst_34 = arith.constant dense<0.000000e+00> : vector<1x8x8xf32>
    %167 = tpu.matmul %160, %163, %cst_34 {dimension_numbers = #tpu.dot_dimension_numbers<[2], [2], [1], [1], [0, 0, 0, 1, 1, 1], [0], [0]>} : vector<1x8x128xbf16>, vector<1x8x128xbf16>, vector<1x8x8xf32> -> vector<1x8x8xf32>
    "tpu.trace_stop"() : () -> ()
    %cst_35 = arith.constant dense<0xFF800000> : vector<1x8xf32>
    %168 = vector.multi_reduction <maximumf>, %167, %cst_35 [2] : vector<1x8x8xf32> to vector<1x8xf32>
    %169 = vector.shape_cast %168 : vector<1x8xf32> to vector<1x8x1xf32>
    %170 = vector.broadcast %169 : vector<1x8x1xf32> to vector<1x8x8xf32>
    %171 = arith.subf %167, %170 : vector<1x8x8xf32>
    %172 = math.exp %171 : vector<1x8x8xf32>
    %cst_36 = arith.constant dense<0.000000e+00> : vector<1x8xf32>
    %173 = vector.multi_reduction <add>, %172, %cst_36 [2] : vector<1x8x8xf32> to vector<1x8xf32>
    %174 = vector.shape_cast %173 : vector<1x8xf32> to vector<1x8x1xf32>
    %175 = vector.broadcast %174 : vector<1x8x1xf32> to vector<1x8x8xf32>
    %176 = arith.divf %172, %175 : vector<1x8x8xf32>
    %177 = arith.truncf %176 : vector<1x8x8xf32> to vector<1x8x8xbf16>
    "tpu.trace_start"() <{level = 10 : i32, message = "bts,bsd->btd"}> : () -> ()
    %cst_37 = arith.constant dense<0.000000e+00> : vector<1x8x128xf32>
    %178 = tpu.matmul %177, %166, %cst_37 {dimension_numbers = #tpu.dot_dimension_numbers<[2], [1], [1], [2], [0, 0, 0, 1, 1, 2], [0], [0]>} : vector<1x8x8xbf16>, vector<1x8x128xbf16>, vector<1x8x128xf32> -> vector<1x8x128xf32>
    "tpu.trace_stop"() : () -> ()
    %179 = tpu.concatenate %31, %52, %73, %94, %115, %136, %157, %178 in 2 : vector<1x8x128xf32>, vector<1x8x128xf32>, vector<1x8x128xf32>, vector<1x8x128xf32>, vector<1x8x128xf32>, vector<1x8x128xf32>, vector<1x8x128xf32>, vector<1x8x128xf32> -> vector<1x8x1024xf32>
    %180 = vector.shape_cast %179 : vector<1x8x1024xf32> to vector<8x1024xf32>
    %181 = arith.truncf %180 : vector<8x1024xf32> to vector<8x1024xbf16>
    %c0_38 = arith.constant 0 : index
    %c0_39 = arith.constant 0 : index
    %182 = vector.load %arg4[%c0_38, %c0_39] : memref<1024x512xbf16, #tpu.memory_space<vmem>>, vector<1024x512xbf16>
    %cst_40 = arith.constant dense<0.000000e+00> : vector<8x512xf32>
    %183 = tpu.matmul %181, %182, %cst_40 {dimension_numbers = #tpu.dot_dimension_numbers<[1], [0], [0], [1], [0, 0, 1, 1], [], []>} : vector<8x1024xbf16>, vector<1024x512xbf16>, vector<8x512xf32> -> vector<8x512xf32>
    %c0_41 = arith.constant 0 : index
    %c0_42 = arith.constant 0 : index
    %184 = vector.load %arg5[%c0_41, %c0_42] : memref<1x512xf32, #tpu.memory_space<vmem>>, vector<1x512xf32>
    %185 = vector.broadcast %184 : vector<1x512xf32> to vector<8x512xf32>
    %186 = arith.addf %183, %185 : vector<8x512xf32>
    %c0_43 = arith.constant 0 : index
    %c0_44 = arith.constant 0 : index
    %187 = vector.load %arg10[%c0_43, %c0_44] : memref<6x512xf32, #tpu.memory_space<vmem>>, vector<1x512xf32>
    %c1 = arith.constant 1 : index
    %c0_45 = arith.constant 0 : index
    %188 = vector.load %arg10[%c1, %c0_45] : memref<6x512xf32, #tpu.memory_space<vmem>>, vector<1x512xf32>
    %c2 = arith.constant 2 : index
    %c0_46 = arith.constant 0 : index
    %189 = vector.load %arg10[%c2, %c0_46] : memref<6x512xf32, #tpu.memory_space<vmem>>, vector<1x512xf32>
    %c3 = arith.constant 3 : index
    %c0_47 = arith.constant 0 : index
    %190 = vector.load %arg10[%c3, %c0_47] : memref<6x512xf32, #tpu.memory_space<vmem>>, vector<1x512xf32>
    %191 = arith.addf %1, %186 : vector<8x512xf32>
    %cst_48 = arith.constant dense<0.000000e+00> : vector<8xf32>
    %192 = vector.multi_reduction <add>, %191, %cst_48 [1] : vector<8x512xf32> to vector<8xf32>
    %193 = vector.shape_cast %192 : vector<8xf32> to vector<8x1xf32>
    %cst_49 = arith.constant 5.120000e+02 : f32
    %194 = vector.broadcast %cst_49 : f32 to vector<8x1xf32>
    %195 = arith.divf %193, %194 : vector<8x1xf32>
    %196 = vector.broadcast %195 : vector<8x1xf32> to vector<8x512xf32>
    %197 = arith.subf %191, %196 : vector<8x512xf32>
    %198 = arith.mulf %197, %197 : vector<8x512xf32>
    %cst_50 = arith.constant dense<0.000000e+00> : vector<8xf32>
    %199 = vector.multi_reduction <add>, %198, %cst_50 [1] : vector<8x512xf32> to vector<8xf32>
    %200 = vector.shape_cast %199 : vector<8xf32> to vector<8x1xf32>
    %cst_51 = arith.constant 5.120000e+02 : f32
    %201 = vector.broadcast %cst_51 : f32 to vector<8x1xf32>
    %202 = arith.divf %200, %201 : vector<8x1xf32>
    %cst_52 = arith.constant 9.99999974E-6 : f32
    %203 = vector.broadcast %cst_52 : f32 to vector<8x1xf32>
    %204 = arith.addf %202, %203 : vector<8x1xf32>
    %205 = math.rsqrt %204 : vector<8x1xf32>
    %206 = vector.broadcast %205 : vector<8x1xf32> to vector<8x512xf32>
    %207 = arith.mulf %197, %206 : vector<8x512xf32>
    %208 = vector.broadcast %187 : vector<1x512xf32> to vector<8x512xf32>
    %209 = arith.mulf %207, %208 : vector<8x512xf32>
    %210 = vector.broadcast %188 : vector<1x512xf32> to vector<8x512xf32>
    %211 = arith.addf %209, %210 : vector<8x512xf32>
    %212 = arith.truncf %211 : vector<8x512xf32> to vector<8x512xbf16>
    %c0_53 = arith.constant 0 : index
    %c0_54 = arith.constant 0 : index
    %213 = vector.load %arg6[%c0_53, %c0_54] : memref<512x512xbf16, #tpu.memory_space<vmem>>, vector<512x512xbf16>
    %cst_55 = arith.constant dense<0.000000e+00> : vector<8x512xf32>
    %214 = tpu.matmul %212, %213, %cst_55 {dimension_numbers = #tpu.dot_dimension_numbers<[1], [0], [0], [1], [0, 0, 1, 1], [], []>} : vector<8x512xbf16>, vector<512x512xbf16>, vector<8x512xf32> -> vector<8x512xf32>
    %c0_56 = arith.constant 0 : index
    %c0_57 = arith.constant 0 : index
    %215 = vector.load %arg7[%c0_56, %c0_57] : memref<1x512xf32, #tpu.memory_space<vmem>>, vector<1x512xf32>
    %216 = vector.broadcast %215 : vector<1x512xf32> to vector<8x512xf32>
    %217 = arith.addf %214, %216 : vector<8x512xf32>
    %cst_58 = arith.constant 0.000000e+00 : f32
    %218 = vector.broadcast %cst_58 : f32 to vector<8x512xf32>
    %219 = arith.maximumf %217, %218 : vector<8x512xf32>
    %220 = arith.truncf %219 : vector<8x512xf32> to vector<8x512xbf16>
    %c0_59 = arith.constant 0 : index
    %c0_60 = arith.constant 0 : index
    %221 = vector.load %arg8[%c0_59, %c0_60] : memref<512x512xbf16, #tpu.memory_space<vmem>>, vector<512x512xbf16>
    %cst_61 = arith.constant dense<0.000000e+00> : vector<8x512xf32>
    %222 = tpu.matmul %220, %221, %cst_61 {dimension_numbers = #tpu.dot_dimension_numbers<[1], [0], [0], [1], [0, 0, 1, 1], [], []>} : vector<8x512xbf16>, vector<512x512xbf16>, vector<8x512xf32> -> vector<8x512xf32>
    %c0_62 = arith.constant 0 : index
    %c0_63 = arith.constant 0 : index
    %223 = vector.load %arg9[%c0_62, %c0_63] : memref<1x512xf32, #tpu.memory_space<vmem>>, vector<1x512xf32>
    %224 = vector.broadcast %223 : vector<1x512xf32> to vector<8x512xf32>
    %225 = arith.addf %222, %224 : vector<8x512xf32>
    %226 = arith.addf %211, %225 : vector<8x512xf32>
    %cst_64 = arith.constant dense<0.000000e+00> : vector<8xf32>
    %227 = vector.multi_reduction <add>, %226, %cst_64 [1] : vector<8x512xf32> to vector<8xf32>
    %228 = vector.shape_cast %227 : vector<8xf32> to vector<8x1xf32>
    %cst_65 = arith.constant 5.120000e+02 : f32
    %229 = vector.broadcast %cst_65 : f32 to vector<8x1xf32>
    %230 = arith.divf %228, %229 : vector<8x1xf32>
    %231 = vector.broadcast %230 : vector<8x1xf32> to vector<8x512xf32>
    %232 = arith.subf %226, %231 : vector<8x512xf32>
    %233 = arith.mulf %232, %232 : vector<8x512xf32>
    %cst_66 = arith.constant dense<0.000000e+00> : vector<8xf32>
    %234 = vector.multi_reduction <add>, %233, %cst_66 [1] : vector<8x512xf32> to vector<8xf32>
    %235 = vector.shape_cast %234 : vector<8xf32> to vector<8x1xf32>
    %cst_67 = arith.constant 5.120000e+02 : f32
    %236 = vector.broadcast %cst_67 : f32 to vector<8x1xf32>
    %237 = arith.divf %235, %236 : vector<8x1xf32>
    %cst_68 = arith.constant 9.99999974E-6 : f32
    %238 = vector.broadcast %cst_68 : f32 to vector<8x1xf32>
    %239 = arith.addf %237, %238 : vector<8x1xf32>
    %240 = math.rsqrt %239 : vector<8x1xf32>
    %241 = vector.broadcast %240 : vector<8x1xf32> to vector<8x512xf32>
    %242 = arith.mulf %232, %241 : vector<8x512xf32>
    %243 = vector.broadcast %189 : vector<1x512xf32> to vector<8x512xf32>
    %244 = arith.mulf %242, %243 : vector<8x512xf32>
    %245 = vector.broadcast %190 : vector<1x512xf32> to vector<8x512xf32>
    %246 = arith.addf %244, %245 : vector<8x512xf32>
    %c4 = arith.constant 4 : index
    %c0_69 = arith.constant 0 : index
    %247 = vector.load %arg10[%c4, %c0_69] : memref<6x512xf32, #tpu.memory_space<vmem>>, vector<1x512xf32>
    %c5 = arith.constant 5 : index
    %c0_70 = arith.constant 0 : index
    %248 = vector.load %arg10[%c5, %c0_70] : memref<6x512xf32, #tpu.memory_space<vmem>>, vector<1x512xf32>
    %cst_71 = arith.constant dense<0.000000e+00> : vector<8xf32>
    %249 = vector.multi_reduction <add>, %246, %cst_71 [1] : vector<8x512xf32> to vector<8xf32>
    %250 = vector.shape_cast %249 : vector<8xf32> to vector<8x1xf32>
    %cst_72 = arith.constant 5.120000e+02 : f32
    %251 = vector.broadcast %cst_72 : f32 to vector<8x1xf32>
    %252 = arith.divf %250, %251 : vector<8x1xf32>
    %253 = vector.broadcast %252 : vector<8x1xf32> to vector<8x512xf32>
    %254 = arith.subf %246, %253 : vector<8x512xf32>
    %255 = arith.mulf %254, %254 : vector<8x512xf32>
    %cst_73 = arith.constant dense<0.000000e+00> : vector<8xf32>
    %256 = vector.multi_reduction <add>, %255, %cst_73 [1] : vector<8x512xf32> to vector<8xf32>
    %257 = vector.shape_cast %256 : vector<8xf32> to vector<8x1xf32>
    %cst_74 = arith.constant 5.120000e+02 : f32
    %258 = vector.broadcast %cst_74 : f32 to vector<8x1xf32>
    %259 = arith.divf %257, %258 : vector<8x1xf32>
    %cst_75 = arith.constant 9.99999974E-6 : f32
    %260 = vector.broadcast %cst_75 : f32 to vector<8x1xf32>
    %261 = arith.addf %259, %260 : vector<8x1xf32>
    %262 = math.rsqrt %261 : vector<8x1xf32>
    %263 = vector.broadcast %262 : vector<8x1xf32> to vector<8x512xf32>
    %264 = arith.mulf %254, %263 : vector<8x512xf32>
    %265 = vector.broadcast %247 : vector<1x512xf32> to vector<8x512xf32>
    %266 = arith.mulf %264, %265 : vector<8x512xf32>
    %267 = vector.broadcast %248 : vector<1x512xf32> to vector<8x512xf32>
    %268 = arith.addf %266, %267 : vector<8x512xf32>
    %269 = vector.shape_cast %268 : vector<8x512xf32> to vector<1x8x512xf32>
    %c0_76 = arith.constant 0 : index
    %c0_77 = arith.constant 0 : index
    %c0_78 = arith.constant 0 : index
    %270 = vector.load %arg11[%c0_76, %c0_77, %c0_78] : memref<1x8x512xf32, #tpu.memory_space<vmem>>, vector<1x8x512xf32>
    tpu.vector_store %arg11[%c0_76, %c0_77, %c0_78], %269 {strides = array<i32>} : memref<1x8x512xf32, #tpu.memory_space<vmem>>, vector<1x8x512xf32>,
    return
  }
  func.func @transform_0(%arg0: i32) -> (i32, i32, i32) {
    %c0_i32 = arith.constant 0 : i32
    %c0_i32_0 = arith.constant 0 : i32
    %c0_i32_1 = arith.constant 0 : i32
    return %arg0, %c0_i32, %c0_i32_0 : i32, i32, i32
  }
  func.func @transform_1(%arg0: i32) -> (i32, i32) {
    %c0_i32 = arith.constant 0 : i32
    %c0_i32_0 = arith.constant 0 : i32
    %c0_i32_1 = arith.constant 0 : i32
    return %c0_i32, %c0_i32_0 : i32, i32
  }
  func.func @transform_2(%arg0: i32) -> (i32, i32) {
    %c0_i32 = arith.constant 0 : i32
    %c0_i32_0 = arith.constant 0 : i32
    %c0_i32_1 = arith.constant 0 : i32
    return %c0_i32, %c0_i32_0 : i32, i32
  }
  func.func @transform_3(%arg0: i32) -> (i32, i32) {
    %c0_i32 = arith.constant 0 : i32
    %c0_i32_0 = arith.constant 0 : i32
    %c0_i32_1 = arith.constant 0 : i32
    return %c0_i32, %c0_i32_0 : i32, i32
  }
  func.func @transform_4(%arg0: i32) -> (i32, i32) {
    %c0_i32 = arith.constant 0 : i32
    %c0_i32_0 = arith.constant 0 : i32
    %c0_i32_1 = arith.constant 0 : i32
    return %c0_i32, %c0_i32_0 : i32, i32
  }
  func.func @transform_5(%arg0: i32) -> (i32, i32) {
    %c0_i32 = arith.constant 0 : i32
    %c0_i32_0 = arith.constant 0 : i32
    %c0_i32_1 = arith.constant 0 : i32
    return %c0_i32, %c0_i32_0 : i32, i32
  }
  func.func @transform_6(%arg0: i32) -> (i32, i32) {
    %c0_i32 = arith.constant 0 : i32
    %c0_i32_0 = arith.constant 0 : i32
    %c0_i32_1 = arith.constant 0 : i32
    return %c0_i32, %c0_i32_0 : i32, i32
  }
  func.func @transform_7(%arg0: i32) -> (i32, i32) {
    %c0_i32 = arith.constant 0 : i32
    %c0_i32_0 = arith.constant 0 : i32
    %c0_i32_1 = arith.constant 0 : i32
    return %c0_i32, %c0_i32_0 : i32, i32
  }
  func.func @transform_8(%arg0: i32) -> (i32, i32) {
    %c0_i32 = arith.constant 0 : i32
    %c0_i32_0 = arith.constant 0 : i32
    %c0_i32_1 = arith.constant 0 : i32
    return %c0_i32, %c0_i32_0 : i32, i32
  }
  func.func @transform_9(%arg0: i32) -> (i32, i32) {
    %c0_i32 = arith.constant 0 : i32
    %c0_i32_0 = arith.constant 0 : i32
    %c0_i32_1 = arith.constant 0 : i32
    return %c0_i32, %c0_i32_0 : i32, i32
  }
  func.func @transform_10(%arg0: i32) -> (i32, i32, i32) {
    %c0_i32 = arith.constant 0 : i32
    %c0_i32_0 = arith.constant 0 : i32
    %c0_i32_1 = arith.constant 0 : i32
    return %arg0, %c0_i32, %c0_i32_0 : i32, i32, i32
  }
}

</mosaic_0001>

<llo_original>
// kernel: global_self_attn_forward.1
$region0: #{global_self_attn_forward.1}
  #allocation0 [shape = 'u32[]', space=smem, size = 0x4, offset = 0x4, fixed_abs, tag = 'smem constant byte address 0x4 - core index']
  #allocation1 [shape = 'u32[144,128]{1,0:T(1,128)}', space=vmem, size = 0x12000, scoped, tag = 'internal scratch']
  %s0 = inlined_call_operand.hbm [shape: f32[2,8,512], index: 0, kind: input, shape index: {}]
  %s1 = inlined_call_operand.hbm [shape: bf16[512,3072], index: 1, kind: input, shape index: {}]
  %s2 = inlined_call_operand.hbm [shape: f32[1,3072], index: 2, kind: input, shape index: {}]
  %s3 = inlined_call_operand.hbm [shape: bf16[1024,512], index: 3, kind: input, shape index: {}]
  %s4 = inlined_call_operand.hbm [shape: f32[1,512], index: 4, kind: input, shape index: {}]
  %s5 = inlined_call_operand.hbm [shape: bf16[512,512], index: 5, kind: input, shape index: {}]
  %s6 = inlined_call_operand.hbm [shape: f32[1,512], index: 6, kind: input, shape index: {}]
  %s7 = inlined_call_operand.hbm [shape: bf16[512,512], index: 7, kind: input, shape index: {}]
  %s8 = inlined_call_operand.hbm [shape: f32[1,512], index: 8, kind: input, shape index: {}]
  %s9 = inlined_call_operand.hbm [shape: f32[6,512], index: 9, kind: input, shape index: {}]
  %s10 = inlined_call_operand.hbm [shape: f32[2,8,512], index: 10, kind: output, shape index: {}]
  %s11 = sld [smem:[#allocation0]]
  $region113: #{global_self_attn_forward.1} parent=0
    _
  %s13 = ssub.s32 1, %s11
  %s14 = scalar_select 0, %s13, %s11
  $region1: #{global_self_attn_forward.1} parent=0
    #allocation2 [shape = 'u8[32768]{0}', space=vmem, size = 0x8000, scoped, tag = 'input window, operand 0']
    #allocation3 [shape = 's32[2]{0}', space=sflag, size = 0x8, scoped, tag = 'scoped memory for global_self_attn_forward.1']
    #allocation4 [shape = 's32[2]{0}', space=sflag, size = 0x8, scoped, tag = 'scoped memory for global_self_attn_forward.1']
    #allocation5 [shape = 'u8[3145728]{0}', space=vmem, size = 0x300000, scoped, tag = 'input window, operand 1, single buffered']
    #allocation6 [shape = 's32[1]{0}', space=sflag, size = 0x4, scoped, tag = 'scoped memory for global_self_attn_forward.1']
    #allocation7 [shape = 'u8[12288]{0}', space=vmem, size = 0x3000, scoped, tag = 'input window, operand 2, single buffered']
    #allocation8 [shape = 'u8[1048576]{0}', space=vmem, size = 0x100000, scoped, tag = 'input window, operand 3, single buffered']
    #allocation9 [shape = 's32[1]{0}', space=sflag, size = 0x4, scoped, tag = 'scoped memory for global_self_attn_forward.1']
    #allocation10 [shape = 'u8[2048]{0}', space=vmem, size = 0x800, scoped, tag = 'input window, operand 4, single buffered']
    #allocation11 [shape = 'u8[524288]{0}', space=vmem, size = 0x80000, scoped, tag = 'input window, operand 5, single buffered']
    #allocation12 [shape = 's32[1]{0}', space=sflag, size = 0x4, scoped, tag = 'scoped memory for global_self_attn_forward.1']
    #allocation13 [shape = 'u8[2048]{0}', space=vmem, size = 0x800, scoped, tag = 'input window, operand 6, single buffered']
    #allocation14 [shape = 'u8[524288]{0}', space=vmem, size = 0x80000, scoped, tag = 'input window, operand 7, single buffered']
    #allocation15 [shape = 's32[1]{0}', space=sflag, size = 0x4, scoped, tag = 'scoped memory for global_self_attn_forward.1']
    #allocation16 [shape = 'u8[2048]{0}', space=vmem, size = 0x800, scoped, tag = 'input window, operand 8, single buffered']
    #allocation17 [shape = 'u8[16384]{0}', space=vmem, size = 0x4000, scoped, tag = 'input window, operand 9, single buffered']
    #allocation18 [shape = 's32[1]{0}', space=sflag, size = 0x4, scoped, tag = 'scoped memory for global_self_attn_forward.1']
    #allocation19 [shape = 'u8[32768]{0}', space=vmem, size = 0x8000, scoped, tag = 'output window, operand 0']
    %15 = vsyncpa [#allocation3], 0
    %s16 = scalar_lea.sflag [#allocation3], 1
    %17 = vsyncpa %s16, 0
    %18 = vsyncpa [#allocation6], 0
    %19 = vsyncpa [#allocation9], 0
    %20 = vsyncpa [#allocation12], 0
    %21 = vsyncpa [#allocation15], 0
    %22 = vsyncpa [#allocation18], 0
    %23 = vsyncpa [#allocation4], 0
    %s24 = scalar_lea.sflag [#allocation4], 1
    %25 = vsyncpa %s24, 0
    loop: start=0, step=1, limit=4
    $region2: #{global_self_attn_forward.1} parent=1 // loop_pre_header
      _
    $region3: #{global_self_attn_forward.1} parent=1 // loop_header
      %s27 = sphi 0, %s31
      %p28 = scmp.ge.s32.totalorder %s27, 4
      %s37 = sphi 0, %s39
      %s40 = sphi 0, %s37
      %s41 = sphi 0, %s40
      %s57 = sphi 0, %s41
      %s61 = sphi 0, %s61
      %s63 = sphi 0, %s61
      %s64 = sphi 0, %s63
      %s78 = sphi 0, %s64
      %s82 = sphi 0, %s82
      %s84 = sphi 0, %s82
      %s85 = sphi 0, %s84
      %s99 = sphi 0, %s85
      %s103 = sphi 0, %s103
      %s105 = sphi 0, %s103
      %s106 = sphi 0, %s105
      %s120 = sphi 0, %s106
      %s124 = sphi 0, %s124
      %s126 = sphi 0, %s124
      %s127 = sphi 0, %s126
      %s141 = sphi 0, %s127
      %s145 = sphi 0, %s145
      %s147 = sphi 0, %s145
      %s148 = sphi 0, %s147
      %s162 = sphi 0, %s148
      %s166 = sphi 0, %s166
      %s168 = sphi 0, %s166
      %s169 = sphi 0, %s168
      %s183 = sphi 0, %s169
      %s187 = sphi 0, %s187
      %s189 = sphi 0, %s187
      %s190 = sphi 0, %s189
      %s204 = sphi 0, %s190
      %s208 = sphi 0, %s208
      %s210 = sphi 0, %s208
      %s211 = sphi 0, %s210
      %s225 = sphi 0, %s211
      %s229 = sphi 0, %s229
      %s231 = sphi 0, %s229
      %s232 = sphi 0, %s231
      %s246 = sphi 0, %s232
      %s252 = sphi 0, %s254
      %s255 = sphi 0, %s252
      %s256 = sphi 0, %s255
      %s272 = sphi 0, %s256
    $region4: #{global_self_attn_forward.1} parent=1 // loop_header_branch
      %30 = sbr.rel (%p28) target = $region8
    $region5: #{global_self_attn_forward.1} parent=1 // loop_body
      %s32 = ssub.s32 %s27, 1
      %s33 = ssub.s32 %s27, 2
      %s34 = sadd.s32 %s27, 1
      %s35 = ssub.s32 %s27, %s34
      %p36 = scmp.eq.s32.totalorder %s35, 0
      %s38 = sadd.s32 %s37, 1
      %s39 = scalar_select %p36, %s37, %s38
      %p42 = pneg %p36
      %p43 = scmp.eq.s32.totalorder %s27, 1
      %p44 = por %p42, %p43
      %p45 = scmp.ne.s32.totalorder %s37, %s40
      %p46 = scmp.eq.s32.totalorder %s27, 0
      %p47 = por %p45, %p46
      %p48 = scmp.ne.s32.totalorder %s37, %s40
      %p49 = scmp.eq.s32.totalorder %s32, 1
      %p50 = por %p48, %p49
      %p51 = scmp.ne.s32.totalorder %s40, %s41
      %p52 = scmp.eq.s32.totalorder %s32, 0
      %p53 = por %p51, %p52
      %p54 = scmp.ne.s32.totalorder %s40, %s41
      %p55 = scmp.eq.s32.totalorder %s33, 1
      %p56 = por %p54, %p55
      %p58 = scmp.ne.s32.totalorder %s41, %s57
      %p59 = scmp.eq.s32.totalorder %s33, 0
      %p60 = por %p58, %p59
      %s62 = sadd.s32 %s61, 1
      %p65 = scmp.eq.s32.totalorder %s27, 1
      %p66 = scmp.ne.s32.totalorder %s61, %s63
      %p67 = scmp.eq.s32.totalorder %s27, 0
      %p68 = por %p66, %p67
      %p69 = scmp.ne.s32.totalorder %s61, %s63
      %p70 = scmp.eq.s32.totalorder %s32, 1
      %p71 = por %p69, %p70
      %p72 = scmp.ne.s32.totalorder %s63, %s64
      %p73 = scmp.eq.s32.totalorder %s32, 0
      %p74 = por %p72, %p73
      %p75 = scmp.ne.s32.totalorder %s63, %s64
      %p76 = scmp.eq.s32.totalorder %s33, 1
      %p77 = por %p75, %p76
      %p79 = scmp.ne.s32.totalorder %s64, %s78
      %p80 = scmp.eq.s32.totalorder %s33, 0
      %p81 = por %p79, %p80
      %s83 = sadd.s32 %s82, 1
      %p86 = scmp.eq.s32.totalorder %s27, 1
      %p87 = scmp.ne.s32.totalorder %s82, %s84
      %p88 = scmp.eq.s32.totalorder %s27, 0
      %p89 = por %p87, %p88
      %p90 = scmp.ne.s32.totalorder %s82, %s84
      %p91 = scmp.eq.s32.totalorder %s32, 1
      %p92 = por %p90, %p91
      %p93 = scmp.ne.s32.totalorder %s84, %s85
      %p94 = scmp.eq.s32.totalorder %s32, 0
      %p95 = por %p93, %p94
      %p96 = scmp.ne.s32.totalorder %s84, %s85
      %p97 = scmp.eq.s32.totalorder %s33, 1
      %p98 = por %p96, %p97
      %p100 = scmp.ne.s32.totalorder %s85, %s99
      %p101 = scmp.eq.s32.totalorder %s33, 0
      %p102 = por %p100, %p101
      %s104 = sadd.s32 %s103, 1
      %p107 = scmp.eq.s32.totalorder %s27, 1
      %p108 = scmp.ne.s32.totalorder %s103, %s105
      %p109 = scmp.eq.s32.totalorder %s27, 0
      %p110 = por %p108, %p109
      %p111 = scmp.ne.s32.totalorder %s103, %s105
      %p112 = scmp.eq.s32.totalorder %s32, 1
      %p113 = por %p111, %p112
      %p114 = scmp.ne.s32.totalorder %s105, %s106
      %p115 = scmp.eq.s32.totalorder %s32, 0
      %p116 = por %p114, %p115
      %p117 = scmp.ne.s32.totalorder %s105, %s106
      %p118 = scmp.eq.s32.totalorder %s33, 1
      %p119 = por %p117, %p118
      %p121 = scmp.ne.s32.totalorder %s106, %s120
      %p122 = scmp.eq.s32.totalorder %s33, 0
      %p123 = por %p121, %p122
      %s125 = sadd.s32 %s124, 1
      %p128 = scmp.eq.s32.totalorder %s27, 1
      %p129 = scmp.ne.s32.totalorder %s124, %s126
      %p130 = scmp.eq.s32.totalorder %s27, 0
      %p131 = por %p129, %p130
      %p132 = scmp.ne.s32.totalorder %s124, %s126
      %p133 = scmp.eq.s32.totalorder %s32, 1
      %p134 = por %p132, %p133
      %p135 = scmp.ne.s32.totalorder %s126, %s127
      %p136 = scmp.eq.s32.totalorder %s32, 0
      %p137 = por %p135, %p136
      %p138 = scmp.ne.s32.totalorder %s126, %s127
      %p139 = scmp.eq.s32.totalorder %s33, 1
      %p140 = por %p138, %p139
      %p142 = scmp.ne.s32.totalorder %s127, %s141
      %p143 = scmp.eq.s32.totalorder %s33, 0
      %p144 = por %p142, %p143
      %s146 = sadd.s32 %s145, 1
      %p149 = scmp.eq.s32.totalorder %s27, 1
      %p150 = scmp.ne.s32.totalorder %s145, %s147
      %p151 = scmp.eq.s32.totalorder %s27, 0
      %p152 = por %p150, %p151
      %p153 = scmp.ne.s32.totalorder %s145, %s147
      %p154 = scmp.eq.s32.totalorder %s32, 1
      %p155 = por %p153, %p154
      %p156 = scmp.ne.s32.totalorder %s147, %s148
      %p157 = scmp.eq.s32.totalorder %s32, 0
      %p158 = por %p156, %p157
      %p159 = scmp.ne.s32.totalorder %s147, %s148
      %p160 = scmp.eq.s32.totalorder %s33, 1
      %p161 = por %p159, %p160
      %p163 = scmp.ne.s32.totalorder %s148, %s162
      %p164 = scmp.eq.s32.totalorder %s33, 0
      %p165 = por %p163, %p164
      %s167 = sadd.s32 %s166, 1
      %p170 = scmp.eq.s32.totalorder %s27, 1
      %p171 = scmp.ne.s32.totalorder %s166, %s168
      %p172 = scmp.eq.s32.totalorder %s27, 0
      %p173 = por %p171, %p172
      %p174 = scmp.ne.s32.totalorder %s166, %s168
      %p175 = scmp.eq.s32.totalorder %s32, 1
      %p176 = por %p174, %p175
      %p177 = scmp.ne.s32.totalorder %s168, %s169
      %p178 = scmp.eq.s32.totalorder %s32, 0
      %p179 = por %p177, %p178
      %p180 = scmp.ne.s32.totalorder %s168, %s169
      %p181 = scmp.eq.s32.totalorder %s33, 1
      %p182 = por %p180, %p181
      %p184 = scmp.ne.s32.totalorder %s169, %s183
      %p185 = scmp.eq.s32.totalorder %s33, 0
      %p186 = por %p184, %p185
      %s188 = sadd.s32 %s187, 1
      %p191 = scmp.eq.s32.totalorder %s27, 1
      %p192 = scmp.ne.s32.totalorder %s187, %s189
      %p193 = scmp.eq.s32.totalorder %s27, 0
      %p194 = por %p192, %p193
      %p195 = scmp.ne.s32.totalorder %s187, %s189
      %p196 = scmp.eq.s32.totalorder %s32, 1
      %p197 = por %p195, %p196
      %p198 = scmp.ne.s32.totalorder %s189, %s190
      %p199 = scmp.eq.s32.totalorder %s32, 0
      %p200 = por %p198, %p199
      %p201 = scmp.ne.s32.totalorder %s189, %s190
      %p202 = scmp.eq.s32.totalorder %s33, 1
      %p203 = por %p201, %p202
      %p205 = scmp.ne.s32.totalorder %s190, %s204
      %p206 = scmp.eq.s32.totalorder %s33, 0
      %p207 = por %p205, %p206
      %s209 = sadd.s32 %s208, 1
      %p212 = scmp.eq.s32.totalorder %s27, 1
      %p213 = scmp.ne.s32.totalorder %s208, %s210
      %p214 = scmp.eq.s32.totalorder %s27, 0
      %p215 = por %p213, %p214
      %p216 = scmp.ne.s32.totalorder %s208, %s210
      %p217 = scmp.eq.s32.totalorder %s32, 1
      %p218 = por %p216, %p217
      %p219 = scmp.ne.s32.totalorder %s210, %s211
      %p220 = scmp.eq.s32.totalorder %s32, 0
      %p221 = por %p219, %p220
      %p222 = scmp.ne.s32.totalorder %s210, %s211
      %p223 = scmp.eq.s32.totalorder %s33, 1
      %p224 = por %p222, %p223
      %p226 = scmp.ne.s32.totalorder %s211, %s225
      %p227 = scmp.eq.s32.totalorder %s33, 0
      %p228 = por %p226, %p227
      %s230 = sadd.s32 %s229, 1
      %p233 = scmp.eq.s32.totalorder %s27, 1
      %p234 = scmp.ne.s32.totalorder %s229, %s231
      %p235 = scmp.eq.s32.totalorder %s27, 0
      %p236 = por %p234, %p235
      %p237 = scmp.ne.s32.totalorder %s229, %s231
      %p238 = scmp.eq.s32.totalorder %s32, 1
      %p239 = por %p237, %p238
      %p240 = scmp.ne.s32.totalorder %s231, %s232
      %p241 = scmp.eq.s32.totalorder %s32, 0
      %p242 = por %p240, %p241
      %p243 = scmp.ne.s32.totalorder %s231, %s232
      %p244 = scmp.eq.s32.totalorder %s33, 1
      %p245 = por %p243, %p244
      %p247 = scmp.ne.s32.totalorder %s232, %s246
      %p248 = scmp.eq.s32.totalorder %s33, 0
      %p249 = por %p247, %p248
      %s250 = ssub.s32 %s27, %s34
      %p251 = scmp.eq.s32.totalorder %s250, 0
      %s253 = sadd.s32 %s252, 1
      %s254 = scalar_select %p251, %s252, %s253
      %p257 = pneg %p251
      %p258 = scmp.eq.s32.totalorder %s27, 1
      %p259 = por %p257, %p258
      %p260 = scmp.ne.s32.totalorder %s252, %s255
      %p261 = scmp.eq.s32.totalorder %s27, 0
      %p262 = por %p260, %p261
      %p263 = scmp.ne.s32.totalorder %s252, %s255
      %p264 = scmp.eq.s32.totalorder %s32, 1
      %p265 = por %p263, %p264
      %p266 = scmp.ne.s32.totalorder %s255, %s256
      %p267 = scmp.eq.s32.totalorder %s32, 0
      %p268 = por %p266, %p267
      %p269 = scmp.ne.s32.totalorder %s255, %s256
      %p270 = scmp.eq.s32.totalorder %s33, 1
      %p271 = por %p269, %p270
      %p273 = scmp.ne.s32.totalorder %s256, %s272
      %p274 = scmp.eq.s32.totalorder %s33, 0
      %p275 = por %p273, %p274
      %p276 = scmp.le.s32.totalorder 1, %s27
      %p277 = scmp.lt.s32.totalorder %s27, 3
      %p278 = pnand %p276, %p277
      %p279 = pneg %p278
      // Predicated region
      $region9: #{global_self_attn_forward.1} parent=5 // pred_check
        _
      $region10: #{global_self_attn_forward.1} parent=5 // pred_check_branch
        %281 = sbr.rel (%p278) target = $region12
      $region11: #{global_self_attn_forward.1} parent=5 // pred_region
        %s282 = ssub.s32 %s27, 1
        // Predicated region
        $region13: #{global_self_attn_forward.1} parent=11 // pred_check
          %p283 = pneg %p74
        $region14: #{global_self_attn_forward.1} parent=11 // pred_check_branch
          %285 = sbr.rel (%p283) target = $region16
        $region15: #{global_self_attn_forward.1} parent=11 // pred_region
          %s287 = ssub.s32 98304, 98304
          %288 = vsyncadd [#allocation6], %s287
          %s289 = sshll.u32 [#allocation5], 4
          %s290 = int_to_ptr.vmem [resolvable:$true] %s289
          %295 = dma.hbm_to_vmem [thread:$0]  %s1, 98304, %s290, [#allocation6], 1536, 1536, 96
        $region16: #{global_self_attn_forward.1} parent=11 // pred_fallthru
          _
        // Predicated region
        $region17: #{global_self_attn_forward.1} parent=11 // pred_check
          %p296 = pneg %p95
        $region18: #{global_self_attn_forward.1} parent=11 // pred_check_branch
          %298 = sbr.rel (%p296) target = $region20
        $region19: #{global_self_attn_forward.1} parent=11 // pred_region
          %s300 = ssub.s32 384, 384
          %301 = vsyncadd [#allocation6], %s300
          %s303 = sshll.u32 [#allocation7], 4
          %s304 = int_to_ptr.vmem [resolvable:$true] %s303
          %306 = dma.hbm_to_vmem [thread:$0]  %s2, 384, %s304, [#allocation6]
        $region20: #{global_self_attn_forward.1} parent=11 // pred_fallthru
          _
        // Predicated region
        $region21: #{global_self_attn_forward.1} parent=11 // pred_check
          %p307 = pneg %p116
        $region22: #{global_self_attn_forward.1} parent=11 // pred_check_branch
          %309 = sbr.rel (%p307) target = $region24
        $region23: #{global_self_attn_forward.1} parent=11 // pred_region
          %s311 = ssub.s32 32768, 32768
          %312 = vsyncadd [#allocation9], %s311
          %s313 = sshll.u32 [#allocation8], 4
          %s314 = int_to_ptr.vmem [resolvable:$true] %s313
          %319 = dma.hbm_to_vmem [thread:$0]  %s3, 32768, %s314, [#allocation9], 256, 256, 16
        $region24: #{global_self_attn_forward.1} parent=11 // pred_fallthru
          _
        // Predicated region
        $region25: #{global_self_attn_forward.1} parent=11 // pred_check
          %p320 = pneg %p137
        $region26: #{global_self_attn_forward.1} parent=11 // pred_check_branch
          %322 = sbr.rel (%p320) target = $region28
        $region27: #{global_self_attn_forward.1} parent=11 // pred_region
          %s324 = ssub.s32 64, 64
          %325 = vsyncadd [#allocation9], %s324
          %s327 = sshll.u32 [#allocation10], 4
          %s328 = int_to_ptr.vmem [resolvable:$true] %s327
          %330 = dma.hbm_to_vmem [thread:$0]  %s4, 64, %s328, [#allocation9]
        $region28: #{global_self_attn_forward.1} parent=11 // pred_fallthru
          _
        // Predicated region
        $region29: #{global_self_attn_forward.1} parent=11 // pred_check
          %p331 = pneg %p158
        $region30: #{global_self_attn_forward.1} parent=11 // pred_check_branch
          %333 = sbr.rel (%p331) target = $region32
        $region31: #{global_self_attn_forward.1} parent=11 // pred_region
          %s335 = ssub.s32 16384, 16384
          %336 = vsyncadd [#allocation12], %s335
          %s337 = sshll.u32 [#allocation11], 4
          %s338 = int_to_ptr.vmem [resolvable:$true] %s337
          %343 = dma.hbm_to_vmem [thread:$0]  %s5, 16384, %s338, [#allocation12], 256, 256, 16
        $region32: #{global_self_attn_forward.1} parent=11 // pred_fallthru
          _
        // Predicated region
        $region33: #{global_self_attn_forward.1} parent=11 // pred_check
          %p344 = pneg %p179
        $region34: #{global_self_attn_forward.1} parent=11 // pred_check_branch
          %346 = sbr.rel (%p344) target = $region36
        $region35: #{global_self_attn_forward.1} parent=11 // pred_region
          %s348 = ssub.s32 64, 64
          %349 = vsyncadd [#allocation12], %s348
          %s351 = sshll.u32 [#allocation13], 4
          %s352 = int_to_ptr.vmem [resolvable:$true] %s351
          %354 = dma.hbm_to_vmem [thread:$0]  %s6, 64, %s352, [#allocation12]
        $region36: #{global_self_attn_forward.1} parent=11 // pred_fallthru
          _
        // Predicated region
        $region37: #{global_self_attn_forward.1} parent=11 // pred_check
          %p355 = pneg %p200
        $region38: #{global_self_attn_forward.1} parent=11 // pred_check_branch
          %357 = sbr.rel (%p355) target = $region40
        $region39: #{global_self_attn_forward.1} parent=11 // pred_region
          %s359 = ssub.s32 16384, 16384
          %360 = vsyncadd [#allocation15], %s359
          %s361 = sshll.u32 [#allocation14], 4
          %s362 = int_to_ptr.vmem [resolvable:$true] %s361
          %367 = dma.hbm_to_vmem [thread:$0]  %s7, 16384, %s362, [#allocation15], 256, 256, 16
        $region40: #{global_self_attn_forward.1} parent=11 // pred_fallthru
          _
        // Predicated region
        $region41: #{global_self_attn_forward.1} parent=11 // pred_check
          %p368 = pneg %p221
        $region42: #{global_self_attn_forward.1} parent=11 // pred_check_branch
          %370 = sbr.rel (%p368) target = $region44
        $region43: #{global_self_attn_forward.1} parent=11 // pred_region
          %s372 = ssub.s32 64, 64
          %373 = vsyncadd [#allocation15], %s372
          %s375 = sshll.u32 [#allocation16], 4
          %s376 = int_to_ptr.vmem [resolvable:$true] %s375
          %378 = dma.hbm_to_vmem [thread:$0]  %s8, 64, %s376, [#allocation15]
        $region44: #{global_self_attn_forward.1} parent=11 // pred_fallthru
          _
        // Predicated region
        $region45: #{global_self_attn_forward.1} parent=11 // pred_check
          %p379 = pneg %p242
        $region46: #{global_self_attn_forward.1} parent=11 // pred_check_branch
          %381 = sbr.rel (%p379) target = $region48
        $region47: #{global_self_attn_forward.1} parent=11 // pred_region
          %s383 = ssub.s32 512, 512
          %384 = vsyncadd [#allocation18], %s383
          %s386 = sshll.u32 [#allocation17], 4
          %s387 = int_to_ptr.vmem [resolvable:$true] %s386
          %389 = dma.hbm_to_vmem [thread:$0]  %s9, 512, %s387, [#allocation18]
        $region48: #{global_self_attn_forward.1} parent=11 // pred_fallthru
          _
      $region12: #{global_self_attn_forward.1} parent=5 // pred_fallthru
        _
      %p390 = scmp.lt.s32.totalorder %s27, 2
      // Predicated region
      $region49: #{global_self_attn_forward.1} parent=5 // pred_check
        %p391 = pneg %p390
      $region50: #{global_self_attn_forward.1} parent=5 // pred_check_branch
        %393 = sbr.rel (%p391) target = $region52
      $region51: #{global_self_attn_forward.1} parent=5 // pred_region
        // Predicated region
        $region53: #{global_self_attn_forward.1} parent=51 // pred_check
          %p394 = pneg %p47
        $region54: #{global_self_attn_forward.1} parent=51 // pred_check_branch
          %396 = sbr.rel (%p394) target = $region56
        $region55: #{global_self_attn_forward.1} parent=51 // pred_region
          %s397 = sand.u32 %s37, 1
          %s398 = scalar_lea.sflag [#allocation3], %s397
          %s399 = sand.u32 %s37, 1
          %s400 = smul.addr %s399, 32
          %s401 = scalar_lea.vmem [#allocation2], %s400
          %s403 = ssub.s32 512, 512
          %404 = vsyncadd %s398, %s403
          %s405 = smul.addr %s27, 4
          %s406 = smul.addr %s405, 128
          %s407 = scalar_lea.hbm %s0, %s406
          %s409 = sshll.u32 %s401, 4
          %s410 = int_to_ptr.vmem [resolvable:$true] %s409
          %412 = dma.hbm_to_vmem [thread:$0]  %s407, 512, %s410, %s398
        $region56: #{global_self_attn_forward.1} parent=51 // pred_fallthru
          _
      $region52: #{global_self_attn_forward.1} parent=5 // pred_fallthru
        _
      %p413 = scmp.le.s32.totalorder 1, %s27
      %p414 = scmp.lt.s32.totalorder %s27, 3
      %p415 = pnand %p413, %p414
      %p416 = pneg %p415
      // Predicated region
      $region57: #{global_self_attn_forward.1} parent=5 // pred_check
        _
      $region58: #{global_self_attn_forward.1} parent=5 // pred_check_branch
        %418 = sbr.rel (%p415) target = $region60
      $region59: #{global_self_attn_forward.1} parent=5 // pred_region
        %s419 = ssub.s32 %s27, 1
        %s420 = sand.u32 %s40, 1
        %s421 = scalar_lea.sflag [#allocation3], %s420
        %s422 = sand.u32 %s40, 1
        %s423 = smul.addr %s422, 32
        %s424 = scalar_lea.vmem [#allocation2], %s423
        // Predicated region
        $region61: #{global_self_attn_forward.1} parent=59 // pred_check
          %p425 = pneg %p53
        $region62: #{global_self_attn_forward.1} parent=59 // pred_check_branch
          %427 = sbr.rel (%p425) target = $region64
        $region63: #{global_self_attn_forward.1} parent=59 // pred_region
          %428 = dma.done %s421, 512
        $region64: #{global_self_attn_forward.1} parent=59 // pred_fallthru
          _
        // Predicated region
        $region65: #{global_self_attn_forward.1} parent=59 // pred_check
          %p429 = pneg %p74
        $region66: #{global_self_attn_forward.1} parent=59 // pred_check_branch
          %431 = sbr.rel (%p429) target = $region68
        $region67: #{global_self_attn_forward.1} parent=59 // pred_region
          %432 = dma.done [#allocation6], 98304
        $region68: #{global_self_attn_forward.1} parent=59 // pred_fallthru
          _
        // Predicated region
        $region69: #{global_self_attn_forward.1} parent=59 // pred_check
          %p433 = pneg %p95
        $region70: #{global_self_attn_forward.1} parent=59 // pred_check_branch
          %435 = sbr.rel (%p433) target = $region72
        $region71: #{global_self_attn_forward.1} parent=59 // pred_region
          %436 = dma.done [#allocation6], 384
        $region72: #{global_self_attn_forward.1} parent=59 // pred_fallthru
          _
        // Predicated region
        $region73: #{global_self_attn_forward.1} parent=59 // pred_check
          %p437 = pneg %p116
        $region74: #{global_self_attn_forward.1} parent=59 // pred_check_branch
          %439 = sbr.rel (%p437) target = $region76
        $region75: #{global_self_attn_forward.1} parent=59 // pred_region
          %440 = dma.done [#allocation9], 32768
        $region76: #{global_self_attn_forward.1} parent=59 // pred_fallthru
          _
        // Predicated region
        $region77: #{global_self_attn_forward.1} parent=59 // pred_check
          %p441 = pneg %p137
        $region78: #{global_self_attn_forward.1} parent=59 // pred_check_branch
          %443 = sbr.rel (%p441) target = $region80
        $region79: #{global_self_attn_forward.1} parent=59 // pred_region
          %444 = dma.done [#allocation9], 64
        $region80: #{global_self_attn_forward.1} parent=59 // pred_fallthru
          _
        // Predicated region
        $region81: #{global_self_attn_forward.1} parent=59 // pred_check
          %p445 = pneg %p158
        $region82: #{global_self_attn_forward.1} parent=59 // pred_check_branch
          %447 = sbr.rel (%p445) target = $region84
        $region83: #{global_self_attn_forward.1} parent=59 // pred_region
          %448 = dma.done [#allocation12], 16384
        $region84: #{global_self_attn_forward.1} parent=59 // pred_fallthru
          _
        // Predicated region
        $region85: #{global_self_attn_forward.1} parent=59 // pred_check
          %p449 = pneg %p179
        $region86: #{global_self_attn_forward.1} parent=59 // pred_check_branch
          %451 = sbr.rel (%p449) target = $region88
        $region87: #{global_self_attn_forward.1} parent=59 // pred_region
          %452 = dma.done [#allocation12], 64
        $region88: #{global_self_attn_forward.1} parent=59 // pred_fallthru
          _
        // Predicated region
        $region89: #{global_self_attn_forward.1} parent=59 // pred_check
          %p453 = pneg %p200
        $region90: #{global_self_attn_forward.1} parent=59 // pred_check_branch
          %455 = sbr.rel (%p453) target = $region92
        $region91: #{global_self_attn_forward.1} parent=59 // pred_region
          %456 = dma.done [#allocation15], 16384
        $region92: #{global_self_attn_forward.1} parent=59 // pred_fallthru
          _
        // Predicated region
        $region93: #{global_self_attn_forward.1} parent=59 // pred_check
          %p457 = pneg %p221
        $region94: #{global_self_attn_forward.1} parent=59 // pred_check_branch
          %459 = sbr.rel (%p457) target = $region96
        $region95: #{global_self_attn_forward.1} parent=59 // pred_region
          %460 = dma.done [#allocation15], 64
        $region96: #{global_self_attn_forward.1} parent=59 // pred_fallthru
          _
        // Predicated region
        $region97: #{global_self_attn_forward.1} parent=59 // pred_check
          %p461 = pneg %p242
        $region98: #{global_self_attn_forward.1} parent=59 // pred_check_branch
          %463 = sbr.rel (%p461) target = $region100
        $region99: #{global_self_attn_forward.1} parent=59 // pred_region
          %464 = dma.done [#allocation18], 512
        $region100: #{global_self_attn_forward.1} parent=59 // pred_fallthru
          _
        %s465 = sand.u32 %s40, 1
        %s466 = scalar_lea.sflag [#allocation3], %s465
        %s467 = sand.u32 %s40, 1
        %s468 = smul.addr %s467, 32
        %s469 = scalar_lea.vmem [#allocation2], %s468
        %p470 = pneg %p53
        %p471 = pneg %p50
        %p472 = pneg %p74
        %p473 = pneg %p71
        %p474 = pneg %p95
        %p475 = pneg %p92
        %p476 = pneg %p116
        %p477 = pneg %p113
        %p478 = pneg %p137
        %p479 = pneg %p134
        %p480 = pneg %p158
        %p481 = pneg %p155
        %p482 = pneg %p179
        %p483 = pneg %p176
        %p484 = pneg %p200
        %p485 = pneg %p197
        %p486 = pneg %p221
        %p487 = pneg %p218
        %p488 = pneg %p242
        %p489 = pneg %p239
        %p490 = pneg %p268
        %p491 = pneg %p265
        %s492 = sand.u32 %s255, 1
        %s493 = scalar_lea.sflag [#allocation4], %s492
        %s494 = sand.u32 %s255, 1
        %s495 = smul.addr %s494, 32
        %s496 = scalar_lea.vmem [#allocation19], %s495
        %v498 = vld [vmem:[%s424] sm:$0xff]
        %v499 = vld [vmem:[%s424 + $0x8] sm:$0xff]
        %v500 = vld [vmem:[%s424 + $0x10] sm:$0xff]
        %v501 = vld [vmem:[%s424 + $0x18] sm:$0xff]
        %v502 = vpack.c.bf16 %v498, %v498
        %v503 = vpack.c.bf16 %v499, %v499
        %v504 = vpack.c.bf16 %v500, %v500
        %v505 = vpack.c.bf16 %v501, %v501
        %v506 = vld [vmem:[#allocation5] sm:$0xff]
        %v507 = vld [vmem:[#allocation5 + $0x8] sm:$0xff]
        %v508 = vld [vmem:[#allocation5 + $0x10] sm:$0xff]
        %v509 = vld [vmem:[#allocation5 + $0x18] sm:$0xff]
        %v510 = vld [vmem:[#allocation5 + $0x20] sm:$0xff]
        %v511 = vld [vmem:[#allocation5 + $0x28] sm:$0xff]
        %v512 = vld [vmem:[#allocation5 + $0x30] sm:$0xff]
        %v513 = vld [vmem:[#allocation5 + $0x38] sm:$0xff]
        %v514 = vld [vmem:[#allocation5 + $0x40] sm:$0xff]
        %v515 = vld [vmem:[#allocation5 + $0x48] sm:$0xff]
        %v516 = vld [vmem:[#allocation5 + $0x50] sm:$0xff]
        %v517 = vld [vmem:[#allocation5 + $0x58] sm:$0xff]
        %v518 = vld [vmem:[#allocation5 + $0x60] sm:$0xff]
        %v519 = vld [vmem:[#allocation5 + $0x68] sm:$0xff]
        %v520 = vld [vmem:[#allocation5 + $0x70] sm:$0xff]
        %v521 = vld [vmem:[#allocation5 + $0x78] sm:$0xff]
        %v522 = vld [vmem:[#allocation5 + $0x80] sm:$0xff]
        %v523 = vld [vmem:[#allocation5 + $0x88] sm:$0xff]
        %v524 = vld [vmem:[#allocation5 + $0x90] sm:$0xff]
        %v525 = vld [vmem:[#allocation5 + $0x98] sm:$0xff]
        %v526 = vld [vmem:[#allocation5 + $0xa0] sm:$0xff]
        %v527 = vld [vmem:[#allocation5 + $0xa8] sm:$0xff]
        %v528 = vld [vmem:[#allocation5 + $0xb0] sm:$0xff]
        %v529 = vld [vmem:[#allocation5 + $0xb8] sm:$0xff]
        %v530 = vld [vmem:[#allocation5 + $0xc0] sm:$0xff]
        %v531 = vld [vmem:[#allocation5 + $0xc8] sm:$0xff]
        %v532 = vld [vmem:[#allocation5 + $0xd0] sm:$0xff]
        %v533 = vld [vmem:[#allocation5 + $0xd8] sm:$0xff]
        %v534 = vld [vmem:[#allocation5 + $0xe0] sm:$0xff]
        %v535 = vld [vmem:[#allocation5 + $0xe8] sm:$0xff]
        %v536 = vld [vmem:[#allocation5 + $0xf0] sm:$0xff]
        %v537 = vld [vmem:[#allocation5 + $0xf8] sm:$0xff]
        %v538 = vld [vmem:[#allocation5 + $0x100] sm:$0xff]
        %v539 = vld [vmem:[#allocation5 + $0x108] sm:$0xff]
        %v540 = vld [vmem:[#allocation5 + $0x110] sm:$0xff]
        %v541 = vld [vmem:[#allocation5 + $0x118] sm:$0xff]
        %v542 = vld [vmem:[#allocation5 + $0x120] sm:$0xff]
        %v543 = vld [vmem:[#allocation5 + $0x128] sm:$0xff]
        %v544 = vld [vmem:[#allocation5 + $0x130] sm:$0xff]
        %v545 = vld [vmem:[#allocation5 + $0x138] sm:$0xff]
        %v546 = vld [vmem:[#allocation5 + $0x140] sm:$0xff]
        %v547 = vld [vmem:[#allocation5 + $0x148] sm:$0xff]
        %v548 = vld [vmem:[#allocation5 + $0x150] sm:$0xff]
        %v549 = vld [vmem:[#allocation5 + $0x158] sm:$0xff]
        %v550 = vld [vmem:[#allocation5 + $0x160] sm:$0xff]
        %v551 = vld [vmem:[#allocation5 + $0x168] sm:$0xff]
        %v552 = vld [vmem:[#allocation5 + $0x170] sm:$0xff]
        %v553 = vld [vmem:[#allocation5 + $0x178] sm:$0xff]
        %v554 = vld [vmem:[#allocation5 + $0x180] sm:$0xff]
        %v555 = vld [vmem:[#allocation5 + $0x188] sm:$0xff]
        %v556 = vld [vmem:[#allocation5 + $0x190] sm:$0xff]
        %v557 = vld [vmem:[#allocation5 + $0x198] sm:$0xff]
        %v558 = vld [vmem:[#allocation5 + $0x1a0] sm:$0xff]
        %v559 = vld [vmem:[#allocation5 + $0x1a8] sm:$0xff]
        %v560 = vld [vmem:[#allocation5 + $0x1b0] sm:$0xff]
        %v561 = vld [vmem:[#allocation5 + $0x1b8] sm:$0xff]
        %v562 = vld [vmem:[#allocation5 + $0x1c0] sm:$0xff]
        %v563 = vld [vmem:[#allocation5 + $0x1c8] sm:$0xff]
        %v564 = vld [vmem:[#allocation5 + $0x1d0] sm:$0xff]
        %v565 = vld [vmem:[#allocation5 + $0x1d8] sm:$0xff]
        %v566 = vld [vmem:[#allocation5 + $0x1e0] sm:$0xff]
        %v567 = vld [vmem:[#allocation5 + $0x1e8] sm:$0xff]
        %v568 = vld [vmem:[#allocation5 + $0x1f0] sm:$0xff]
        %v569 = vld [vmem:[#allocation5 + $0x1f8] sm:$0xff]
        %v570 = vld [vmem:[#allocation5 + $0x200] sm:$0xff]
        %v571 = vld [vmem:[#allocation5 + $0x208] sm:$0xff]
        %v572 = vld [vmem:[#allocation5 + $0x210] sm:$0xff]
        %v573 = vld [vmem:[#allocation5 + $0x218] sm:$0xff]
        %v574 = vld [vmem:[#allocation5 + $0x220] sm:$0xff]
        %v575 = vld [vmem:[#allocation5 + $0x228] sm:$0xff]
        %v576 = vld [vmem:[#allocation5 + $0x230] sm:$0xff]
        %v577 = vld [vmem:[#allocation5 + $0x238] sm:$0xff]
        %v578 = vld [vmem:[#allocation5 + $0x240] sm:$0xff]
        %v579 = vld [vmem:[#allocation5 + $0x248] sm:$0xff]
        %v580 = vld [vmem:[#allocation5 + $0x250] sm:$0xff]
        %v581 = vld [vmem:[#allocation5 + $0x258] sm:$0xff]
        %v582 = vld [vmem:[#allocation5 + $0x260] sm:$0xff]
        %v583 = vld [vmem:[#allocation5 + $0x268] sm:$0xff]
        %v584 = vld [vmem:[#allocation5 + $0x270] sm:$0xff]
        %v585 = vld [vmem:[#allocation5 + $0x278] sm:$0xff]
        %v586 = vld [vmem:[#allocation5 + $0x280] sm:$0xff]
        %v587 = vld [vmem:[#allocation5 + $0x288] sm:$0xff]
        %v588 = vld [vmem:[#allocation5 + $0x290] sm:$0xff]
        %v589 = vld [vmem:[#allocation5 + $0x298] sm:$0xff]
        %v590 = vld [vmem:[#allocation5 + $0x2a0] sm:$0xff]
        %v591 = vld [vmem:[#allocation5 + $0x2a8] sm:$0xff]
        %v592 = vld [vmem:[#allocation5 + $0x2b0] sm:$0xff]
        %v593 = vld [vmem:[#allocation5 + $0x2b8] sm:$0xff]
        %v594 = vld [vmem:[#allocation5 + $0x2c0] sm:$0xff]
        %v595 = vld [vmem:[#allocation5 + $0x2c8] sm:$0xff]
        %v596 = vld [vmem:[#allocation5 + $0x2d0] sm:$0xff]
        %v597 = vld [vmem:[#allocation5 + $0x2d8] sm:$0xff]
        %v598 = vld [vmem:[#allocation5 + $0x2e0] sm:$0xff]
        %v599 = vld [vmem:[#allocation5 + $0x2e8] sm:$0xff]
        %v600 = vld [vmem:[#allocation5 + $0x2f0] sm:$0xff]
        %v601 = vld [vmem:[#allocation5 + $0x2f8] sm:$0xff]
        %v602 = vld [vmem:[#allocation5 + $0x300] sm:$0xff]
        %v603 = vld [vmem:[#allocation5 + $0x308] sm:$0xff]
        %v604 = vld [vmem:[#allocation5 + $0x310] sm:$0xff]
        %v605 = vld [vmem:[#allocation5 + $0x318] sm:$0xff]
        %v606 = vld [vmem:[#allocation5 + $0x320] sm:$0xff]
        %v607 = vld [vmem:[#allocation5 + $0x328] sm:$0xff]
        %v608 = vld [vmem:[#allocation5 + $0x330] sm:$0xff]
        %v609 = vld [vmem:[#allocation5 + $0x338] sm:$0xff]
        %v610 = vld [vmem:[#allocation5 + $0x340] sm:$0xff]
        %v611 = vld [vmem:[#allocation5 + $0x348] sm:$0xff]
        %v612 = vld [vmem:[#allocation5 + $0x350] sm:$0xff]
        %v613 = vld [vmem:[#allocation5 + $0x358] sm:$0xff]
        %v614 = vld [vmem:[#allocation5 + $0x360] sm:$0xff]
        %v615 = vld [vmem:[#allocation5 + $0x368] sm:$0xff]
        %v616 = vld [vmem:[#allocation5 + $0x370] sm:$0xff]
        %v617 = vld [vmem:[#allocation5 + $0x378] sm:$0xff]
        %v618 = vld [vmem:[#allocation5 + $0x380] sm:$0xff]
        %v619 = vld [vmem:[#allocation5 + $0x388] sm:$0xff]
        %v620 = vld [vmem:[#allocation5 + $0x390] sm:$0xff]
        %v621 = vld [vmem:[#allocation5 + $0x398] sm:$0xff]
        %v622 = vld [vmem:[#allocation5 + $0x3a0] sm:$0xff]
        %v623 = vld [vmem:[#allocation5 + $0x3a8] sm:$0xff]
        %v624 = vld [vmem:[#allocation5 + $0x3b0] sm:$0xff]
        %v625 = vld [vmem:[#allocation5 + $0x3b8] sm:$0xff]
        %v626 = vld [vmem:[#allocation5 + $0x3c0] sm:$0xff]
        %v627 = vld [vmem:[#allocation5 + $0x3c8] sm:$0xff]
        %v628 = vld [vmem:[#allocation5 + $0x3d0] sm:$0xff]
        %v629 = vld [vmem:[#allocation5 + $0x3d8] sm:$0xff]
        %v630 = vld [vmem:[#allocation5 + $0x3e0] sm:$0xff]
        %v631 = vld [vmem:[#allocation5 + $0x3e8] sm:$0xff]
        %v632 = vld [vmem:[#allocation5 + $0x3f0] sm:$0xff]
        %v633 = vld [vmem:[#allocation5 + $0x3f8] sm:$0xff]
        %v634 = vld [vmem:[#allocation5 + $0x400] sm:$0xff]
        %v635 = vld [vmem:[#allocation5 + $0x408] sm:$0xff]
        %v636 = vld [vmem:[#allocation5 + $0x410] sm:$0xff]
        %v637 = vld [vmem:[#allocation5 + $0x418] sm:$0xff]
        %v638 = vld [vmem:[#allocation5 + $0x420] sm:$0xff]
        %v639 = vld [vmem:[#allocation5 + $0x428] sm:$0xff]
        %v640 = vld [vmem:[#allocation5 + $0x430] sm:$0xff]
        %v641 = vld [vmem:[#allocation5 + $0x438] sm:$0xff]
        %v642 = vld [vmem:[#allocation5 + $0x440] sm:$0xff]
        %v643 = vld [vmem:[#allocation5 + $0x448] sm:$0xff]
        %v644 = vld [vmem:[#allocation5 + $0x450] sm:$0xff]
        %v645 = vld [vmem:[#allocation5 + $0x458] sm:$0xff]
        %v646 = vld [vmem:[#allocation5 + $0x460] sm:$0xff]
        %v647 = vld [vmem:[#allocation5 + $0x468] sm:$0xff]
        %v648 = vld [vmem:[#allocation5 + $0x470] sm:$0xff]
        %v649 = vld [vmem:[#allocation5 + $0x478] sm:$0xff]
        %v650 = vld [vmem:[#allocation5 + $0x480] sm:$0xff]
        %v651 = vld [vmem:[#allocation5 + $0x488] sm:$0xff]
        %v652 = vld [vmem:[#allocation5 + $0x490] sm:$0xff]
        %v653 = vld [vmem:[#allocation5 + $0x498] sm:$0xff]
        %v654 = vld [vmem:[#allocation5 + $0x4a0] sm:$0xff]
        %v655 = vld [vmem:[#allocation5 + $0x4a8] sm:$0xff]
        %v656 = vld [vmem:[#allocation5 + $0x4b0] sm:$0xff]
        %v657 = vld [vmem:[#allocation5 + $0x4b8] sm:$0xff]
        %v658 = vld [vmem:[#allocation5 + $0x4c0] sm:$0xff]
        %v659 = vld [vmem:[#allocation5 + $0x4c8] sm:$0xff]
        %v660 = vld [vmem:[#allocation5 + $0x4d0] sm:$0xff]
        %v661 = vld [vmem:[#allocation5 + $0x4d8] sm:$0xff]
        %v662 = vld [vmem:[#allocation5 + $0x4e0] sm:$0xff]
        %v663 = vld [vmem:[#allocation5 + $0x4e8] sm:$0xff]
        %v664 = vld [vmem:[#allocation5 + $0x4f0] sm:$0xff]
        %v665 = vld [vmem:[#allocation5 + $0x4f8] sm:$0xff]
        %v666 = vld [vmem:[#allocation5 + $0x500] sm:$0xff]
        %v667 = vld [vmem:[#allocation5 + $0x508] sm:$0xff]
        %v668 = vld [vmem:[#allocation5 + $0x510] sm:$0xff]
        %v669 = vld [vmem:[#allocation5 + $0x518] sm:$0xff]
        %v670 = vld [vmem:[#allocation5 + $0x520] sm:$0xff]
        %v671 = vld [vmem:[#allocation5 + $0x528] sm:$0xff]
        %v672 = vld [vmem:[#allocation5 + $0x530] sm:$0xff]
        %v673 = vld [vmem:[#allocation5 + $0x538] sm:$0xff]
        %v674 = vld [vmem:[#allocation5 + $0x540] sm:$0xff]
        %v675 = vld [vmem:[#allocation5 + $0x548] sm:$0xff]
        %v676 = vld [vmem:[#allocation5 + $0x550] sm:$0xff]
        %v677 = vld [vmem:[#allocation5 + $0x558] sm:$0xff]
        %v678 = vld [vmem:[#allocation5 + $0x560] sm:$0xff]
        %v679 = vld [vmem:[#allocation5 + $0x568] sm:$0xff]
        %v680 = vld [vmem:[#allocation5 + $0x570] sm:$0xff]
        %v681 = vld [vmem:[#allocation5 + $0x578] sm:$0xff]
        %v682 = vld [vmem:[#allocation5 + $0x580] sm:$0xff]
        %v683 = vld [vmem:[#allocation5 + $0x588] sm:$0xff]
        %v684 = vld [vmem:[#allocation5 + $0x590] sm:$0xff]
        %v685 = vld [vmem:[#allocation5 + $0x598] sm:$0xff]
        %v686 = vld [vmem:[#allocation5 + $0x5a0] sm:$0xff]
        %v687 = vld [vmem:[#allocation5 + $0x5a8] sm:$0xff]
        %v688 = vld [vmem:[#allocation5 + $0x5b0] sm:$0xff]
        %v689 = vld [vmem:[#allocation5 + $0x5b8] sm:$0xff]
        %v690 = vld [vmem:[#allocation5 + $0x5c0] sm:$0xff]
        %v691 = vld [vmem:[#allocation5 + $0x5c8] sm:$0xff]
        %v692 = vld [vmem:[#allocation5 + $0x5d0] sm:$0xff]
        %v693 = vld [vmem:[#allocation5 + $0x5d8] sm:$0xff]
        %v694 = vld [vmem:[#allocation5 + $0x5e0] sm:$0xff]
        %v695 = vld [vmem:[#allocation5 + $0x5e8] sm:$0xff]
        %v696 = vld [vmem:[#allocation5 + $0x5f0] sm:$0xff]
        %v697 = vld [vmem:[#allocation5 + $0x5f8] sm:$0xff]
        %v698 = vld [vmem:[#allocation5 + $0x600] sm:$0xff]
        %v699 = vld [vmem:[#allocation5 + $0x608] sm:$0xff]
        %v700 = vld [vmem:[#allocation5 + $0x610] sm:$0xff]
        %v701 = vld [vmem:[#allocation5 + $0x618] sm:$0xff]
        %v702 = vld [vmem:[#allocation5 + $0x620] sm:$0xff]
        %v703 = vld [vmem:[#allocation5 + $0x628] sm:$0xff]
        %v704 = vld [vmem:[#allocation5 + $0x630] sm:$0xff]
        %v705 = vld [vmem:[#allocation5 + $0x638] sm:$0xff]
        %v706 = vld [vmem:[#allocation5 + $0x640] sm:$0xff]
        %v707 = vld [vmem:[#allocation5 + $0x648] sm:$0xff]
        %v708 = vld [vmem:[#allocation5 + $0x650] sm:$0xff]
        %v709 = vld [vmem:[#allocation5 + $0x658] sm:$0xff]
        %v710 = vld [vmem:[#allocation5 + $0x660] sm:$0xff]
        %v711 = vld [vmem:[#allocation5 + $0x668] sm:$0xff]
        %v712 = vld [vmem:[#allocation5 + $0x670] sm:$0xff]
        %v713 = vld [vmem:[#allocation5 + $0x678] sm:$0xff]
        %v714 = vld [vmem:[#allocation5 + $0x680] sm:$0xff]
        %v715 = vld [vmem:[#allocation5 + $0x688] sm:$0xff]
        %v716 = vld [vmem:[#allocation5 + $0x690] sm:$0xff]
        %v717 = vld [vmem:[#allocation5 + $0x698] sm:$0xff]
        %v718 = vld [vmem:[#allocation5 + $0x6a0] sm:$0xff]
        %v719 = vld [vmem:[#allocation5 + $0x6a8] sm:$0xff]
        %v720 = vld [vmem:[#allocation5 + $0x6b0] sm:$0xff]
        %v721 = vld [vmem:[#allocation5 + $0x6b8] sm:$0xff]
        %v722 = vld [vmem:[#allocation5 + $0x6c0] sm:$0xff]
        %v723 = vld [vmem:[#allocation5 + $0x6c8] sm:$0xff]
        %v724 = vld [vmem:[#allocation5 + $0x6d0] sm:$0xff]
        %v725 = vld [vmem:[#allocation5 + $0x6d8] sm:$0xff]
        %v726 = vld [vmem:[#allocation5 + $0x6e0] sm:$0xff]
        %v727 = vld [vmem:[#allocation5 + $0x6e8] sm:$0xff]
        %v728 = vld [vmem:[#allocation5 + $0x6f0] sm:$0xff]
        %v729 = vld [vmem:[#allocation5 + $0x6f8] sm:$0xff]
        %v730 = vld [vmem:[#allocation5 + $0x700] sm:$0xff]
        %v731 = vld [vmem:[#allocation5 + $0x708] sm:$0xff]
        %v732 = vld [vmem:[#allocation5 + $0x710] sm:$0xff]
        %v733 = vld [vmem:[#allocation5 + $0x718] sm:$0xff]
        %v734 = vld [vmem:[#allocation5 + $0x720] sm:$0xff]
        %v735 = vld [vmem:[#allocation5 + $0x728] sm:$0xff]
        %v736 = vld [vmem:[#allocation5 + $0x730] sm:$0xff]
        %v737 = vld [vmem:[#allocation5 + $0x738] sm:$0xff]
        %v738 = vld [vmem:[#allocation5 + $0x740] sm:$0xff]
        %v739 = vld [vmem:[#allocation5 + $0x748] sm:$0xff]
        %v740 = vld [vmem:[#allocation5 + $0x750] sm:$0xff]
        %v741 = vld [vmem:[#allocation5 + $0x758] sm:$0xff]
        %v742 = vld [vmem:[#allocation5 + $0x760] sm:$0xff]
        %v743 = vld [vmem:[#allocation5 + $0x768] sm:$0xff]
        %v744 = vld [vmem:[#allocation5 + $0x770] sm:$0xff]
        %v745 = vld [vmem:[#allocation5 + $0x778] sm:$0xff]
        %v746 = vld [vmem:[#allocation5 + $0x780] sm:$0xff]
        %v747 = vld [vmem:[#allocation5 + $0x788] sm:$0xff]
        %v748 = vld [vmem:[#allocation5 + $0x790] sm:$0xff]
        %v749 = vld [vmem:[#allocation5 + $0x798] sm:$0xff]
        %v750 = vld [vmem:[#allocation5 + $0x7a0] sm:$0xff]
        %v751 = vld [vmem:[#allocation5 + $0x7a8] sm:$0xff]
        %v752 = vld [vmem:[#allocation5 + $0x7b0] sm:$0xff]
        %v753 = vld [vmem:[#allocation5 + $0x7b8] sm:$0xff]
        %v754 = vld [vmem:[#allocation5 + $0x7c0] sm:$0xff]
        %v755 = vld [vmem:[#allocation5 + $0x7c8] sm:$0xff]
        %v756 = vld [vmem:[#allocation5 + $0x7d0] sm:$0xff]
        %v757 = vld [vmem:[#allocation5 + $0x7d8] sm:$0xff]
        %v758 = vld [vmem:[#allocation5 + $0x7e0] sm:$0xff]
        %v759 = vld [vmem:[#allocation5 + $0x7e8] sm:$0xff]
        %v760 = vld [vmem:[#allocation5 + $0x7f0] sm:$0xff]
        %v761 = vld [vmem:[#allocation5 + $0x7f8] sm:$0xff]
        %v762 = vld [vmem:[#allocation5 + $0x800] sm:$0xff]
        %v763 = vld [vmem:[#allocation5 + $0x808] sm:$0xff]
        %v764 = vld [vmem:[#allocation5 + $0x810] sm:$0xff]
        %v765 = vld [vmem:[#allocation5 + $0x818] sm:$0xff]
        %v766 = vld [vmem:[#allocation5 + $0x820] sm:$0xff]
        %v767 = vld [vmem:[#allocation5 + $0x828] sm:$0xff]
        %v768 = vld [vmem:[#allocation5 + $0x830] sm:$0xff]
        %v769 = vld [vmem:[#allocation5 + $0x838] sm:$0xff]
        %v770 = vld [vmem:[#allocation5 + $0x840] sm:$0xff]
        %v771 = vld [vmem:[#allocation5 + $0x848] sm:$0xff]
        %v772 = vld [vmem:[#allocation5 + $0x850] sm:$0xff]
        %v773 = vld [vmem:[#allocation5 + $0x858] sm:$0xff]
        %v774 = vld [vmem:[#allocation5 + $0x860] sm:$0xff]
        %v775 = vld [vmem:[#allocation5 + $0x868] sm:$0xff]
        %v776 = vld [vmem:[#allocation5 + $0x870] sm:$0xff]
        %v777 = vld [vmem:[#allocation5 + $0x878] sm:$0xff]
        %v778 = vld [vmem:[#allocation5 + $0x880] sm:$0xff]
        %v779 = vld [vmem:[#allocation5 + $0x888] sm:$0xff]
        %v780 = vld [vmem:[#allocation5 + $0x890] sm:$0xff]
        %v781 = vld [vmem:[#allocation5 + $0x898] sm:$0xff]
        %v782 = vld [vmem:[#allocation5 + $0x8a0] sm:$0xff]
        %v783 = vld [vmem:[#allocation5 + $0x8a8] sm:$0xff]
        %v784 = vld [vmem:[#allocation5 + $0x8b0] sm:$0xff]
        %v785 = vld [vmem:[#allocation5 + $0x8b8] sm:$0xff]
        %v786 = vld [vmem:[#allocation5 + $0x8c0] sm:$0xff]
        %v787 = vld [vmem:[#allocation5 + $0x8c8] sm:$0xff]
        %v788 = vld [vmem:[#allocation5 + $0x8d0] sm:$0xff]
        %v789 = vld [vmem:[#allocation5 + $0x8d8] sm:$0xff]
        %v790 = vld [vmem:[#allocation5 + $0x8e0] sm:$0xff]
        %v791 = vld [vmem:[#allocation5 + $0x8e8] sm:$0xff]
        %v792 = vld [vmem:[#allocation5 + $0x8f0] sm:$0xff]
        %v793 = vld [vmem:[#allocation5 + $0x8f8] sm:$0xff]
        %v794 = vld [vmem:[#allocation5 + $0x900] sm:$0xff]
        %v795 = vld [vmem:[#allocation5 + $0x908] sm:$0xff]
        %v796 = vld [vmem:[#allocation5 + $0x910] sm:$0xff]
        %v797 = vld [vmem:[#allocation5 + $0x918] sm:$0xff]
        %v798 = vld [vmem:[#allocation5 + $0x920] sm:$0xff]
        %v799 = vld [vmem:[#allocation5 + $0x928] sm:$0xff]
        %v800 = vld [vmem:[#allocation5 + $0x930] sm:$0xff]
        %v801 = vld [vmem:[#allocation5 + $0x938] sm:$0xff]
        %v802 = vld [vmem:[#allocation5 + $0x940] sm:$0xff]
        %v803 = vld [vmem:[#allocation5 + $0x948] sm:$0xff]
        %v804 = vld [vmem:[#allocation5 + $0x950] sm:$0xff]
        %v805 = vld [vmem:[#allocation5 + $0x958] sm:$0xff]
        %v806 = vld [vmem:[#allocation5 + $0x960] sm:$0xff]
        %v807 = vld [vmem:[#allocation5 + $0x968] sm:$0xff]
        %v808 = vld [vmem:[#allocation5 + $0x970] sm:$0xff]
        %v809 = vld [vmem:[#allocation5 + $0x978] sm:$0xff]
        %v810 = vld [vmem:[#allocation5 + $0x980] sm:$0xff]
        %v811 = vld [vmem:[#allocation5 + $0x988] sm:$0xff]
        %v812 = vld [vmem:[#allocation5 + $0x990] sm:$0xff]
        %v813 = vld [vmem:[#allocation5 + $0x998] sm:$0xff]
        %v814 = vld [vmem:[#allocation5 + $0x9a0] sm:$0xff]
        %v815 = vld [vmem:[#allocation5 + $0x9a8] sm:$0xff]
        %v816 = vld [vmem:[#allocation5 + $0x9b0] sm:$0xff]
        %v817 = vld [vmem:[#allocation5 + $0x9b8] sm:$0xff]
        %v818 = vld [vmem:[#allocation5 + $0x9c0] sm:$0xff]
        %v819 = vld [vmem:[#allocation5 + $0x9c8] sm:$0xff]
        %v820 = vld [vmem:[#allocation5 + $0x9d0] sm:$0xff]
        %v821 = vld [vmem:[#allocation5 + $0x9d8] sm:$0xff]
        %v822 = vld [vmem:[#allocation5 + $0x9e0] sm:$0xff]
        %v823 = vld [vmem:[#allocation5 + $0x9e8] sm:$0xff]
        %v824 = vld [vmem:[#allocation5 + $0x9f0] sm:$0xff]
        %v825 = vld [vmem:[#allocation5 + $0x9f8] sm:$0xff]
        %v826 = vld [vmem:[#allocation5 + $0xa00] sm:$0xff]
        %v827 = vld [vmem:[#allocation5 + $0xa08] sm:$0xff]
        %v828 = vld [vmem:[#allocation5 + $0xa10] sm:$0xff]
        %v829 = vld [vmem:[#allocation5 + $0xa18] sm:$0xff]
        %v830 = vld [vmem:[#allocation5 + $0xa20] sm:$0xff]
        %v831 = vld [vmem:[#allocation5 + $0xa28] sm:$0xff]
        %v832 = vld [vmem:[#allocation5 + $0xa30] sm:$0xff]
        %v833 = vld [vmem:[#allocation5 + $0xa38] sm:$0xff]
        %v834 = vld [vmem:[#allocation5 + $0xa40] sm:$0xff]
        %v835 = vld [vmem:[#allocation5 + $0xa48] sm:$0xff]
        %v836 = vld [vmem:[#allocation5 + $0xa50] sm:$0xff]
        %v837 = vld [vmem:[#allocation5 + $0xa58] sm:$0xff]
        %v838 = vld [vmem:[#allocation5 + $0xa60] sm:$0xff]
        %v839 = vld [vmem:[#allocation5 + $0xa68] sm:$0xff]
        %v840 = vld [vmem:[#allocation5 + $0xa70] sm:$0xff]
        %v841 = vld [vmem:[#allocation5 + $0xa78] sm:$0xff]
        %v842 = vld [vmem:[#allocation5 + $0xa80] sm:$0xff]
        %v843 = vld [vmem:[#allocation5 + $0xa88] sm:$0xff]
        %v844 = vld [vmem:[#allocation5 + $0xa90] sm:$0xff]
        %v845 = vld [vmem:[#allocation5 + $0xa98] sm:$0xff]
        %v846 = vld [vmem:[#allocation5 + $0xaa0] sm:$0xff]
        %v847 = vld [vmem:[#allocation5 + $0xaa8] sm:$0xff]
        %v848 = vld [vmem:[#allocation5 + $0xab0] sm:$0xff]
        %v849 = vld [vmem:[#allocation5 + $0xab8] sm:$0xff]
        %v850 = vld [vmem:[#allocation5 + $0xac0] sm:$0xff]
        %v851 = vld [vmem:[#allocation5 + $0xac8] sm:$0xff]
        %v852 = vld [vmem:[#allocation5 + $0xad0] sm:$0xff]
        %v853 = vld [vmem:[#allocation5 + $0xad8] sm:$0xff]
        %v854 = vld [vmem:[#allocation5 + $0xae0] sm:$0xff]
        %v855 = vld [vmem:[#allocation5 + $0xae8] sm:$0xff]
        %v856 = vld [vmem:[#allocation5 + $0xaf0] sm:$0xff]
        %v857 = vld [vmem:[#allocation5 + $0xaf8] sm:$0xff]
        %v858 = vld [vmem:[#allocation5 + $0xb00] sm:$0xff]
        %v859 = vld [vmem:[#allocation5 + $0xb08] sm:$0xff]
        %v860 = vld [vmem:[#allocation5 + $0xb10] sm:$0xff]
        %v861 = vld [vmem:[#allocation5 + $0xb18] sm:$0xff]
        %v862 = vld [vmem:[#allocation5 + $0xb20] sm:$0xff]
        %v863 = vld [vmem:[#allocation5 + $0xb28] sm:$0xff]
        %v864 = vld [vmem:[#allocation5 + $0xb30] sm:$0xff]
        %v865 = vld [vmem:[#allocation5 + $0xb38] sm:$0xff]
        %v866 = vld [vmem:[#allocation5 + $0xb40] sm:$0xff]
        %v867 = vld [vmem:[#allocation5 + $0xb48] sm:$0xff]
        %v868 = vld [vmem:[#allocation5 + $0xb50] sm:$0xff]
        %v869 = vld [vmem:[#allocation5 + $0xb58] sm:$0xff]
        %v870 = vld [vmem:[#allocation5 + $0xb60] sm:$0xff]
        %v871 = vld [vmem:[#allocation5 + $0xb68] sm:$0xff]
        %v872 = vld [vmem:[#allocation5 + $0xb70] sm:$0xff]
        %v873 = vld [vmem:[#allocation5 + $0xb78] sm:$0xff]
        %v874 = vld [vmem:[#allocation5 + $0xb80] sm:$0xff]
        %v875 = vld [vmem:[#allocation5 + $0xb88] sm:$0xff]
        %v876 = vld [vmem:[#allocation5 + $0xb90] sm:$0xff]
        %v877 = vld [vmem:[#allocation5 + $0xb98] sm:$0xff]
        %v878 = vld [vmem:[#allocation5 + $0xba0] sm:$0xff]
        %v879 = vld [vmem:[#allocation5 + $0xba8] sm:$0xff]
        %v880 = vld [vmem:[#allocation5 + $0xbb0] sm:$0xff]
        %v881 = vld [vmem:[#allocation5 + $0xbb8] sm:$0xff]
        %v882 = vld [vmem:[#allocation5 + $0xbc0] sm:$0xff]
        %v883 = vld [vmem:[#allocation5 + $0xbc8] sm:$0xff]
        %v884 = vld [vmem:[#allocation5 + $0xbd0] sm:$0xff]
        %v885 = vld [vmem:[#allocation5 + $0xbd8] sm:$0xff]
        %v886 = vld [vmem:[#allocation5 + $0xbe0] sm:$0xff]
        %v887 = vld [vmem:[#allocation5 + $0xbe8] sm:$0xff]
        %v888 = vld [vmem:[#allocation5 + $0xbf0] sm:$0xff]
        %v889 = vld [vmem:[#allocation5 + $0xbf8] sm:$0xff]
        %v890 = vld [vmem:[#allocation5 + $0xc00] sm:$0xff]
        %v891 = vld [vmem:[#allocation5 + $0xc08] sm:$0xff]
        %v892 = vld [vmem:[#allocation5 + $0xc10] sm:$0xff]
        %v893 = vld [vmem:[#allocation5 + $0xc18] sm:$0xff]
        %v894 = vld [vmem:[#allocation5 + $0xc20] sm:$0xff]
        %v895 = vld [vmem:[#allocation5 + $0xc28] sm:$0xff]
        %v896 = vld [vmem:[#allocation5 + $0xc30] sm:$0xff]
        %v897 = vld [vmem:[#allocation5 + $0xc38] sm:$0xff]
        %v898 = vld [vmem:[#allocation5 + $0xc40] sm:$0xff]
        %v899 = vld [vmem:[#allocation5 + $0xc48] sm:$0xff]
        %v900 = vld [vmem:[#allocation5 + $0xc50] sm:$0xff]
        %v901 = vld [vmem:[#allocation5 + $0xc58] sm:$0xff]
        %v902 = vld [vmem:[#allocation5 + $0xc60] sm:$0xff]
        %v903 = vld [vmem:[#allocation5 + $0xc68] sm:$0xff]
        %v904 = vld [vmem:[#allocation5 + $0xc70] sm:$0xff]
        %v905 = vld [vmem:[#allocation5 + $0xc78] sm:$0xff]
        %v906 = vld [vmem:[#allocation5 + $0xc80] sm:$0xff]
        %v907 = vld [vmem:[#allocation5 + $0xc88] sm:$0xff]
        %v908 = vld [vmem:[#allocation5 + $0xc90] sm:$0xff]
        %v909 = vld [vmem:[#allocation5 + $0xc98] sm:$0xff]
        %v910 = vld [vmem:[#allocation5 + $0xca0] sm:$0xff]
        %v911 = vld [vmem:[#allocation5 + $0xca8] sm:$0xff]
        %v912 = vld [vmem:[#allocation5 + $0xcb0] sm:$0xff]
        %v913 = vld [vmem:[#allocation5 + $0xcb8] sm:$0xff]
        %v914 = vld [vmem:[#allocation5 + $0xcc0] sm:$0xff]
        %v915 = vld [vmem:[#allocation5 + $0xcc8] sm:$0xff]
        %v916 = vld [vmem:[#allocation5 + $0xcd0] sm:$0xff]
        %v917 = vld [vmem:[#allocation5 + $0xcd8] sm:$0xff]
        %v918 = vld [vmem:[#allocation5 + $0xce0] sm:$0xff]
        %v919 = vld [vmem:[#allocation5 + $0xce8] sm:$0xff]
        %v920 = vld [vmem:[#allocation5 + $0xcf0] sm:$0xff]
        %v921 = vld [vmem:[#allocation5 + $0xcf8] sm:$0xff]
        %v922 = vld [vmem:[#allocation5 + $0xd00] sm:$0xff]
        %v923 = vld [vmem:[#allocation5 + $0xd08] sm:$0xff]
        %v924 = vld [vmem:[#allocation5 + $0xd10] sm:$0xff]
        %v925 = vld [vmem:[#allocation5 + $0xd18] sm:$0xff]
        %v926 = vld [vmem:[#allocation5 + $0xd20] sm:$0xff]
        %v927 = vld [vmem:[#allocation5 + $0xd28] sm:$0xff]
        %v928 = vld [vmem:[#allocation5 + $0xd30] sm:$0xff]
        %v929 = vld [vmem:[#allocation5 + $0xd38] sm:$0xff]
        %v930 = vld [vmem:[#allocation5 + $0xd40] sm:$0xff]
        %v931 = vld [vmem:[#allocation5 + $0xd48] sm:$0xff]
        %v932 = vld [vmem:[#allocation5 + $0xd50] sm:$0xff]
        %v933 = vld [vmem:[#allocation5 + $0xd58] sm:$0xff]
        %v934 = vld [vmem:[#allocation5 + $0xd60] sm:$0xff]
        %v935 = vld [vmem:[#allocation5 + $0xd68] sm:$0xff]
        %v936 = vld [vmem:[#allocation5 + $0xd70] sm:$0xff]
        %v937 = vld [vmem:[#allocation5 + $0xd78] sm:$0xff]
        %v938 = vld [vmem:[#allocation5 + $0xd80] sm:$0xff]
        %v939 = vld [vmem:[#allocation5 + $0xd88] sm:$0xff]
        %v940 = vld [vmem:[#allocation5 + $0xd90] sm:$0xff]
        %v941 = vld [vmem:[#allocation5 + $0xd98] sm:$0xff]
        %v942 = vld [vmem:[#allocation5 + $0xda0] sm:$0xff]
        %v943 = vld [vmem:[#allocation5 + $0xda8] sm:$0xff]
        %v944 = vld [vmem:[#allocation5 + $0xdb0] sm:$0xff]
        %v945 = vld [vmem:[#allocation5 + $0xdb8] sm:$0xff]
        %v946 = vld [vmem:[#allocation5 + $0xdc0] sm:$0xff]
        %v947 = vld [vmem:[#allocation5 + $0xdc8] sm:$0xff]
        %v948 = vld [vmem:[#allocation5 + $0xdd0] sm:$0xff]
        %v949 = vld [vmem:[#allocation5 + $0xdd8] sm:$0xff]
        %v950 = vld [vmem:[#allocation5 + $0xde0] sm:$0xff]
        %v951 = vld [vmem:[#allocation5 + $0xde8] sm:$0xff]
        %v952 = vld [vmem:[#allocation5 + $0xdf0] sm:$0xff]
        %v953 = vld [vmem:[#allocation5 + $0xdf8] sm:$0xff]
        %v954 = vld [vmem:[#allocation5 + $0xe00] sm:$0xff]
        %v955 = vld [vmem:[#allocation5 + $0xe08] sm:$0xff]
        %v956 = vld [vmem:[#allocation5 + $0xe10] sm:$0xff]
        %v957 = vld [vmem:[#allocation5 + $0xe18] sm:$0xff]
        %v958 = vld [vmem:[#allocation5 + $0xe20] sm:$0xff]
        %v959 = vld [vmem:[#allocation5 + $0xe28] sm:$0xff]
        %v960 = vld [vmem:[#allocation5 + $0xe30] sm:$0xff]
        %v961 = vld [vmem:[#allocation5 + $0xe38] sm:$0xff]
        %v962 = vld [vmem:[#allocation5 + $0xe40] sm:$0xff]
        %v963 = vld [vmem:[#allocation5 + $0xe48] sm:$0xff]
        %v964 = vld [vmem:[#allocation5 + $0xe50] sm:$0xff]
        %v965 = vld [vmem:[#allocation5 + $0xe58] sm:$0xff]
        %v966 = vld [vmem:[#allocation5 + $0xe60] sm:$0xff]
        %v967 = vld [vmem:[#allocation5 + $0xe68] sm:$0xff]
        %v968 = vld [vmem:[#allocation5 + $0xe70] sm:$0xff]
        %v969 = vld [vmem:[#allocation5 + $0xe78] sm:$0xff]
        %v970 = vld [vmem:[#allocation5 + $0xe80] sm:$0xff]
        %v971 = vld [vmem:[#allocation5 + $0xe88] sm:$0xff]
        %v972 = vld [vmem:[#allocation5 + $0xe90] sm:$0xff]
        %v973 = vld [vmem:[#allocation5 + $0xe98] sm:$0xff]
        %v974 = vld [vmem:[#allocation5 + $0xea0] sm:$0xff]
        %v975 = vld [vmem:[#allocation5 + $0xea8] sm:$0xff]
        %v976 = vld [vmem:[#allocation5 + $0xeb0] sm:$0xff]
        %v977 = vld [vmem:[#allocation5 + $0xeb8] sm:$0xff]
        %v978 = vld [vmem:[#allocation5 + $0xec0] sm:$0xff]
        %v979 = vld [vmem:[#allocation5 + $0xec8] sm:$0xff]
        %v980 = vld [vmem:[#allocation5 + $0xed0] sm:$0xff]
        %v981 = vld [vmem:[#allocation5 + $0xed8] sm:$0xff]
        %v982 = vld [vmem:[#allocation5 + $0xee0] sm:$0xff]
        %v983 = vld [vmem:[#allocation5 + $0xee8] sm:$0xff]
        %v984 = vld [vmem:[#allocation5 + $0xef0] sm:$0xff]
        %v985 = vld [vmem:[#allocation5 + $0xef8] sm:$0xff]
        %v986 = vld [vmem:[#allocation5 + $0xf00] sm:$0xff]
        %v987 = vld [vmem:[#allocation5 + $0xf08] sm:$0xff]
        %v988 = vld [vmem:[#allocation5 + $0xf10] sm:$0xff]
        %v989 = vld [vmem:[#allocation5 + $0xf18] sm:$0xff]
        %v990 = vld [vmem:[#allocation5 + $0xf20] sm:$0xff]
        %v991 = vld [vmem:[#allocation5 + $0xf28] sm:$0xff]
        %v992 = vld [vmem:[#allocation5 + $0xf30] sm:$0xff]
        %v993 = vld [vmem:[#allocation5 + $0xf38] sm:$0xff]
        %v994 = vld [vmem:[#allocation5 + $0xf40] sm:$0xff]
        %v995 = vld [vmem:[#allocation5 + $0xf48] sm:$0xff]
        %v996 = vld [vmem:[#allocation5 + $0xf50] sm:$0xff]
        %v997 = vld [vmem:[#allocation5 + $0xf58] sm:$0xff]
        %v998 = vld [vmem:[#allocation5 + $0xf60] sm:$0xff]
        %v999 = vld [vmem:[#allocation5 + $0xf68] sm:$0xff]
        %v1000 = vld [vmem:[#allocation5 + $0xf70] sm:$0xff]
        %v1001 = vld [vmem:[#allocation5 + $0xf78] sm:$0xff]
        %v1002 = vld [vmem:[#allocation5 + $0xf80] sm:$0xff]
        %v1003 = vld [vmem:[#allocation5 + $0xf88] sm:$0xff]
        %v1004 = vld [vmem:[#allocation5 + $0xf90] sm:$0xff]
        %v1005 = vld [vmem:[#allocation5 + $0xf98] sm:$0xff]
        %v1006 = vld [vmem:[#allocation5 + $0xfa0] sm:$0xff]
        %v1007 = vld [vmem:[#allocation5 + $0xfa8] sm:$0xff]
        %v1008 = vld [vmem:[#allocation5 + $0xfb0] sm:$0xff]
        %v1009 = vld [vmem:[#allocation5 + $0xfb8] sm:$0xff]
        %v1010 = vld [vmem:[#allocation5 + $0xfc0] sm:$0xff]
        %v1011 = vld [vmem:[#allocation5 + $0xfc8] sm:$0xff]
        %v1012 = vld [vmem:[#allocation5 + $0xfd0] sm:$0xff]
        %v1013 = vld [vmem:[#allocation5 + $0xfd8] sm:$0xff]
        %v1014 = vld [vmem:[#allocation5 + $0xfe0] sm:$0xff]
        %v1015 = vld [vmem:[#allocation5 + $0xfe8] sm:$0xff]
        %v1016 = vld [vmem:[#allocation5 + $0xff0] sm:$0xff]
        %v1017 = vld [vmem:[#allocation5 + $0xff8] sm:$0xff]
        %v1018 = vld [vmem:[#allocation5 + $0x1000] sm:$0xff]
        %v1019 = vld [vmem:[#allocation5 + $0x1008] sm:$0xff]
        %v1020 = vld [vmem:[#allocation5 + $0x1010] sm:$0xff]
        %v1021 = vld [vmem:[#allocation5 + $0x1018] sm:$0xff]
        %v1022 = vld [vmem:[#allocation5 + $0x1020] sm:$0xff]
        %v1023 = vld [vmem:[#allocation5 + $0x1028] sm:$0xff]
        %v1024 = vld [vmem:[#allocation5 + $0x1030] sm:$0xff]
        %v1025 = vld [vmem:[#allocation5 + $0x1038] sm:$0xff]
        %v1026 = vld [vmem:[#allocation5 + $0x1040] sm:$0xff]
        %v1027 = vld [vmem:[#allocation5 + $0x1048] sm:$0xff]
        %v1028 = vld [vmem:[#allocation5 + $0x1050] sm:$0xff]
        %v1029 = vld [vmem:[#allocation5 + $0x1058] sm:$0xff]
        %v1030 = vld [vmem:[#allocation5 + $0x1060] sm:$0xff]
        %v1031 = vld [vmem:[#allocation5 + $0x1068] sm:$0xff]
        %v1032 = vld [vmem:[#allocation5 + $0x1070] sm:$0xff]
        %v1033 = vld [vmem:[#allocation5 + $0x1078] sm:$0xff]
        %v1034 = vld [vmem:[#allocation5 + $0x1080] sm:$0xff]
        %v1035 = vld [vmem:[#allocation5 + $0x1088] sm:$0xff]
        %v1036 = vld [vmem:[#allocation5 + $0x1090] sm:$0xff]
        %v1037 = vld [vmem:[#allocation5 + $0x1098] sm:$0xff]
        %v1038 = vld [vmem:[#allocation5 + $0x10a0] sm:$0xff]
        %v1039 = vld [vmem:[#allocation5 + $0x10a8] sm:$0xff]
        %v1040 = vld [vmem:[#allocation5 + $0x10b0] sm:$0xff]
        %v1041 = vld [vmem:[#allocation5 + $0x10b8] sm:$0xff]
        %v1042 = vld [vmem:[#allocation5 + $0x10c0] sm:$0xff]
        %v1043 = vld [vmem:[#allocation5 + $0x10c8] sm:$0xff]
        %v1044 = vld [vmem:[#allocation5 + $0x10d0] sm:$0xff]
        %v1045 = vld [vmem:[#allocation5 + $0x10d8] sm:$0xff]
        %v1046 = vld [vmem:[#allocation5 + $0x10e0] sm:$0xff]
        %v1047 = vld [vmem:[#allocation5 + $0x10e8] sm:$0xff]
        %v1048 = vld [vmem:[#allocation5 + $0x10f0] sm:$0xff]
        %v1049 = vld [vmem:[#allocation5 + $0x10f8] sm:$0xff]
        %v1050 = vld [vmem:[#allocation5 + $0x1100] sm:$0xff]
        %v1051 = vld [vmem:[#allocation5 + $0x1108] sm:$0xff]
        %v1052 = vld [vmem:[#allocation5 + $0x1110] sm:$0xff]
        %v1053 = vld [vmem:[#allocation5 + $0x1118] sm:$0xff]
        %v1054 = vld [vmem:[#allocation5 + $0x1120] sm:$0xff]
        %v1055 = vld [vmem:[#allocation5 + $0x1128] sm:$0xff]
        %v1056 = vld [vmem:[#allocation5 + $0x1130] sm:$0xff]
        %v1057 = vld [vmem:[#allocation5 + $0x1138] sm:$0xff]
        %v1058 = vld [vmem:[#allocation5 + $0x1140] sm:$0xff]
        %v1059 = vld [vmem:[#allocation5 + $0x1148] sm:$0xff]
        %v1060 = vld [vmem:[#allocation5 + $0x1150] sm:$0xff]
        %v1061 = vld [vmem:[#allocation5 + $0x1158] sm:$0xff]
        %v1062 = vld [vmem:[#allocation5 + $0x1160] sm:$0xff]
        %v1063 = vld [vmem:[#allocation5 + $0x1168] sm:$0xff]
        %v1064 = vld [vmem:[#allocation5 + $0x1170] sm:$0xff]
        %v1065 = vld [vmem:[#allocation5 + $0x1178] sm:$0xff]
        %v1066 = vld [vmem:[#allocation5 + $0x1180] sm:$0xff]
        %v1067 = vld [vmem:[#allocation5 + $0x1188] sm:$0xff]
        %v1068 = vld [vmem:[#allocation5 + $0x1190] sm:$0xff]
        %v1069 = vld [vmem:[#allocation5 + $0x1198] sm:$0xff]
        %v1070 = vld [vmem:[#allocation5 + $0x11a0] sm:$0xff]
        %v1071 = vld [vmem:[#allocation5 + $0x11a8] sm:$0xff]
        %v1072 = vld [vmem:[#allocation5 + $0x11b0] sm:$0xff]
        %v1073 = vld [vmem:[#allocation5 + $0x11b8] sm:$0xff]
        %v1074 = vld [vmem:[#allocation5 + $0x11c0] sm:$0xff]
        %v1075 = vld [vmem:[#allocation5 + $0x11c8] sm:$0xff]
        %v1076 = vld [vmem:[#allocation5 + $0x11d0] sm:$0xff]
        %v1077 = vld [vmem:[#allocation5 + $0x11d8] sm:$0xff]
        %v1078 = vld [vmem:[#allocation5 + $0x11e0] sm:$0xff]
        %v1079 = vld [vmem:[#allocation5 + $0x11e8] sm:$0xff]
        %v1080 = vld [vmem:[#allocation5 + $0x11f0] sm:$0xff]
        %v1081 = vld [vmem:[#allocation5 + $0x11f8] sm:$0xff]
        %v1082 = vld [vmem:[#allocation5 + $0x1200] sm:$0xff]
        %v1083 = vld [vmem:[#allocation5 + $0x1208] sm:$0xff]
        %v1084 = vld [vmem:[#allocation5 + $0x1210] sm:$0xff]
        %v1085 = vld [vmem:[#allocation5 + $0x1218] sm:$0xff]
        %v1086 = vld [vmem:[#allocation5 + $0x1220] sm:$0xff]
        %v1087 = vld [vmem:[#allocation5 + $0x1228] sm:$0xff]
        %v1088 = vld [vmem:[#allocation5 + $0x1230] sm:$0xff]
        %v1089 = vld [vmem:[#allocation5 + $0x1238] sm:$0xff]
        %v1090 = vld [vmem:[#allocation5 + $0x1240] sm:$0xff]
        %v1091 = vld [vmem:[#allocation5 + $0x1248] sm:$0xff]
        %v1092 = vld [vmem:[#allocation5 + $0x1250] sm:$0xff]
        %v1093 = vld [vmem:[#allocation5 + $0x1258] sm:$0xff]
        %v1094 = vld [vmem:[#allocation5 + $0x1260] sm:$0xff]
        %v1095 = vld [vmem:[#allocation5 + $0x1268] sm:$0xff]
        %v1096 = vld [vmem:[#allocation5 + $0x1270] sm:$0xff]
        %v1097 = vld [vmem:[#allocation5 + $0x1278] sm:$0xff]
        %v1098 = vld [vmem:[#allocation5 + $0x1280] sm:$0xff]
        %v1099 = vld [vmem:[#allocation5 + $0x1288] sm:$0xff]
        %v1100 = vld [vmem:[#allocation5 + $0x1290] sm:$0xff]
        %v1101 = vld [vmem:[#allocation5 + $0x1298] sm:$0xff]
        %v1102 = vld [vmem:[#allocation5 + $0x12a0] sm:$0xff]
        %v1103 = vld [vmem:[#allocation5 + $0x12a8] sm:$0xff]
        %v1104 = vld [vmem:[#allocation5 + $0x12b0] sm:$0xff]
        %v1105 = vld [vmem:[#allocation5 + $0x12b8] sm:$0xff]
        %v1106 = vld [vmem:[#allocation5 + $0x12c0] sm:$0xff]
        %v1107 = vld [vmem:[#allocation5 + $0x12c8] sm:$0xff]
        %v1108 = vld [vmem:[#allocation5 + $0x12d0] sm:$0xff]
        %v1109 = vld [vmem:[#allocation5 + $0x12d8] sm:$0xff]
        %v1110 = vld [vmem:[#allocation5 + $0x12e0] sm:$0xff]
        %v1111 = vld [vmem:[#allocation5 + $0x12e8] sm:$0xff]
        %v1112 = vld [vmem:[#allocation5 + $0x12f0] sm:$0xff]
        %v1113 = vld [vmem:[#allocation5 + $0x12f8] sm:$0xff]
        %v1114 = vld [vmem:[#allocation5 + $0x1300] sm:$0xff]
        %v1115 = vld [vmem:[#allocation5 + $0x1308] sm:$0xff]
        %v1116 = vld [vmem:[#allocation5 + $0x1310] sm:$0xff]
        %v1117 = vld [vmem:[#allocation5 + $0x1318] sm:$0xff]
        %v1118 = vld [vmem:[#allocation5 + $0x1320] sm:$0xff]
        %v1119 = vld [vmem:[#allocation5 + $0x1328] sm:$0xff]
        %v1120 = vld [vmem:[#allocation5 + $0x1330] sm:$0xff]
        %v1121 = vld [vmem:[#allocation5 + $0x1338] sm:$0xff]
        %v1122 = vld [vmem:[#allocation5 + $0x1340] sm:$0xff]
        %v1123 = vld [vmem:[#allocation5 + $0x1348] sm:$0xff]
        %v1124 = vld [vmem:[#allocation5 + $0x1350] sm:$0xff]
        %v1125 = vld [vmem:[#allocation5 + $0x1358] sm:$0xff]
        %v1126 = vld [vmem:[#allocation5 + $0x1360] sm:$0xff]
        %v1127 = vld [vmem:[#allocation5 + $0x1368] sm:$0xff]
        %v1128 = vld [vmem:[#allocation5 + $0x1370] sm:$0xff]
        %v1129 = vld [vmem:[#allocation5 + $0x1378] sm:$0xff]
        %v1130 = vld [vmem:[#allocation5 + $0x1380] sm:$0xff]
        %v1131 = vld [vmem:[#allocation5 + $0x1388] sm:$0xff]
        %v1132 = vld [vmem:[#allocation5 + $0x1390] sm:$0xff]
        %v1133 = vld [vmem:[#allocation5 + $0x1398] sm:$0xff]
        %v1134 = vld [vmem:[#allocation5 + $0x13a0] sm:$0xff]
        %v1135 = vld [vmem:[#allocation5 + $0x13a8] sm:$0xff]
        %v1136 = vld [vmem:[#allocation5 + $0x13b0] sm:$0xff]
        %v1137 = vld [vmem:[#allocation5 + $0x13b8] sm:$0xff]
        %v1138 = vld [vmem:[#allocation5 + $0x13c0] sm:$0xff]
        %v1139 = vld [vmem:[#allocation5 + $0x13c8] sm:$0xff]
        %v1140 = vld [vmem:[#allocation5 + $0x13d0] sm:$0xff]
        %v1141 = vld [vmem:[#allocation5 + $0x13d8] sm:$0xff]
        %v1142 = vld [vmem:[#allocation5 + $0x13e0] sm:$0xff]
        %v1143 = vld [vmem:[#allocation5 + $0x13e8] sm:$0xff]
        %v1144 = vld [vmem:[#allocation5 + $0x13f0] sm:$0xff]
        %v1145 = vld [vmem:[#allocation5 + $0x13f8] sm:$0xff]
        %v1146 = vld [vmem:[#allocation5 + $0x1400] sm:$0xff]
        %v1147 = vld [vmem:[#allocation5 + $0x1408] sm:$0xff]
        %v1148 = vld [vmem:[#allocation5 + $0x1410] sm:$0xff]
        %v1149 = vld [vmem:[#allocation5 + $0x1418] sm:$0xff]
        %v1150 = vld [vmem:[#allocation5 + $0x1420] sm:$0xff]
        %v1151 = vld [vmem:[#allocation5 + $0x1428] sm:$0xff]
        %v1152 = vld [vmem:[#allocation5 + $0x1430] sm:$0xff]
        %v1153 = vld [vmem:[#allocation5 + $0x1438] sm:$0xff]
        %v1154 = vld [vmem:[#allocation5 + $0x1440] sm:$0xff]
        %v1155 = vld [vmem:[#allocation5 + $0x1448] sm:$0xff]
        %v1156 = vld [vmem:[#allocation5 + $0x1450] sm:$0xff]
        %v1157 = vld [vmem:[#allocation5 + $0x1458] sm:$0xff]
        %v1158 = vld [vmem:[#allocation5 + $0x1460] sm:$0xff]
        %v1159 = vld [vmem:[#allocation5 + $0x1468] sm:$0xff]
        %v1160 = vld [vmem:[#allocation5 + $0x1470] sm:$0xff]
        %v1161 = vld [vmem:[#allocation5 + $0x1478] sm:$0xff]
        %v1162 = vld [vmem:[#allocation5 + $0x1480] sm:$0xff]
        %v1163 = vld [vmem:[#allocation5 + $0x1488] sm:$0xff]
        %v1164 = vld [vmem:[#allocation5 + $0x1490] sm:$0xff]
        %v1165 = vld [vmem:[#allocation5 + $0x1498] sm:$0xff]
        %v1166 = vld [vmem:[#allocation5 + $0x14a0] sm:$0xff]
        %v1167 = vld [vmem:[#allocation5 + $0x14a8] sm:$0xff]
        %v1168 = vld [vmem:[#allocation5 + $0x14b0] sm:$0xff]
        %v1169 = vld [vmem:[#allocation5 + $0x14b8] sm:$0xff]
        %v1170 = vld [vmem:[#allocation5 + $0x14c0] sm:$0xff]
        %v1171 = vld [vmem:[#allocation5 + $0x14c8] sm:$0xff]
        %v1172 = vld [vmem:[#allocation5 + $0x14d0] sm:$0xff]
        %v1173 = vld [vmem:[#allocation5 + $0x14d8] sm:$0xff]
        %v1174 = vld [vmem:[#allocation5 + $0x14e0] sm:$0xff]
        %v1175 = vld [vmem:[#allocation5 + $0x14e8] sm:$0xff]
        %v1176 = vld [vmem:[#allocation5 + $0x14f0] sm:$0xff]
        %v1177 = vld [vmem:[#allocation5 + $0x14f8] sm:$0xff]
        %v1178 = vld [vmem:[#allocation5 + $0x1500] sm:$0xff]
        %v1179 = vld [vmem:[#allocation5 + $0x1508] sm:$0xff]
        %v1180 = vld [vmem:[#allocation5 + $0x1510] sm:$0xff]
        %v1181 = vld [vmem:[#allocation5 + $0x1518] sm:$0xff]
        %v1182 = vld [vmem:[#allocation5 + $0x1520] sm:$0xff]
        %v1183 = vld [vmem:[#allocation5 + $0x1528] sm:$0xff]
        %v1184 = vld [vmem:[#allocation5 + $0x1530] sm:$0xff]
        %v1185 = vld [vmem:[#allocation5 + $0x1538] sm:$0xff]
        %v1186 = vld [vmem:[#allocation5 + $0x1540] sm:$0xff]
        %v1187 = vld [vmem:[#allocation5 + $0x1548] sm:$0xff]
        %v1188 = vld [vmem:[#allocation5 + $0x1550] sm:$0xff]
        %v1189 = vld [vmem:[#allocation5 + $0x1558] sm:$0xff]
        %v1190 = vld [vmem:[#allocation5 + $0x1560] sm:$0xff]
        %v1191 = vld [vmem:[#allocation5 + $0x1568] sm:$0xff]
        %v1192 = vld [vmem:[#allocation5 + $0x1570] sm:$0xff]
        %v1193 = vld [vmem:[#allocation5 + $0x1578] sm:$0xff]
        %v1194 = vld [vmem:[#allocation5 + $0x1580] sm:$0xff]
        %v1195 = vld [vmem:[#allocation5 + $0x1588] sm:$0xff]
        %v1196 = vld [vmem:[#allocation5 + $0x1590] sm:$0xff]
        %v1197 = vld [vmem:[#allocation5 + $0x1598] sm:$0xff]
        %v1198 = vld [vmem:[#allocation5 + $0x15a0] sm:$0xff]
        %v1199 = vld [vmem:[#allocation5 + $0x15a8] sm:$0xff]
        %v1200 = vld [vmem:[#allocation5 + $0x15b0] sm:$0xff]
        %v1201 = vld [vmem:[#allocation5 + $0x15b8] sm:$0xff]
        %v1202 = vld [vmem:[#allocation5 + $0x15c0] sm:$0xff]
        %v1203 = vld [vmem:[#allocation5 + $0x15c8] sm:$0xff]
        %v1204 = vld [vmem:[#allocation5 + $0x15d0] sm:$0xff]
        %v1205 = vld [vmem:[#allocation5 + $0x15d8] sm:$0xff]
        %v1206 = vld [vmem:[#allocation5 + $0x15e0] sm:$0xff]
        %v1207 = vld [vmem:[#allocation5 + $0x15e8] sm:$0xff]
        %v1208 = vld [vmem:[#allocation5 + $0x15f0] sm:$0xff]
        %v1209 = vld [vmem:[#allocation5 + $0x15f8] sm:$0xff]
        %v1210 = vld [vmem:[#allocation5 + $0x1600] sm:$0xff]
        %v1211 = vld [vmem:[#allocation5 + $0x1608] sm:$0xff]
        %v1212 = vld [vmem:[#allocation5 + $0x1610] sm:$0xff]
        %v1213 = vld [vmem:[#allocation5 + $0x1618] sm:$0xff]
        %v1214 = vld [vmem:[#allocation5 + $0x1620] sm:$0xff]
        %v1215 = vld [vmem:[#allocation5 + $0x1628] sm:$0xff]
        %v1216 = vld [vmem:[#allocation5 + $0x1630] sm:$0xff]
        %v1217 = vld [vmem:[#allocation5 + $0x1638] sm:$0xff]
        %v1218 = vld [vmem:[#allocation5 + $0x1640] sm:$0xff]
        %v1219 = vld [vmem:[#allocation5 + $0x1648] sm:$0xff]
        %v1220 = vld [vmem:[#allocation5 + $0x1650] sm:$0xff]
        %v1221 = vld [vmem:[#allocation5 + $0x1658] sm:$0xff]
        %v1222 = vld [vmem:[#allocation5 + $0x1660] sm:$0xff]
        %v1223 = vld [vmem:[#allocation5 + $0x1668] sm:$0xff]
        %v1224 = vld [vmem:[#allocation5 + $0x1670] sm:$0xff]
        %v1225 = vld [vmem:[#allocation5 + $0x1678] sm:$0xff]
        %v1226 = vld [vmem:[#allocation5 + $0x1680] sm:$0xff]
        %v1227 = vld [vmem:[#allocation5 + $0x1688] sm:$0xff]
        %v1228 = vld [vmem:[#allocation5 + $0x1690] sm:$0xff]
        %v1229 = vld [vmem:[#allocation5 + $0x1698] sm:$0xff]
        %v1230 = vld [vmem:[#allocation5 + $0x16a0] sm:$0xff]
        %v1231 = vld [vmem:[#allocation5 + $0x16a8] sm:$0xff]
        %v1232 = vld [vmem:[#allocation5 + $0x16b0] sm:$0xff]
        %v1233 = vld [vmem:[#allocation5 + $0x16b8] sm:$0xff]
        %v1234 = vld [vmem:[#allocation5 + $0x16c0] sm:$0xff]
        %v1235 = vld [vmem:[#allocation5 + $0x16c8] sm:$0xff]
        %v1236 = vld [vmem:[#allocation5 + $0x16d0] sm:$0xff]
        %v1237 = vld [vmem:[#allocation5 + $0x16d8] sm:$0xff]
        %v1238 = vld [vmem:[#allocation5 + $0x16e0] sm:$0xff]
        %v1239 = vld [vmem:[#allocation5 + $0x16e8] sm:$0xff]
        %v1240 = vld [vmem:[#allocation5 + $0x16f0] sm:$0xff]
        %v1241 = vld [vmem:[#allocation5 + $0x16f8] sm:$0xff]
        %v1242 = vld [vmem:[#allocation5 + $0x1700] sm:$0xff]
        %v1243 = vld [vmem:[#allocation5 + $0x1708] sm:$0xff]
        %v1244 = vld [vmem:[#allocation5 + $0x1710] sm:$0xff]
        %v1245 = vld [vmem:[#allocation5 + $0x1718] sm:$0xff]
        %v1246 = vld [vmem:[#allocation5 + $0x1720] sm:$0xff]
        %v1247 = vld [vmem:[#allocation5 + $0x1728] sm:$0xff]
        %v1248 = vld [vmem:[#allocation5 + $0x1730] sm:$0xff]
        %v1249 = vld [vmem:[#allocation5 + $0x1738] sm:$0xff]
        %v1250 = vld [vmem:[#allocation5 + $0x1740] sm:$0xff]
        %v1251 = vld [vmem:[#allocation5 + $0x1748] sm:$0xff]
        %v1252 = vld [vmem:[#allocation5 + $0x1750] sm:$0xff]
        %v1253 = vld [vmem:[#allocation5 + $0x1758] sm:$0xff]
        %v1254 = vld [vmem:[#allocation5 + $0x1760] sm:$0xff]
        %v1255 = vld [vmem:[#allocation5 + $0x1768] sm:$0xff]
        %v1256 = vld [vmem:[#allocation5 + $0x1770] sm:$0xff]
        %v1257 = vld [vmem:[#allocation5 + $0x1778] sm:$0xff]
        %v1258 = vld [vmem:[#allocation5 + $0x1780] sm:$0xff]
        %v1259 = vld [vmem:[#allocation5 + $0x1788] sm:$0xff]
        %v1260 = vld [vmem:[#allocation5 + $0x1790] sm:$0xff]
        %v1261 = vld [vmem:[#allocation5 + $0x1798] sm:$0xff]
        %v1262 = vld [vmem:[#allocation5 + $0x17a0] sm:$0xff]
        %v1263 = vld [vmem:[#allocation5 + $0x17a8] sm:$0xff]
        %v1264 = vld [vmem:[#allocation5 + $0x17b0] sm:$0xff]
        %v1265 = vld [vmem:[#allocation5 + $0x17b8] sm:$0xff]
        %v1266 = vld [vmem:[#allocation5 + $0x17c0] sm:$0xff]
        %v1267 = vld [vmem:[#allocation5 + $0x17c8] sm:$0xff]
        %v1268 = vld [vmem:[#allocation5 + $0x17d0] sm:$0xff]
        %v1269 = vld [vmem:[#allocation5 + $0x17d8] sm:$0xff]
        %v1270 = vld [vmem:[#allocation5 + $0x17e0] sm:$0xff]
        %v1271 = vld [vmem:[#allocation5 + $0x17e8] sm:$0xff]
        %v1272 = vld [vmem:[#allocation5 + $0x17f0] sm:$0xff]
        %v1273 = vld [vmem:[#allocation5 + $0x17f8] sm:$0xff]
        %v1274 = vld [vmem:[#allocation7] sm:$0xff]
        %v1275 = vld [vmem:[#allocation7 + $0x8] sm:$0xff]
        %v1276 = vld [vmem:[#allocation7 + $0x10] sm:$0xff]
        %v1280 = vlaneseq
        %v1281 = vshrl.u32 %v1280, 7
        %v1282 = vsub.s32 0, %v1281
        %v1283 = vrot.slane %v1274, %v1282
        %v1284 = vlaneseq
        %v1285 = vshrl.u32 %v1284, 7
        %v1286 = vsub.s32 1, %v1285
        %v1287 = vrot.slane %v1274, %v1286
        %v1288 = vlaneseq
        %v1289 = vshrl.u32 %v1288, 7
        %v1290 = vsub.s32 2, %v1289
        %v1291 = vrot.slane %v1274, %v1290
        %v1292 = vlaneseq
        %v1293 = vshrl.u32 %v1292, 7
        %v1294 = vsub.s32 3, %v1293
        %v1295 = vrot.slane %v1274, %v1294
        %v1296 = vlaneseq
        %v1297 = vshrl.u32 %v1296, 7
        %v1298 = vsub.s32 4, %v1297
        %v1299 = vrot.slane %v1274, %v1298
        %v1300 = vlaneseq
        %v1301 = vshrl.u32 %v1300, 7
        %v1302 = vsub.s32 5, %v1301
        %v1303 = vrot.slane %v1274, %v1302
        %v1304 = vlaneseq
        %v1305 = vshrl.u32 %v1304, 7
        %v1306 = vsub.s32 6, %v1305
        %v1307 = vrot.slane %v1274, %v1306
        %v1308 = vlaneseq
        %v1309 = vshrl.u32 %v1308, 7
        %v1310 = vsub.s32 7, %v1309
        %v1311 = vrot.slane %v1274, %v1310
        %v1312 = vlaneseq
        %v1313 = vshrl.u32 %v1312, 7
        %v1314 = vsub.s32 0, %v1313
        %v1315 = vrot.slane %v1275, %v1314
        %v1316 = vlaneseq
        %v1317 = vshrl.u32 %v1316, 7
        %v1318 = vsub.s32 1, %v1317
        %v1319 = vrot.slane %v1275, %v1318
        %v1320 = vlaneseq
        %v1321 = vshrl.u32 %v1320, 7
        %v1322 = vsub.s32 2, %v1321
        %v1323 = vrot.slane %v1275, %v1322
        %v1324 = vlaneseq
        %v1325 = vshrl.u32 %v1324, 7
        %v1326 = vsub.s32 3, %v1325
        %v1327 = vrot.slane %v1275, %v1326
        %v1328 = vlaneseq
        %v1329 = vshrl.u32 %v1328, 7
        %v1330 = vsub.s32 4, %v1329
        %v1331 = vrot.slane %v1275, %v1330
        %v1332 = vlaneseq
        %v1333 = vshrl.u32 %v1332, 7
        %v1334 = vsub.s32 5, %v1333
        %v1335 = vrot.slane %v1275, %v1334
        %v1336 = vlaneseq
        %v1337 = vshrl.u32 %v1336, 7
        %v1338 = vsub.s32 6, %v1337
        %v1339 = vrot.slane %v1275, %v1338
        %v1340 = vlaneseq
        %v1341 = vshrl.u32 %v1340, 7
        %v1342 = vsub.s32 7, %v1341
        %v1343 = vrot.slane %v1275, %v1342
        %v1344 = vlaneseq
        %v1345 = vshrl.u32 %v1344, 7
        %v1346 = vsub.s32 0, %v1345
        %v1347 = vrot.slane %v1276, %v1346
        %v1348 = vlaneseq
        %v1349 = vshrl.u32 %v1348, 7
        %v1350 = vsub.s32 1, %v1349
        %v1351 = vrot.slane %v1276, %v1350
        %v1352 = vlaneseq
        %v1353 = vshrl.u32 %v1352, 7
        %v1354 = vsub.s32 2, %v1353
        %v1355 = vrot.slane %v1276, %v1354
        %v1356 = vlaneseq
        %v1357 = vshrl.u32 %v1356, 7
        %v1358 = vsub.s32 3, %v1357
        %v1359 = vrot.slane %v1276, %v1358
        %v1360 = vlaneseq
        %v1361 = vshrl.u32 %v1360, 7
        %v1362 = vsub.s32 4, %v1361
        %v1363 = vrot.slane %v1276, %v1362
        %v1364 = vlaneseq
        %v1365 = vshrl.u32 %v1364, 7
        %v1366 = vsub.s32 5, %v1365
        %v1367 = vrot.slane %v1276, %v1366
        %v1368 = vlaneseq
        %v1369 = vshrl.u32 %v1368, 7
        %v1370 = vsub.s32 6, %v1369
        %v1371 = vrot.slane %v1276, %v1370
        %v1372 = vlaneseq
        %v1373 = vshrl.u32 %v1372, 7
        %v1374 = vsub.s32 7, %v1373
        %v1375 = vrot.slane %v1276, %v1374
        %v2168 = vunpack.c.l.b16 %v506
        %v2169 = vunpack.c.h.b16 %v506
        %v2170 = vunpack.c.l.b16 %v507
        %v2171 = vunpack.c.h.b16 %v507
        %v2172 = vunpack.c.l.b16 %v508
        %v2173 = vunpack.c.h.b16 %v508
        %v2174 = vunpack.c.l.b16 %v509
        %v2175 = vunpack.c.h.b16 %v509
        %v2176 = vunpack.c.l.b16 %v510
        %v2177 = vunpack.c.h.b16 %v510
        %v2178 = vunpack.c.l.b16 %v511
        %v2179 = vunpack.c.h.b16 %v511
        %v2180 = vunpack.c.l.b16 %v512
        %v2181 = vunpack.c.h.b16 %v512
        %v2182 = vunpack.c.l.b16 %v513
        %v2183 = vunpack.c.h.b16 %v513
        %v2184 = vunpack.c.l.b16 %v514
        %v2185 = vunpack.c.h.b16 %v514
        %v2186 = vunpack.c.l.b16 %v515
        %v2187 = vunpack.c.h.b16 %v515
        %v2188 = vunpack.c.l.b16 %v516
        %v2189 = vunpack.c.h.b16 %v516
        %v2190 = vunpack.c.l.b16 %v517
        %v2191 = vunpack.c.h.b16 %v517
        %v2192 = vunpack.c.l.b16 %v518
        %v2193 = vunpack.c.h.b16 %v518
        %v2194 = vunpack.c.l.b16 %v519
        %v2195 = vunpack.c.h.b16 %v519
        %v2196 = vunpack.c.l.b16 %v520
        %v2197 = vunpack.c.h.b16 %v520
        %v2198 = vunpack.c.l.b16 %v521
        %v2199 = vunpack.c.h.b16 %v521
        %v2200 = vunpack.c.l.b16 %v522
        %v2201 = vunpack.c.h.b16 %v522
        %v2202 = vunpack.c.l.b16 %v523
        %v2203 = vunpack.c.h.b16 %v523
        %v2204 = vunpack.c.l.b16 %v524
        %v2205 = vunpack.c.h.b16 %v524
        %v2206 = vunpack.c.l.b16 %v525
        %v2207 = vunpack.c.h.b16 %v525
        %v2208 = vunpack.c.l.b16 %v526
        %v2209 = vunpack.c.h.b16 %v526
        %v2210 = vunpack.c.l.b16 %v527
        %v2211 = vunpack.c.h.b16 %v527
        %v2212 = vunpack.c.l.b16 %v528
        %v2213 = vunpack.c.h.b16 %v528
        %v2214 = vunpack.c.l.b16 %v529
        %v2215 = vunpack.c.h.b16 %v529
        %v2216 = vunpack.c.l.b16 %v530
        %v2217 = vunpack.c.h.b16 %v530
        %v2218 = vunpack.c.l.b16 %v531
        %v2219 = vunpack.c.h.b16 %v531
        %v2220 = vunpack.c.l.b16 %v532
        %v2221 = vunpack.c.h.b16 %v532
        %v2222 = vunpack.c.l.b16 %v533
        %v2223 = vunpack.c.h.b16 %v533
        %v2224 = vunpack.c.l.b16 %v534
        %v2225 = vunpack.c.h.b16 %v534
        %v2226 = vunpack.c.l.b16 %v535
        %v2227 = vunpack.c.h.b16 %v535
        %v2228 = vunpack.c.l.b16 %v536
        %v2229 = vunpack.c.h.b16 %v536
        %v2230 = vunpack.c.l.b16 %v537
        %v2231 = vunpack.c.h.b16 %v537
        %v2232 = vunpack.c.l.b16 %v538
        %v2233 = vunpack.c.h.b16 %v538
        %v2234 = vunpack.c.l.b16 %v539
        %v2235 = vunpack.c.h.b16 %v539
        %v2236 = vunpack.c.l.b16 %v540
        %v2237 = vunpack.c.h.b16 %v540
        %v2238 = vunpack.c.l.b16 %v541
        %v2239 = vunpack.c.h.b16 %v541
        %v2240 = vunpack.c.l.b16 %v542
        %v2241 = vunpack.c.h.b16 %v542
        %v2242 = vunpack.c.l.b16 %v543
        %v2243 = vunpack.c.h.b16 %v543
        %v2244 = vunpack.c.l.b16 %v544
        %v2245 = vunpack.c.h.b16 %v544
        %v2246 = vunpack.c.l.b16 %v545
        %v2247 = vunpack.c.h.b16 %v545
        %v2248 = vunpack.c.l.b16 %v546
        %v2249 = vunpack.c.h.b16 %v546
        %v2250 = vunpack.c.l.b16 %v547
        %v2251 = vunpack.c.h.b16 %v547
        %v2252 = vunpack.c.l.b16 %v548
        %v2253 = vunpack.c.h.b16 %v548
        %v2254 = vunpack.c.l.b16 %v549
        %v2255 = vunpack.c.h.b16 %v549
        %v2256 = vunpack.c.l.b16 %v550
        %v2257 = vunpack.c.h.b16 %v550
        %v2258 = vunpack.c.l.b16 %v551
        %v2259 = vunpack.c.h.b16 %v551
        %v2260 = vunpack.c.l.b16 %v552
        %v2261 = vunpack.c.h.b16 %v552
        %v2262 = vunpack.c.l.b16 %v553
        %v2263 = vunpack.c.h.b16 %v553
        %v2264 = vunpack.c.l.b16 %v554
        %v2265 = vunpack.c.h.b16 %v554
        %v2266 = vunpack.c.l.b16 %v555
        %v2267 = vunpack.c.h.b16 %v555
        %v2268 = vunpack.c.l.b16 %v556
        %v2269 = vunpack.c.h.b16 %v556
        %v2270 = vunpack.c.l.b16 %v557
        %v2271 = vunpack.c.h.b16 %v557
        %v2272 = vunpack.c.l.b16 %v558
        %v2273 = vunpack.c.h.b16 %v558
        %v2274 = vunpack.c.l.b16 %v559
        %v2275 = vunpack.c.h.b16 %v559
        %v2276 = vunpack.c.l.b16 %v560
        %v2277 = vunpack.c.h.b16 %v560
        %v2278 = vunpack.c.l.b16 %v561
        %v2279 = vunpack.c.h.b16 %v561
        %v2280 = vunpack.c.l.b16 %v562
        %v2281 = vunpack.c.h.b16 %v562
        %v2282 = vunpack.c.l.b16 %v563
        %v2283 = vunpack.c.h.b16 %v563
        %v2284 = vunpack.c.l.b16 %v564
        %v2285 = vunpack.c.h.b16 %v564
        %v2286 = vunpack.c.l.b16 %v565
        %v2287 = vunpack.c.h.b16 %v565
        %v2288 = vunpack.c.l.b16 %v566
        %v2289 = vunpack.c.h.b16 %v566
        %v2290 = vunpack.c.l.b16 %v567
        %v2291 = vunpack.c.h.b16 %v567
        %v2292 = vunpack.c.l.b16 %v568
        %v2293 = vunpack.c.h.b16 %v568
        %v2294 = vunpack.c.l.b16 %v569
        %v2295 = vunpack.c.h.b16 %v569
        %v2296 = vunpack.c.l.b16 %v570
        %v2297 = vunpack.c.h.b16 %v570
        %v2298 = vunpack.c.l.b16 %v571
        %v2299 = vunpack.c.h.b16 %v571
        %v2300 = vunpack.c.l.b16 %v572
        %v2301 = vunpack.c.h.b16 %v572
        %v2302 = vunpack.c.l.b16 %v573
        %v2303 = vunpack.c.h.b16 %v573
        %v2304 = vunpack.c.l.b16 %v574
        %v2305 = vunpack.c.h.b16 %v574
        %v2306 = vunpack.c.l.b16 %v575
        %v2307 = vunpack.c.h.b16 %v575
        %v2308 = vunpack.c.l.b16 %v576
        %v2309 = vunpack.c.h.b16 %v576
        %v2310 = vunpack.c.l.b16 %v577
        %v2311 = vunpack.c.h.b16 %v577
        %v2312 = vunpack.c.l.b16 %v578
        %v2313 = vunpack.c.h.b16 %v578
        %v2314 = vunpack.c.l.b16 %v579
        %v2315 = vunpack.c.h.b16 %v579
        %v2316 = vunpack.c.l.b16 %v580
        %v2317 = vunpack.c.h.b16 %v580
        %v2318 = vunpack.c.l.b16 %v581
        %v2319 = vunpack.c.h.b16 %v581
        %v2320 = vunpack.c.l.b16 %v582
        %v2321 = vunpack.c.h.b16 %v582
        %v2322 = vunpack.c.l.b16 %v583
        %v2323 = vunpack.c.h.b16 %v583
        %v2324 = vunpack.c.l.b16 %v584
        %v2325 = vunpack.c.h.b16 %v584
        %v2326 = vunpack.c.l.b16 %v585
        %v2327 = vunpack.c.h.b16 %v585
        %v2328 = vunpack.c.l.b16 %v586
        %v2329 = vunpack.c.h.b16 %v586
        %v2330 = vunpack.c.l.b16 %v587
        %v2331 = vunpack.c.h.b16 %v587
        %v2332 = vunpack.c.l.b16 %v588
        %v2333 = vunpack.c.h.b16 %v588
        %v2334 = vunpack.c.l.b16 %v589
        %v2335 = vunpack.c.h.b16 %v589
        %v2336 = vunpack.c.l.b16 %v590
        %v2337 = vunpack.c.h.b16 %v590
        %v2338 = vunpack.c.l.b16 %v591
        %v2339 = vunpack.c.h.b16 %v591
        %v2340 = vunpack.c.l.b16 %v592
        %v2341 = vunpack.c.h.b16 %v592
        %v2342 = vunpack.c.l.b16 %v593
        %v2343 = vunpack.c.h.b16 %v593
        %v2344 = vunpack.c.l.b16 %v594
        %v2345 = vunpack.c.h.b16 %v594
        %v2346 = vunpack.c.l.b16 %v595
        %v2347 = vunpack.c.h.b16 %v595
        %v2348 = vunpack.c.l.b16 %v596
        %v2349 = vunpack.c.h.b16 %v596
        %v2350 = vunpack.c.l.b16 %v597
        %v2351 = vunpack.c.h.b16 %v597
        %v2352 = vunpack.c.l.b16 %v598
        %v2353 = vunpack.c.h.b16 %v598
        %v2354 = vunpack.c.l.b16 %v599
        %v2355 = vunpack.c.h.b16 %v599
        %v2356 = vunpack.c.l.b16 %v600
        %v2357 = vunpack.c.h.b16 %v600
        %v2358 = vunpack.c.l.b16 %v601
        %v2359 = vunpack.c.h.b16 %v601
        %v2360 = vunpack.c.l.b16 %v602
        %v2361 = vunpack.c.h.b16 %v602
        %v2362 = vunpack.c.l.b16 %v603
        %v2363 = vunpack.c.h.b16 %v603
        %v2364 = vunpack.c.l.b16 %v604
        %v2365 = vunpack.c.h.b16 %v604
        %v2366 = vunpack.c.l.b16 %v605
        %v2367 = vunpack.c.h.b16 %v605
        %v2368 = vunpack.c.l.b16 %v606
        %v2369 = vunpack.c.h.b16 %v606
        %v2370 = vunpack.c.l.b16 %v607
        %v2371 = vunpack.c.h.b16 %v607
        %v2372 = vunpack.c.l.b16 %v608
        %v2373 = vunpack.c.h.b16 %v608
        %v2374 = vunpack.c.l.b16 %v609
        %v2375 = vunpack.c.h.b16 %v609
        %v2376 = vunpack.c.l.b16 %v610
        %v2377 = vunpack.c.h.b16 %v610
        %v2378 = vunpack.c.l.b16 %v611
        %v2379 = vunpack.c.h.b16 %v611
        %v2380 = vunpack.c.l.b16 %v612
        %v2381 = vunpack.c.h.b16 %v612
        %v2382 = vunpack.c.l.b16 %v613
        %v2383 = vunpack.c.h.b16 %v613
        %v2384 = vunpack.c.l.b16 %v614
        %v2385 = vunpack.c.h.b16 %v614
        %v2386 = vunpack.c.l.b16 %v615
        %v2387 = vunpack.c.h.b16 %v615
        %v2388 = vunpack.c.l.b16 %v616
        %v2389 = vunpack.c.h.b16 %v616
        %v2390 = vunpack.c.l.b16 %v617
        %v2391 = vunpack.c.h.b16 %v617
        %v2392 = vunpack.c.l.b16 %v618
        %v2393 = vunpack.c.h.b16 %v618
        %v2394 = vunpack.c.l.b16 %v619
        %v2395 = vunpack.c.h.b16 %v619
        %v2396 = vunpack.c.l.b16 %v620
        %v2397 = vunpack.c.h.b16 %v620
        %v2398 = vunpack.c.l.b16 %v621
        %v2399 = vunpack.c.h.b16 %v621
        %v2400 = vunpack.c.l.b16 %v622
        %v2401 = vunpack.c.h.b16 %v622
        %v2402 = vunpack.c.l.b16 %v623
        %v2403 = vunpack.c.h.b16 %v623
        %v2404 = vunpack.c.l.b16 %v624
        %v2405 = vunpack.c.h.b16 %v624
        %v2406 = vunpack.c.l.b16 %v625
        %v2407 = vunpack.c.h.b16 %v625
        %v2408 = vunpack.c.l.b16 %v626
        %v2409 = vunpack.c.h.b16 %v626
        %v2410 = vunpack.c.l.b16 %v627
        %v2411 = vunpack.c.h.b16 %v627
        %v2412 = vunpack.c.l.b16 %v628
        %v2413 = vunpack.c.h.b16 %v628
        %v2414 = vunpack.c.l.b16 %v629
        %v2415 = vunpack.c.h.b16 %v629
        %v2416 = vunpack.c.l.b16 %v630
        %v2417 = vunpack.c.h.b16 %v630
        %v2418 = vunpack.c.l.b16 %v631
        %v2419 = vunpack.c.h.b16 %v631
        %v2420 = vunpack.c.l.b16 %v632
        %v2421 = vunpack.c.h.b16 %v632
        %v2422 = vunpack.c.l.b16 %v633
        %v2423 = vunpack.c.h.b16 %v633
        %v2424 = vunpack.c.l.b16 %v634
        %v2425 = vunpack.c.h.b16 %v634
        %v2426 = vunpack.c.l.b16 %v635
        %v2427 = vunpack.c.h.b16 %v635
        %v2428 = vunpack.c.l.b16 %v636
        %v2429 = vunpack.c.h.b16 %v636
        %v2430 = vunpack.c.l.b16 %v637
        %v2431 = vunpack.c.h.b16 %v637
        %v2432 = vunpack.c.l.b16 %v638
        %v2433 = vunpack.c.h.b16 %v638
        %v2434 = vunpack.c.l.b16 %v639
        %v2435 = vunpack.c.h.b16 %v639
        %v2436 = vunpack.c.l.b16 %v640
        %v2437 = vunpack.c.h.b16 %v640
        %v2438 = vunpack.c.l.b16 %v641
        %v2439 = vunpack.c.h.b16 %v641
        %v2440 = vunpack.c.l.b16 %v642
        %v2441 = vunpack.c.h.b16 %v642
        %v2442 = vunpack.c.l.b16 %v643
        %v2443 = vunpack.c.h.b16 %v643
        %v2444 = vunpack.c.l.b16 %v644
        %v2445 = vunpack.c.h.b16 %v644
        %v2446 = vunpack.c.l.b16 %v645
        %v2447 = vunpack.c.h.b16 %v645
        %v2448 = vunpack.c.l.b16 %v646
        %v2449 = vunpack.c.h.b16 %v646
        %v2450 = vunpack.c.l.b16 %v647
        %v2451 = vunpack.c.h.b16 %v647
        %v2452 = vunpack.c.l.b16 %v648
        %v2453 = vunpack.c.h.b16 %v648
        %v2454 = vunpack.c.l.b16 %v649
        %v2455 = vunpack.c.h.b16 %v649
        %v2456 = vunpack.c.l.b16 %v650
        %v2457 = vunpack.c.h.b16 %v650
        %v2458 = vunpack.c.l.b16 %v651
        %v2459 = vunpack.c.h.b16 %v651
        %v2460 = vunpack.c.l.b16 %v652
        %v2461 = vunpack.c.h.b16 %v652
        %v2462 = vunpack.c.l.b16 %v653
        %v2463 = vunpack.c.h.b16 %v653
        %v2464 = vunpack.c.l.b16 %v654
        %v2465 = vunpack.c.h.b16 %v654
        %v2466 = vunpack.c.l.b16 %v655
        %v2467 = vunpack.c.h.b16 %v655
        %v2468 = vunpack.c.l.b16 %v656
        %v2469 = vunpack.c.h.b16 %v656
        %v2470 = vunpack.c.l.b16 %v657
        %v2471 = vunpack.c.h.b16 %v657
        %v2472 = vunpack.c.l.b16 %v658
        %v2473 = vunpack.c.h.b16 %v658
        %v2474 = vunpack.c.l.b16 %v659
        %v2475 = vunpack.c.h.b16 %v659
        %v2476 = vunpack.c.l.b16 %v660
        %v2477 = vunpack.c.h.b16 %v660
        %v2478 = vunpack.c.l.b16 %v661
        %v2479 = vunpack.c.h.b16 %v661
        %v2480 = vunpack.c.l.b16 %v662
        %v2481 = vunpack.c.h.b16 %v662
        %v2482 = vunpack.c.l.b16 %v663
        %v2483 = vunpack.c.h.b16 %v663
        %v2484 = vunpack.c.l.b16 %v664
        %v2485 = vunpack.c.h.b16 %v664
        %v2486 = vunpack.c.l.b16 %v665
        %v2487 = vunpack.c.h.b16 %v665
        %v2488 = vunpack.c.l.b16 %v666
        %v2489 = vunpack.c.h.b16 %v666
        %v2490 = vunpack.c.l.b16 %v667
        %v2491 = vunpack.c.h.b16 %v667
        %v2492 = vunpack.c.l.b16 %v668
        %v2493 = vunpack.c.h.b16 %v668
        %v2494 = vunpack.c.l.b16 %v669
        %v2495 = vunpack.c.h.b16 %v669
        %v2496 = vunpack.c.l.b16 %v670
        %v2497 = vunpack.c.h.b16 %v670
        %v2498 = vunpack.c.l.b16 %v671
        %v2499 = vunpack.c.h.b16 %v671
        %v2500 = vunpack.c.l.b16 %v672
        %v2501 = vunpack.c.h.b16 %v672
        %v2502 = vunpack.c.l.b16 %v673
        %v2503 = vunpack.c.h.b16 %v673
        %v2504 = vunpack.c.l.b16 %v674
        %v2505 = vunpack.c.h.b16 %v674
        %v2506 = vunpack.c.l.b16 %v675
        %v2507 = vunpack.c.h.b16 %v675
        %v2508 = vunpack.c.l.b16 %v676
        %v2509 = vunpack.c.h.b16 %v676
        %v2510 = vunpack.c.l.b16 %v677
        %v2511 = vunpack.c.h.b16 %v677
        %v2512 = vunpack.c.l.b16 %v678
        %v2513 = vunpack.c.h.b16 %v678
        %v2514 = vunpack.c.l.b16 %v679
        %v2515 = vunpack.c.h.b16 %v679
        %v2516 = vunpack.c.l.b16 %v680
        %v2517 = vunpack.c.h.b16 %v680
        %v2518 = vunpack.c.l.b16 %v681
        %v2519 = vunpack.c.h.b16 %v681
        %v2520 = vunpack.c.l.b16 %v682
        %v2521 = vunpack.c.h.b16 %v682
        %v2522 = vunpack.c.l.b16 %v683
        %v2523 = vunpack.c.h.b16 %v683
        %v2524 = vunpack.c.l.b16 %v684
        %v2525 = vunpack.c.h.b16 %v684
        %v2526 = vunpack.c.l.b16 %v685
        %v2527 = vunpack.c.h.b16 %v685
        %v2528 = vunpack.c.l.b16 %v686
        %v2529 = vunpack.c.h.b16 %v686
        %v2530 = vunpack.c.l.b16 %v687
        %v2531 = vunpack.c.h.b16 %v687
        %v2532 = vunpack.c.l.b16 %v688
        %v2533 = vunpack.c.h.b16 %v688
        %v2534 = vunpack.c.l.b16 %v689
        %v2535 = vunpack.c.h.b16 %v689
        %v2536 = vunpack.c.l.b16 %v690
        %v2537 = vunpack.c.h.b16 %v690
        %v2538 = vunpack.c.l.b16 %v691
        %v2539 = vunpack.c.h.b16 %v691
        %v2540 = vunpack.c.l.b16 %v692
        %v2541 = vunpack.c.h.b16 %v692
        %v2542 = vunpack.c.l.b16 %v693
        %v2543 = vunpack.c.h.b16 %v693
        %v2544 = vunpack.c.l.b16 %v694
        %v2545 = vunpack.c.h.b16 %v694
        %v2546 = vunpack.c.l.b16 %v695
        %v2547 = vunpack.c.h.b16 %v695
        %v2548 = vunpack.c.l.b16 %v696
        %v2549 = vunpack.c.h.b16 %v696
        %v2550 = vunpack.c.l.b16 %v697
        %v2551 = vunpack.c.h.b16 %v697
        %v2552 = vunpack.c.l.b16 %v698
        %v2553 = vunpack.c.h.b16 %v698
        %v2554 = vunpack.c.l.b16 %v699
        %v2555 = vunpack.c.h.b16 %v699
        %v2556 = vunpack.c.l.b16 %v700
        %v2557 = vunpack.c.h.b16 %v700
        %v2558 = vunpack.c.l.b16 %v701
        %v2559 = vunpack.c.h.b16 %v701
        %v2560 = vunpack.c.l.b16 %v702
        %v2561 = vunpack.c.h.b16 %v702
        %v2562 = vunpack.c.l.b16 %v703
        %v2563 = vunpack.c.h.b16 %v703
        %v2564 = vunpack.c.l.b16 %v704
        %v2565 = vunpack.c.h.b16 %v704
        %v2566 = vunpack.c.l.b16 %v705
        %v2567 = vunpack.c.h.b16 %v705
        %v2568 = vunpack.c.l.b16 %v706
        %v2569 = vunpack.c.h.b16 %v706
        %v2570 = vunpack.c.l.b16 %v707
        %v2571 = vunpack.c.h.b16 %v707
        %v2572 = vunpack.c.l.b16 %v708
        %v2573 = vunpack.c.h.b16 %v708
        %v2574 = vunpack.c.l.b16 %v709
        %v2575 = vunpack.c.h.b16 %v709
        %v2576 = vunpack.c.l.b16 %v710
        %v2577 = vunpack.c.h.b16 %v710
        %v2578 = vunpack.c.l.b16 %v711
        %v2579 = vunpack.c.h.b16 %v711
        %v2580 = vunpack.c.l.b16 %v712
        %v2581 = vunpack.c.h.b16 %v712
        %v2582 = vunpack.c.l.b16 %v713
        %v2583 = vunpack.c.h.b16 %v713
        %v2584 = vunpack.c.l.b16 %v714
        %v2585 = vunpack.c.h.b16 %v714
        %v2586 = vunpack.c.l.b16 %v715
        %v2587 = vunpack.c.h.b16 %v715
        %v2588 = vunpack.c.l.b16 %v716
        %v2589 = vunpack.c.h.b16 %v716
        %v2590 = vunpack.c.l.b16 %v717
        %v2591 = vunpack.c.h.b16 %v717
        %v2592 = vunpack.c.l.b16 %v718
        %v2593 = vunpack.c.h.b16 %v718
        %v2594 = vunpack.c.l.b16 %v719
        %v2595 = vunpack.c.h.b16 %v719
        %v2596 = vunpack.c.l.b16 %v720
        %v2597 = vunpack.c.h.b16 %v720
        %v2598 = vunpack.c.l.b16 %v721
        %v2599 = vunpack.c.h.b16 %v721
        %v2600 = vunpack.c.l.b16 %v722
        %v2601 = vunpack.c.h.b16 %v722
        %v2602 = vunpack.c.l.b16 %v723
        %v2603 = vunpack.c.h.b16 %v723
        %v2604 = vunpack.c.l.b16 %v724
        %v2605 = vunpack.c.h.b16 %v724
        %v2606 = vunpack.c.l.b16 %v725
        %v2607 = vunpack.c.h.b16 %v725
        %v2608 = vunpack.c.l.b16 %v726
        %v2609 = vunpack.c.h.b16 %v726
        %v2610 = vunpack.c.l.b16 %v727
        %v2611 = vunpack.c.h.b16 %v727
        %v2612 = vunpack.c.l.b16 %v728
        %v2613 = vunpack.c.h.b16 %v728
        %v2614 = vunpack.c.l.b16 %v729
        %v2615 = vunpack.c.h.b16 %v729
        %v2616 = vunpack.c.l.b16 %v730
        %v2617 = vunpack.c.h.b16 %v730
        %v2618 = vunpack.c.l.b16 %v731
        %v2619 = vunpack.c.h.b16 %v731
        %v2620 = vunpack.c.l.b16 %v732
        %v2621 = vunpack.c.h.b16 %v732
        %v2622 = vunpack.c.l.b16 %v733
        %v2623 = vunpack.c.h.b16 %v733
        %v2624 = vunpack.c.l.b16 %v734
        %v2625 = vunpack.c.h.b16 %v734
        %v2626 = vunpack.c.l.b16 %v735
        %v2627 = vunpack.c.h.b16 %v735
        %v2628 = vunpack.c.l.b16 %v736
        %v2629 = vunpack.c.h.b16 %v736
        %v2630 = vunpack.c.l.b16 %v737
        %v2631 = vunpack.c.h.b16 %v737
        %v2632 = vunpack.c.l.b16 %v738
        %v2633 = vunpack.c.h.b16 %v738
        %v2634 = vunpack.c.l.b16 %v739
        %v2635 = vunpack.c.h.b16 %v739
        %v2636 = vunpack.c.l.b16 %v740
        %v2637 = vunpack.c.h.b16 %v740
        %v2638 = vunpack.c.l.b16 %v741
        %v2639 = vunpack.c.h.b16 %v741
        %v2640 = vunpack.c.l.b16 %v742
        %v2641 = vunpack.c.h.b16 %v742
        %v2642 = vunpack.c.l.b16 %v743
        %v2643 = vunpack.c.h.b16 %v743
        %v2644 = vunpack.c.l.b16 %v744
        %v2645 = vunpack.c.h.b16 %v744
        %v2646 = vunpack.c.l.b16 %v745
        %v2647 = vunpack.c.h.b16 %v745
        %v2648 = vunpack.c.l.b16 %v746
        %v2649 = vunpack.c.h.b16 %v746
        %v2650 = vunpack.c.l.b16 %v747
        %v2651 = vunpack.c.h.b16 %v747
        %v2652 = vunpack.c.l.b16 %v748
        %v2653 = vunpack.c.h.b16 %v748
        %v2654 = vunpack.c.l.b16 %v749
        %v2655 = vunpack.c.h.b16 %v749
        %v2656 = vunpack.c.l.b16 %v750
        %v2657 = vunpack.c.h.b16 %v750
        %v2658 = vunpack.c.l.b16 %v751
        %v2659 = vunpack.c.h.b16 %v751
        %v2660 = vunpack.c.l.b16 %v752
        %v2661 = vunpack.c.h.b16 %v752
        %v2662 = vunpack.c.l.b16 %v753
        %v2663 = vunpack.c.h.b16 %v753
        %v2664 = vunpack.c.l.b16 %v754
        %v2665 = vunpack.c.h.b16 %v754
        %v2666 = vunpack.c.l.b16 %v755
        %v2667 = vunpack.c.h.b16 %v755
        %v2668 = vunpack.c.l.b16 %v756
        %v2669 = vunpack.c.h.b16 %v756
        %v2670 = vunpack.c.l.b16 %v757
        %v2671 = vunpack.c.h.b16 %v757
        %v2672 = vunpack.c.l.b16 %v758
        %v2673 = vunpack.c.h.b16 %v758
        %v2674 = vunpack.c.l.b16 %v759
        %v2675 = vunpack.c.h.b16 %v759
        %v2676 = vunpack.c.l.b16 %v760
        %v2677 = vunpack.c.h.b16 %v760
        %v2678 = vunpack.c.l.b16 %v761
        %v2679 = vunpack.c.h.b16 %v761
        %v2680 = vunpack.c.l.b16 %v762
        %v2681 = vunpack.c.h.b16 %v762
        %v2682 = vunpack.c.l.b16 %v763
        %v2683 = vunpack.c.h.b16 %v763
        %v2684 = vunpack.c.l.b16 %v764
        %v2685 = vunpack.c.h.b16 %v764
        %v2686 = vunpack.c.l.b16 %v765
        %v2687 = vunpack.c.h.b16 %v765
        %v2688 = vunpack.c.l.b16 %v766
        %v2689 = vunpack.c.h.b16 %v766
        %v2690 = vunpack.c.l.b16 %v767
        %v2691 = vunpack.c.h.b16 %v767
        %v2692 = vunpack.c.l.b16 %v768
        %v2693 = vunpack.c.h.b16 %v768
        %v2694 = vunpack.c.l.b16 %v769
        %v2695 = vunpack.c.h.b16 %v769
        %v2696 = vunpack.c.l.b16 %v770
        %v2697 = vunpack.c.h.b16 %v770
        %v2698 = vunpack.c.l.b16 %v771
        %v2699 = vunpack.c.h.b16 %v771
        %v2700 = vunpack.c.l.b16 %v772
        %v2701 = vunpack.c.h.b16 %v772
        %v2702 = vunpack.c.l.b16 %v773
        %v2703 = vunpack.c.h.b16 %v773
        %v2704 = vunpack.c.l.b16 %v774
        %v2705 = vunpack.c.h.b16 %v774
        %v2706 = vunpack.c.l.b16 %v775
        %v2707 = vunpack.c.h.b16 %v775
        %v2708 = vunpack.c.l.b16 %v776
        %v2709 = vunpack.c.h.b16 %v776
        %v2710 = vunpack.c.l.b16 %v777
        %v2711 = vunpack.c.h.b16 %v777
        %v2712 = vunpack.c.l.b16 %v778
        %v2713 = vunpack.c.h.b16 %v778
        %v2714 = vunpack.c.l.b16 %v779
        %v2715 = vunpack.c.h.b16 %v779
        %v2716 = vunpack.c.l.b16 %v780
        %v2717 = vunpack.c.h.b16 %v780
        %v2718 = vunpack.c.l.b16 %v781
        %v2719 = vunpack.c.h.b16 %v781
        %v2720 = vunpack.c.l.b16 %v782
        %v2721 = vunpack.c.h.b16 %v782
        %v2722 = vunpack.c.l.b16 %v783
        %v2723 = vunpack.c.h.b16 %v783
        %v2724 = vunpack.c.l.b16 %v784
        %v2725 = vunpack.c.h.b16 %v784
        %v2726 = vunpack.c.l.b16 %v785
        %v2727 = vunpack.c.h.b16 %v785
        %v2728 = vunpack.c.l.b16 %v786
        %v2729 = vunpack.c.h.b16 %v786
        %v2730 = vunpack.c.l.b16 %v787
        %v2731 = vunpack.c.h.b16 %v787
        %v2732 = vunpack.c.l.b16 %v788
        %v2733 = vunpack.c.h.b16 %v788
        %v2734 = vunpack.c.l.b16 %v789
        %v2735 = vunpack.c.h.b16 %v789
        %v2736 = vunpack.c.l.b16 %v790
        %v2737 = vunpack.c.h.b16 %v790
        %v2738 = vunpack.c.l.b16 %v791
        %v2739 = vunpack.c.h.b16 %v791
        %v2740 = vunpack.c.l.b16 %v792
        %v2741 = vunpack.c.h.b16 %v792
        %v2742 = vunpack.c.l.b16 %v793
        %v2743 = vunpack.c.h.b16 %v793
        %v2744 = vunpack.c.l.b16 %v794
        %v2745 = vunpack.c.h.b16 %v794
        %v2746 = vunpack.c.l.b16 %v795
        %v2747 = vunpack.c.h.b16 %v795
        %v2748 = vunpack.c.l.b16 %v796
        %v2749 = vunpack.c.h.b16 %v796
        %v2750 = vunpack.c.l.b16 %v797
        %v2751 = vunpack.c.h.b16 %v797
        %v2752 = vunpack.c.l.b16 %v798
        %v2753 = vunpack.c.h.b16 %v798
        %v2754 = vunpack.c.l.b16 %v799
        %v2755 = vunpack.c.h.b16 %v799
        %v2756 = vunpack.c.l.b16 %v800
        %v2757 = vunpack.c.h.b16 %v800
        %v2758 = vunpack.c.l.b16 %v801
        %v2759 = vunpack.c.h.b16 %v801
        %v2760 = vunpack.c.l.b16 %v802
        %v2761 = vunpack.c.h.b16 %v802
        %v2762 = vunpack.c.l.b16 %v803
        %v2763 = vunpack.c.h.b16 %v803
        %v2764 = vunpack.c.l.b16 %v804
        %v2765 = vunpack.c.h.b16 %v804
        %v2766 = vunpack.c.l.b16 %v805
        %v2767 = vunpack.c.h.b16 %v805
        %v2768 = vunpack.c.l.b16 %v806
        %v2769 = vunpack.c.h.b16 %v806
        %v2770 = vunpack.c.l.b16 %v807
        %v2771 = vunpack.c.h.b16 %v807
        %v2772 = vunpack.c.l.b16 %v808
        %v2773 = vunpack.c.h.b16 %v808
        %v2774 = vunpack.c.l.b16 %v809
        %v2775 = vunpack.c.h.b16 %v809
        %v2776 = vunpack.c.l.b16 %v810
        %v2777 = vunpack.c.h.b16 %v810
        %v2778 = vunpack.c.l.b16 %v811
        %v2779 = vunpack.c.h.b16 %v811
        %v2780 = vunpack.c.l.b16 %v812
        %v2781 = vunpack.c.h.b16 %v812
        %v2782 = vunpack.c.l.b16 %v813
        %v2783 = vunpack.c.h.b16 %v813
        %v2784 = vunpack.c.l.b16 %v814
        %v2785 = vunpack.c.h.b16 %v814
        %v2786 = vunpack.c.l.b16 %v815
        %v2787 = vunpack.c.h.b16 %v815
        %v2788 = vunpack.c.l.b16 %v816
        %v2789 = vunpack.c.h.b16 %v816
        %v2790 = vunpack.c.l.b16 %v817
        %v2791 = vunpack.c.h.b16 %v817
        %v2792 = vunpack.c.l.b16 %v818
        %v2793 = vunpack.c.h.b16 %v818
        %v2794 = vunpack.c.l.b16 %v819
        %v2795 = vunpack.c.h.b16 %v819
        %v2796 = vunpack.c.l.b16 %v820
        %v2797 = vunpack.c.h.b16 %v820
        %v2798 = vunpack.c.l.b16 %v821
        %v2799 = vunpack.c.h.b16 %v821
        %v2800 = vunpack.c.l.b16 %v822
        %v2801 = vunpack.c.h.b16 %v822
        %v2802 = vunpack.c.l.b16 %v823
        %v2803 = vunpack.c.h.b16 %v823
        %v2804 = vunpack.c.l.b16 %v824
        %v2805 = vunpack.c.h.b16 %v824
        %v2806 = vunpack.c.l.b16 %v825
        %v2807 = vunpack.c.h.b16 %v825
        %v2808 = vunpack.c.l.b16 %v826
        %v2809 = vunpack.c.h.b16 %v826
        %v2810 = vunpack.c.l.b16 %v827
        %v2811 = vunpack.c.h.b16 %v827
        %v2812 = vunpack.c.l.b16 %v828
        %v2813 = vunpack.c.h.b16 %v828
        %v2814 = vunpack.c.l.b16 %v829
        %v2815 = vunpack.c.h.b16 %v829
        %v2816 = vunpack.c.l.b16 %v830
        %v2817 = vunpack.c.h.b16 %v830
        %v2818 = vunpack.c.l.b16 %v831
        %v2819 = vunpack.c.h.b16 %v831
        %v2820 = vunpack.c.l.b16 %v832
        %v2821 = vunpack.c.h.b16 %v832
        %v2822 = vunpack.c.l.b16 %v833
        %v2823 = vunpack.c.h.b16 %v833
        %v2824 = vunpack.c.l.b16 %v834
        %v2825 = vunpack.c.h.b16 %v834
        %v2826 = vunpack.c.l.b16 %v835
        %v2827 = vunpack.c.h.b16 %v835
        %v2828 = vunpack.c.l.b16 %v836
        %v2829 = vunpack.c.h.b16 %v836
        %v2830 = vunpack.c.l.b16 %v837
        %v2831 = vunpack.c.h.b16 %v837
        %v2832 = vunpack.c.l.b16 %v838
        %v2833 = vunpack.c.h.b16 %v838
        %v2834 = vunpack.c.l.b16 %v839
        %v2835 = vunpack.c.h.b16 %v839
        %v2836 = vunpack.c.l.b16 %v840
        %v2837 = vunpack.c.h.b16 %v840
        %v2838 = vunpack.c.l.b16 %v841
        %v2839 = vunpack.c.h.b16 %v841
        %v2840 = vunpack.c.l.b16 %v842
        %v2841 = vunpack.c.h.b16 %v842
        %v2842 = vunpack.c.l.b16 %v843
        %v2843 = vunpack.c.h.b16 %v843
        %v2844 = vunpack.c.l.b16 %v844
        %v2845 = vunpack.c.h.b16 %v844
        %v2846 = vunpack.c.l.b16 %v845
        %v2847 = vunpack.c.h.b16 %v845
        %v2848 = vunpack.c.l.b16 %v846
        %v2849 = vunpack.c.h.b16 %v846
        %v2850 = vunpack.c.l.b16 %v847
        %v2851 = vunpack.c.h.b16 %v847
        %v2852 = vunpack.c.l.b16 %v848
        %v2853 = vunpack.c.h.b16 %v848
        %v2854 = vunpack.c.l.b16 %v849
        %v2855 = vunpack.c.h.b16 %v849
        %v2856 = vunpack.c.l.b16 %v850
        %v2857 = vunpack.c.h.b16 %v850
        %v2858 = vunpack.c.l.b16 %v851
        %v2859 = vunpack.c.h.b16 %v851
        %v2860 = vunpack.c.l.b16 %v852
        %v2861 = vunpack.c.h.b16 %v852
        %v2862 = vunpack.c.l.b16 %v853
        %v2863 = vunpack.c.h.b16 %v853
        %v2864 = vunpack.c.l.b16 %v854
        %v2865 = vunpack.c.h.b16 %v854
        %v2866 = vunpack.c.l.b16 %v855
        %v2867 = vunpack.c.h.b16 %v855
        %v2868 = vunpack.c.l.b16 %v856
        %v2869 = vunpack.c.h.b16 %v856
        %v2870 = vunpack.c.l.b16 %v857
        %v2871 = vunpack.c.h.b16 %v857
        %v2872 = vunpack.c.l.b16 %v858
        %v2873 = vunpack.c.h.b16 %v858
        %v2874 = vunpack.c.l.b16 %v859
        %v2875 = vunpack.c.h.b16 %v859
        %v2876 = vunpack.c.l.b16 %v860
        %v2877 = vunpack.c.h.b16 %v860
        %v2878 = vunpack.c.l.b16 %v861
        %v2879 = vunpack.c.h.b16 %v861
        %v2880 = vunpack.c.l.b16 %v862
        %v2881 = vunpack.c.h.b16 %v862
        %v2882 = vunpack.c.l.b16 %v863
        %v2883 = vunpack.c.h.b16 %v863
        %v2884 = vunpack.c.l.b16 %v864
        %v2885 = vunpack.c.h.b16 %v864
        %v2886 = vunpack.c.l.b16 %v865
        %v2887 = vunpack.c.h.b16 %v865
        %v2888 = vunpack.c.l.b16 %v866
        %v2889 = vunpack.c.h.b16 %v866
        %v2890 = vunpack.c.l.b16 %v867
        %v2891 = vunpack.c.h.b16 %v867
        %v2892 = vunpack.c.l.b16 %v868
        %v2893 = vunpack.c.h.b16 %v868
        %v2894 = vunpack.c.l.b16 %v869
        %v2895 = vunpack.c.h.b16 %v869
        %v2896 = vunpack.c.l.b16 %v870
        %v2897 = vunpack.c.h.b16 %v870
        %v2898 = vunpack.c.l.b16 %v871
        %v2899 = vunpack.c.h.b16 %v871
        %v2900 = vunpack.c.l.b16 %v872
        %v2901 = vunpack.c.h.b16 %v872
        %v2902 = vunpack.c.l.b16 %v873
        %v2903 = vunpack.c.h.b16 %v873
        %v2904 = vunpack.c.l.b16 %v874
        %v2905 = vunpack.c.h.b16 %v874
        %v2906 = vunpack.c.l.b16 %v875
        %v2907 = vunpack.c.h.b16 %v875
        %v2908 = vunpack.c.l.b16 %v876
        %v2909 = vunpack.c.h.b16 %v876
        %v2910 = vunpack.c.l.b16 %v877
        %v2911 = vunpack.c.h.b16 %v877
        %v2912 = vunpack.c.l.b16 %v878
        %v2913 = vunpack.c.h.b16 %v878
        %v2914 = vunpack.c.l.b16 %v879
        %v2915 = vunpack.c.h.b16 %v879
        %v2916 = vunpack.c.l.b16 %v880
        %v2917 = vunpack.c.h.b16 %v880
        %v2918 = vunpack.c.l.b16 %v881
        %v2919 = vunpack.c.h.b16 %v881
        %v2920 = vunpack.c.l.b16 %v882
        %v2921 = vunpack.c.h.b16 %v882
        %v2922 = vunpack.c.l.b16 %v883
        %v2923 = vunpack.c.h.b16 %v883
        %v2924 = vunpack.c.l.b16 %v884
        %v2925 = vunpack.c.h.b16 %v884
        %v2926 = vunpack.c.l.b16 %v885
        %v2927 = vunpack.c.h.b16 %v885
        %v2928 = vunpack.c.l.b16 %v886
        %v2929 = vunpack.c.h.b16 %v886
        %v2930 = vunpack.c.l.b16 %v887
        %v2931 = vunpack.c.h.b16 %v887
        %v2932 = vunpack.c.l.b16 %v888
        %v2933 = vunpack.c.h.b16 %v888
        %v2934 = vunpack.c.l.b16 %v889
        %v2935 = vunpack.c.h.b16 %v889
        %v2936 = vunpack.c.l.b16 %v890
        %v2937 = vunpack.c.h.b16 %v890
        %v2938 = vunpack.c.l.b16 %v891
        %v2939 = vunpack.c.h.b16 %v891
        %v2940 = vunpack.c.l.b16 %v892
        %v2941 = vunpack.c.h.b16 %v892
        %v2942 = vunpack.c.l.b16 %v893
        %v2943 = vunpack.c.h.b16 %v893
        %v2944 = vunpack.c.l.b16 %v894
        %v2945 = vunpack.c.h.b16 %v894
        %v2946 = vunpack.c.l.b16 %v895
        %v2947 = vunpack.c.h.b16 %v895
        %v2948 = vunpack.c.l.b16 %v896
        %v2949 = vunpack.c.h.b16 %v896
        %v2950 = vunpack.c.l.b16 %v897
        %v2951 = vunpack.c.h.b16 %v897
        %v2952 = vunpack.c.l.b16 %v898
        %v2953 = vunpack.c.h.b16 %v898
        %v2954 = vunpack.c.l.b16 %v899
        %v2955 = vunpack.c.h.b16 %v899
        %v2956 = vunpack.c.l.b16 %v900
        %v2957 = vunpack.c.h.b16 %v900
        %v2958 = vunpack.c.l.b16 %v901
        %v2959 = vunpack.c.h.b16 %v901
        %v2960 = vunpack.c.l.b16 %v902
        %v2961 = vunpack.c.h.b16 %v902
        %v2962 = vunpack.c.l.b16 %v903
        %v2963 = vunpack.c.h.b16 %v903
        %v2964 = vunpack.c.l.b16 %v904
        %v2965 = vunpack.c.h.b16 %v904
        %v2966 = vunpack.c.l.b16 %v905
        %v2967 = vunpack.c.h.b16 %v905
        %v2968 = vunpack.c.l.b16 %v906
        %v2969 = vunpack.c.h.b16 %v906
        %v2970 = vunpack.c.l.b16 %v907
        %v2971 = vunpack.c.h.b16 %v907
        %v2972 = vunpack.c.l.b16 %v908
        %v2973 = vunpack.c.h.b16 %v908
        %v2974 = vunpack.c.l.b16 %v909
        %v2975 = vunpack.c.h.b16 %v909
        %v2976 = vunpack.c.l.b16 %v910
        %v2977 = vunpack.c.h.b16 %v910
        %v2978 = vunpack.c.l.b16 %v911
        %v2979 = vunpack.c.h.b16 %v911
        %v2980 = vunpack.c.l.b16 %v912
        %v2981 = vunpack.c.h.b16 %v912
        %v2982 = vunpack.c.l.b16 %v913
        %v2983 = vunpack.c.h.b16 %v913
        %v2984 = vunpack.c.l.b16 %v914
        %v2985 = vunpack.c.h.b16 %v914
        %v2986 = vunpack.c.l.b16 %v915
        %v2987 = vunpack.c.h.b16 %v915
        %v2988 = vunpack.c.l.b16 %v916
        %v2989 = vunpack.c.h.b16 %v916
        %v2990 = vunpack.c.l.b16 %v917
        %v2991 = vunpack.c.h.b16 %v917
        %v2992 = vunpack.c.l.b16 %v918
        %v2993 = vunpack.c.h.b16 %v918
        %v2994 = vunpack.c.l.b16 %v919
        %v2995 = vunpack.c.h.b16 %v919
        %v2996 = vunpack.c.l.b16 %v920
        %v2997 = vunpack.c.h.b16 %v920
        %v2998 = vunpack.c.l.b16 %v921
        %v2999 = vunpack.c.h.b16 %v921
        %v3000 = vunpack.c.l.b16 %v922
        %v3001 = vunpack.c.h.b16 %v922
        %v3002 = vunpack.c.l.b16 %v923
        %v3003 = vunpack.c.h.b16 %v923
        %v3004 = vunpack.c.l.b16 %v924
        %v3005 = vunpack.c.h.b16 %v924
        %v3006 = vunpack.c.l.b16 %v925
        %v3007 = vunpack.c.h.b16 %v925
        %v3008 = vunpack.c.l.b16 %v926
        %v3009 = vunpack.c.h.b16 %v926
        %v3010 = vunpack.c.l.b16 %v927
        %v3011 = vunpack.c.h.b16 %v927
        %v3012 = vunpack.c.l.b16 %v928
        %v3013 = vunpack.c.h.b16 %v928
        %v3014 = vunpack.c.l.b16 %v929
        %v3015 = vunpack.c.h.b16 %v929
        %v3016 = vunpack.c.l.b16 %v930
        %v3017 = vunpack.c.h.b16 %v930
        %v3018 = vunpack.c.l.b16 %v931
        %v3019 = vunpack.c.h.b16 %v931
        %v3020 = vunpack.c.l.b16 %v932
        %v3021 = vunpack.c.h.b16 %v932
        %v3022 = vunpack.c.l.b16 %v933
        %v3023 = vunpack.c.h.b16 %v933
        %v3024 = vunpack.c.l.b16 %v934
        %v3025 = vunpack.c.h.b16 %v934
        %v3026 = vunpack.c.l.b16 %v935
        %v3027 = vunpack.c.h.b16 %v935
        %v3028 = vunpack.c.l.b16 %v936
        %v3029 = vunpack.c.h.b16 %v936
        %v3030 = vunpack.c.l.b16 %v937
        %v3031 = vunpack.c.h.b16 %v937
        %v3032 = vunpack.c.l.b16 %v938
        %v3033 = vunpack.c.h.b16 %v938
        %v3034 = vunpack.c.l.b16 %v939
        %v3035 = vunpack.c.h.b16 %v939
        %v3036 = vunpack.c.l.b16 %v940
        %v3037 = vunpack.c.h.b16 %v940
        %v3038 = vunpack.c.l.b16 %v941
        %v3039 = vunpack.c.h.b16 %v941
        %v3040 = vunpack.c.l.b16 %v942
        %v3041 = vunpack.c.h.b16 %v942
        %v3042 = vunpack.c.l.b16 %v943
        %v3043 = vunpack.c.h.b16 %v943
        %v3044 = vunpack.c.l.b16 %v944
        %v3045 = vunpack.c.h.b16 %v944
        %v3046 = vunpack.c.l.b16 %v945
        %v3047 = vunpack.c.h.b16 %v945
        %v3048 = vunpack.c.l.b16 %v946
        %v3049 = vunpack.c.h.b16 %v946
        %v3050 = vunpack.c.l.b16 %v947
        %v3051 = vunpack.c.h.b16 %v947
        %v3052 = vunpack.c.l.b16 %v948
        %v3053 = vunpack.c.h.b16 %v948
        %v3054 = vunpack.c.l.b16 %v949
        %v3055 = vunpack.c.h.b16 %v949
        %v3056 = vunpack.c.l.b16 %v950
        %v3057 = vunpack.c.h.b16 %v950
        %v3058 = vunpack.c.l.b16 %v951
        %v3059 = vunpack.c.h.b16 %v951
        %v3060 = vunpack.c.l.b16 %v952
        %v3061 = vunpack.c.h.b16 %v952
        %v3062 = vunpack.c.l.b16 %v953
        %v3063 = vunpack.c.h.b16 %v953
        %v3064 = vunpack.c.l.b16 %v954
        %v3065 = vunpack.c.h.b16 %v954
        %v3066 = vunpack.c.l.b16 %v955
        %v3067 = vunpack.c.h.b16 %v955
        %v3068 = vunpack.c.l.b16 %v956
        %v3069 = vunpack.c.h.b16 %v956
        %v3070 = vunpack.c.l.b16 %v957
        %v3071 = vunpack.c.h.b16 %v957
        %v3072 = vunpack.c.l.b16 %v958
        %v3073 = vunpack.c.h.b16 %v958
        %v3074 = vunpack.c.l.b16 %v959
        %v3075 = vunpack.c.h.b16 %v959
        %v3076 = vunpack.c.l.b16 %v960
        %v3077 = vunpack.c.h.b16 %v960
        %v3078 = vunpack.c.l.b16 %v961
        %v3079 = vunpack.c.h.b16 %v961
        %v3080 = vunpack.c.l.b16 %v962
        %v3081 = vunpack.c.h.b16 %v962
        %v3082 = vunpack.c.l.b16 %v963
        %v3083 = vunpack.c.h.b16 %v963
        %v3084 = vunpack.c.l.b16 %v964
        %v3085 = vunpack.c.h.b16 %v964
        %v3086 = vunpack.c.l.b16 %v965
        %v3087 = vunpack.c.h.b16 %v965
        %v3088 = vunpack.c.l.b16 %v966
        %v3089 = vunpack.c.h.b16 %v966
        %v3090 = vunpack.c.l.b16 %v967
        %v3091 = vunpack.c.h.b16 %v967
        %v3092 = vunpack.c.l.b16 %v968
        %v3093 = vunpack.c.h.b16 %v968
        %v3094 = vunpack.c.l.b16 %v969
        %v3095 = vunpack.c.h.b16 %v969
        %v3096 = vunpack.c.l.b16 %v970
        %v3097 = vunpack.c.h.b16 %v970
        %v3098 = vunpack.c.l.b16 %v971
        %v3099 = vunpack.c.h.b16 %v971
        %v3100 = vunpack.c.l.b16 %v972
        %v3101 = vunpack.c.h.b16 %v972
        %v3102 = vunpack.c.l.b16 %v973
        %v3103 = vunpack.c.h.b16 %v973
        %v3104 = vunpack.c.l.b16 %v974
        %v3105 = vunpack.c.h.b16 %v974
        %v3106 = vunpack.c.l.b16 %v975
        %v3107 = vunpack.c.h.b16 %v975
        %v3108 = vunpack.c.l.b16 %v976
        %v3109 = vunpack.c.h.b16 %v976
        %v3110 = vunpack.c.l.b16 %v977
        %v3111 = vunpack.c.h.b16 %v977
        %v3112 = vunpack.c.l.b16 %v978
        %v3113 = vunpack.c.h.b16 %v978
        %v3114 = vunpack.c.l.b16 %v979
        %v3115 = vunpack.c.h.b16 %v979
        %v3116 = vunpack.c.l.b16 %v980
        %v3117 = vunpack.c.h.b16 %v980
        %v3118 = vunpack.c.l.b16 %v981
        %v3119 = vunpack.c.h.b16 %v981
        %v3120 = vunpack.c.l.b16 %v982
        %v3121 = vunpack.c.h.b16 %v982
        %v3122 = vunpack.c.l.b16 %v983
        %v3123 = vunpack.c.h.b16 %v983
        %v3124 = vunpack.c.l.b16 %v984
        %v3125 = vunpack.c.h.b16 %v984
        %v3126 = vunpack.c.l.b16 %v985
        %v3127 = vunpack.c.h.b16 %v985
        %v3128 = vunpack.c.l.b16 %v986
        %v3129 = vunpack.c.h.b16 %v986
        %v3130 = vunpack.c.l.b16 %v987
        %v3131 = vunpack.c.h.b16 %v987
        %v3132 = vunpack.c.l.b16 %v988
        %v3133 = vunpack.c.h.b16 %v988
        %v3134 = vunpack.c.l.b16 %v989
        %v3135 = vunpack.c.h.b16 %v989
        %v3136 = vunpack.c.l.b16 %v990
        %v3137 = vunpack.c.h.b16 %v990
        %v3138 = vunpack.c.l.b16 %v991
        %v3139 = vunpack.c.h.b16 %v991
        %v3140 = vunpack.c.l.b16 %v992
        %v3141 = vunpack.c.h.b16 %v992
        %v3142 = vunpack.c.l.b16 %v993
        %v3143 = vunpack.c.h.b16 %v993
        %v3144 = vunpack.c.l.b16 %v994
        %v3145 = vunpack.c.h.b16 %v994
        %v3146 = vunpack.c.l.b16 %v995
        %v3147 = vunpack.c.h.b16 %v995
        %v3148 = vunpack.c.l.b16 %v996
        %v3149 = vunpack.c.h.b16 %v996
        %v3150 = vunpack.c.l.b16 %v997
        %v3151 = vunpack.c.h.b16 %v997
        %v3152 = vunpack.c.l.b16 %v998
        %v3153 = vunpack.c.h.b16 %v998
        %v3154 = vunpack.c.l.b16 %v999
        %v3155 = vunpack.c.h.b16 %v999
        %v3156 = vunpack.c.l.b16 %v1000
        %v3157 = vunpack.c.h.b16 %v1000
        %v3158 = vunpack.c.l.b16 %v1001
        %v3159 = vunpack.c.h.b16 %v1001
        %v3160 = vunpack.c.l.b16 %v1002
        %v3161 = vunpack.c.h.b16 %v1002
        %v3162 = vunpack.c.l.b16 %v1003
        %v3163 = vunpack.c.h.b16 %v1003
        %v3164 = vunpack.c.l.b16 %v1004
        %v3165 = vunpack.c.h.b16 %v1004
        %v3166 = vunpack.c.l.b16 %v1005
        %v3167 = vunpack.c.h.b16 %v1005
        %v3168 = vunpack.c.l.b16 %v1006
        %v3169 = vunpack.c.h.b16 %v1006
        %v3170 = vunpack.c.l.b16 %v1007
        %v3171 = vunpack.c.h.b16 %v1007
        %v3172 = vunpack.c.l.b16 %v1008
        %v3173 = vunpack.c.h.b16 %v1008
        %v3174 = vunpack.c.l.b16 %v1009
        %v3175 = vunpack.c.h.b16 %v1009
        %v3176 = vunpack.c.l.b16 %v1010
        %v3177 = vunpack.c.h.b16 %v1010
        %v3178 = vunpack.c.l.b16 %v1011
        %v3179 = vunpack.c.h.b16 %v1011
        %v3180 = vunpack.c.l.b16 %v1012
        %v3181 = vunpack.c.h.b16 %v1012
        %v3182 = vunpack.c.l.b16 %v1013
        %v3183 = vunpack.c.h.b16 %v1013
        %v3184 = vunpack.c.l.b16 %v1014
        %v3185 = vunpack.c.h.b16 %v1014
        %v3186 = vunpack.c.l.b16 %v1015
        %v3187 = vunpack.c.h.b16 %v1015
        %v3188 = vunpack.c.l.b16 %v1016
        %v3189 = vunpack.c.h.b16 %v1016
        %v3190 = vunpack.c.l.b16 %v1017
        %v3191 = vunpack.c.h.b16 %v1017
        %v3192 = vunpack.c.l.b16 %v1018
        %v3193 = vunpack.c.h.b16 %v1018
        %v3194 = vunpack.c.l.b16 %v1019
        %v3195 = vunpack.c.h.b16 %v1019
        %v3196 = vunpack.c.l.b16 %v1020
        %v3197 = vunpack.c.h.b16 %v1020
        %v3198 = vunpack.c.l.b16 %v1021
        %v3199 = vunpack.c.h.b16 %v1021
        %v3200 = vunpack.c.l.b16 %v1022
        %v3201 = vunpack.c.h.b16 %v1022
        %v3202 = vunpack.c.l.b16 %v1023
        %v3203 = vunpack.c.h.b16 %v1023
        %v3204 = vunpack.c.l.b16 %v1024
        %v3205 = vunpack.c.h.b16 %v1024
        %v3206 = vunpack.c.l.b16 %v1025
        %v3207 = vunpack.c.h.b16 %v1025
        %v3208 = vunpack.c.l.b16 %v1026
        %v3209 = vunpack.c.h.b16 %v1026
        %v3210 = vunpack.c.l.b16 %v1027
        %v3211 = vunpack.c.h.b16 %v1027
        %v3212 = vunpack.c.l.b16 %v1028
        %v3213 = vunpack.c.h.b16 %v1028
        %v3214 = vunpack.c.l.b16 %v1029
        %v3215 = vunpack.c.h.b16 %v1029
        %v3216 = vunpack.c.l.b16 %v1030
        %v3217 = vunpack.c.h.b16 %v1030
        %v3218 = vunpack.c.l.b16 %v1031
        %v3219 = vunpack.c.h.b16 %v1031
        %v3220 = vunpack.c.l.b16 %v1032
        %v3221 = vunpack.c.h.b16 %v1032
        %v3222 = vunpack.c.l.b16 %v1033
        %v3223 = vunpack.c.h.b16 %v1033
        %v3224 = vunpack.c.l.b16 %v1034
        %v3225 = vunpack.c.h.b16 %v1034
        %v3226 = vunpack.c.l.b16 %v1035
        %v3227 = vunpack.c.h.b16 %v1035
        %v3228 = vunpack.c.l.b16 %v1036
        %v3229 = vunpack.c.h.b16 %v1036
        %v3230 = vunpack.c.l.b16 %v1037
        %v3231 = vunpack.c.h.b16 %v1037
        %v3232 = vunpack.c.l.b16 %v1038
        %v3233 = vunpack.c.h.b16 %v1038
        %v3234 = vunpack.c.l.b16 %v1039
        %v3235 = vunpack.c.h.b16 %v1039
        %v3236 = vunpack.c.l.b16 %v1040
        %v3237 = vunpack.c.h.b16 %v1040
        %v3238 = vunpack.c.l.b16 %v1041
        %v3239 = vunpack.c.h.b16 %v1041
        %v3240 = vunpack.c.l.b16 %v1042
        %v3241 = vunpack.c.h.b16 %v1042
        %v3242 = vunpack.c.l.b16 %v1043
        %v3243 = vunpack.c.h.b16 %v1043
        %v3244 = vunpack.c.l.b16 %v1044
        %v3245 = vunpack.c.h.b16 %v1044
        %v3246 = vunpack.c.l.b16 %v1045
        %v3247 = vunpack.c.h.b16 %v1045
        %v3248 = vunpack.c.l.b16 %v1046
        %v3249 = vunpack.c.h.b16 %v1046
        %v3250 = vunpack.c.l.b16 %v1047
        %v3251 = vunpack.c.h.b16 %v1047
        %v3252 = vunpack.c.l.b16 %v1048
        %v3253 = vunpack.c.h.b16 %v1048
        %v3254 = vunpack.c.l.b16 %v1049
        %v3255 = vunpack.c.h.b16 %v1049
        %v3256 = vunpack.c.l.b16 %v1050
        %v3257 = vunpack.c.h.b16 %v1050
        %v3258 = vunpack.c.l.b16 %v1051
        %v3259 = vunpack.c.h.b16 %v1051
        %v3260 = vunpack.c.l.b16 %v1052
        %v3261 = vunpack.c.h.b16 %v1052
        %v3262 = vunpack.c.l.b16 %v1053
        %v3263 = vunpack.c.h.b16 %v1053
        %v3264 = vunpack.c.l.b16 %v1054
        %v3265 = vunpack.c.h.b16 %v1054
        %v3266 = vunpack.c.l.b16 %v1055
        %v3267 = vunpack.c.h.b16 %v1055
        %v3268 = vunpack.c.l.b16 %v1056
        %v3269 = vunpack.c.h.b16 %v1056
        %v3270 = vunpack.c.l.b16 %v1057
        %v3271 = vunpack.c.h.b16 %v1057
        %v3272 = vunpack.c.l.b16 %v1058
        %v3273 = vunpack.c.h.b16 %v1058
        %v3274 = vunpack.c.l.b16 %v1059
        %v3275 = vunpack.c.h.b16 %v1059
        %v3276 = vunpack.c.l.b16 %v1060
        %v3277 = vunpack.c.h.b16 %v1060
        %v3278 = vunpack.c.l.b16 %v1061
        %v3279 = vunpack.c.h.b16 %v1061
        %v3280 = vunpack.c.l.b16 %v1062
        %v3281 = vunpack.c.h.b16 %v1062
        %v3282 = vunpack.c.l.b16 %v1063
        %v3283 = vunpack.c.h.b16 %v1063
        %v3284 = vunpack.c.l.b16 %v1064
        %v3285 = vunpack.c.h.b16 %v1064
        %v3286 = vunpack.c.l.b16 %v1065
        %v3287 = vunpack.c.h.b16 %v1065
        %v3288 = vunpack.c.l.b16 %v1066
        %v3289 = vunpack.c.h.b16 %v1066
        %v3290 = vunpack.c.l.b16 %v1067
        %v3291 = vunpack.c.h.b16 %v1067
        %v3292 = vunpack.c.l.b16 %v1068
        %v3293 = vunpack.c.h.b16 %v1068
        %v3294 = vunpack.c.l.b16 %v1069
        %v3295 = vunpack.c.h.b16 %v1069
        %v3296 = vunpack.c.l.b16 %v1070
        %v3297 = vunpack.c.h.b16 %v1070
        %v3298 = vunpack.c.l.b16 %v1071
        %v3299 = vunpack.c.h.b16 %v1071
        %v3300 = vunpack.c.l.b16 %v1072
        %v3301 = vunpack.c.h.b16 %v1072
        %v3302 = vunpack.c.l.b16 %v1073
        %v3303 = vunpack.c.h.b16 %v1073
        %v3304 = vunpack.c.l.b16 %v1074
        %v3305 = vunpack.c.h.b16 %v1074
        %v3306 = vunpack.c.l.b16 %v1075
        %v3307 = vunpack.c.h.b16 %v1075
        %v3308 = vunpack.c.l.b16 %v1076
        %v3309 = vunpack.c.h.b16 %v1076
        %v3310 = vunpack.c.l.b16 %v1077
        %v3311 = vunpack.c.h.b16 %v1077
        %v3312 = vunpack.c.l.b16 %v1078
        %v3313 = vunpack.c.h.b16 %v1078
        %v3314 = vunpack.c.l.b16 %v1079
        %v3315 = vunpack.c.h.b16 %v1079
        %v3316 = vunpack.c.l.b16 %v1080
        %v3317 = vunpack.c.h.b16 %v1080
        %v3318 = vunpack.c.l.b16 %v1081
        %v3319 = vunpack.c.h.b16 %v1081
        %v3320 = vunpack.c.l.b16 %v1082
        %v3321 = vunpack.c.h.b16 %v1082
        %v3322 = vunpack.c.l.b16 %v1083
        %v3323 = vunpack.c.h.b16 %v1083
        %v3324 = vunpack.c.l.b16 %v1084
        %v3325 = vunpack.c.h.b16 %v1084
        %v3326 = vunpack.c.l.b16 %v1085
        %v3327 = vunpack.c.h.b16 %v1085
        %v3328 = vunpack.c.l.b16 %v1086
        %v3329 = vunpack.c.h.b16 %v1086
        %v3330 = vunpack.c.l.b16 %v1087
        %v3331 = vunpack.c.h.b16 %v1087
        %v3332 = vunpack.c.l.b16 %v1088
        %v3333 = vunpack.c.h.b16 %v1088
        %v3334 = vunpack.c.l.b16 %v1089
        %v3335 = vunpack.c.h.b16 %v1089
        %v3336 = vunpack.c.l.b16 %v1090
        %v3337 = vunpack.c.h.b16 %v1090
        %v3338 = vunpack.c.l.b16 %v1091
        %v3339 = vunpack.c.h.b16 %v1091
        %v3340 = vunpack.c.l.b16 %v1092
        %v3341 = vunpack.c.h.b16 %v1092
        %v3342 = vunpack.c.l.b16 %v1093
        %v3343 = vunpack.c.h.b16 %v1093
        %v3344 = vunpack.c.l.b16 %v1094
        %v3345 = vunpack.c.h.b16 %v1094
        %v3346 = vunpack.c.l.b16 %v1095
        %v3347 = vunpack.c.h.b16 %v1095
        %v3348 = vunpack.c.l.b16 %v1096
        %v3349 = vunpack.c.h.b16 %v1096
        %v3350 = vunpack.c.l.b16 %v1097
        %v3351 = vunpack.c.h.b16 %v1097
        %v3352 = vunpack.c.l.b16 %v1098
        %v3353 = vunpack.c.h.b16 %v1098
        %v3354 = vunpack.c.l.b16 %v1099
        %v3355 = vunpack.c.h.b16 %v1099
        %v3356 = vunpack.c.l.b16 %v1100
        %v3357 = vunpack.c.h.b16 %v1100
        %v3358 = vunpack.c.l.b16 %v1101
        %v3359 = vunpack.c.h.b16 %v1101
        %v3360 = vunpack.c.l.b16 %v1102
        %v3361 = vunpack.c.h.b16 %v1102
        %v3362 = vunpack.c.l.b16 %v1103
        %v3363 = vunpack.c.h.b16 %v1103
        %v3364 = vunpack.c.l.b16 %v1104
        %v3365 = vunpack.c.h.b16 %v1104
        %v3366 = vunpack.c.l.b16 %v1105
        %v3367 = vunpack.c.h.b16 %v1105
        %v3368 = vunpack.c.l.b16 %v1106
        %v3369 = vunpack.c.h.b16 %v1106
        %v3370 = vunpack.c.l.b16 %v1107
        %v3371 = vunpack.c.h.b16 %v1107
        %v3372 = vunpack.c.l.b16 %v1108
        %v3373 = vunpack.c.h.b16 %v1108
        %v3374 = vunpack.c.l.b16 %v1109
        %v3375 = vunpack.c.h.b16 %v1109
        %v3376 = vunpack.c.l.b16 %v1110
        %v3377 = vunpack.c.h.b16 %v1110
        %v3378 = vunpack.c.l.b16 %v1111
        %v3379 = vunpack.c.h.b16 %v1111
        %v3380 = vunpack.c.l.b16 %v1112
        %v3381 = vunpack.c.h.b16 %v1112
        %v3382 = vunpack.c.l.b16 %v1113
        %v3383 = vunpack.c.h.b16 %v1113
        %v3384 = vunpack.c.l.b16 %v1114
        %v3385 = vunpack.c.h.b16 %v1114
        %v3386 = vunpack.c.l.b16 %v1115
        %v3387 = vunpack.c.h.b16 %v1115
        %v3388 = vunpack.c.l.b16 %v1116
        %v3389 = vunpack.c.h.b16 %v1116
        %v3390 = vunpack.c.l.b16 %v1117
        %v3391 = vunpack.c.h.b16 %v1117
        %v3392 = vunpack.c.l.b16 %v1118
        %v3393 = vunpack.c.h.b16 %v1118
        %v3394 = vunpack.c.l.b16 %v1119
        %v3395 = vunpack.c.h.b16 %v1119
        %v3396 = vunpack.c.l.b16 %v1120
        %v3397 = vunpack.c.h.b16 %v1120
        %v3398 = vunpack.c.l.b16 %v1121
        %v3399 = vunpack.c.h.b16 %v1121
        %v3400 = vunpack.c.l.b16 %v1122
        %v3401 = vunpack.c.h.b16 %v1122
        %v3402 = vunpack.c.l.b16 %v1123
        %v3403 = vunpack.c.h.b16 %v1123
        %v3404 = vunpack.c.l.b16 %v1124
        %v3405 = vunpack.c.h.b16 %v1124
        %v3406 = vunpack.c.l.b16 %v1125
        %v3407 = vunpack.c.h.b16 %v1125
        %v3408 = vunpack.c.l.b16 %v1126
        %v3409 = vunpack.c.h.b16 %v1126
        %v3410 = vunpack.c.l.b16 %v1127
        %v3411 = vunpack.c.h.b16 %v1127
        %v3412 = vunpack.c.l.b16 %v1128
        %v3413 = vunpack.c.h.b16 %v1128
        %v3414 = vunpack.c.l.b16 %v1129
        %v3415 = vunpack.c.h.b16 %v1129
        %v3416 = vunpack.c.l.b16 %v1130
        %v3417 = vunpack.c.h.b16 %v1130
        %v3418 = vunpack.c.l.b16 %v1131
        %v3419 = vunpack.c.h.b16 %v1131
        %v3420 = vunpack.c.l.b16 %v1132
        %v3421 = vunpack.c.h.b16 %v1132
        %v3422 = vunpack.c.l.b16 %v1133
        %v3423 = vunpack.c.h.b16 %v1133
        %v3424 = vunpack.c.l.b16 %v1134
        %v3425 = vunpack.c.h.b16 %v1134
        %v3426 = vunpack.c.l.b16 %v1135
        %v3427 = vunpack.c.h.b16 %v1135
        %v3428 = vunpack.c.l.b16 %v1136
        %v3429 = vunpack.c.h.b16 %v1136
        %v3430 = vunpack.c.l.b16 %v1137
        %v3431 = vunpack.c.h.b16 %v1137
        %v3432 = vunpack.c.l.b16 %v1138
        %v3433 = vunpack.c.h.b16 %v1138
        %v3434 = vunpack.c.l.b16 %v1139
        %v3435 = vunpack.c.h.b16 %v1139
        %v3436 = vunpack.c.l.b16 %v1140
        %v3437 = vunpack.c.h.b16 %v1140
        %v3438 = vunpack.c.l.b16 %v1141
        %v3439 = vunpack.c.h.b16 %v1141
        %v3440 = vunpack.c.l.b16 %v1142
        %v3441 = vunpack.c.h.b16 %v1142
        %v3442 = vunpack.c.l.b16 %v1143
        %v3443 = vunpack.c.h.b16 %v1143
        %v3444 = vunpack.c.l.b16 %v1144
        %v3445 = vunpack.c.h.b16 %v1144
        %v3446 = vunpack.c.l.b16 %v1145
        %v3447 = vunpack.c.h.b16 %v1145
        %v3448 = vunpack.c.l.b16 %v1146
        %v3449 = vunpack.c.h.b16 %v1146
        %v3450 = vunpack.c.l.b16 %v1147
        %v3451 = vunpack.c.h.b16 %v1147
        %v3452 = vunpack.c.l.b16 %v1148
        %v3453 = vunpack.c.h.b16 %v1148
        %v3454 = vunpack.c.l.b16 %v1149
        %v3455 = vunpack.c.h.b16 %v1149
        %v3456 = vunpack.c.l.b16 %v1150
        %v3457 = vunpack.c.h.b16 %v1150
        %v3458 = vunpack.c.l.b16 %v1151
        %v3459 = vunpack.c.h.b16 %v1151
        %v3460 = vunpack.c.l.b16 %v1152
        %v3461 = vunpack.c.h.b16 %v1152
        %v3462 = vunpack.c.l.b16 %v1153
        %v3463 = vunpack.c.h.b16 %v1153
        %v3464 = vunpack.c.l.b16 %v1154
        %v3465 = vunpack.c.h.b16 %v1154
        %v3466 = vunpack.c.l.b16 %v1155
        %v3467 = vunpack.c.h.b16 %v1155
        %v3468 = vunpack.c.l.b16 %v1156
        %v3469 = vunpack.c.h.b16 %v1156
        %v3470 = vunpack.c.l.b16 %v1157
        %v3471 = vunpack.c.h.b16 %v1157
        %v3472 = vunpack.c.l.b16 %v1158
        %v3473 = vunpack.c.h.b16 %v1158
        %v3474 = vunpack.c.l.b16 %v1159
        %v3475 = vunpack.c.h.b16 %v1159
        %v3476 = vunpack.c.l.b16 %v1160
        %v3477 = vunpack.c.h.b16 %v1160
        %v3478 = vunpack.c.l.b16 %v1161
        %v3479 = vunpack.c.h.b16 %v1161
        %v3480 = vunpack.c.l.b16 %v1162
        %v3481 = vunpack.c.h.b16 %v1162
        %v3482 = vunpack.c.l.b16 %v1163
        %v3483 = vunpack.c.h.b16 %v1163
        %v3484 = vunpack.c.l.b16 %v1164
        %v3485 = vunpack.c.h.b16 %v1164
        %v3486 = vunpack.c.l.b16 %v1165
        %v3487 = vunpack.c.h.b16 %v1165
        %v3488 = vunpack.c.l.b16 %v1166
        %v3489 = vunpack.c.h.b16 %v1166
        %v3490 = vunpack.c.l.b16 %v1167
        %v3491 = vunpack.c.h.b16 %v1167
        %v3492 = vunpack.c.l.b16 %v1168
        %v3493 = vunpack.c.h.b16 %v1168
        %v3494 = vunpack.c.l.b16 %v1169
        %v3495 = vunpack.c.h.b16 %v1169
        %v3496 = vunpack.c.l.b16 %v1170
        %v3497 = vunpack.c.h.b16 %v1170
        %v3498 = vunpack.c.l.b16 %v1171
        %v3499 = vunpack.c.h.b16 %v1171
        %v3500 = vunpack.c.l.b16 %v1172
        %v3501 = vunpack.c.h.b16 %v1172
        %v3502 = vunpack.c.l.b16 %v1173
        %v3503 = vunpack.c.h.b16 %v1173
        %v3504 = vunpack.c.l.b16 %v1174
        %v3505 = vunpack.c.h.b16 %v1174
        %v3506 = vunpack.c.l.b16 %v1175
        %v3507 = vunpack.c.h.b16 %v1175
        %v3508 = vunpack.c.l.b16 %v1176
        %v3509 = vunpack.c.h.b16 %v1176
        %v3510 = vunpack.c.l.b16 %v1177
        %v3511 = vunpack.c.h.b16 %v1177
        %v3512 = vunpack.c.l.b16 %v1178
        %v3513 = vunpack.c.h.b16 %v1178
        %v3514 = vunpack.c.l.b16 %v1179
        %v3515 = vunpack.c.h.b16 %v1179
        %v3516 = vunpack.c.l.b16 %v1180
        %v3517 = vunpack.c.h.b16 %v1180
        %v3518 = vunpack.c.l.b16 %v1181
        %v3519 = vunpack.c.h.b16 %v1181
        %v3520 = vunpack.c.l.b16 %v1182
        %v3521 = vunpack.c.h.b16 %v1182
        %v3522 = vunpack.c.l.b16 %v1183
        %v3523 = vunpack.c.h.b16 %v1183
        %v3524 = vunpack.c.l.b16 %v1184
        %v3525 = vunpack.c.h.b16 %v1184
        %v3526 = vunpack.c.l.b16 %v1185
        %v3527 = vunpack.c.h.b16 %v1185
        %v3528 = vunpack.c.l.b16 %v1186
        %v3529 = vunpack.c.h.b16 %v1186
        %v3530 = vunpack.c.l.b16 %v1187
        %v3531 = vunpack.c.h.b16 %v1187
        %v3532 = vunpack.c.l.b16 %v1188
        %v3533 = vunpack.c.h.b16 %v1188
        %v3534 = vunpack.c.l.b16 %v1189
        %v3535 = vunpack.c.h.b16 %v1189
        %v3536 = vunpack.c.l.b16 %v1190
        %v3537 = vunpack.c.h.b16 %v1190
        %v3538 = vunpack.c.l.b16 %v1191
        %v3539 = vunpack.c.h.b16 %v1191
        %v3540 = vunpack.c.l.b16 %v1192
        %v3541 = vunpack.c.h.b16 %v1192
        %v3542 = vunpack.c.l.b16 %v1193
        %v3543 = vunpack.c.h.b16 %v1193
        %v3544 = vunpack.c.l.b16 %v1194
        %v3545 = vunpack.c.h.b16 %v1194
        %v3546 = vunpack.c.l.b16 %v1195
        %v3547 = vunpack.c.h.b16 %v1195
        %v3548 = vunpack.c.l.b16 %v1196
        %v3549 = vunpack.c.h.b16 %v1196
        %v3550 = vunpack.c.l.b16 %v1197
        %v3551 = vunpack.c.h.b16 %v1197
        %v3552 = vunpack.c.l.b16 %v1198
        %v3553 = vunpack.c.h.b16 %v1198
        %v3554 = vunpack.c.l.b16 %v1199
        %v3555 = vunpack.c.h.b16 %v1199
        %v3556 = vunpack.c.l.b16 %v1200
        %v3557 = vunpack.c.h.b16 %v1200
        %v3558 = vunpack.c.l.b16 %v1201
        %v3559 = vunpack.c.h.b16 %v1201
        %v3560 = vunpack.c.l.b16 %v1202
        %v3561 = vunpack.c.h.b16 %v1202
        %v3562 = vunpack.c.l.b16 %v1203
        %v3563 = vunpack.c.h.b16 %v1203
        %v3564 = vunpack.c.l.b16 %v1204
        %v3565 = vunpack.c.h.b16 %v1204
        %v3566 = vunpack.c.l.b16 %v1205
        %v3567 = vunpack.c.h.b16 %v1205
        %v3568 = vunpack.c.l.b16 %v1206
        %v3569 = vunpack.c.h.b16 %v1206
        %v3570 = vunpack.c.l.b16 %v1207
        %v3571 = vunpack.c.h.b16 %v1207
        %v3572 = vunpack.c.l.b16 %v1208
        %v3573 = vunpack.c.h.b16 %v1208
        %v3574 = vunpack.c.l.b16 %v1209
        %v3575 = vunpack.c.h.b16 %v1209
        %v3576 = vunpack.c.l.b16 %v1210
        %v3577 = vunpack.c.h.b16 %v1210
        %v3578 = vunpack.c.l.b16 %v1211
        %v3579 = vunpack.c.h.b16 %v1211
        %v3580 = vunpack.c.l.b16 %v1212
        %v3581 = vunpack.c.h.b16 %v1212
        %v3582 = vunpack.c.l.b16 %v1213
        %v3583 = vunpack.c.h.b16 %v1213
        %v3584 = vunpack.c.l.b16 %v1214
        %v3585 = vunpack.c.h.b16 %v1214
        %v3586 = vunpack.c.l.b16 %v1215
        %v3587 = vunpack.c.h.b16 %v1215
        %v3588 = vunpack.c.l.b16 %v1216
        %v3589 = vunpack.c.h.b16 %v1216
        %v3590 = vunpack.c.l.b16 %v1217
        %v3591 = vunpack.c.h.b16 %v1217
        %v3592 = vunpack.c.l.b16 %v1218
        %v3593 = vunpack.c.h.b16 %v1218
        %v3594 = vunpack.c.l.b16 %v1219
        %v3595 = vunpack.c.h.b16 %v1219
        %v3596 = vunpack.c.l.b16 %v1220
        %v3597 = vunpack.c.h.b16 %v1220
        %v3598 = vunpack.c.l.b16 %v1221
        %v3599 = vunpack.c.h.b16 %v1221
        %v3600 = vunpack.c.l.b16 %v1222
        %v3601 = vunpack.c.h.b16 %v1222
        %v3602 = vunpack.c.l.b16 %v1223
        %v3603 = vunpack.c.h.b16 %v1223
        %v3604 = vunpack.c.l.b16 %v1224
        %v3605 = vunpack.c.h.b16 %v1224
        %v3606 = vunpack.c.l.b16 %v1225
        %v3607 = vunpack.c.h.b16 %v1225
        %v3608 = vunpack.c.l.b16 %v1226
        %v3609 = vunpack.c.h.b16 %v1226
        %v3610 = vunpack.c.l.b16 %v1227
        %v3611 = vunpack.c.h.b16 %v1227
        %v3612 = vunpack.c.l.b16 %v1228
        %v3613 = vunpack.c.h.b16 %v1228
        %v3614 = vunpack.c.l.b16 %v1229
        %v3615 = vunpack.c.h.b16 %v1229
        %v3616 = vunpack.c.l.b16 %v1230
        %v3617 = vunpack.c.h.b16 %v1230
        %v3618 = vunpack.c.l.b16 %v1231
        %v3619 = vunpack.c.h.b16 %v1231
        %v3620 = vunpack.c.l.b16 %v1232
        %v3621 = vunpack.c.h.b16 %v1232
        %v3622 = vunpack.c.l.b16 %v1233
        %v3623 = vunpack.c.h.b16 %v1233
        %v3624 = vunpack.c.l.b16 %v1234
        %v3625 = vunpack.c.h.b16 %v1234
        %v3626 = vunpack.c.l.b16 %v1235
        %v3627 = vunpack.c.h.b16 %v1235
        %v3628 = vunpack.c.l.b16 %v1236
        %v3629 = vunpack.c.h.b16 %v1236
        %v3630 = vunpack.c.l.b16 %v1237
        %v3631 = vunpack.c.h.b16 %v1237
        %v3632 = vunpack.c.l.b16 %v1238
        %v3633 = vunpack.c.h.b16 %v1238
        %v3634 = vunpack.c.l.b16 %v1239
        %v3635 = vunpack.c.h.b16 %v1239
        %v3636 = vunpack.c.l.b16 %v1240
        %v3637 = vunpack.c.h.b16 %v1240
        %v3638 = vunpack.c.l.b16 %v1241
        %v3639 = vunpack.c.h.b16 %v1241
        %v3640 = vunpack.c.l.b16 %v1242
        %v3641 = vunpack.c.h.b16 %v1242
        %v3642 = vunpack.c.l.b16 %v1243
        %v3643 = vunpack.c.h.b16 %v1243
        %v3644 = vunpack.c.l.b16 %v1244
        %v3645 = vunpack.c.h.b16 %v1244
        %v3646 = vunpack.c.l.b16 %v1245
        %v3647 = vunpack.c.h.b16 %v1245
        %v3648 = vunpack.c.l.b16 %v1246
        %v3649 = vunpack.c.h.b16 %v1246
        %v3650 = vunpack.c.l.b16 %v1247
        %v3651 = vunpack.c.h.b16 %v1247
        %v3652 = vunpack.c.l.b16 %v1248
        %v3653 = vunpack.c.h.b16 %v1248
        %v3654 = vunpack.c.l.b16 %v1249
        %v3655 = vunpack.c.h.b16 %v1249
        %v3656 = vunpack.c.l.b16 %v1250
        %v3657 = vunpack.c.h.b16 %v1250
        %v3658 = vunpack.c.l.b16 %v1251
        %v3659 = vunpack.c.h.b16 %v1251
        %v3660 = vunpack.c.l.b16 %v1252
        %v3661 = vunpack.c.h.b16 %v1252
        %v3662 = vunpack.c.l.b16 %v1253
        %v3663 = vunpack.c.h.b16 %v1253
        %v3664 = vunpack.c.l.b16 %v1254
        %v3665 = vunpack.c.h.b16 %v1254
        %v3666 = vunpack.c.l.b16 %v1255
        %v3667 = vunpack.c.h.b16 %v1255
        %v3668 = vunpack.c.l.b16 %v1256
        %v3669 = vunpack.c.h.b16 %v1256
        %v3670 = vunpack.c.l.b16 %v1257
        %v3671 = vunpack.c.h.b16 %v1257
        %v3672 = vunpack.c.l.b16 %v1258
        %v3673 = vunpack.c.h.b16 %v1258
        %v3674 = vunpack.c.l.b16 %v1259
        %v3675 = vunpack.c.h.b16 %v1259
        %v3676 = vunpack.c.l.b16 %v1260
        %v3677 = vunpack.c.h.b16 %v1260
        %v3678 = vunpack.c.l.b16 %v1261
        %v3679 = vunpack.c.h.b16 %v1261
        %v3680 = vunpack.c.l.b16 %v1262
        %v3681 = vunpack.c.h.b16 %v1262
        %v3682 = vunpack.c.l.b16 %v1263
        %v3683 = vunpack.c.h.b16 %v1263
        %v3684 = vunpack.c.l.b16 %v1264
        %v3685 = vunpack.c.h.b16 %v1264
        %v3686 = vunpack.c.l.b16 %v1265
        %v3687 = vunpack.c.h.b16 %v1265
        %v3688 = vunpack.c.l.b16 %v1266
        %v3689 = vunpack.c.h.b16 %v1266
        %v3690 = vunpack.c.l.b16 %v1267
        %v3691 = vunpack.c.h.b16 %v1267
        %v3692 = vunpack.c.l.b16 %v1268
        %v3693 = vunpack.c.h.b16 %v1268
        %v3694 = vunpack.c.l.b16 %v1269
        %v3695 = vunpack.c.h.b16 %v1269
        %v3696 = vunpack.c.l.b16 %v1270
        %v3697 = vunpack.c.h.b16 %v1270
        %v3698 = vunpack.c.l.b16 %v1271
        %v3699 = vunpack.c.h.b16 %v1271
        %v3700 = vunpack.c.l.b16 %v1272
        %v3701 = vunpack.c.h.b16 %v1272
        %v3702 = vunpack.c.l.b16 %v1273
        %v3703 = vunpack.c.h.b16 %v1273
        %v3704 = vpack.c.b16 %v2192, %v2168
        %v3705 = vpack.c.b16 %v2193, %v2169
        %v3706 = vpack.c.b16 %v2194, %v2170
        %v3707 = vpack.c.b16 %v2195, %v2171
        %v3708 = vpack.c.b16 %v2196, %v2172
        %v3709 = vpack.c.b16 %v2197, %v2173
        %v3710 = vpack.c.b16 %v2198, %v2174
        %v3711 = vpack.c.b16 %v2199, %v2175
        %v3712 = vpack.c.b16 %v2200, %v2176
        %v3713 = vpack.c.b16 %v2201, %v2177
        %v3714 = vpack.c.b16 %v2202, %v2178
        %v3715 = vpack.c.b16 %v2203, %v2179
        %v3716 = vpack.c.b16 %v2204, %v2180
        %v3717 = vpack.c.b16 %v2205, %v2181
        %v3718 = vpack.c.b16 %v2206, %v2182
        %v3719 = vpack.c.b16 %v2207, %v2183
        %v3720 = vpack.c.b16 %v2208, %v2184
        %v3721 = vpack.c.b16 %v2209, %v2185
        %v3722 = vpack.c.b16 %v2210, %v2186
        %v3723 = vpack.c.b16 %v2211, %v2187
        %v3724 = vpack.c.b16 %v2212, %v2188
        %v3725 = vpack.c.b16 %v2213, %v2189
        %v3726 = vpack.c.b16 %v2214, %v2190
        %v3727 = vpack.c.b16 %v2215, %v2191
        %v3728 = vpack.c.b16 %v2240, %v2216
        %v3729 = vpack.c.b16 %v2241, %v2217
        %v3730 = vpack.c.b16 %v2242, %v2218
        %v3731 = vpack.c.b16 %v2243, %v2219
        %v3732 = vpack.c.b16 %v2244, %v2220
        %v3733 = vpack.c.b16 %v2245, %v2221
        %v3734 = vpack.c.b16 %v2246, %v2222
        %v3735 = vpack.c.b16 %v2247, %v2223
        %v3736 = vpack.c.b16 %v2248, %v2224
        %v3737 = vpack.c.b16 %v2249, %v2225
        %v3738 = vpack.c.b16 %v2250, %v2226
        %v3739 = vpack.c.b16 %v2251, %v2227
        %v3740 = vpack.c.b16 %v2252, %v2228
        %v3741 = vpack.c.b16 %v2253, %v2229
        %v3742 = vpack.c.b16 %v2254, %v2230
        %v3743 = vpack.c.b16 %v2255, %v2231
        %v3744 = vpack.c.b16 %v2256, %v2232
        %v3745 = vpack.c.b16 %v2257, %v2233
        %v3746 = vpack.c.b16 %v2258, %v2234
        %v3747 = vpack.c.b16 %v2259, %v2235
        %v3748 = vpack.c.b16 %v2260, %v2236
        %v3749 = vpack.c.b16 %v2261, %v2237
        %v3750 = vpack.c.b16 %v2262, %v2238
        %v3751 = vpack.c.b16 %v2263, %v2239
        %v3752 = vpack.c.b16 %v2288, %v2264
        %v3753 = vpack.c.b16 %v2289, %v2265
        %v3754 = vpack.c.b16 %v2290, %v2266
        %v3755 = vpack.c.b16 %v2291, %v2267
        %v3756 = vpack.c.b16 %v2292, %v2268
        %v3757 = vpack.c.b16 %v2293, %v2269
        %v3758 = vpack.c.b16 %v2294, %v2270
        %v3759 = vpack.c.b16 %v2295, %v2271
        %v3760 = vpack.c.b16 %v2296, %v2272
        %v3761 = vpack.c.b16 %v2297, %v2273
        %v3762 = vpack.c.b16 %v2298, %v2274
        %v3763 = vpack.c.b16 %v2299, %v2275
        %v3764 = vpack.c.b16 %v2300, %v2276
        %v3765 = vpack.c.b16 %v2301, %v2277
        %v3766 = vpack.c.b16 %v2302, %v2278
        %v3767 = vpack.c.b16 %v2303, %v2279
        %v3768 = vpack.c.b16 %v2304, %v2280
        %v3769 = vpack.c.b16 %v2305, %v2281
        %v3770 = vpack.c.b16 %v2306, %v2282
        %v3771 = vpack.c.b16 %v2307, %v2283
        %v3772 = vpack.c.b16 %v2308, %v2284
        %v3773 = vpack.c.b16 %v2309, %v2285
        %v3774 = vpack.c.b16 %v2310, %v2286
        %v3775 = vpack.c.b16 %v2311, %v2287
        %v3776 = vpack.c.b16 %v2336, %v2312
        %v3777 = vpack.c.b16 %v2337, %v2313
        %v3778 = vpack.c.b16 %v2338, %v2314
        %v3779 = vpack.c.b16 %v2339, %v2315
        %v3780 = vpack.c.b16 %v2340, %v2316
        %v3781 = vpack.c.b16 %v2341, %v2317
        %v3782 = vpack.c.b16 %v2342, %v2318
        %v3783 = vpack.c.b16 %v2343, %v2319
        %v3784 = vpack.c.b16 %v2344, %v2320
        %v3785 = vpack.c.b16 %v2345, %v2321
        %v3786 = vpack.c.b16 %v2346, %v2322
        %v3787 = vpack.c.b16 %v2347, %v2323
        %v3788 = vpack.c.b16 %v2348, %v2324
        %v3789 = vpack.c.b16 %v2349, %v2325
        %v3790 = vpack.c.b16 %v2350, %v2326
        %v3791 = vpack.c.b16 %v2351, %v2327
        %v3792 = vpack.c.b16 %v2352, %v2328
        %v3793 = vpack.c.b16 %v2353, %v2329
        %v3794 = vpack.c.b16 %v2354, %v2330
        %v3795 = vpack.c.b16 %v2355, %v2331
        %v3796 = vpack.c.b16 %v2356, %v2332
        %v3797 = vpack.c.b16 %v2357, %v2333
        %v3798 = vpack.c.b16 %v2358, %v2334
        %v3799 = vpack.c.b16 %v2359, %v2335
        %v3800 = vpack.c.b16 %v2384, %v2360
        %v3801 = vpack.c.b16 %v2385, %v2361
        %v3802 = vpack.c.b16 %v2386, %v2362
        %v3803 = vpack.c.b16 %v2387, %v2363
        %v3804 = vpack.c.b16 %v2388, %v2364
        %v3805 = vpack.c.b16 %v2389, %v2365
        %v3806 = vpack.c.b16 %v2390, %v2366
        %v3807 = vpack.c.b16 %v2391, %v2367
        %v3808 = vpack.c.b16 %v2392, %v2368
        %v3809 = vpack.c.b16 %v2393, %v2369
        %v3810 = vpack.c.b16 %v2394, %v2370
        %v3811 = vpack.c.b16 %v2395, %v2371
        %v3812 = vpack.c.b16 %v2396, %v2372
        %v3813 = vpack.c.b16 %v2397, %v2373
        %v3814 = vpack.c.b16 %v2398, %v2374
        %v3815 = vpack.c.b16 %v2399, %v2375
        %v3816 = vpack.c.b16 %v2400, %v2376
        %v3817 = vpack.c.b16 %v2401, %v2377
        %v3818 = vpack.c.b16 %v2402, %v2378
        %v3819 = vpack.c.b16 %v2403, %v2379
        %v3820 = vpack.c.b16 %v2404, %v2380
        %v3821 = vpack.c.b16 %v2405, %v2381
        %v3822 = vpack.c.b16 %v2406, %v2382
        %v3823 = vpack.c.b16 %v2407, %v2383
        %v3824 = vpack.c.b16 %v2432, %v2408
        %v3825 = vpack.c.b16 %v2433, %v2409
        %v3826 = vpack.c.b16 %v2434, %v2410
        %v3827 = vpack.c.b16 %v2435, %v2411
        %v3828 = vpack.c.b16 %v2436, %v2412
        %v3829 = vpack.c.b16 %v2437, %v2413
        %v3830 = vpack.c.b16 %v2438, %v2414
        %v3831 = vpack.c.b16 %v2439, %v2415
        %v3832 = vpack.c.b16 %v2440, %v2416
        %v3833 = vpack.c.b16 %v2441, %v2417
        %v3834 = vpack.c.b16 %v2442, %v2418
        %v3835 = vpack.c.b16 %v2443, %v2419
        %v3836 = vpack.c.b16 %v2444, %v2420
        %v3837 = vpack.c.b16 %v2445, %v2421
        %v3838 = vpack.c.b16 %v2446, %v2422
        %v3839 = vpack.c.b16 %v2447, %v2423
        %v3840 = vpack.c.b16 %v2448, %v2424
        %v3841 = vpack.c.b16 %v2449, %v2425
        %v3842 = vpack.c.b16 %v2450, %v2426
        %v3843 = vpack.c.b16 %v2451, %v2427
        %v3844 = vpack.c.b16 %v2452, %v2428
        %v3845 = vpack.c.b16 %v2453, %v2429
        %v3846 = vpack.c.b16 %v2454, %v2430
        %v3847 = vpack.c.b16 %v2455, %v2431
        %v3848 = vpack.c.b16 %v2480, %v2456
        %v3849 = vpack.c.b16 %v2481, %v2457
        %v3850 = vpack.c.b16 %v2482, %v2458
        %v3851 = vpack.c.b16 %v2483, %v2459
        %v3852 = vpack.c.b16 %v2484, %v2460
        %v3853 = vpack.c.b16 %v2485, %v2461
        %v3854 = vpack.c.b16 %v2486, %v2462
        %v3855 = vpack.c.b16 %v2487, %v2463
        %v3856 = vpack.c.b16 %v2488, %v2464
        %v3857 = vpack.c.b16 %v2489, %v2465
        %v3858 = vpack.c.b16 %v2490, %v2466
        %v3859 = vpack.c.b16 %v2491, %v2467
        %v3860 = vpack.c.b16 %v2492, %v2468
        %v3861 = vpack.c.b16 %v2493, %v2469
        %v3862 = vpack.c.b16 %v2494, %v2470
        %v3863 = vpack.c.b16 %v2495, %v2471
        %v3864 = vpack.c.b16 %v2496, %v2472
        %v3865 = vpack.c.b16 %v2497, %v2473
        %v3866 = vpack.c.b16 %v2498, %v2474
        %v3867 = vpack.c.b16 %v2499, %v2475
        %v3868 = vpack.c.b16 %v2500, %v2476
        %v3869 = vpack.c.b16 %v2501, %v2477
        %v3870 = vpack.c.b16 %v2502, %v2478
        %v3871 = vpack.c.b16 %v2503, %v2479
        %v3872 = vpack.c.b16 %v2528, %v2504
        %v3873 = vpack.c.b16 %v2529, %v2505
        %v3874 = vpack.c.b16 %v2530, %v2506
        %v3875 = vpack.c.b16 %v2531, %v2507
        %v3876 = vpack.c.b16 %v2532, %v2508
        %v3877 = vpack.c.b16 %v2533, %v2509
        %v3878 = vpack.c.b16 %v2534, %v2510
        %v3879 = vpack.c.b16 %v2535, %v2511
        %v3880 = vpack.c.b16 %v2536, %v2512
        %v3881 = vpack.c.b16 %v2537, %v2513
        %v3882 = vpack.c.b16 %v2538, %v2514
        %v3883 = vpack.c.b16 %v2539, %v2515
        %v3884 = vpack.c.b16 %v2540, %v2516
        %v3885 = vpack.c.b16 %v2541, %v2517
        %v3886 = vpack.c.b16 %v2542, %v2518
        %v3887 = vpack.c.b16 %v2543, %v2519
        %v3888 = vpack.c.b16 %v2544, %v2520
        %v3889 = vpack.c.b16 %v2545, %v2521
        %v3890 = vpack.c.b16 %v2546, %v2522
        %v3891 = vpack.c.b16 %v2547, %v2523
        %v3892 = vpack.c.b16 %v2548, %v2524
        %v3893 = vpack.c.b16 %v2549, %v2525
        %v3894 = vpack.c.b16 %v2550, %v2526
        %v3895 = vpack.c.b16 %v2551, %v2527
        %v3896 = vpack.c.b16 %v2576, %v2552
        %v3897 = vpack.c.b16 %v2577, %v2553
        %v3898 = vpack.c.b16 %v2578, %v2554
        %v3899 = vpack.c.b16 %v2579, %v2555
        %v3900 = vpack.c.b16 %v2580, %v2556
        %v3901 = vpack.c.b16 %v2581, %v2557
        %v3902 = vpack.c.b16 %v2582, %v2558
        %v3903 = vpack.c.b16 %v2583, %v2559
        %v3904 = vpack.c.b16 %v2584, %v2560
        %v3905 = vpack.c.b16 %v2585, %v2561
        %v3906 = vpack.c.b16 %v2586, %v2562
        %v3907 = vpack.c.b16 %v2587, %v2563
        %v3908 = vpack.c.b16 %v2588, %v2564
        %v3909 = vpack.c.b16 %v2589, %v2565
        %v3910 = vpack.c.b16 %v2590, %v2566
        %v3911 = vpack.c.b16 %v2591, %v2567
        %v3912 = vpack.c.b16 %v2592, %v2568
        %v3913 = vpack.c.b16 %v2593, %v2569
        %v3914 = vpack.c.b16 %v2594, %v2570
        %v3915 = vpack.c.b16 %v2595, %v2571
        %v3916 = vpack.c.b16 %v2596, %v2572
        %v3917 = vpack.c.b16 %v2597, %v2573
        %v3918 = vpack.c.b16 %v2598, %v2574
        %v3919 = vpack.c.b16 %v2599, %v2575
        %v3920 = vpack.c.b16 %v2624, %v2600
        %v3921 = vpack.c.b16 %v2625, %v2601
        %v3922 = vpack.c.b16 %v2626, %v2602
        %v3923 = vpack.c.b16 %v2627, %v2603
        %v3924 = vpack.c.b16 %v2628, %v2604
        %v3925 = vpack.c.b16 %v2629, %v2605
        %v3926 = vpack.c.b16 %v2630, %v2606
        %v3927 = vpack.c.b16 %v2631, %v2607
        %v3928 = vpack.c.b16 %v2632, %v2608
        %v3929 = vpack.c.b16 %v2633, %v2609
        %v3930 = vpack.c.b16 %v2634, %v2610
        %v3931 = vpack.c.b16 %v2635, %v2611
        %v3932 = vpack.c.b16 %v2636, %v2612
        %v3933 = vpack.c.b16 %v2637, %v2613
        %v3934 = vpack.c.b16 %v2638, %v2614
        %v3935 = vpack.c.b16 %v2639, %v2615
        %v3936 = vpack.c.b16 %v2640, %v2616
        %v3937 = vpack.c.b16 %v2641, %v2617
        %v3938 = vpack.c.b16 %v2642, %v2618
        %v3939 = vpack.c.b16 %v2643, %v2619
        %v3940 = vpack.c.b16 %v2644, %v2620
        %v3941 = vpack.c.b16 %v2645, %v2621
        %v3942 = vpack.c.b16 %v2646, %v2622
        %v3943 = vpack.c.b16 %v2647, %v2623
        %v3944 = vpack.c.b16 %v2672, %v2648
        %v3945 = vpack.c.b16 %v2673, %v2649
        %v3946 = vpack.c.b16 %v2674, %v2650
        %v3947 = vpack.c.b16 %v2675, %v2651
        %v3948 = vpack.c.b16 %v2676, %v2652
        %v3949 = vpack.c.b16 %v2677, %v2653
        %v3950 = vpack.c.b16 %v2678, %v2654
        %v3951 = vpack.c.b16 %v2679, %v2655
        %v3952 = vpack.c.b16 %v2680, %v2656
        %v3953 = vpack.c.b16 %v2681, %v2657
        %v3954 = vpack.c.b16 %v2682, %v2658
        %v3955 = vpack.c.b16 %v2683, %v2659
        %v3956 = vpack.c.b16 %v2684, %v2660
        %v3957 = vpack.c.b16 %v2685, %v2661
        %v3958 = vpack.c.b16 %v2686, %v2662
        %v3959 = vpack.c.b16 %v2687, %v2663
        %v3960 = vpack.c.b16 %v2688, %v2664
        %v3961 = vpack.c.b16 %v2689, %v2665
        %v3962 = vpack.c.b16 %v2690, %v2666
        %v3963 = vpack.c.b16 %v2691, %v2667
        %v3964 = vpack.c.b16 %v2692, %v2668
        %v3965 = vpack.c.b16 %v2693, %v2669
        %v3966 = vpack.c.b16 %v2694, %v2670
        %v3967 = vpack.c.b16 %v2695, %v2671
        %v3968 = vpack.c.b16 %v2720, %v2696
        %v3969 = vpack.c.b16 %v2721, %v2697
        %v3970 = vpack.c.b16 %v2722, %v2698
        %v3971 = vpack.c.b16 %v2723, %v2699
        %v3972 = vpack.c.b16 %v2724, %v2700
        %v3973 = vpack.c.b16 %v2725, %v2701
        %v3974 = vpack.c.b16 %v2726, %v2702
        %v3975 = vpack.c.b16 %v2727, %v2703
        %v3976 = vpack.c.b16 %v2728, %v2704
        %v3977 = vpack.c.b16 %v2729, %v2705
        %v3978 = vpack.c.b16 %v2730, %v2706
        %v3979 = vpack.c.b16 %v2731, %v2707
        %v3980 = vpack.c.b16 %v2732, %v2708
        %v3981 = vpack.c.b16 %v2733, %v2709
        %v3982 = vpack.c.b16 %v2734, %v2710
        %v3983 = vpack.c.b16 %v2735, %v2711
        %v3984 = vpack.c.b16 %v2736, %v2712
        %v3985 = vpack.c.b16 %v2737, %v2713
        %v3986 = vpack.c.b16 %v2738, %v2714
        %v3987 = vpack.c.b16 %v2739, %v2715
        %v3988 = vpack.c.b16 %v2740, %v2716
        %v3989 = vpack.c.b16 %v2741, %v2717
        %v3990 = vpack.c.b16 %v2742, %v2718
        %v3991 = vpack.c.b16 %v2743, %v2719
        %v3992 = vpack.c.b16 %v2768, %v2744
        %v3993 = vpack.c.b16 %v2769, %v2745
        %v3994 = vpack.c.b16 %v2770, %v2746
        %v3995 = vpack.c.b16 %v2771, %v2747
        %v3996 = vpack.c.b16 %v2772, %v2748
        %v3997 = vpack.c.b16 %v2773, %v2749
        %v3998 = vpack.c.b16 %v2774, %v2750
        %v3999 = vpack.c.b16 %v2775, %v2751
        %v4000 = vpack.c.b16 %v2776, %v2752
        %v4001 = vpack.c.b16 %v2777, %v2753
        %v4002 = vpack.c.b16 %v2778, %v2754
        %v4003 = vpack.c.b16 %v2779, %v2755
        %v4004 = vpack.c.b16 %v2780, %v2756
        %v4005 = vpack.c.b16 %v2781, %v2757
        %v4006 = vpack.c.b16 %v2782, %v2758
        %v4007 = vpack.c.b16 %v2783, %v2759
        %v4008 = vpack.c.b16 %v2784, %v2760
        %v4009 = vpack.c.b16 %v2785, %v2761
        %v4010 = vpack.c.b16 %v2786, %v2762
        %v4011 = vpack.c.b16 %v2787, %v2763
        %v4012 = vpack.c.b16 %v2788, %v2764
        %v4013 = vpack.c.b16 %v2789, %v2765
        %v4014 = vpack.c.b16 %v2790, %v2766
        %v4015 = vpack.c.b16 %v2791, %v2767
        %v4016 = vpack.c.b16 %v2816, %v2792
        %v4017 = vpack.c.b16 %v2817, %v2793
        %v4018 = vpack.c.b16 %v2818, %v2794
        %v4019 = vpack.c.b16 %v2819, %v2795
        %v4020 = vpack.c.b16 %v2820, %v2796
        %v4021 = vpack.c.b16 %v2821, %v2797
        %v4022 = vpack.c.b16 %v2822, %v2798
        %v4023 = vpack.c.b16 %v2823, %v2799
        %v4024 = vpack.c.b16 %v2824, %v2800
        %v4025 = vpack.c.b16 %v2825, %v2801
        %v4026 = vpack.c.b16 %v2826, %v2802
        %v4027 = vpack.c.b16 %v2827, %v2803
        %v4028 = vpack.c.b16 %v2828, %v2804
        %v4029 = vpack.c.b16 %v2829, %v2805
        %v4030 = vpack.c.b16 %v2830, %v2806
        %v4031 = vpack.c.b16 %v2831, %v2807
        %v4032 = vpack.c.b16 %v2832, %v2808
        %v4033 = vpack.c.b16 %v2833, %v2809
        %v4034 = vpack.c.b16 %v2834, %v2810
        %v4035 = vpack.c.b16 %v2835, %v2811
        %v4036 = vpack.c.b16 %v2836, %v2812
        %v4037 = vpack.c.b16 %v2837, %v2813
        %v4038 = vpack.c.b16 %v2838, %v2814
        %v4039 = vpack.c.b16 %v2839, %v2815
        %v4040 = vpack.c.b16 %v2864, %v2840
        %v4041 = vpack.c.b16 %v2865, %v2841
        %v4042 = vpack.c.b16 %v2866, %v2842
        %v4043 = vpack.c.b16 %v2867, %v2843
        %v4044 = vpack.c.b16 %v2868, %v2844
        %v4045 = vpack.c.b16 %v2869, %v2845
        %v4046 = vpack.c.b16 %v2870, %v2846
        %v4047 = vpack.c.b16 %v2871, %v2847
        %v4048 = vpack.c.b16 %v2872, %v2848
        %v4049 = vpack.c.b16 %v2873, %v2849
        %v4050 = vpack.c.b16 %v2874, %v2850
        %v4051 = vpack.c.b16 %v2875, %v2851
        %v4052 = vpack.c.b16 %v2876, %v2852
        %v4053 = vpack.c.b16 %v2877, %v2853
        %v4054 = vpack.c.b16 %v2878, %v2854
        %v4055 = vpack.c.b16 %v2879, %v2855
        %v4056 = vpack.c.b16 %v2880, %v2856
        %v4057 = vpack.c.b16 %v2881, %v2857
        %v4058 = vpack.c.b16 %v2882, %v2858
        %v4059 = vpack.c.b16 %v2883, %v2859
        %v4060 = vpack.c.b16 %v2884, %v2860
        %v4061 = vpack.c.b16 %v2885, %v2861
        %v4062 = vpack.c.b16 %v2886, %v2862
        %v4063 = vpack.c.b16 %v2887, %v2863
        %v4064 = vpack.c.b16 %v2912, %v2888
        %v4065 = vpack.c.b16 %v2913, %v2889
        %v4066 = vpack.c.b16 %v2914, %v2890
        %v4067 = vpack.c.b16 %v2915, %v2891
        %v4068 = vpack.c.b16 %v2916, %v2892
        %v4069 = vpack.c.b16 %v2917, %v2893
        %v4070 = vpack.c.b16 %v2918, %v2894
        %v4071 = vpack.c.b16 %v2919, %v2895
        %v4072 = vpack.c.b16 %v2920, %v2896
        %v4073 = vpack.c.b16 %v2921, %v2897
        %v4074 = vpack.c.b16 %v2922, %v2898
        %v4075 = vpack.c.b16 %v2923, %v2899
        %v4076 = vpack.c.b16 %v2924, %v2900
        %v4077 = vpack.c.b16 %v2925, %v2901
        %v4078 = vpack.c.b16 %v2926, %v2902
        %v4079 = vpack.c.b16 %v2927, %v2903
        %v4080 = vpack.c.b16 %v2928, %v2904
        %v4081 = vpack.c.b16 %v2929, %v2905
        %v4082 = vpack.c.b16 %v2930, %v2906
        %v4083 = vpack.c.b16 %v2931, %v2907
        %v4084 = vpack.c.b16 %v2932, %v2908
        %v4085 = vpack.c.b16 %v2933, %v2909
        %v4086 = vpack.c.b16 %v2934, %v2910
        %v4087 = vpack.c.b16 %v2935, %v2911
        %v4088 = vpack.c.b16 %v2960, %v2936
        %v4089 = vpack.c.b16 %v2961, %v2937
        %v4090 = vpack.c.b16 %v2962, %v2938
        %v4091 = vpack.c.b16 %v2963, %v2939
        %v4092 = vpack.c.b16 %v2964, %v2940
        %v4093 = vpack.c.b16 %v2965, %v2941
        %v4094 = vpack.c.b16 %v2966, %v2942
        %v4095 = vpack.c.b16 %v2967, %v2943
        %v4096 = vpack.c.b16 %v2968, %v2944
        %v4097 = vpack.c.b16 %v2969, %v2945
        %v4098 = vpack.c.b16 %v2970, %v2946
        %v4099 = vpack.c.b16 %v2971, %v2947
        %v4100 = vpack.c.b16 %v2972, %v2948
        %v4101 = vpack.c.b16 %v2973, %v2949
        %v4102 = vpack.c.b16 %v2974, %v2950
        %v4103 = vpack.c.b16 %v2975, %v2951
        %v4104 = vpack.c.b16 %v2976, %v2952
        %v4105 = vpack.c.b16 %v2977, %v2953
        %v4106 = vpack.c.b16 %v2978, %v2954
        %v4107 = vpack.c.b16 %v2979, %v2955
        %v4108 = vpack.c.b16 %v2980, %v2956
        %v4109 = vpack.c.b16 %v2981, %v2957
        %v4110 = vpack.c.b16 %v2982, %v2958
        %v4111 = vpack.c.b16 %v2983, %v2959
        %v4112 = vpack.c.b16 %v3008, %v2984
        %v4113 = vpack.c.b16 %v3009, %v2985
        %v4114 = vpack.c.b16 %v3010, %v2986
        %v4115 = vpack.c.b16 %v3011, %v2987
        %v4116 = vpack.c.b16 %v3012, %v2988
        %v4117 = vpack.c.b16 %v3013, %v2989
        %v4118 = vpack.c.b16 %v3014, %v2990
        %v4119 = vpack.c.b16 %v3015, %v2991
        %v4120 = vpack.c.b16 %v3016, %v2992
        %v4121 = vpack.c.b16 %v3017, %v2993
        %v4122 = vpack.c.b16 %v3018, %v2994
        %v4123 = vpack.c.b16 %v3019, %v2995
        %v4124 = vpack.c.b16 %v3020, %v2996
        %v4125 = vpack.c.b16 %v3021, %v2997
        %v4126 = vpack.c.b16 %v3022, %v2998
        %v4127 = vpack.c.b16 %v3023, %v2999
        %v4128 = vpack.c.b16 %v3024, %v3000
        %v4129 = vpack.c.b16 %v3025, %v3001
        %v4130 = vpack.c.b16 %v3026, %v3002
        %v4131 = vpack.c.b16 %v3027, %v3003
        %v4132 = vpack.c.b16 %v3028, %v3004
        %v4133 = vpack.c.b16 %v3029, %v3005
        %v4134 = vpack.c.b16 %v3030, %v3006
        %v4135 = vpack.c.b16 %v3031, %v3007
        %v4136 = vpack.c.b16 %v3056, %v3032
        %v4137 = vpack.c.b16 %v3057, %v3033
        %v4138 = vpack.c.b16 %v3058, %v3034
        %v4139 = vpack.c.b16 %v3059, %v3035
        %v4140 = vpack.c.b16 %v3060, %v3036
        %v4141 = vpack.c.b16 %v3061, %v3037
        %v4142 = vpack.c.b16 %v3062, %v3038
        %v4143 = vpack.c.b16 %v3063, %v3039
        %v4144 = vpack.c.b16 %v3064, %v3040
        %v4145 = vpack.c.b16 %v3065, %v3041
        %v4146 = vpack.c.b16 %v3066, %v3042
        %v4147 = vpack.c.b16 %v3067, %v3043
        %v4148 = vpack.c.b16 %v3068, %v3044
        %v4149 = vpack.c.b16 %v3069, %v3045
        %v4150 = vpack.c.b16 %v3070, %v3046
        %v4151 = vpack.c.b16 %v3071, %v3047
        %v4152 = vpack.c.b16 %v3072, %v3048
        %v4153 = vpack.c.b16 %v3073, %v3049
        %v4154 = vpack.c.b16 %v3074, %v3050
        %v4155 = vpack.c.b16 %v3075, %v3051
        %v4156 = vpack.c.b16 %v3076, %v3052
        %v4157 = vpack.c.b16 %v3077, %v3053
        %v4158 = vpack.c.b16 %v3078, %v3054
        %v4159 = vpack.c.b16 %v3079, %v3055
        %v4160 = vpack.c.b16 %v3104, %v3080
        %v4161 = vpack.c.b16 %v3105, %v3081
        %v4162 = vpack.c.b16 %v3106, %v3082
        %v4163 = vpack.c.b16 %v3107, %v3083
        %v4164 = vpack.c.b16 %v3108, %v3084
        %v4165 = vpack.c.b16 %v3109, %v3085
        %v4166 = vpack.c.b16 %v3110, %v3086
        %v4167 = vpack.c.b16 %v3111, %v3087
        %v4168 = vpack.c.b16 %v3112, %v3088
        %v4169 = vpack.c.b16 %v3113, %v3089
        %v4170 = vpack.c.b16 %v3114, %v3090
        %v4171 = vpack.c.b16 %v3115, %v3091
        %v4172 = vpack.c.b16 %v3116, %v3092
        %v4173 = vpack.c.b16 %v3117, %v3093
        %v4174 = vpack.c.b16 %v3118, %v3094
        %v4175 = vpack.c.b16 %v3119, %v3095
        %v4176 = vpack.c.b16 %v3120, %v3096
        %v4177 = vpack.c.b16 %v3121, %v3097
        %v4178 = vpack.c.b16 %v3122, %v3098
        %v4179 = vpack.c.b16 %v3123, %v3099
        %v4180 = vpack.c.b16 %v3124, %v3100
        %v4181 = vpack.c.b16 %v3125, %v3101
        %v4182 = vpack.c.b16 %v3126, %v3102
        %v4183 = vpack.c.b16 %v3127, %v3103
        %v4184 = vpack.c.b16 %v3152, %v3128
        %v4185 = vpack.c.b16 %v3153, %v3129
        %v4186 = vpack.c.b16 %v3154, %v3130
        %v4187 = vpack.c.b16 %v3155, %v3131
        %v4188 = vpack.c.b16 %v3156, %v3132
        %v4189 = vpack.c.b16 %v3157, %v3133
        %v4190 = vpack.c.b16 %v3158, %v3134
        %v4191 = vpack.c.b16 %v3159, %v3135
        %v4192 = vpack.c.b16 %v3160, %v3136
        %v4193 = vpack.c.b16 %v3161, %v3137
        %v4194 = vpack.c.b16 %v3162, %v3138
        %v4195 = vpack.c.b16 %v3163, %v3139
        %v4196 = vpack.c.b16 %v3164, %v3140
        %v4197 = vpack.c.b16 %v3165, %v3141
        %v4198 = vpack.c.b16 %v3166, %v3142
        %v4199 = vpack.c.b16 %v3167, %v3143
        %v4200 = vpack.c.b16 %v3168, %v3144
        %v4201 = vpack.c.b16 %v3169, %v3145
        %v4202 = vpack.c.b16 %v3170, %v3146
        %v4203 = vpack.c.b16 %v3171, %v3147
        %v4204 = vpack.c.b16 %v3172, %v3148
        %v4205 = vpack.c.b16 %v3173, %v3149
        %v4206 = vpack.c.b16 %v3174, %v3150
        %v4207 = vpack.c.b16 %v3175, %v3151
        %v4208 = vpack.c.b16 %v3200, %v3176
        %v4209 = vpack.c.b16 %v3201, %v3177
        %v4210 = vpack.c.b16 %v3202, %v3178
        %v4211 = vpack.c.b16 %v3203, %v3179
        %v4212 = vpack.c.b16 %v3204, %v3180
        %v4213 = vpack.c.b16 %v3205, %v3181
        %v4214 = vpack.c.b16 %v3206, %v3182
        %v4215 = vpack.c.b16 %v3207, %v3183
        %v4216 = vpack.c.b16 %v3208, %v3184
        %v4217 = vpack.c.b16 %v3209, %v3185
        %v4218 = vpack.c.b16 %v3210, %v3186
        %v4219 = vpack.c.b16 %v3211, %v3187
        %v4220 = vpack.c.b16 %v3212, %v3188
        %v4221 = vpack.c.b16 %v3213, %v3189
        %v4222 = vpack.c.b16 %v3214, %v3190
        %v4223 = vpack.c.b16 %v3215, %v3191
        %v4224 = vpack.c.b16 %v3216, %v3192
        %v4225 = vpack.c.b16 %v3217, %v3193
        %v4226 = vpack.c.b16 %v3218, %v3194
        %v4227 = vpack.c.b16 %v3219, %v3195
        %v4228 = vpack.c.b16 %v3220, %v3196
        %v4229 = vpack.c.b16 %v3221, %v3197
        %v4230 = vpack.c.b16 %v3222, %v3198
        %v4231 = vpack.c.b16 %v3223, %v3199
        %v4232 = vpack.c.b16 %v3248, %v3224
        %v4233 = vpack.c.b16 %v3249, %v3225
        %v4234 = vpack.c.b16 %v3250, %v3226
        %v4235 = vpack.c.b16 %v3251, %v3227
        %v4236 = vpack.c.b16 %v3252, %v3228
        %v4237 = vpack.c.b16 %v3253, %v3229
        %v4238 = vpack.c.b16 %v3254, %v3230
        %v4239 = vpack.c.b16 %v3255, %v3231
        %v4240 = vpack.c.b16 %v3256, %v3232
        %v4241 = vpack.c.b16 %v3257, %v3233
        %v4242 = vpack.c.b16 %v3258, %v3234
        %v4243 = vpack.c.b16 %v3259, %v3235
        %v4244 = vpack.c.b16 %v3260, %v3236
        %v4245 = vpack.c.b16 %v3261, %v3237
        %v4246 = vpack.c.b16 %v3262, %v3238
        %v4247 = vpack.c.b16 %v3263, %v3239
        %v4248 = vpack.c.b16 %v3264, %v3240
        %v4249 = vpack.c.b16 %v3265, %v3241
        %v4250 = vpack.c.b16 %v3266, %v3242
        %v4251 = vpack.c.b16 %v3267, %v3243
        %v4252 = vpack.c.b16 %v3268, %v3244
        %v4253 = vpack.c.b16 %v3269, %v3245
        %v4254 = vpack.c.b16 %v3270, %v3246
        %v4255 = vpack.c.b16 %v3271, %v3247
        %v4256 = vpack.c.b16 %v3296, %v3272
        %v4257 = vpack.c.b16 %v3297, %v3273
        %v4258 = vpack.c.b16 %v3298, %v3274
        %v4259 = vpack.c.b16 %v3299, %v3275
        %v4260 = vpack.c.b16 %v3300, %v3276
        %v4261 = vpack.c.b16 %v3301, %v3277
        %v4262 = vpack.c.b16 %v3302, %v3278
        %v4263 = vpack.c.b16 %v3303, %v3279
        %v4264 = vpack.c.b16 %v3304, %v3280
        %v4265 = vpack.c.b16 %v3305, %v3281
        %v4266 = vpack.c.b16 %v3306, %v3282
        %v4267 = vpack.c.b16 %v3307, %v3283
        %v4268 = vpack.c.b16 %v3308, %v3284
        %v4269 = vpack.c.b16 %v3309, %v3285
        %v4270 = vpack.c.b16 %v3310, %v3286
        %v4271 = vpack.c.b16 %v3311, %v3287
        %v4272 = vpack.c.b16 %v3312, %v3288
        %v4273 = vpack.c.b16 %v3313, %v3289
        %v4274 = vpack.c.b16 %v3314, %v3290
        %v4275 = vpack.c.b16 %v3315, %v3291
        %v4276 = vpack.c.b16 %v3316, %v3292
        %v4277 = vpack.c.b16 %v3317, %v3293
        %v4278 = vpack.c.b16 %v3318, %v3294
        %v4279 = vpack.c.b16 %v3319, %v3295
        %v4280 = vpack.c.b16 %v3344, %v3320
        %v4281 = vpack.c.b16 %v3345, %v3321
        %v4282 = vpack.c.b16 %v3346, %v3322
        %v4283 = vpack.c.b16 %v3347, %v3323
        %v4284 = vpack.c.b16 %v3348, %v3324
        %v4285 = vpack.c.b16 %v3349, %v3325
        %v4286 = vpack.c.b16 %v3350, %v3326
        %v4287 = vpack.c.b16 %v3351, %v3327
        %v4288 = vpack.c.b16 %v3352, %v3328
        %v4289 = vpack.c.b16 %v3353, %v3329
        %v4290 = vpack.c.b16 %v3354, %v3330
        %v4291 = vpack.c.b16 %v3355, %v3331
        %v4292 = vpack.c.b16 %v3356, %v3332
        %v4293 = vpack.c.b16 %v3357, %v3333
        %v4294 = vpack.c.b16 %v3358, %v3334
        %v4295 = vpack.c.b16 %v3359, %v3335
        %v4296 = vpack.c.b16 %v3360, %v3336
        %v4297 = vpack.c.b16 %v3361, %v3337
        %v4298 = vpack.c.b16 %v3362, %v3338
        %v4299 = vpack.c.b16 %v3363, %v3339
        %v4300 = vpack.c.b16 %v3364, %v3340
        %v4301 = vpack.c.b16 %v3365, %v3341
        %v4302 = vpack.c.b16 %v3366, %v3342
        %v4303 = vpack.c.b16 %v3367, %v3343
        %v4304 = vpack.c.b16 %v3392, %v3368
        %v4305 = vpack.c.b16 %v3393, %v3369
        %v4306 = vpack.c.b16 %v3394, %v3370
        %v4307 = vpack.c.b16 %v3395, %v3371
        %v4308 = vpack.c.b16 %v3396, %v3372
        %v4309 = vpack.c.b16 %v3397, %v3373
        %v4310 = vpack.c.b16 %v3398, %v3374
        %v4311 = vpack.c.b16 %v3399, %v3375
        %v4312 = vpack.c.b16 %v3400, %v3376
        %v4313 = vpack.c.b16 %v3401, %v3377
        %v4314 = vpack.c.b16 %v3402, %v3378
        %v4315 = vpack.c.b16 %v3403, %v3379
        %v4316 = vpack.c.b16 %v3404, %v3380
        %v4317 = vpack.c.b16 %v3405, %v3381
        %v4318 = vpack.c.b16 %v3406, %v3382
        %v4319 = vpack.c.b16 %v3407, %v3383
        %v4320 = vpack.c.b16 %v3408, %v3384
        %v4321 = vpack.c.b16 %v3409, %v3385
        %v4322 = vpack.c.b16 %v3410, %v3386
        %v4323 = vpack.c.b16 %v3411, %v3387
        %v4324 = vpack.c.b16 %v3412, %v3388
        %v4325 = vpack.c.b16 %v3413, %v3389
        %v4326 = vpack.c.b16 %v3414, %v3390
        %v4327 = vpack.c.b16 %v3415, %v3391
        %v4328 = vpack.c.b16 %v3440, %v3416
        %v4329 = vpack.c.b16 %v3441, %v3417
        %v4330 = vpack.c.b16 %v3442, %v3418
        %v4331 = vpack.c.b16 %v3443, %v3419
        %v4332 = vpack.c.b16 %v3444, %v3420
        %v4333 = vpack.c.b16 %v3445, %v3421
        %v4334 = vpack.c.b16 %v3446, %v3422
        %v4335 = vpack.c.b16 %v3447, %v3423
        %v4336 = vpack.c.b16 %v3448, %v3424
        %v4337 = vpack.c.b16 %v3449, %v3425
        %v4338 = vpack.c.b16 %v3450, %v3426
        %v4339 = vpack.c.b16 %v3451, %v3427
        %v4340 = vpack.c.b16 %v3452, %v3428
        %v4341 = vpack.c.b16 %v3453, %v3429
        %v4342 = vpack.c.b16 %v3454, %v3430
        %v4343 = vpack.c.b16 %v3455, %v3431
        %v4344 = vpack.c.b16 %v3456, %v3432
        %v4345 = vpack.c.b16 %v3457, %v3433
        %v4346 = vpack.c.b16 %v3458, %v3434
        %v4347 = vpack.c.b16 %v3459, %v3435
        %v4348 = vpack.c.b16 %v3460, %v3436
        %v4349 = vpack.c.b16 %v3461, %v3437
        %v4350 = vpack.c.b16 %v3462, %v3438
        %v4351 = vpack.c.b16 %v3463, %v3439
        %v4352 = vpack.c.b16 %v3488, %v3464
        %v4353 = vpack.c.b16 %v3489, %v3465
        %v4354 = vpack.c.b16 %v3490, %v3466
        %v4355 = vpack.c.b16 %v3491, %v3467
        %v4356 = vpack.c.b16 %v3492, %v3468
        %v4357 = vpack.c.b16 %v3493, %v3469
        %v4358 = vpack.c.b16 %v3494, %v3470
        %v4359 = vpack.c.b16 %v3495, %v3471
        %v4360 = vpack.c.b16 %v3496, %v3472
        %v4361 = vpack.c.b16 %v3497, %v3473
        %v4362 = vpack.c.b16 %v3498, %v3474
        %v4363 = vpack.c.b16 %v3499, %v3475
        %v4364 = vpack.c.b16 %v3500, %v3476
        %v4365 = vpack.c.b16 %v3501, %v3477
        %v4366 = vpack.c.b16 %v3502, %v3478
        %v4367 = vpack.c.b16 %v3503, %v3479
        %v4368 = vpack.c.b16 %v3504, %v3480
        %v4369 = vpack.c.b16 %v3505, %v3481
        %v4370 = vpack.c.b16 %v3506, %v3482
        %v4371 = vpack.c.b16 %v3507, %v3483
        %v4372 = vpack.c.b16 %v3508, %v3484
        %v4373 = vpack.c.b16 %v3509, %v3485
        %v4374 = vpack.c.b16 %v3510, %v3486
        %v4375 = vpack.c.b16 %v3511, %v3487
        %v4376 = vpack.c.b16 %v3536, %v3512
        %v4377 = vpack.c.b16 %v3537, %v3513
        %v4378 = vpack.c.b16 %v3538, %v3514
        %v4379 = vpack.c.b16 %v3539, %v3515
        %v4380 = vpack.c.b16 %v3540, %v3516
        %v4381 = vpack.c.b16 %v3541, %v3517
        %v4382 = vpack.c.b16 %v3542, %v3518
        %v4383 = vpack.c.b16 %v3543, %v3519
        %v4384 = vpack.c.b16 %v3544, %v3520
        %v4385 = vpack.c.b16 %v3545, %v3521
        %v4386 = vpack.c.b16 %v3546, %v3522
        %v4387 = vpack.c.b16 %v3547, %v3523
        %v4388 = vpack.c.b16 %v3548, %v3524
        %v4389 = vpack.c.b16 %v3549, %v3525
        %v4390 = vpack.c.b16 %v3550, %v3526
        %v4391 = vpack.c.b16 %v3551, %v3527
        %v4392 = vpack.c.b16 %v3552, %v3528
        %v4393 = vpack.c.b16 %v3553, %v3529
        %v4394 = vpack.c.b16 %v3554, %v3530
        %v4395 = vpack.c.b16 %v3555, %v3531
        %v4396 = vpack.c.b16 %v3556, %v3532
        %v4397 = vpack.c.b16 %v3557, %v3533
        %v4398 = vpack.c.b16 %v3558, %v3534
        %v4399 = vpack.c.b16 %v3559, %v3535
        %v4400 = vpack.c.b16 %v3584, %v3560
        %v4401 = vpack.c.b16 %v3585, %v3561
        %v4402 = vpack.c.b16 %v3586, %v3562
        %v4403 = vpack.c.b16 %v3587, %v3563
        %v4404 = vpack.c.b16 %v3588, %v3564
        %v4405 = vpack.c.b16 %v3589, %v3565
        %v4406 = vpack.c.b16 %v3590, %v3566
        %v4407 = vpack.c.b16 %v3591, %v3567
        %v4408 = vpack.c.b16 %v3592, %v3568
        %v4409 = vpack.c.b16 %v3593, %v3569
        %v4410 = vpack.c.b16 %v3594, %v3570
        %v4411 = vpack.c.b16 %v3595, %v3571
        %v4412 = vpack.c.b16 %v3596, %v3572
        %v4413 = vpack.c.b16 %v3597, %v3573
        %v4414 = vpack.c.b16 %v3598, %v3574
        %v4415 = vpack.c.b16 %v3599, %v3575
        %v4416 = vpack.c.b16 %v3600, %v3576
        %v4417 = vpack.c.b16 %v3601, %v3577
        %v4418 = vpack.c.b16 %v3602, %v3578
        %v4419 = vpack.c.b16 %v3603, %v3579
        %v4420 = vpack.c.b16 %v3604, %v3580
        %v4421 = vpack.c.b16 %v3605, %v3581
        %v4422 = vpack.c.b16 %v3606, %v3582
        %v4423 = vpack.c.b16 %v3607, %v3583
        %v4424 = vpack.c.b16 %v3632, %v3608
        %v4425 = vpack.c.b16 %v3633, %v3609
        %v4426 = vpack.c.b16 %v3634, %v3610
        %v4427 = vpack.c.b16 %v3635, %v3611
        %v4428 = vpack.c.b16 %v3636, %v3612
        %v4429 = vpack.c.b16 %v3637, %v3613
        %v4430 = vpack.c.b16 %v3638, %v3614
        %v4431 = vpack.c.b16 %v3639, %v3615
        %v4432 = vpack.c.b16 %v3640, %v3616
        %v4433 = vpack.c.b16 %v3641, %v3617
        %v4434 = vpack.c.b16 %v3642, %v3618
        %v4435 = vpack.c.b16 %v3643, %v3619
        %v4436 = vpack.c.b16 %v3644, %v3620
        %v4437 = vpack.c.b16 %v3645, %v3621
        %v4438 = vpack.c.b16 %v3646, %v3622
        %v4439 = vpack.c.b16 %v3647, %v3623
        %v4440 = vpack.c.b16 %v3648, %v3624
        %v4441 = vpack.c.b16 %v3649, %v3625
        %v4442 = vpack.c.b16 %v3650, %v3626
        %v4443 = vpack.c.b16 %v3651, %v3627
        %v4444 = vpack.c.b16 %v3652, %v3628
        %v4445 = vpack.c.b16 %v3653, %v3629
        %v4446 = vpack.c.b16 %v3654, %v3630
        %v4447 = vpack.c.b16 %v3655, %v3631
        %v4448 = vpack.c.b16 %v3680, %v3656
        %v4449 = vpack.c.b16 %v3681, %v3657
        %v4450 = vpack.c.b16 %v3682, %v3658
        %v4451 = vpack.c.b16 %v3683, %v3659
        %v4452 = vpack.c.b16 %v3684, %v3660
        %v4453 = vpack.c.b16 %v3685, %v3661
        %v4454 = vpack.c.b16 %v3686, %v3662
        %v4455 = vpack.c.b16 %v3687, %v3663
        %v4456 = vpack.c.b16 %v3688, %v3664
        %v4457 = vpack.c.b16 %v3689, %v3665
        %v4458 = vpack.c.b16 %v3690, %v3666
        %v4459 = vpack.c.b16 %v3691, %v3667
        %v4460 = vpack.c.b16 %v3692, %v3668
        %v4461 = vpack.c.b16 %v3693, %v3669
        %v4462 = vpack.c.b16 %v3694, %v3670
        %v4463 = vpack.c.b16 %v3695, %v3671
        %v4464 = vpack.c.b16 %v3696, %v3672
        %v4465 = vpack.c.b16 %v3697, %v3673
        %v4466 = vpack.c.b16 %v3698, %v3674
        %v4467 = vpack.c.b16 %v3699, %v3675
        %v4468 = vpack.c.b16 %v3700, %v3676
        %v4469 = vpack.c.b16 %v3701, %v3677
        %v4470 = vpack.c.b16 %v3702, %v3678
        %v4471 = vpack.c.b16 %v3703, %v3679
        %5240 = vmatprep.subr.bf16.mxu0 %v3873
        %5241 = vmatpush1.bf16.msra.mxu0 %v3872
        %5242 = vmatprep.subr.bf16.mxu0 %v3849
        %5243 = vmatpush1.bf16.msra.mxu0 %v3848
        %5244 = vmatprep.subr.bf16.mxu0 %v3825
        %5245 = vmatpush1.bf16.msra.mxu0 %v3824
        %5246 = vmatprep.subr.bf16.mxu0 %v3801
        %5247 = vmatpush1.bf16.msra.mxu0 %v3800
        %5248 = vmatprep.subr.bf16.mxu0 %v3777
        %5249 = vmatpush1.bf16.msra.mxu0 %v3776
        %5250 = vmatprep.subr.bf16.mxu0 %v3753
        %5251 = vmatpush1.bf16.msra.mxu0 %v3752
        %5252 = vmatprep.subr.bf16.mxu0 %v3729
        %5253 = vmatpush1.bf16.msra.mxu0 %v3728
        %5254 = vmatprep.subr.bf16.mxu0 %v3705
        %5255 = vmatpush1.bf16.msra.mxu0 %v3704
        %5256 = vmatprep.subr.bf16.mxu0 %v4065
        %5257 = vmatpush2.bf16.msra.mxu0 %v4064
        %5258 = vmatprep.subr.bf16.mxu0 %v4041
        %5259 = vmatpush2.bf16.msra.mxu0 %v4040
        %5260 = vmatprep.subr.bf16.mxu0 %v4017
        %5261 = vmatpush2.bf16.msra.mxu0 %v4016
        %5262 = vmatprep.subr.bf16.mxu0 %v3993
        %5263 = vmatpush2.bf16.msra.mxu0 %v3992
        %5264 = vmatprep.subr.bf16.mxu0 %v3969
        %5265 = vmatpush2.bf16.msra.mxu0 %v3968
        %5266 = vmatprep.subr.bf16.mxu0 %v3945
        %5267 = vmatpush2.bf16.msra.mxu0 %v3944
        %5268 = vmatprep.subr.bf16.mxu0 %v3921
        %5269 = vmatpush2.bf16.msra.mxu0 %v3920
        %5270 = vmatprep.subr.bf16.mxu0 %v3897
        %5271 = vmatpush2.bf16.msra.mxu0 %v3896
        %5272 = vmatprep.mubr.bf16.mxu0 %v503
        %5273 = vmatmul.mubr.bf16.gmra.mxu0 %v502
        %v5274 = vpop.f32.mrf.mxu0
        %v5275 = vadd.f32 %v1283, %v5274
        %v5276 = vpop.f32.mrf.mxu0
        %v5277 = vadd.f32 %v1287, %v5276
        %v5278 = vpop.f32.mrf.mxu0
        %v5279 = vpop.f32.mrf.mxu0
        %5280 = vdwg.mxu0
        %5281 = vmatprep.subr.bf16.mxu0 %v4257
        %5282 = vmatpush1.bf16.msra.mxu0 %v4256
        %5283 = vmatprep.subr.bf16.mxu0 %v4233
        %5284 = vmatpush1.bf16.msra.mxu0 %v4232
        %5285 = vmatprep.subr.bf16.mxu0 %v4209
        %5286 = vmatpush1.bf16.msra.mxu0 %v4208
        %5287 = vmatprep.subr.bf16.mxu0 %v4185
        %5288 = vmatpush1.bf16.msra.mxu0 %v4184
        %5289 = vmatprep.subr.bf16.mxu0 %v4161
        %5290 = vmatpush1.bf16.msra.mxu0 %v4160
        %5291 = vmatprep.subr.bf16.mxu0 %v4137
        %5292 = vmatpush1.bf16.msra.mxu0 %v4136
        %5293 = vmatprep.subr.bf16.mxu0 %v4113
        %5294 = vmatpush1.bf16.msra.mxu0 %v4112
        %5295 = vmatprep.subr.bf16.mxu0 %v4089
        %5296 = vmatpush1.bf16.msra.mxu0 %v4088
        %5297 = vmatprep.subr.bf16.mxu0 %v4449
        %5298 = vmatpush2.bf16.msra.mxu0 %v4448
        %5299 = vmatprep.subr.bf16.mxu0 %v4425
        %5300 = vmatpush2.bf16.msra.mxu0 %v4424
        %5301 = vmatprep.subr.bf16.mxu0 %v4401
        %5302 = vmatpush2.bf16.msra.mxu0 %v4400
        %5303 = vmatprep.subr.bf16.mxu0 %v4377
        %5304 = vmatpush2.bf16.msra.mxu0 %v4376
        %5305 = vmatprep.subr.bf16.mxu0 %v4353
        %5306 = vmatpush2.bf16.msra.mxu0 %v4352
        %5307 = vmatprep.subr.bf16.mxu0 %v4329
        %5308 = vmatpush2.bf16.msra.mxu0 %v4328
        %5309 = vmatprep.subr.bf16.mxu0 %v4305
        %5310 = vmatpush2.bf16.msra.mxu0 %v4304
        %5311 = vmatprep.subr.bf16.mxu0 %v4281
        %5312 = vmatpush2.bf16.msra.mxu0 %v4280
        %5313 = vmatprep.mubr.bf16.mxu0 %v505
        %5314 = vmatmul.mubr.bf16.gmra.mxu0 %v504
        %v5315 = vpop.f32.mrf.mxu0
        %v5316 = vadd.f32 %v5275, %v5315
        %v5317 = vpop.f32.mrf.mxu0
        %v5318 = vadd.f32 %v5277, %v5317
        %v5319 = vpop.f32.mrf.mxu0
        %v5320 = vpop.f32.mrf.mxu0
        %5321 = vdwg.mxu0
        %5322 = vmatprep.subr.bf16.mxu0 %v3875
        %5323 = vmatpush1.bf16.msra.mxu0 %v3874
        %5324 = vmatprep.subr.bf16.mxu0 %v3851
        %5325 = vmatpush1.bf16.msra.mxu0 %v3850
        %5326 = vmatprep.subr.bf16.mxu0 %v3827
        %5327 = vmatpush1.bf16.msra.mxu0 %v3826
        %5328 = vmatprep.subr.bf16.mxu0 %v3803
        %5329 = vmatpush1.bf16.msra.mxu0 %v3802
        %5330 = vmatprep.subr.bf16.mxu0 %v3779
        %5331 = vmatpush1.bf16.msra.mxu0 %v3778
        %5332 = vmatprep.subr.bf16.mxu0 %v3755
        %5333 = vmatpush1.bf16.msra.mxu0 %v3754
        %5334 = vmatprep.subr.bf16.mxu0 %v3731
        %5335 = vmatpush1.bf16.msra.mxu0 %v3730
        %5336 = vmatprep.subr.bf16.mxu0 %v3707
        %5337 = vmatpush1.bf16.msra.mxu0 %v3706
        %5338 = vmatprep.subr.bf16.mxu0 %v4067
        %5339 = vmatpush2.bf16.msra.mxu0 %v4066
        %5340 = vmatprep.subr.bf16.mxu0 %v4043
        %5341 = vmatpush2.bf16.msra.mxu0 %v4042
        %5342 = vmatprep.subr.bf16.mxu0 %v4019
        %5343 = vmatpush2.bf16.msra.mxu0 %v4018
        %5344 = vmatprep.subr.bf16.mxu0 %v3995
        %5345 = vmatpush2.bf16.msra.mxu0 %v3994
        %5346 = vmatprep.subr.bf16.mxu0 %v3971
        %5347 = vmatpush2.bf16.msra.mxu0 %v3970
        %5348 = vmatprep.subr.bf16.mxu0 %v3947
        %5349 = vmatpush2.bf16.msra.mxu0 %v3946
        %5350 = vmatprep.subr.bf16.mxu0 %v3923
        %5351 = vmatpush2.bf16.msra.mxu0 %v3922
        %5352 = vmatprep.subr.bf16.mxu0 %v3899
        %5353 = vmatpush2.bf16.msra.mxu0 %v3898
        %5354 = vmatprep.mubr.bf16.mxu0 %v503
        %5355 = vmatmul.mubr.bf16.gmra.mxu0 %v502
        %v5356 = vpop.f32.mrf.mxu0
        %v5357 = vadd.f32 %v1291, %v5356
        %v5358 = vpop.f32.mrf.mxu0
        %v5359 = vadd.f32 %v1295, %v5358
        %v5360 = vpop.f32.mrf.mxu0
        %v5361 = vpop.f32.mrf.mxu0
        %5362 = vdwg.mxu0
        %5363 = vmatprep.subr.bf16.mxu0 %v4259
        %5364 = vmatpush1.bf16.msra.mxu0 %v4258
        %5365 = vmatprep.subr.bf16.mxu0 %v4235
        %5366 = vmatpush1.bf16.msra.mxu0 %v4234
        %5367 = vmatprep.subr.bf16.mxu0 %v4211
        %5368 = vmatpush1.bf16.msra.mxu0 %v4210
        %5369 = vmatprep.subr.bf16.mxu0 %v4187
        %5370 = vmatpush1.bf16.msra.mxu0 %v4186
        %5371 = vmatprep.subr.bf16.mxu0 %v4163
        %5372 = vmatpush1.bf16.msra.mxu0 %v4162
        %5373 = vmatprep.subr.bf16.mxu0 %v4139
        %5374 = vmatpush1.bf16.msra.mxu0 %v4138
        %5375 = vmatprep.subr.bf16.mxu0 %v4115
        %5376 = vmatpush1.bf16.msra.mxu0 %v4114
        %5377 = vmatprep.subr.bf16.mxu0 %v4091
        %5378 = vmatpush1.bf16.msra.mxu0 %v4090
        %5379 = vmatprep.subr.bf16.mxu0 %v4451
        %5380 = vmatpush2.bf16.msra.mxu0 %v4450
        %5381 = vmatprep.subr.bf16.mxu0 %v4427
        %5382 = vmatpush2.bf16.msra.mxu0 %v4426
        %5383 = vmatprep.subr.bf16.mxu0 %v4403
        %5384 = vmatpush2.bf16.msra.mxu0 %v4402
        %5385 = vmatprep.subr.bf16.mxu0 %v4379
        %5386 = vmatpush2.bf16.msra.mxu0 %v4378
        %5387 = vmatprep.subr.bf16.mxu0 %v4355
        %5388 = vmatpush2.bf16.msra.mxu0 %v4354
        %5389 = vmatprep.subr.bf16.mxu0 %v4331
        %5390 = vmatpush2.bf16.msra.mxu0 %v4330
        %5391 = vmatprep.subr.bf16.mxu0 %v4307
        %5392 = vmatpush2.bf16.msra.mxu0 %v4306
        %5393 = vmatprep.subr.bf16.mxu0 %v4283
        %5394 = vmatpush2.bf16.msra.mxu0 %v4282
        %5395 = vmatprep.mubr.bf16.mxu0 %v505
        %5396 = vmatmul.mubr.bf16.gmra.mxu0 %v504
        %v5397 = vpop.f32.mrf.mxu0
        %v5398 = vadd.f32 %v5357, %v5397
        %v5399 = vpop.f32.mrf.mxu0
        %v5400 = vadd.f32 %v5359, %v5399
        %v5401 = vpop.f32.mrf.mxu0
        %v5402 = vpop.f32.mrf.mxu0
        %5403 = vdwg.mxu0
        %5404 = vmatprep.subr.bf16.mxu0 %v3877
        %5405 = vmatpush1.bf16.msra.mxu0 %v3876
        %5406 = vmatprep.subr.bf16.mxu0 %v3853
        %5407 = vmatpush1.bf16.msra.mxu0 %v3852
        %5408 = vmatprep.subr.bf16.mxu0 %v3829
        %5409 = vmatpush1.bf16.msra.mxu0 %v3828
        %5410 = vmatprep.subr.bf16.mxu0 %v3805
        %5411 = vmatpush1.bf16.msra.mxu0 %v3804
        %5412 = vmatprep.subr.bf16.mxu0 %v3781
        %5413 = vmatpush1.bf16.msra.mxu0 %v3780
        %5414 = vmatprep.subr.bf16.mxu0 %v3757
        %5415 = vmatpush1.bf16.msra.mxu0 %v3756
        %5416 = vmatprep.subr.bf16.mxu0 %v3733
        %5417 = vmatpush1.bf16.msra.mxu0 %v3732
        %5418 = vmatprep.subr.bf16.mxu0 %v3709
        %5419 = vmatpush1.bf16.msra.mxu0 %v3708
        %5420 = vmatprep.subr.bf16.mxu0 %v4069
        %5421 = vmatpush2.bf16.msra.mxu0 %v4068
        %5422 = vmatprep.subr.bf16.mxu0 %v4045
        %5423 = vmatpush2.bf16.msra.mxu0 %v4044
        %5424 = vmatprep.subr.bf16.mxu0 %v4021
        %5425 = vmatpush2.bf16.msra.mxu0 %v4020
        %5426 = vmatprep.subr.bf16.mxu0 %v3997
        %5427 = vmatpush2.bf16.msra.mxu0 %v3996
        %5428 = vmatprep.subr.bf16.mxu0 %v3973
        %5429 = vmatpush2.bf16.msra.mxu0 %v3972
        %5430 = vmatprep.subr.bf16.mxu0 %v3949
        %5431 = vmatpush2.bf16.msra.mxu0 %v3948
        %5432 = vmatprep.subr.bf16.mxu0 %v3925
        %5433 = vmatpush2.bf16.msra.mxu0 %v3924
        %5434 = vmatprep.subr.bf16.mxu0 %v3901
        %5435 = vmatpush2.bf16.msra.mxu0 %v3900
        %5436 = vmatprep.mubr.bf16.mxu0 %v503
        %5437 = vmatmul.mubr.bf16.gmra.mxu0 %v502
        %v5438 = vpop.f32.mrf.mxu0
        %v5439 = vadd.f32 %v1299, %v5438
        %v5440 = vpop.f32.mrf.mxu0
        %v5441 = vadd.f32 %v1303, %v5440
        %v5442 = vpop.f32.mrf.mxu0
        %v5443 = vpop.f32.mrf.mxu0
        %5444 = vdwg.mxu0
        %5445 = vmatprep.subr.bf16.mxu0 %v4261
        %5446 = vmatpush1.bf16.msra.mxu0 %v4260
        %5447 = vmatprep.subr.bf16.mxu0 %v4237
        %5448 = vmatpush1.bf16.msra.mxu0 %v4236
        %5449 = vmatprep.subr.bf16.mxu0 %v4213
        %5450 = vmatpush1.bf16.msra.mxu0 %v4212
        %5451 = vmatprep.subr.bf16.mxu0 %v4189
        %5452 = vmatpush1.bf16.msra.mxu0 %v4188
        %5453 = vmatprep.subr.bf16.mxu0 %v4165
        %5454 = vmatpush1.bf16.msra.mxu0 %v4164
        %5455 = vmatprep.subr.bf16.mxu0 %v4141
        %5456 = vmatpush1.bf16.msra.mxu0 %v4140
        %5457 = vmatprep.subr.bf16.mxu0 %v4117
        %5458 = vmatpush1.bf16.msra.mxu0 %v4116
        %5459 = vmatprep.subr.bf16.mxu0 %v4093
        %5460 = vmatpush1.bf16.msra.mxu0 %v4092
        %5461 = vmatprep.subr.bf16.mxu0 %v4453
        %5462 = vmatpush2.bf16.msra.mxu0 %v4452
        %5463 = vmatprep.subr.bf16.mxu0 %v4429
        %5464 = vmatpush2.bf16.msra.mxu0 %v4428
        %5465 = vmatprep.subr.bf16.mxu0 %v4405
        %5466 = vmatpush2.bf16.msra.mxu0 %v4404
        %5467 = vmatprep.subr.bf16.mxu0 %v4381
        %5468 = vmatpush2.bf16.msra.mxu0 %v4380
        %5469 = vmatprep.subr.bf16.mxu0 %v4357
        %5470 = vmatpush2.bf16.msra.mxu0 %v4356
        %5471 = vmatprep.subr.bf16.mxu0 %v4333
        %5472 = vmatpush2.bf16.msra.mxu0 %v4332
        %5473 = vmatprep.subr.bf16.mxu0 %v4309
        %5474 = vmatpush2.bf16.msra.mxu0 %v4308
        %5475 = vmatprep.subr.bf16.mxu0 %v4285
        %5476 = vmatpush2.bf16.msra.mxu0 %v4284
        %5477 = vmatprep.mubr.bf16.mxu0 %v505
        %5478 = vmatmul.mubr.bf16.gmra.mxu0 %v504
        %v5479 = vpop.f32.mrf.mxu0
        %v5480 = vadd.f32 %v5439, %v5479
        %v5481 = vpop.f32.mrf.mxu0
        %v5482 = vadd.f32 %v5441, %v5481
        %v5483 = vpop.f32.mrf.mxu0
        %v5484 = vpop.f32.mrf.mxu0
        %5485 = vdwg.mxu0
        %5486 = vmatprep.subr.bf16.mxu0 %v3879
        %5487 = vmatpush1.bf16.msra.mxu0 %v3878
        %5488 = vmatprep.subr.bf16.mxu0 %v3855
        %5489 = vmatpush1.bf16.msra.mxu0 %v3854
        %5490 = vmatprep.subr.bf16.mxu0 %v3831
        %5491 = vmatpush1.bf16.msra.mxu0 %v3830
        %5492 = vmatprep.subr.bf16.mxu0 %v3807
        %5493 = vmatpush1.bf16.msra.mxu0 %v3806
        %5494 = vmatprep.subr.bf16.mxu0 %v3783
        %5495 = vmatpush1.bf16.msra.mxu0 %v3782
        %5496 = vmatprep.subr.bf16.mxu0 %v3759
        %5497 = vmatpush1.bf16.msra.mxu0 %v3758
        %5498 = vmatprep.subr.bf16.mxu0 %v3735
        %5499 = vmatpush1.bf16.msra.mxu0 %v3734
        %5500 = vmatprep.subr.bf16.mxu0 %v3711
        %5501 = vmatpush1.bf16.msra.mxu0 %v3710
        %5502 = vmatprep.subr.bf16.mxu0 %v4071
        %5503 = vmatpush2.bf16.msra.mxu0 %v4070
        %5504 = vmatprep.subr.bf16.mxu0 %v4047
        %5505 = vmatpush2.bf16.msra.mxu0 %v4046
        %5506 = vmatprep.subr.bf16.mxu0 %v4023
        %5507 = vmatpush2.bf16.msra.mxu0 %v4022
        %5508 = vmatprep.subr.bf16.mxu0 %v3999
        %5509 = vmatpush2.bf16.msra.mxu0 %v3998
        %5510 = vmatprep.subr.bf16.mxu0 %v3975
        %5511 = vmatpush2.bf16.msra.mxu0 %v3974
        %5512 = vmatprep.subr.bf16.mxu0 %v3951
        %5513 = vmatpush2.bf16.msra.mxu0 %v3950
        %5514 = vmatprep.subr.bf16.mxu0 %v3927
        %5515 = vmatpush2.bf16.msra.mxu0 %v3926
        %5516 = vmatprep.subr.bf16.mxu0 %v3903
        %5517 = vmatpush2.bf16.msra.mxu0 %v3902
        %5518 = vmatprep.mubr.bf16.mxu0 %v503
        %5519 = vmatmul.mubr.bf16.gmra.mxu0 %v502
        %v5520 = vpop.f32.mrf.mxu0
        %v5521 = vadd.f32 %v1307, %v5520
        %v5522 = vpop.f32.mrf.mxu0
        %v5523 = vadd.f32 %v1311, %v5522
        %v5524 = vpop.f32.mrf.mxu0
        %v5525 = vpop.f32.mrf.mxu0
        %5526 = vdwg.mxu0
        %5527 = vmatprep.subr.bf16.mxu0 %v4263
        %5528 = vmatpush1.bf16.msra.mxu0 %v4262
        %5529 = vmatprep.subr.bf16.mxu0 %v4239
        %5530 = vmatpush1.bf16.msra.mxu0 %v4238
        %5531 = vmatprep.subr.bf16.mxu0 %v4215
        %5532 = vmatpush1.bf16.msra.mxu0 %v4214
        %5533 = vmatprep.subr.bf16.mxu0 %v4191
        %5534 = vmatpush1.bf16.msra.mxu0 %v4190
        %5535 = vmatprep.subr.bf16.mxu0 %v4167
        %5536 = vmatpush1.bf16.msra.mxu0 %v4166
        %5537 = vmatprep.subr.bf16.mxu0 %v4143
        %5538 = vmatpush1.bf16.msra.mxu0 %v4142
        %5539 = vmatprep.subr.bf16.mxu0 %v4119
        %5540 = vmatpush1.bf16.msra.mxu0 %v4118
        %5541 = vmatprep.subr.bf16.mxu0 %v4095
        %5542 = vmatpush1.bf16.msra.mxu0 %v4094
        %5543 = vmatprep.subr.bf16.mxu0 %v4455
        %5544 = vmatpush2.bf16.msra.mxu0 %v4454
        %5545 = vmatprep.subr.bf16.mxu0 %v4431
        %5546 = vmatpush2.bf16.msra.mxu0 %v4430
        %5547 = vmatprep.subr.bf16.mxu0 %v4407
        %5548 = vmatpush2.bf16.msra.mxu0 %v4406
        %5549 = vmatprep.subr.bf16.mxu0 %v4383
        %5550 = vmatpush2.bf16.msra.mxu0 %v4382
        %5551 = vmatprep.subr.bf16.mxu0 %v4359
        %5552 = vmatpush2.bf16.msra.mxu0 %v4358
        %5553 = vmatprep.subr.bf16.mxu0 %v4335
        %5554 = vmatpush2.bf16.msra.mxu0 %v4334
        %5555 = vmatprep.subr.bf16.mxu0 %v4311
        %5556 = vmatpush2.bf16.msra.mxu0 %v4310
        %5557 = vmatprep.subr.bf16.mxu0 %v4287
        %5558 = vmatpush2.bf16.msra.mxu0 %v4286
        %5559 = vmatprep.mubr.bf16.mxu0 %v505
        %5560 = vmatmul.mubr.bf16.gmra.mxu0 %v504
        %v5561 = vpop.f32.mrf.mxu0
        %v5562 = vadd.f32 %v5521, %v5561
        %v5563 = vpop.f32.mrf.mxu0
        %v5564 = vadd.f32 %v5523, %v5563
        %v5565 = vpop.f32.mrf.mxu0
        %v5566 = vpop.f32.mrf.mxu0
        %5567 = vdwg.mxu0
        %5568 = vmatprep.subr.bf16.mxu0 %v3881
        %5569 = vmatpush1.bf16.msra.mxu0 %v3880
        %5570 = vmatprep.subr.bf16.mxu0 %v3857
        %5571 = vmatpush1.bf16.msra.mxu0 %v3856
        %5572 = vmatprep.subr.bf16.mxu0 %v3833
        %5573 = vmatpush1.bf16.msra.mxu0 %v3832
        %5574 = vmatprep.subr.bf16.mxu0 %v3809
        %5575 = vmatpush1.bf16.msra.mxu0 %v3808
        %5576 = vmatprep.subr.bf16.mxu0 %v3785
        %5577 = vmatpush1.bf16.msra.mxu0 %v3784
        %5578 = vmatprep.subr.bf16.mxu0 %v3761
        %5579 = vmatpush1.bf16.msra.mxu0 %v3760
        %5580 = vmatprep.subr.bf16.mxu0 %v3737
        %5581 = vmatpush1.bf16.msra.mxu0 %v3736
        %5582 = vmatprep.subr.bf16.mxu0 %v3713
        %5583 = vmatpush1.bf16.msra.mxu0 %v3712
        %5584 = vmatprep.subr.bf16.mxu0 %v4073
        %5585 = vmatpush2.bf16.msra.mxu0 %v4072
        %5586 = vmatprep.subr.bf16.mxu0 %v4049
        %5587 = vmatpush2.bf16.msra.mxu0 %v4048
        %5588 = vmatprep.subr.bf16.mxu0 %v4025
        %5589 = vmatpush2.bf16.msra.mxu0 %v4024
        %5590 = vmatprep.subr.bf16.mxu0 %v4001
        %5591 = vmatpush2.bf16.msra.mxu0 %v4000
        %5592 = vmatprep.subr.bf16.mxu0 %v3977
        %5593 = vmatpush2.bf16.msra.mxu0 %v3976
        %5594 = vmatprep.subr.bf16.mxu0 %v3953
        %5595 = vmatpush2.bf16.msra.mxu0 %v3952
        %5596 = vmatprep.subr.bf16.mxu0 %v3929
        %5597 = vmatpush2.bf16.msra.mxu0 %v3928
        %5598 = vmatprep.subr.bf16.mxu0 %v3905
        %5599 = vmatpush2.bf16.msra.mxu0 %v3904
        %5600 = vmatprep.mubr.bf16.mxu0 %v503
        %5601 = vmatmul.mubr.bf16.gmra.mxu0 %v502
        %v5602 = vpop.f32.mrf.mxu0
        %v5603 = vadd.f32 %v1315, %v5602
        %v5604 = vpop.f32.mrf.mxu0
        %v5605 = vadd.f32 %v1319, %v5604
        %v5606 = vpop.f32.mrf.mxu0
        %v5607 = vpop.f32.mrf.mxu0
        %5608 = vdwg.mxu0
        %5609 = vmatprep.subr.bf16.mxu0 %v4265
        %5610 = vmatpush1.bf16.msra.mxu0 %v4264
        %5611 = vmatprep.subr.bf16.mxu0 %v4241
        %5612 = vmatpush1.bf16.msra.mxu0 %v4240
        %5613 = vmatprep.subr.bf16.mxu0 %v4217
        %5614 = vmatpush1.bf16.msra.mxu0 %v4216
        %5615 = vmatprep.subr.bf16.mxu0 %v4193
        %5616 = vmatpush1.bf16.msra.mxu0 %v4192
        %5617 = vmatprep.subr.bf16.mxu0 %v4169
        %5618 = vmatpush1.bf16.msra.mxu0 %v4168
        %5619 = vmatprep.subr.bf16.mxu0 %v4145
        %5620 = vmatpush1.bf16.msra.mxu0 %v4144
        %5621 = vmatprep.subr.bf16.mxu0 %v4121
        %5622 = vmatpush1.bf16.msra.mxu0 %v4120
        %5623 = vmatprep.subr.bf16.mxu0 %v4097
        %5624 = vmatpush1.bf16.msra.mxu0 %v4096
        %5625 = vmatprep.subr.bf16.mxu0 %v4457
        %5626 = vmatpush2.bf16.msra.mxu0 %v4456
        %5627 = vmatprep.subr.bf16.mxu0 %v4433
        %5628 = vmatpush2.bf16.msra.mxu0 %v4432
        %5629 = vmatprep.subr.bf16.mxu0 %v4409
        %5630 = vmatpush2.bf16.msra.mxu0 %v4408
        %5631 = vmatprep.subr.bf16.mxu0 %v4385
        %5632 = vmatpush2.bf16.msra.mxu0 %v4384
        %5633 = vmatprep.subr.bf16.mxu0 %v4361
        %5634 = vmatpush2.bf16.msra.mxu0 %v4360
        %5635 = vmatprep.subr.bf16.mxu0 %v4337
        %5636 = vmatpush2.bf16.msra.mxu0 %v4336
        %5637 = vmatprep.subr.bf16.mxu0 %v4313
        %5638 = vmatpush2.bf16.msra.mxu0 %v4312
        %5639 = vmatprep.subr.bf16.mxu0 %v4289
        %5640 = vmatpush2.bf16.msra.mxu0 %v4288
        %5641 = vmatprep.mubr.bf16.mxu0 %v505
        %5642 = vmatmul.mubr.bf16.gmra.mxu0 %v504
        %v5643 = vpop.f32.mrf.mxu0
        %v5644 = vadd.f32 %v5603, %v5643
        %v5645 = vpop.f32.mrf.mxu0
        %v5646 = vadd.f32 %v5605, %v5645
        %v5647 = vpop.f32.mrf.mxu0
        %v5648 = vpop.f32.mrf.mxu0
        %5649 = vdwg.mxu0
        %5650 = vmatprep.subr.bf16.mxu0 %v3883
        %5651 = vmatpush1.bf16.msra.mxu0 %v3882
        %5652 = vmatprep.subr.bf16.mxu0 %v3859
        %5653 = vmatpush1.bf16.msra.mxu0 %v3858
        %5654 = vmatprep.subr.bf16.mxu0 %v3835
        %5655 = vmatpush1.bf16.msra.mxu0 %v3834
        %5656 = vmatprep.subr.bf16.mxu0 %v3811
        %5657 = vmatpush1.bf16.msra.mxu0 %v3810
        %5658 = vmatprep.subr.bf16.mxu0 %v3787
        %5659 = vmatpush1.bf16.msra.mxu0 %v3786
        %5660 = vmatprep.subr.bf16.mxu0 %v3763
        %5661 = vmatpush1.bf16.msra.mxu0 %v3762
        %5662 = vmatprep.subr.bf16.mxu0 %v3739
        %5663 = vmatpush1.bf16.msra.mxu0 %v3738
        %5664 = vmatprep.subr.bf16.mxu0 %v3715
        %5665 = vmatpush1.bf16.msra.mxu0 %v3714
        %5666 = vmatprep.subr.bf16.mxu0 %v4075
        %5667 = vmatpush2.bf16.msra.mxu0 %v4074
        %5668 = vmatprep.subr.bf16.mxu0 %v4051
        %5669 = vmatpush2.bf16.msra.mxu0 %v4050
        %5670 = vmatprep.subr.bf16.mxu0 %v4027
        %5671 = vmatpush2.bf16.msra.mxu0 %v4026
        %5672 = vmatprep.subr.bf16.mxu0 %v4003
        %5673 = vmatpush2.bf16.msra.mxu0 %v4002
        %5674 = vmatprep.subr.bf16.mxu0 %v3979
        %5675 = vmatpush2.bf16.msra.mxu0 %v3978
        %5676 = vmatprep.subr.bf16.mxu0 %v3955
        %5677 = vmatpush2.bf16.msra.mxu0 %v3954
        %5678 = vmatprep.subr.bf16.mxu0 %v3931
        %5679 = vmatpush2.bf16.msra.mxu0 %v3930
        %5680 = vmatprep.subr.bf16.mxu0 %v3907
        %5681 = vmatpush2.bf16.msra.mxu0 %v3906
        %5682 = vmatprep.mubr.bf16.mxu0 %v503
        %5683 = vmatmul.mubr.bf16.gmra.mxu0 %v502
        %v5684 = vpop.f32.mrf.mxu0
        %v5685 = vadd.f32 %v1323, %v5684
        %v5686 = vpop.f32.mrf.mxu0
        %v5687 = vadd.f32 %v1327, %v5686
        %v5688 = vpop.f32.mrf.mxu0
        %v5689 = vpop.f32.mrf.mxu0
        %5690 = vdwg.mxu0
        %5691 = vmatprep.subr.bf16.mxu0 %v4267
        %5692 = vmatpush1.bf16.msra.mxu0 %v4266
        %5693 = vmatprep.subr.bf16.mxu0 %v4243
        %5694 = vmatpush1.bf16.msra.mxu0 %v4242
        %5695 = vmatprep.subr.bf16.mxu0 %v4219
        %5696 = vmatpush1.bf16.msra.mxu0 %v4218
        %5697 = vmatprep.subr.bf16.mxu0 %v4195
        %5698 = vmatpush1.bf16.msra.mxu0 %v4194
        %5699 = vmatprep.subr.bf16.mxu0 %v4171
        %5700 = vmatpush1.bf16.msra.mxu0 %v4170
        %5701 = vmatprep.subr.bf16.mxu0 %v4147
        %5702 = vmatpush1.bf16.msra.mxu0 %v4146
        %5703 = vmatprep.subr.bf16.mxu0 %v4123
        %5704 = vmatpush1.bf16.msra.mxu0 %v4122
        %5705 = vmatprep.subr.bf16.mxu0 %v4099
        %5706 = vmatpush1.bf16.msra.mxu0 %v4098
        %5707 = vmatprep.subr.bf16.mxu0 %v4459
        %5708 = vmatpush2.bf16.msra.mxu0 %v4458
        %5709 = vmatprep.subr.bf16.mxu0 %v4435
        %5710 = vmatpush2.bf16.msra.mxu0 %v4434
        %5711 = vmatprep.subr.bf16.mxu0 %v4411
        %5712 = vmatpush2.bf16.msra.mxu0 %v4410
        %5713 = vmatprep.subr.bf16.mxu0 %v4387
        %5714 = vmatpush2.bf16.msra.mxu0 %v4386
        %5715 = vmatprep.subr.bf16.mxu0 %v4363
        %5716 = vmatpush2.bf16.msra.mxu0 %v4362
        %5717 = vmatprep.subr.bf16.mxu0 %v4339
        %5718 = vmatpush2.bf16.msra.mxu0 %v4338
        %5719 = vmatprep.subr.bf16.mxu0 %v4315
        %5720 = vmatpush2.bf16.msra.mxu0 %v4314
        %5721 = vmatprep.subr.bf16.mxu0 %v4291
        %5722 = vmatpush2.bf16.msra.mxu0 %v4290
        %5723 = vmatprep.mubr.bf16.mxu0 %v505
        %5724 = vmatmul.mubr.bf16.gmra.mxu0 %v504
        %v5725 = vpop.f32.mrf.mxu0
        %v5726 = vadd.f32 %v5685, %v5725
        %v5727 = vpop.f32.mrf.mxu0
        %v5728 = vadd.f32 %v5687, %v5727
        %v5729 = vpop.f32.mrf.mxu0
        %v5730 = vpop.f32.mrf.mxu0
        %5731 = vdwg.mxu0
        %5732 = vmatprep.subr.bf16.mxu0 %v3885
        %5733 = vmatpush1.bf16.msra.mxu0 %v3884
        %5734 = vmatprep.subr.bf16.mxu0 %v3861
        %5735 = vmatpush1.bf16.msra.mxu0 %v3860
        %5736 = vmatprep.subr.bf16.mxu0 %v3837
        %5737 = vmatpush1.bf16.msra.mxu0 %v3836
        %5738 = vmatprep.subr.bf16.mxu0 %v3813
        %5739 = vmatpush1.bf16.msra.mxu0 %v3812
        %5740 = vmatprep.subr.bf16.mxu0 %v3789
        %5741 = vmatpush1.bf16.msra.mxu0 %v3788
        %5742 = vmatprep.subr.bf16.mxu0 %v3765
        %5743 = vmatpush1.bf16.msra.mxu0 %v3764
        %5744 = vmatprep.subr.bf16.mxu0 %v3741
        %5745 = vmatpush1.bf16.msra.mxu0 %v3740
        %5746 = vmatprep.subr.bf16.mxu0 %v3717
        %5747 = vmatpush1.bf16.msra.mxu0 %v3716
        %5748 = vmatprep.subr.bf16.mxu0 %v4077
        %5749 = vmatpush2.bf16.msra.mxu0 %v4076
        %5750 = vmatprep.subr.bf16.mxu0 %v4053
        %5751 = vmatpush2.bf16.msra.mxu0 %v4052
        %5752 = vmatprep.subr.bf16.mxu0 %v4029
        %5753 = vmatpush2.bf16.msra.mxu0 %v4028
        %5754 = vmatprep.subr.bf16.mxu0 %v4005
        %5755 = vmatpush2.bf16.msra.mxu0 %v4004
        %5756 = vmatprep.subr.bf16.mxu0 %v3981
        %5757 = vmatpush2.bf16.msra.mxu0 %v3980
        %5758 = vmatprep.subr.bf16.mxu0 %v3957
        %5759 = vmatpush2.bf16.msra.mxu0 %v3956
        %5760 = vmatprep.subr.bf16.mxu0 %v3933
        %5761 = vmatpush2.bf16.msra.mxu0 %v3932
        %5762 = vmatprep.subr.bf16.mxu0 %v3909
        %5763 = vmatpush2.bf16.msra.mxu0 %v3908
        %5764 = vmatprep.mubr.bf16.mxu0 %v503
        %5765 = vmatmul.mubr.bf16.gmra.mxu0 %v502
        %v5766 = vpop.f32.mrf.mxu0
        %v5767 = vadd.f32 %v1331, %v5766
        %v5768 = vpop.f32.mrf.mxu0
        %v5769 = vadd.f32 %v1335, %v5768
        %v5770 = vpop.f32.mrf.mxu0
        %v5771 = vpop.f32.mrf.mxu0
        %5772 = vdwg.mxu0
        %5773 = vmatprep.subr.bf16.mxu0 %v4269
        %5774 = vmatpush1.bf16.msra.mxu0 %v4268
        %5775 = vmatprep.subr.bf16.mxu0 %v4245
        %5776 = vmatpush1.bf16.msra.mxu0 %v4244
        %5777 = vmatprep.subr.bf16.mxu0 %v4221
        %5778 = vmatpush1.bf16.msra.mxu0 %v4220
        %5779 = vmatprep.subr.bf16.mxu0 %v4197
        %5780 = vmatpush1.bf16.msra.mxu0 %v4196
        %5781 = vmatprep.subr.bf16.mxu0 %v4173
        %5782 = vmatpush1.bf16.msra.mxu0 %v4172
        %5783 = vmatprep.subr.bf16.mxu0 %v4149
        %5784 = vmatpush1.bf16.msra.mxu0 %v4148
        %5785 = vmatprep.subr.bf16.mxu0 %v4125
        %5786 = vmatpush1.bf16.msra.mxu0 %v4124
        %5787 = vmatprep.subr.bf16.mxu0 %v4101
        %5788 = vmatpush1.bf16.msra.mxu0 %v4100
        %5789 = vmatprep.subr.bf16.mxu0 %v4461
        %5790 = vmatpush2.bf16.msra.mxu0 %v4460
        %5791 = vmatprep.subr.bf16.mxu0 %v4437
        %5792 = vmatpush2.bf16.msra.mxu0 %v4436
        %5793 = vmatprep.subr.bf16.mxu0 %v4413
        %5794 = vmatpush2.bf16.msra.mxu0 %v4412
        %5795 = vmatprep.subr.bf16.mxu0 %v4389
        %5796 = vmatpush2.bf16.msra.mxu0 %v4388
        %5797 = vmatprep.subr.bf16.mxu0 %v4365
        %5798 = vmatpush2.bf16.msra.mxu0 %v4364
        %5799 = vmatprep.subr.bf16.mxu0 %v4341
        %5800 = vmatpush2.bf16.msra.mxu0 %v4340
        %5801 = vmatprep.subr.bf16.mxu0 %v4317
        %5802 = vmatpush2.bf16.msra.mxu0 %v4316
        %5803 = vmatprep.subr.bf16.mxu0 %v4293
        %5804 = vmatpush2.bf16.msra.mxu0 %v4292
        %5805 = vmatprep.mubr.bf16.mxu0 %v505
        %5806 = vmatmul.mubr.bf16.gmra.mxu0 %v504
        %v5807 = vpop.f32.mrf.mxu0
        %v5808 = vadd.f32 %v5767, %v5807
        %v5809 = vpop.f32.mrf.mxu0
        %v5810 = vadd.f32 %v5769, %v5809
        %v5811 = vpop.f32.mrf.mxu0
        %v5812 = vpop.f32.mrf.mxu0
        %5813 = vdwg.mxu0
        %5814 = vmatprep.subr.bf16.mxu0 %v3887
        %5815 = vmatpush1.bf16.msra.mxu0 %v3886
        %5816 = vmatprep.subr.bf16.mxu0 %v3863
        %5817 = vmatpush1.bf16.msra.mxu0 %v3862
        %5818 = vmatprep.subr.bf16.mxu0 %v3839
        %5819 = vmatpush1.bf16.msra.mxu0 %v3838
        %5820 = vmatprep.subr.bf16.mxu0 %v3815
        %5821 = vmatpush1.bf16.msra.mxu0 %v3814
        %5822 = vmatprep.subr.bf16.mxu0 %v3791
        %5823 = vmatpush1.bf16.msra.mxu0 %v3790
        %5824 = vmatprep.subr.bf16.mxu0 %v3767
        %5825 = vmatpush1.bf16.msra.mxu0 %v3766
        %5826 = vmatprep.subr.bf16.mxu0 %v3743
        %5827 = vmatpush1.bf16.msra.mxu0 %v3742
        %5828 = vmatprep.subr.bf16.mxu0 %v3719
        %5829 = vmatpush1.bf16.msra.mxu0 %v3718
        %5830 = vmatprep.subr.bf16.mxu0 %v4079
        %5831 = vmatpush2.bf16.msra.mxu0 %v4078
        %5832 = vmatprep.subr.bf16.mxu0 %v4055
        %5833 = vmatpush2.bf16.msra.mxu0 %v4054
        %5834 = vmatprep.subr.bf16.mxu0 %v4031
        %5835 = vmatpush2.bf16.msra.mxu0 %v4030
        %5836 = vmatprep.subr.bf16.mxu0 %v4007
        %5837 = vmatpush2.bf16.msra.mxu0 %v4006
        %5838 = vmatprep.subr.bf16.mxu0 %v3983
        %5839 = vmatpush2.bf16.msra.mxu0 %v3982
        %5840 = vmatprep.subr.bf16.mxu0 %v3959
        %5841 = vmatpush2.bf16.msra.mxu0 %v3958
        %5842 = vmatprep.subr.bf16.mxu0 %v3935
        %5843 = vmatpush2.bf16.msra.mxu0 %v3934
        %5844 = vmatprep.subr.bf16.mxu0 %v3911
        %5845 = vmatpush2.bf16.msra.mxu0 %v3910
        %5846 = vmatprep.mubr.bf16.mxu0 %v503
        %5847 = vmatmul.mubr.bf16.gmra.mxu0 %v502
        %v5848 = vpop.f32.mrf.mxu0
        %v5849 = vadd.f32 %v1339, %v5848
        %v5850 = vpop.f32.mrf.mxu0
        %v5851 = vadd.f32 %v1343, %v5850
        %v5852 = vpop.f32.mrf.mxu0
        %v5853 = vpop.f32.mrf.mxu0
        %5854 = vdwg.mxu0
        %5855 = vmatprep.subr.bf16.mxu0 %v4271
        %5856 = vmatpush1.bf16.msra.mxu0 %v4270
        %5857 = vmatprep.subr.bf16.mxu0 %v4247
        %5858 = vmatpush1.bf16.msra.mxu0 %v4246
        %5859 = vmatprep.subr.bf16.mxu0 %v4223
        %5860 = vmatpush1.bf16.msra.mxu0 %v4222
        %5861 = vmatprep.subr.bf16.mxu0 %v4199
        %5862 = vmatpush1.bf16.msra.mxu0 %v4198
        %5863 = vmatprep.subr.bf16.mxu0 %v4175
        %5864 = vmatpush1.bf16.msra.mxu0 %v4174
        %5865 = vmatprep.subr.bf16.mxu0 %v4151
        %5866 = vmatpush1.bf16.msra.mxu0 %v4150
        %5867 = vmatprep.subr.bf16.mxu0 %v4127
        %5868 = vmatpush1.bf16.msra.mxu0 %v4126
        %5869 = vmatprep.subr.bf16.mxu0 %v4103
        %5870 = vmatpush1.bf16.msra.mxu0 %v4102
        %5871 = vmatprep.subr.bf16.mxu0 %v4463
        %5872 = vmatpush2.bf16.msra.mxu0 %v4462
        %5873 = vmatprep.subr.bf16.mxu0 %v4439
        %5874 = vmatpush2.bf16.msra.mxu0 %v4438
        %5875 = vmatprep.subr.bf16.mxu0 %v4415
        %5876 = vmatpush2.bf16.msra.mxu0 %v4414
        %5877 = vmatprep.subr.bf16.mxu0 %v4391
        %5878 = vmatpush2.bf16.msra.mxu0 %v4390
        %5879 = vmatprep.subr.bf16.mxu0 %v4367
        %5880 = vmatpush2.bf16.msra.mxu0 %v4366
        %5881 = vmatprep.subr.bf16.mxu0 %v4343
        %5882 = vmatpush2.bf16.msra.mxu0 %v4342
        %5883 = vmatprep.subr.bf16.mxu0 %v4319
        %5884 = vmatpush2.bf16.msra.mxu0 %v4318
        %5885 = vmatprep.subr.bf16.mxu0 %v4295
        %5886 = vmatpush2.bf16.msra.mxu0 %v4294
        %5887 = vmatprep.mubr.bf16.mxu0 %v505
        %5888 = vmatmul.mubr.bf16.gmra.mxu0 %v504
        %v5889 = vpop.f32.mrf.mxu0
        %v5890 = vadd.f32 %v5849, %v5889
        %v5891 = vpop.f32.mrf.mxu0
        %v5892 = vadd.f32 %v5851, %v5891
        %v5893 = vpop.f32.mrf.mxu0
        %v5894 = vpop.f32.mrf.mxu0
        %5895 = vdwg.mxu0
        %5896 = vmatprep.subr.bf16.mxu0 %v3889
        %5897 = vmatpush1.bf16.msra.mxu0 %v3888
        %5898 = vmatprep.subr.bf16.mxu0 %v3865
        %5899 = vmatpush1.bf16.msra.mxu0 %v3864
        %5900 = vmatprep.subr.bf16.mxu0 %v3841
        %5901 = vmatpush1.bf16.msra.mxu0 %v3840
        %5902 = vmatprep.subr.bf16.mxu0 %v3817
        %5903 = vmatpush1.bf16.msra.mxu0 %v3816
        %5904 = vmatprep.subr.bf16.mxu0 %v3793
        %5905 = vmatpush1.bf16.msra.mxu0 %v3792
        %5906 = vmatprep.subr.bf16.mxu0 %v3769
        %5907 = vmatpush1.bf16.msra.mxu0 %v3768
        %5908 = vmatprep.subr.bf16.mxu0 %v3745
        %5909 = vmatpush1.bf16.msra.mxu0 %v3744
        %5910 = vmatprep.subr.bf16.mxu0 %v3721
        %5911 = vmatpush1.bf16.msra.mxu0 %v3720
        %5912 = vmatprep.subr.bf16.mxu0 %v4081
        %5913 = vmatpush2.bf16.msra.mxu0 %v4080
        %5914 = vmatprep.subr.bf16.mxu0 %v4057
        %5915 = vmatpush2.bf16.msra.mxu0 %v4056
        %5916 = vmatprep.subr.bf16.mxu0 %v4033
        %5917 = vmatpush2.bf16.msra.mxu0 %v4032
        %5918 = vmatprep.subr.bf16.mxu0 %v4009
        %5919 = vmatpush2.bf16.msra.mxu0 %v4008
        %5920 = vmatprep.subr.bf16.mxu0 %v3985
        %5921 = vmatpush2.bf16.msra.mxu0 %v3984
        %5922 = vmatprep.subr.bf16.mxu0 %v3961
        %5923 = vmatpush2.bf16.msra.mxu0 %v3960
        %5924 = vmatprep.subr.bf16.mxu0 %v3937
        %5925 = vmatpush2.bf16.msra.mxu0 %v3936
        %5926 = vmatprep.subr.bf16.mxu0 %v3913
        %5927 = vmatpush2.bf16.msra.mxu0 %v3912
        %5928 = vmatprep.mubr.bf16.mxu0 %v503
        %5929 = vmatmul.mubr.bf16.gmra.mxu0 %v502
        %v5930 = vpop.f32.mrf.mxu0
        %v5931 = vadd.f32 %v1347, %v5930
        %v5932 = vpop.f32.mrf.mxu0
        %v5933 = vadd.f32 %v1351, %v5932
        %v5934 = vpop.f32.mrf.mxu0
        %v5935 = vpop.f32.mrf.mxu0
        %5936 = vdwg.mxu0
        %5937 = vmatprep.subr.bf16.mxu0 %v4273
        %5938 = vmatpush1.bf16.msra.mxu0 %v4272
        %5939 = vmatprep.subr.bf16.mxu0 %v4249
        %5940 = vmatpush1.bf16.msra.mxu0 %v4248
        %5941 = vmatprep.subr.bf16.mxu0 %v4225
        %5942 = vmatpush1.bf16.msra.mxu0 %v4224
        %5943 = vmatprep.subr.bf16.mxu0 %v4201
        %5944 = vmatpush1.bf16.msra.mxu0 %v4200
        %5945 = vmatprep.subr.bf16.mxu0 %v4177
        %5946 = vmatpush1.bf16.msra.mxu0 %v4176
        %5947 = vmatprep.subr.bf16.mxu0 %v4153
        %5948 = vmatpush1.bf16.msra.mxu0 %v4152
        %5949 = vmatprep.subr.bf16.mxu0 %v4129
        %5950 = vmatpush1.bf16.msra.mxu0 %v4128
        %5951 = vmatprep.subr.bf16.mxu0 %v4105
        %5952 = vmatpush1.bf16.msra.mxu0 %v4104
        %5953 = vmatprep.subr.bf16.mxu0 %v4465
        %5954 = vmatpush2.bf16.msra.mxu0 %v4464
        %5955 = vmatprep.subr.bf16.mxu0 %v4441
        %5956 = vmatpush2.bf16.msra.mxu0 %v4440
        %5957 = vmatprep.subr.bf16.mxu0 %v4417
        %5958 = vmatpush2.bf16.msra.mxu0 %v4416
        %5959 = vmatprep.subr.bf16.mxu0 %v4393
        %5960 = vmatpush2.bf16.msra.mxu0 %v4392
        %5961 = vmatprep.subr.bf16.mxu0 %v4369
        %5962 = vmatpush2.bf16.msra.mxu0 %v4368
        %5963 = vmatprep.subr.bf16.mxu0 %v4345
        %5964 = vmatpush2.bf16.msra.mxu0 %v4344
        %5965 = vmatprep.subr.bf16.mxu0 %v4321
        %5966 = vmatpush2.bf16.msra.mxu0 %v4320
        %5967 = vmatprep.subr.bf16.mxu0 %v4297
        %5968 = vmatpush2.bf16.msra.mxu0 %v4296
        %5969 = vmatprep.mubr.bf16.mxu0 %v505
        %5970 = vmatmul.mubr.bf16.gmra.mxu0 %v504
        %v5971 = vpop.f32.mrf.mxu0
        %v5972 = vadd.f32 %v5931, %v5971
        %v5973 = vpop.f32.mrf.mxu0
        %v5974 = vadd.f32 %v5933, %v5973
        %v5975 = vpop.f32.mrf.mxu0
        %v5976 = vpop.f32.mrf.mxu0
        %5977 = vdwg.mxu0
        %5978 = vmatprep.subr.bf16.mxu0 %v3891
        %5979 = vmatpush1.bf16.msra.mxu0 %v3890
        %5980 = vmatprep.subr.bf16.mxu0 %v3867
        %5981 = vmatpush1.bf16.msra.mxu0 %v3866
        %5982 = vmatprep.subr.bf16.mxu0 %v3843
        %5983 = vmatpush1.bf16.msra.mxu0 %v3842
        %5984 = vmatprep.subr.bf16.mxu0 %v3819
        %5985 = vmatpush1.bf16.msra.mxu0 %v3818
        %5986 = vmatprep.subr.bf16.mxu0 %v3795
        %5987 = vmatpush1.bf16.msra.mxu0 %v3794
        %5988 = vmatprep.subr.bf16.mxu0 %v3771
        %5989 = vmatpush1.bf16.msra.mxu0 %v3770
        %5990 = vmatprep.subr.bf16.mxu0 %v3747
        %5991 = vmatpush1.bf16.msra.mxu0 %v3746
        %5992 = vmatprep.subr.bf16.mxu0 %v3723
        %5993 = vmatpush1.bf16.msra.mxu0 %v3722
        %5994 = vmatprep.subr.bf16.mxu0 %v4083
        %5995 = vmatpush2.bf16.msra.mxu0 %v4082
        %5996 = vmatprep.subr.bf16.mxu0 %v4059
        %5997 = vmatpush2.bf16.msra.mxu0 %v4058
        %5998 = vmatprep.subr.bf16.mxu0 %v4035
        %5999 = vmatpush2.bf16.msra.mxu0 %v4034
        %6000 = vmatprep.subr.bf16.mxu0 %v4011
        %6001 = vmatpush2.bf16.msra.mxu0 %v4010
        %6002 = vmatprep.subr.bf16.mxu0 %v3987
        %6003 = vmatpush2.bf16.msra.mxu0 %v3986
        %6004 = vmatprep.subr.bf16.mxu0 %v3963
        %6005 = vmatpush2.bf16.msra.mxu0 %v3962
        %6006 = vmatprep.subr.bf16.mxu0 %v3939
        %6007 = vmatpush2.bf16.msra.mxu0 %v3938
        %6008 = vmatprep.subr.bf16.mxu0 %v3915
        %6009 = vmatpush2.bf16.msra.mxu0 %v3914
        %6010 = vmatprep.mubr.bf16.mxu0 %v503
        %6011 = vmatmul.mubr.bf16.gmra.mxu0 %v502
        %v6012 = vpop.f32.mrf.mxu0
        %v6013 = vadd.f32 %v1355, %v6012
        %v6014 = vpop.f32.mrf.mxu0
        %v6015 = vadd.f32 %v1359, %v6014
        %v6016 = vpop.f32.mrf.mxu0
        %v6017 = vpop.f32.mrf.mxu0
        %6018 = vdwg.mxu0
        %6019 = vmatprep.subr.bf16.mxu0 %v4275
        %6020 = vmatpush1.bf16.msra.mxu0 %v4274
        %6021 = vmatprep.subr.bf16.mxu0 %v4251
        %6022 = vmatpush1.bf16.msra.mxu0 %v4250
        %6023 = vmatprep.subr.bf16.mxu0 %v4227
        %6024 = vmatpush1.bf16.msra.mxu0 %v4226
        %6025 = vmatprep.subr.bf16.mxu0 %v4203
        %6026 = vmatpush1.bf16.msra.mxu0 %v4202
        %6027 = vmatprep.subr.bf16.mxu0 %v4179
        %6028 = vmatpush1.bf16.msra.mxu0 %v4178
        %6029 = vmatprep.subr.bf16.mxu0 %v4155
        %6030 = vmatpush1.bf16.msra.mxu0 %v4154
        %6031 = vmatprep.subr.bf16.mxu0 %v4131
        %6032 = vmatpush1.bf16.msra.mxu0 %v4130
        %6033 = vmatprep.subr.bf16.mxu0 %v4107
        %6034 = vmatpush1.bf16.msra.mxu0 %v4106
        %6035 = vmatprep.subr.bf16.mxu0 %v4467
        %6036 = vmatpush2.bf16.msra.mxu0 %v4466
        %6037 = vmatprep.subr.bf16.mxu0 %v4443
        %6038 = vmatpush2.bf16.msra.mxu0 %v4442
        %6039 = vmatprep.subr.bf16.mxu0 %v4419
        %6040 = vmatpush2.bf16.msra.mxu0 %v4418
        %6041 = vmatprep.subr.bf16.mxu0 %v4395
        %6042 = vmatpush2.bf16.msra.mxu0 %v4394
        %6043 = vmatprep.subr.bf16.mxu0 %v4371
        %6044 = vmatpush2.bf16.msra.mxu0 %v4370
        %6045 = vmatprep.subr.bf16.mxu0 %v4347
        %6046 = vmatpush2.bf16.msra.mxu0 %v4346
        %6047 = vmatprep.subr.bf16.mxu0 %v4323
        %6048 = vmatpush2.bf16.msra.mxu0 %v4322
        %6049 = vmatprep.subr.bf16.mxu0 %v4299
        %6050 = vmatpush2.bf16.msra.mxu0 %v4298
        %6051 = vmatprep.mubr.bf16.mxu0 %v505
        %6052 = vmatmul.mubr.bf16.gmra.mxu0 %v504
        %v6053 = vpop.f32.mrf.mxu0
        %v6054 = vadd.f32 %v6013, %v6053
        %v6055 = vpop.f32.mrf.mxu0
        %v6056 = vadd.f32 %v6015, %v6055
        %v6057 = vpop.f32.mrf.mxu0
        %v6058 = vpop.f32.mrf.mxu0
        %6059 = vdwg.mxu0
        %6060 = vmatprep.subr.bf16.mxu0 %v3893
        %6061 = vmatpush1.bf16.msra.mxu0 %v3892
        %6062 = vmatprep.subr.bf16.mxu0 %v3869
        %6063 = vmatpush1.bf16.msra.mxu0 %v3868
        %6064 = vmatprep.subr.bf16.mxu0 %v3845
        %6065 = vmatpush1.bf16.msra.mxu0 %v3844
        %6066 = vmatprep.subr.bf16.mxu0 %v3821
        %6067 = vmatpush1.bf16.msra.mxu0 %v3820
        %6068 = vmatprep.subr.bf16.mxu0 %v3797
        %6069 = vmatpush1.bf16.msra.mxu0 %v3796
        %6070 = vmatprep.subr.bf16.mxu0 %v3773
        %6071 = vmatpush1.bf16.msra.mxu0 %v3772
        %6072 = vmatprep.subr.bf16.mxu0 %v3749
        %6073 = vmatpush1.bf16.msra.mxu0 %v3748
        %6074 = vmatprep.subr.bf16.mxu0 %v3725
        %6075 = vmatpush1.bf16.msra.mxu0 %v3724
        %6076 = vmatprep.subr.bf16.mxu0 %v4085
        %6077 = vmatpush2.bf16.msra.mxu0 %v4084
        %6078 = vmatprep.subr.bf16.mxu0 %v4061
        %6079 = vmatpush2.bf16.msra.mxu0 %v4060
        %6080 = vmatprep.subr.bf16.mxu0 %v4037
        %6081 = vmatpush2.bf16.msra.mxu0 %v4036
        %6082 = vmatprep.subr.bf16.mxu0 %v4013
        %6083 = vmatpush2.bf16.msra.mxu0 %v4012
        %6084 = vmatprep.subr.bf16.mxu0 %v3989
        %6085 = vmatpush2.bf16.msra.mxu0 %v3988
        %6086 = vmatprep.subr.bf16.mxu0 %v3965
        %6087 = vmatpush2.bf16.msra.mxu0 %v3964
        %6088 = vmatprep.subr.bf16.mxu0 %v3941
        %6089 = vmatpush2.bf16.msra.mxu0 %v3940
        %6090 = vmatprep.subr.bf16.mxu0 %v3917
        %6091 = vmatpush2.bf16.msra.mxu0 %v3916
        %6092 = vmatprep.mubr.bf16.mxu0 %v503
        %6093 = vmatmul.mubr.bf16.gmra.mxu0 %v502
        %v6094 = vpop.f32.mrf.mxu0
        %v6095 = vadd.f32 %v1363, %v6094
        %v6096 = vpop.f32.mrf.mxu0
        %v6097 = vadd.f32 %v1367, %v6096
        %v6098 = vpop.f32.mrf.mxu0
        %v6099 = vpop.f32.mrf.mxu0
        %6100 = vdwg.mxu0
        %6101 = vmatprep.subr.bf16.mxu0 %v4277
        %6102 = vmatpush1.bf16.msra.mxu0 %v4276
        %6103 = vmatprep.subr.bf16.mxu0 %v4253
        %6104 = vmatpush1.bf16.msra.mxu0 %v4252
        %6105 = vmatprep.subr.bf16.mxu0 %v4229
        %6106 = vmatpush1.bf16.msra.mxu0 %v4228
        %6107 = vmatprep.subr.bf16.mxu0 %v4205
        %6108 = vmatpush1.bf16.msra.mxu0 %v4204
        %6109 = vmatprep.subr.bf16.mxu0 %v4181
        %6110 = vmatpush1.bf16.msra.mxu0 %v4180
        %6111 = vmatprep.subr.bf16.mxu0 %v4157
        %6112 = vmatpush1.bf16.msra.mxu0 %v4156
        %6113 = vmatprep.subr.bf16.mxu0 %v4133
        %6114 = vmatpush1.bf16.msra.mxu0 %v4132
        %6115 = vmatprep.subr.bf16.mxu0 %v4109
        %6116 = vmatpush1.bf16.msra.mxu0 %v4108
        %6117 = vmatprep.subr.bf16.mxu0 %v4469
        %6118 = vmatpush2.bf16.msra.mxu0 %v4468
        %6119 = vmatprep.subr.bf16.mxu0 %v4445
        %6120 = vmatpush2.bf16.msra.mxu0 %v4444
        %6121 = vmatprep.subr.bf16.mxu0 %v4421
        %6122 = vmatpush2.bf16.msra.mxu0 %v4420
        %6123 = vmatprep.subr.bf16.mxu0 %v4397
        %6124 = vmatpush2.bf16.msra.mxu0 %v4396
        %6125 = vmatprep.subr.bf16.mxu0 %v4373
        %6126 = vmatpush2.bf16.msra.mxu0 %v4372
        %6127 = vmatprep.subr.bf16.mxu0 %v4349
        %6128 = vmatpush2.bf16.msra.mxu0 %v4348
        %6129 = vmatprep.subr.bf16.mxu0 %v4325
        %6130 = vmatpush2.bf16.msra.mxu0 %v4324
        %6131 = vmatprep.subr.bf16.mxu0 %v4301
        %6132 = vmatpush2.bf16.msra.mxu0 %v4300
        %6133 = vmatprep.mubr.bf16.mxu0 %v505
        %6134 = vmatmul.mubr.bf16.gmra.mxu0 %v504
        %v6135 = vpop.f32.mrf.mxu0
        %v6136 = vadd.f32 %v6095, %v6135
        %v6137 = vpop.f32.mrf.mxu0
        %v6138 = vadd.f32 %v6097, %v6137
        %v6139 = vpop.f32.mrf.mxu0
        %v6140 = vpop.f32.mrf.mxu0
        %6141 = vdwg.mxu0
        %6142 = vmatprep.subr.bf16.mxu0 %v3895
        %6143 = vmatpush1.bf16.msra.mxu0 %v3894
        %6144 = vmatprep.subr.bf16.mxu0 %v3871
        %6145 = vmatpush1.bf16.msra.mxu0 %v3870
        %6146 = vmatprep.subr.bf16.mxu0 %v3847
        %6147 = vmatpush1.bf16.msra.mxu0 %v3846
        %6148 = vmatprep.subr.bf16.mxu0 %v3823
        %6149 = vmatpush1.bf16.msra.mxu0 %v3822
        %6150 = vmatprep.subr.bf16.mxu0 %v3799
        %6151 = vmatpush1.bf16.msra.mxu0 %v3798
        %6152 = vmatprep.subr.bf16.mxu0 %v3775
        %6153 = vmatpush1.bf16.msra.mxu0 %v3774
        %6154 = vmatprep.subr.bf16.mxu0 %v3751
        %6155 = vmatpush1.bf16.msra.mxu0 %v3750
        %6156 = vmatprep.subr.bf16.mxu0 %v3727
        %6157 = vmatpush1.bf16.msra.mxu0 %v3726
        %6158 = vmatprep.subr.bf16.mxu0 %v4087
        %6159 = vmatpush2.bf16.msra.mxu0 %v4086
        %6160 = vmatprep.subr.bf16.mxu0 %v4063
        %6161 = vmatpush2.bf16.msra.mxu0 %v4062
        %6162 = vmatprep.subr.bf16.mxu0 %v4039
        %6163 = vmatpush2.bf16.msra.mxu0 %v4038
        %6164 = vmatprep.subr.bf16.mxu0 %v4015
        %6165 = vmatpush2.bf16.msra.mxu0 %v4014
        %6166 = vmatprep.subr.bf16.mxu0 %v3991
        %6167 = vmatpush2.bf16.msra.mxu0 %v3990
        %6168 = vmatprep.subr.bf16.mxu0 %v3967
        %6169 = vmatpush2.bf16.msra.mxu0 %v3966
        %6170 = vmatprep.subr.bf16.mxu0 %v3943
        %6171 = vmatpush2.bf16.msra.mxu0 %v3942
        %6172 = vmatprep.subr.bf16.mxu0 %v3919
        %6173 = vmatpush2.bf16.msra.mxu0 %v3918
        %6174 = vmatprep.mubr.bf16.mxu0 %v503
        %6175 = vmatmul.mubr.bf16.gmra.mxu0 %v502
        %v6176 = vpop.f32.mrf.mxu0
        %v6177 = vadd.f32 %v1371, %v6176
        %v6178 = vpop.f32.mrf.mxu0
        %v6179 = vadd.f32 %v1375, %v6178
        %v6180 = vpop.f32.mrf.mxu0
        %v6181 = vpop.f32.mrf.mxu0
        %6182 = vdwg.mxu0
        %6183 = vmatprep.subr.bf16.mxu0 %v4279
        %6184 = vmatpush1.bf16.msra.mxu0 %v4278
        %6185 = vmatprep.subr.bf16.mxu0 %v4255
        %6186 = vmatpush1.bf16.msra.mxu0 %v4254
        %6187 = vmatprep.subr.bf16.mxu0 %v4231
        %6188 = vmatpush1.bf16.msra.mxu0 %v4230
        %6189 = vmatprep.subr.bf16.mxu0 %v4207
        %6190 = vmatpush1.bf16.msra.mxu0 %v4206
        %6191 = vmatprep.subr.bf16.mxu0 %v4183
        %6192 = vmatpush1.bf16.msra.mxu0 %v4182
        %6193 = vmatprep.subr.bf16.mxu0 %v4159
        %6194 = vmatpush1.bf16.msra.mxu0 %v4158
        %6195 = vmatprep.subr.bf16.mxu0 %v4135
        %6196 = vmatpush1.bf16.msra.mxu0 %v4134
        %6197 = vmatprep.subr.bf16.mxu0 %v4111
        %6198 = vmatpush1.bf16.msra.mxu0 %v4110
        %6199 = vmatprep.subr.bf16.mxu0 %v4471
        %6200 = vmatpush2.bf16.msra.mxu0 %v4470
        %6201 = vmatprep.subr.bf16.mxu0 %v4447
        %6202 = vmatpush2.bf16.msra.mxu0 %v4446
        %6203 = vmatprep.subr.bf16.mxu0 %v4423
        %6204 = vmatpush2.bf16.msra.mxu0 %v4422
        %6205 = vmatprep.subr.bf16.mxu0 %v4399
        %6206 = vmatpush2.bf16.msra.mxu0 %v4398
        %6207 = vmatprep.subr.bf16.mxu0 %v4375
        %6208 = vmatpush2.bf16.msra.mxu0 %v4374
        %6209 = vmatprep.subr.bf16.mxu0 %v4351
        %6210 = vmatpush2.bf16.msra.mxu0 %v4350
        %6211 = vmatprep.subr.bf16.mxu0 %v4327
        %6212 = vmatpush2.bf16.msra.mxu0 %v4326
        %6213 = vmatprep.subr.bf16.mxu0 %v4303
        %6214 = vmatpush2.bf16.msra.mxu0 %v4302
        %6215 = vmatprep.mubr.bf16.mxu0 %v505
        %6216 = vmatmul.mubr.bf16.gmra.mxu0 %v504
        %v6217 = vpop.f32.mrf.mxu0
        %v6218 = vadd.f32 %v6177, %v6217
        %v6219 = vpop.f32.mrf.mxu0
        %v6220 = vadd.f32 %v6179, %v6219
        %v6221 = vpop.f32.mrf.mxu0
        %v6222 = vpop.f32.mrf.mxu0
        %6223 = vdwg.mxu0
        %v6224 = vpack.c.bf16 %v5316, %v5316
        %v6225 = vpack.c.bf16 %v5644, %v5644
        %v6226 = vpack.c.bf16 %v5972, %v5972
        %6227 = vmatprep.subr.bf16.mxu0 0
        %6228 = vmatpush1.bf16.xpose.msra.mxu0 0
        %6229 = vmatprep.subr.bf16.mxu0 0
        %6230 = vmatpush1.bf16.xpose.msra.mxu0 0
        %6231 = vmatprep.subr.bf16.mxu0 0
        %6232 = vmatpush1.bf16.xpose.msra.mxu0 0
        %6233 = vmatprep.subr.bf16.mxu0 0
        %6234 = vmatpush1.bf16.xpose.msra.mxu0 0
        %6235 = vmatprep.subr.bf16.mxu0 0
        %6236 = vmatpush1.bf16.xpose.msra.mxu0 0
        %6237 = vmatprep.subr.bf16.mxu0 0
        %6238 = vmatpush1.bf16.xpose.msra.mxu0 0
        %6239 = vmatprep.subr.bf16.mxu0 0
        %6240 = vmatpush1.bf16.xpose.msra.mxu0 0
        %6241 = vmatprep.subr.bf16.mxu0 0
        %6242 = vmatpush1.bf16.xpose.msra.mxu0 %v6225
        %6243 = vmatprep.subr.bf16.mxu0 0
        %6244 = vmatpush2.bf16.xpose.msra.mxu0 0
        %6245 = vmatprep.subr.bf16.mxu0 0
        %6246 = vmatpush2.bf16.xpose.msra.mxu0 0
        %6247 = vmatprep.subr.bf16.mxu0 0
        %6248 = vmatpush2.bf16.xpose.msra.mxu0 0
        %6249 = vmatprep.subr.bf16.mxu0 0
        %6250 = vmatpush2.bf16.xpose.msra.mxu0 0
        %6251 = vmatprep.subr.bf16.mxu0 0
        %6252 = vmatpush2.bf16.xpose.msra.mxu0 0
        %6253 = vmatprep.subr.bf16.mxu0 0
        %6254 = vmatpush2.bf16.xpose.msra.mxu0 0
        %6255 = vmatprep.subr.bf16.mxu0 0
        %6256 = vmatpush2.bf16.xpose.msra.mxu0 0
        %6257 = vmatprep.subr.bf16.mxu0 0
        %6258 = vmatpush2.bf16.xpose.msra.mxu0 0
        %6259 = vmatprep.mubr.bf16.mxu0 0
        %6260 = vmatmul.mubr.bf16.gmra.mxu0 %v6224
        %v6261 = vpop.f32.mrf.mxu0
        %v6262 = vadd.f32 0.0, %v6261
        %v6263 = vpop.f32.mrf.mxu0
        %v6264 = vpop.f32.mrf.mxu0
        %v6265 = vpop.f32.mrf.mxu0
        %6266 = vdwg.mxu0
        %vm6267 = vcmask 64512
        %v6268 = vsel %vm6267, %v6262, -inf
        %6269 = vmax.xlane.f32.xlu0 %v6268
        %v6270 = vpop.xlane.xlu0 %6269
        %v6271 = vsub.f32 %v6262, %v6270
        %v6272 = vmul.f32 %v6271, 1.442695
        %v6273 = vpow.pop %v6272
        %v6274 = vsel %vm6267, %v6273, 0.0
        %6275 = vadd.xlane.f32.xlu0 %v6274
        %v6276 = vpop.xlane.xlu0 %6275
        %v6277 = vrcp.pop %v6276
        %v6278 = vmul.f32 %v6273, %v6277
        %v6279 = vpack.c.bf16 %v6278, %v6278
        %v6281 = vsel %vm6267, %v6279, 0
        %vm6283 = vcmask 1043456
        %v6285 = vsel %vm6283, %v6226, 0
        %6287 = vmatprep.subr.bf16.mxu0 0
        %6288 = vmatpush1.bf16.msra.mxu0 0
        %6289 = vmatprep.subr.bf16.mxu0 0
        %6290 = vmatpush1.bf16.msra.mxu0 0
        %6291 = vmatprep.subr.bf16.mxu0 0
        %6292 = vmatpush1.bf16.msra.mxu0 0
        %6293 = vmatprep.subr.bf16.mxu0 0
        %6294 = vmatpush1.bf16.msra.mxu0 0
        %6295 = vmatprep.subr.bf16.mxu0 0
        %6296 = vmatpush1.bf16.msra.mxu0 0
        %6297 = vmatprep.subr.bf16.mxu0 0
        %6298 = vmatpush1.bf16.msra.mxu0 0
        %6299 = vmatprep.subr.bf16.mxu0 0
        %6300 = vmatpush1.bf16.msra.mxu0 0
        %6301 = vmatprep.subr.bf16.mxu0 0
        %6302 = vmatpush1.bf16.msra.mxu0 %v6285
        %6303 = vmatprep.subr.bf16.mxu0 0
        %6304 = vmatpush2.bf16.msra.mxu0 0
        %6305 = vmatprep.subr.bf16.mxu0 0
        %6306 = vmatpush2.bf16.msra.mxu0 0
        %6307 = vmatprep.subr.bf16.mxu0 0
        %6308 = vmatpush2.bf16.msra.mxu0 0
        %6309 = vmatprep.subr.bf16.mxu0 0
        %6310 = vmatpush2.bf16.msra.mxu0 0
        %6311 = vmatprep.subr.bf16.mxu0 0
        %6312 = vmatpush2.bf16.msra.mxu0 0
        %6313 = vmatprep.subr.bf16.mxu0 0
        %6314 = vmatpush2.bf16.msra.mxu0 0
        %6315 = vmatprep.subr.bf16.mxu0 0
        %6316 = vmatpush2.bf16.msra.mxu0 0
        %6317 = vmatprep.subr.bf16.mxu0 0
        %6318 = vmatpush2.bf16.msra.mxu0 0
        %6319 = vmatprep.mubr.bf16.mxu0 0
        %6320 = vmatmul.mubr.bf16.gmra.mxu0 %v6281
        %v6321 = vpop.f32.mrf.mxu0
        %v6322 = vadd.f32 0.0, %v6321
        %v6323 = vpop.f32.mrf.mxu0
        %v6324 = vpop.f32.mrf.mxu0
        %v6325 = vpop.f32.mrf.mxu0
        %6326 = vdwg.mxu0
        %v6327 = vpack.c.bf16 %v5318, %v5318
        %v6328 = vpack.c.bf16 %v5646, %v5646
        %v6329 = vpack.c.bf16 %v5974, %v5974
        %6330 = vmatprep.subr.bf16.mxu0 0
        %6331 = vmatpush1.bf16.xpose.msra.mxu0 0
        %6332 = vmatprep.subr.bf16.mxu0 0
        %6333 = vmatpush1.bf16.xpose.msra.mxu0 0
        %6334 = vmatprep.subr.bf16.mxu0 0
        %6335 = vmatpush1.bf16.xpose.msra.mxu0 0
        %6336 = vmatprep.subr.bf16.mxu0 0
        %6337 = vmatpush1.bf16.xpose.msra.mxu0 0
        %6338 = vmatprep.subr.bf16.mxu0 0
        %6339 = vmatpush1.bf16.xpose.msra.mxu0 0
        %6340 = vmatprep.subr.bf16.mxu0 0
        %6341 = vmatpush1.bf16.xpose.msra.mxu0 0
        %6342 = vmatprep.subr.bf16.mxu0 0
        %6343 = vmatpush1.bf16.xpose.msra.mxu0 0
        %6344 = vmatprep.subr.bf16.mxu0 0
        %6345 = vmatpush1.bf16.xpose.msra.mxu0 %v6328
        %6346 = vmatprep.subr.bf16.mxu0 0
        %6347 = vmatpush2.bf16.xpose.msra.mxu0 0
        %6348 = vmatprep.subr.bf16.mxu0 0
        %6349 = vmatpush2.bf16.xpose.msra.mxu0 0
        %6350 = vmatprep.subr.bf16.mxu0 0
        %6351 = vmatpush2.bf16.xpose.msra.mxu0 0
        %6352 = vmatprep.subr.bf16.mxu0 0
        %6353 = vmatpush2.bf16.xpose.msra.mxu0 0
        %6354 = vmatprep.subr.bf16.mxu0 0
        %6355 = vmatpush2.bf16.xpose.msra.mxu0 0
        %6356 = vmatprep.subr.bf16.mxu0 0
        %6357 = vmatpush2.bf16.xpose.msra.mxu0 0
        %6358 = vmatprep.subr.bf16.mxu0 0
        %6359 = vmatpush2.bf16.xpose.msra.mxu0 0
        %6360 = vmatprep.subr.bf16.mxu0 0
        %6361 = vmatpush2.bf16.xpose.msra.mxu0 0
        %6362 = vmatprep.mubr.bf16.mxu0 0
        %6363 = vmatmul.mubr.bf16.gmra.mxu0 %v6327
        %v6364 = vpop.f32.mrf.mxu0
        %v6365 = vadd.f32 0.0, %v6364
        %v6366 = vpop.f32.mrf.mxu0
        %v6367 = vpop.f32.mrf.mxu0
        %v6368 = vpop.f32.mrf.mxu0
        %6369 = vdwg.mxu0
        %v6370 = vsel %vm6267, %v6365, -inf
        %6371 = vmax.xlane.f32.xlu0 %v6370
        %v6372 = vpop.xlane.xlu0 %6371
        %v6373 = vsub.f32 %v6365, %v6372
        %v6374 = vmul.f32 %v6373, 1.442695
        %v6375 = vpow.pop %v6374
        %v6376 = vsel %vm6267, %v6375, 0.0
        %6377 = vadd.xlane.f32.xlu0 %v6376
        %v6378 = vpop.xlane.xlu0 %6377
        %v6379 = vrcp.pop %v6378
        %v6380 = vmul.f32 %v6375, %v6379
        %v6381 = vpack.c.bf16 %v6380, %v6380
        %v6383 = vsel %vm6267, %v6381, 0
        %v6386 = vsel %vm6283, %v6329, 0
        %6388 = vmatprep.subr.bf16.mxu0 0
        %6389 = vmatpush1.bf16.msra.mxu0 0
        %6390 = vmatprep.subr.bf16.mxu0 0
        %6391 = vmatpush1.bf16.msra.mxu0 0
        %6392 = vmatprep.subr.bf16.mxu0 0
        %6393 = vmatpush1.bf16.msra.mxu0 0
        %6394 = vmatprep.subr.bf16.mxu0 0
        %6395 = vmatpush1.bf16.msra.mxu0 0
        %6396 = vmatprep.subr.bf16.mxu0 0
        %6397 = vmatpush1.bf16.msra.mxu0 0
        %6398 = vmatprep.subr.bf16.mxu0 0
        %6399 = vmatpush1.bf16.msra.mxu0 0
        %6400 = vmatprep.subr.bf16.mxu0 0
        %6401 = vmatpush1.bf16.msra.mxu0 0
        %6402 = vmatprep.subr.bf16.mxu0 0
        %6403 = vmatpush1.bf16.msra.mxu0 %v6386
        %6404 = vmatprep.subr.bf16.mxu0 0
        %6405 = vmatpush2.bf16.msra.mxu0 0
        %6406 = vmatprep.subr.bf16.mxu0 0
        %6407 = vmatpush2.bf16.msra.mxu0 0
        %6408 = vmatprep.subr.bf16.mxu0 0
        %6409 = vmatpush2.bf16.msra.mxu0 0
        %6410 = vmatprep.subr.bf16.mxu0 0
        %6411 = vmatpush2.bf16.msra.mxu0 0
        %6412 = vmatprep.subr.bf16.mxu0 0
        %6413 = vmatpush2.bf16.msra.mxu0 0
        %6414 = vmatprep.subr.bf16.mxu0 0
        %6415 = vmatpush2.bf16.msra.mxu0 0
        %6416 = vmatprep.subr.bf16.mxu0 0
        %6417 = vmatpush2.bf16.msra.mxu0 0
        %6418 = vmatprep.subr.bf16.mxu0 0
        %6419 = vmatpush2.bf16.msra.mxu0 0
        %6420 = vmatprep.mubr.bf16.mxu0 0
        %6421 = vmatmul.mubr.bf16.gmra.mxu0 %v6383
        %v6422 = vpop.f32.mrf.mxu0
        %v6423 = vadd.f32 0.0, %v6422
        %v6424 = vpop.f32.mrf.mxu0
        %v6425 = vpop.f32.mrf.mxu0
        %v6426 = vpop.f32.mrf.mxu0
        %6427 = vdwg.mxu0
        %v6428 = vpack.c.bf16 %v5398, %v5398
        %v6429 = vpack.c.bf16 %v5726, %v5726
        %v6430 = vpack.c.bf16 %v6054, %v6054
        %6431 = vmatprep.subr.bf16.mxu0 0
        %6432 = vmatpush1.bf16.xpose.msra.mxu0 0
        %6433 = vmatprep.subr.bf16.mxu0 0
        %6434 = vmatpush1.bf16.xpose.msra.mxu0 0
        %6435 = vmatprep.subr.bf16.mxu0 0
        %6436 = vmatpush1.bf16.xpose.msra.mxu0 0
        %6437 = vmatprep.subr.bf16.mxu0 0
        %6438 = vmatpush1.bf16.xpose.msra.mxu0 0
        %6439 = vmatprep.subr.bf16.mxu0 0
        %6440 = vmatpush1.bf16.xpose.msra.mxu0 0
        %6441 = vmatprep.subr.bf16.mxu0 0
        %6442 = vmatpush1.bf16.xpose.msra.mxu0 0
        %6443 = vmatprep.subr.bf16.mxu0 0
        %6444 = vmatpush1.bf16.xpose.msra.mxu0 0
        %6445 = vmatprep.subr.bf16.mxu0 0
        %6446 = vmatpush1.bf16.xpose.msra.mxu0 %v6429
        %6447 = vmatprep.subr.bf16.mxu0 0
        %6448 = vmatpush2.bf16.xpose.msra.mxu0 0
        %6449 = vmatprep.subr.bf16.mxu0 0
        %6450 = vmatpush2.bf16.xpose.msra.mxu0 0
        %6451 = vmatprep.subr.bf16.mxu0 0
        %6452 = vmatpush2.bf16.xpose.msra.mxu0 0
        %6453 = vmatprep.subr.bf16.mxu0 0
        %6454 = vmatpush2.bf16.xpose.msra.mxu0 0
        %6455 = vmatprep.subr.bf16.mxu0 0
        %6456 = vmatpush2.bf16.xpose.msra.mxu0 0
        %6457 = vmatprep.subr.bf16.mxu0 0
        %6458 = vmatpush2.bf16.xpose.msra.mxu0 0
        %6459 = vmatprep.subr.bf16.mxu0 0
        %6460 = vmatpush2.bf16.xpose.msra.mxu0 0
        %6461 = vmatprep.subr.bf16.mxu0 0
        %6462 = vmatpush2.bf16.xpose.msra.mxu0 0
        %6463 = vmatprep.mubr.bf16.mxu0 0
        %6464 = vmatmul.mubr.bf16.gmra.mxu0 %v6428
        %v6465 = vpop.f32.mrf.mxu0
        %v6466 = vadd.f32 0.0, %v6465
        %v6467 = vpop.f32.mrf.mxu0
        %v6468 = vpop.f32.mrf.mxu0
        %v6469 = vpop.f32.mrf.mxu0
        %6470 = vdwg.mxu0
        %v6471 = vsel %vm6267, %v6466, -inf
        %6472 = vmax.xlane.f32.xlu0 %v6471
        %v6473 = vpop.xlane.xlu0 %6472
        %v6474 = vsub.f32 %v6466, %v6473
        %v6475 = vmul.f32 %v6474, 1.442695
        %v6476 = vpow.pop %v6475
        %v6477 = vsel %vm6267, %v6476, 0.0
        %6478 = vadd.xlane.f32.xlu0 %v6477
        %v6479 = vpop.xlane.xlu0 %6478
        %v6480 = vrcp.pop %v6479
        %v6481 = vmul.f32 %v6476, %v6480
        %v6482 = vpack.c.bf16 %v6481, %v6481
        %v6484 = vsel %vm6267, %v6482, 0
        %v6487 = vsel %vm6283, %v6430, 0
        %6489 = vmatprep.subr.bf16.mxu0 0
        %6490 = vmatpush1.bf16.msra.mxu0 0
        %6491 = vmatprep.subr.bf16.mxu0 0
        %6492 = vmatpush1.bf16.msra.mxu0 0
        %6493 = vmatprep.subr.bf16.mxu0 0
        %6494 = vmatpush1.bf16.msra.mxu0 0
        %6495 = vmatprep.subr.bf16.mxu0 0
        %6496 = vmatpush1.bf16.msra.mxu0 0
        %6497 = vmatprep.subr.bf16.mxu0 0
        %6498 = vmatpush1.bf16.msra.mxu0 0
        %6499 = vmatprep.subr.bf16.mxu0 0
        %6500 = vmatpush1.bf16.msra.mxu0 0
        %6501 = vmatprep.subr.bf16.mxu0 0
        %6502 = vmatpush1.bf16.msra.mxu0 0
        %6503 = vmatprep.subr.bf16.mxu0 0
        %6504 = vmatpush1.bf16.msra.mxu0 %v6487
        %6505 = vmatprep.subr.bf16.mxu0 0
        %6506 = vmatpush2.bf16.msra.mxu0 0
        %6507 = vmatprep.subr.bf16.mxu0 0
        %6508 = vmatpush2.bf16.msra.mxu0 0
        %6509 = vmatprep.subr.bf16.mxu0 0
        %6510 = vmatpush2.bf16.msra.mxu0 0
        %6511 = vmatprep.subr.bf16.mxu0 0
        %6512 = vmatpush2.bf16.msra.mxu0 0
        %6513 = vmatprep.subr.bf16.mxu0 0
        %6514 = vmatpush2.bf16.msra.mxu0 0
        %6515 = vmatprep.subr.bf16.mxu0 0
        %6516 = vmatpush2.bf16.msra.mxu0 0
        %6517 = vmatprep.subr.bf16.mxu0 0
        %6518 = vmatpush2.bf16.msra.mxu0 0
        %6519 = vmatprep.subr.bf16.mxu0 0
        %6520 = vmatpush2.bf16.msra.mxu0 0
        %6521 = vmatprep.mubr.bf16.mxu0 0
        %6522 = vmatmul.mubr.bf16.gmra.mxu0 %v6484
        %v6523 = vpop.f32.mrf.mxu0
        %v6524 = vadd.f32 0.0, %v6523
        %v6525 = vpop.f32.mrf.mxu0
        %v6526 = vpop.f32.mrf.mxu0
        %v6527 = vpop.f32.mrf.mxu0
        %6528 = vdwg.mxu0
        %v6529 = vpack.c.bf16 %v5400, %v5400
        %v6530 = vpack.c.bf16 %v5728, %v5728
        %v6531 = vpack.c.bf16 %v6056, %v6056
        %6532 = vmatprep.subr.bf16.mxu0 0
        %6533 = vmatpush1.bf16.xpose.msra.mxu0 0
        %6534 = vmatprep.subr.bf16.mxu0 0
        %6535 = vmatpush1.bf16.xpose.msra.mxu0 0
        %6536 = vmatprep.subr.bf16.mxu0 0
        %6537 = vmatpush1.bf16.xpose.msra.mxu0 0
        %6538 = vmatprep.subr.bf16.mxu0 0
        %6539 = vmatpush1.bf16.xpose.msra.mxu0 0
        %6540 = vmatprep.subr.bf16.mxu0 0
        %6541 = vmatpush1.bf16.xpose.msra.mxu0 0
        %6542 = vmatprep.subr.bf16.mxu0 0
        %6543 = vmatpush1.bf16.xpose.msra.mxu0 0
        %6544 = vmatprep.subr.bf16.mxu0 0
        %6545 = vmatpush1.bf16.xpose.msra.mxu0 0
        %6546 = vmatprep.subr.bf16.mxu0 0
        %6547 = vmatpush1.bf16.xpose.msra.mxu0 %v6530
        %6548 = vmatprep.subr.bf16.mxu0 0
        %6549 = vmatpush2.bf16.xpose.msra.mxu0 0
        %6550 = vmatprep.subr.bf16.mxu0 0
        %6551 = vmatpush2.bf16.xpose.msra.mxu0 0
        %6552 = vmatprep.subr.bf16.mxu0 0
        %6553 = vmatpush2.bf16.xpose.msra.mxu0 0
        %6554 = vmatprep.subr.bf16.mxu0 0
        %6555 = vmatpush2.bf16.xpose.msra.mxu0 0
        %6556 = vmatprep.subr.bf16.mxu0 0
        %6557 = vmatpush2.bf16.xpose.msra.mxu0 0
        %6558 = vmatprep.subr.bf16.mxu0 0
        %6559 = vmatpush2.bf16.xpose.msra.mxu0 0
        %6560 = vmatprep.subr.bf16.mxu0 0
        %6561 = vmatpush2.bf16.xpose.msra.mxu0 0
        %6562 = vmatprep.subr.bf16.mxu0 0
        %6563 = vmatpush2.bf16.xpose.msra.mxu0 0
        %6564 = vmatprep.mubr.bf16.mxu0 0
        %6565 = vmatmul.mubr.bf16.gmra.mxu0 %v6529
        %v6566 = vpop.f32.mrf.mxu0
        %v6567 = vadd.f32 0.0, %v6566
        %v6568 = vpop.f32.mrf.mxu0
        %v6569 = vpop.f32.mrf.mxu0
        %v6570 = vpop.f32.mrf.mxu0
        %6571 = vdwg.mxu0
        %v6572 = vsel %vm6267, %v6567, -inf
        %6573 = vmax.xlane.f32.xlu0 %v6572
        %v6574 = vpop.xlane.xlu0 %6573
        %v6575 = vsub.f32 %v6567, %v6574
        %v6576 = vmul.f32 %v6575, 1.442695
        %v6577 = vpow.pop %v6576
        %v6578 = vsel %vm6267, %v6577, 0.0
        %6579 = vadd.xlane.f32.xlu0 %v6578
        %v6580 = vpop.xlane.xlu0 %6579
        %v6581 = vrcp.pop %v6580
        %v6582 = vmul.f32 %v6577, %v6581
        %v6583 = vpack.c.bf16 %v6582, %v6582
        %v6585 = vsel %vm6267, %v6583, 0
        %v6588 = vsel %vm6283, %v6531, 0
        %6590 = vmatprep.subr.bf16.mxu0 0
        %6591 = vmatpush1.bf16.msra.mxu0 0
        %6592 = vmatprep.subr.bf16.mxu0 0
        %6593 = vmatpush1.bf16.msra.mxu0 0
        %6594 = vmatprep.subr.bf16.mxu0 0
        %6595 = vmatpush1.bf16.msra.mxu0 0
        %6596 = vmatprep.subr.bf16.mxu0 0
        %6597 = vmatpush1.bf16.msra.mxu0 0
        %6598 = vmatprep.subr.bf16.mxu0 0
        %6599 = vmatpush1.bf16.msra.mxu0 0
        %6600 = vmatprep.subr.bf16.mxu0 0
        %6601 = vmatpush1.bf16.msra.mxu0 0
        %6602 = vmatprep.subr.bf16.mxu0 0
        %6603 = vmatpush1.bf16.msra.mxu0 0
        %6604 = vmatprep.subr.bf16.mxu0 0
        %6605 = vmatpush1.bf16.msra.mxu0 %v6588
        %6606 = vmatprep.subr.bf16.mxu0 0
        %6607 = vmatpush2.bf16.msra.mxu0 0
        %6608 = vmatprep.subr.bf16.mxu0 0
        %6609 = vmatpush2.bf16.msra.mxu0 0
        %6610 = vmatprep.subr.bf16.mxu0 0
        %6611 = vmatpush2.bf16.msra.mxu0 0
        %6612 = vmatprep.subr.bf16.mxu0 0
        %6613 = vmatpush2.bf16.msra.mxu0 0
        %6614 = vmatprep.subr.bf16.mxu0 0
        %6615 = vmatpush2.bf16.msra.mxu0 0
        %6616 = vmatprep.subr.bf16.mxu0 0
        %6617 = vmatpush2.bf16.msra.mxu0 0
        %6618 = vmatprep.subr.bf16.mxu0 0
        %6619 = vmatpush2.bf16.msra.mxu0 0
        %6620 = vmatprep.subr.bf16.mxu0 0
        %6621 = vmatpush2.bf16.msra.mxu0 0
        %6622 = vmatprep.mubr.bf16.mxu0 0
        %6623 = vmatmul.mubr.bf16.gmra.mxu0 %v6585
        %v6624 = vpop.f32.mrf.mxu0
        %v6625 = vadd.f32 0.0, %v6624
        %v6626 = vpop.f32.mrf.mxu0
        %v6627 = vpop.f32.mrf.mxu0
        %v6628 = vpop.f32.mrf.mxu0
        %6629 = vdwg.mxu0
        %v6630 = vpack.c.bf16 %v5480, %v5480
        %v6631 = vpack.c.bf16 %v5808, %v5808
        %v6632 = vpack.c.bf16 %v6136, %v6136
        %6633 = vmatprep.subr.bf16.mxu0 0
        %6634 = vmatpush1.bf16.xpose.msra.mxu0 0
        %6635 = vmatprep.subr.bf16.mxu0 0
        %6636 = vmatpush1.bf16.xpose.msra.mxu0 0
        %6637 = vmatprep.subr.bf16.mxu0 0
        %6638 = vmatpush1.bf16.xpose.msra.mxu0 0
        %6639 = vmatprep.subr.bf16.mxu0 0
        %6640 = vmatpush1.bf16.xpose.msra.mxu0 0
        %6641 = vmatprep.subr.bf16.mxu0 0
        %6642 = vmatpush1.bf16.xpose.msra.mxu0 0
        %6643 = vmatprep.subr.bf16.mxu0 0
        %6644 = vmatpush1.bf16.xpose.msra.mxu0 0
        %6645 = vmatprep.subr.bf16.mxu0 0
        %6646 = vmatpush1.bf16.xpose.msra.mxu0 0
        %6647 = vmatprep.subr.bf16.mxu0 0
        %6648 = vmatpush1.bf16.xpose.msra.mxu0 %v6631
        %6649 = vmatprep.subr.bf16.mxu0 0
        %6650 = vmatpush2.bf16.xpose.msra.mxu0 0
        %6651 = vmatprep.subr.bf16.mxu0 0
        %6652 = vmatpush2.bf16.xpose.msra.mxu0 0
        %6653 = vmatprep.subr.bf16.mxu0 0
        %6654 = vmatpush2.bf16.xpose.msra.mxu0 0
        %6655 = vmatprep.subr.bf16.mxu0 0
        %6656 = vmatpush2.bf16.xpose.msra.mxu0 0
        %6657 = vmatprep.subr.bf16.mxu0 0
        %6658 = vmatpush2.bf16.xpose.msra.mxu0 0
        %6659 = vmatprep.subr.bf16.mxu0 0
        %6660 = vmatpush2.bf16.xpose.msra.mxu0 0
        %6661 = vmatprep.subr.bf16.mxu0 0
        %6662 = vmatpush2.bf16.xpose.msra.mxu0 0
        %6663 = vmatprep.subr.bf16.mxu0 0
        %6664 = vmatpush2.bf16.xpose.msra.mxu0 0
        %6665 = vmatprep.mubr.bf16.mxu0 0
        %6666 = vmatmul.mubr.bf16.gmra.mxu0 %v6630
        %v6667 = vpop.f32.mrf.mxu0
        %v6668 = vadd.f32 0.0, %v6667
        %v6669 = vpop.f32.mrf.mxu0
        %v6670 = vpop.f32.mrf.mxu0
        %v6671 = vpop.f32.mrf.mxu0
        %6672 = vdwg.mxu0
        %v6673 = vsel %vm6267, %v6668, -inf
        %6674 = vmax.xlane.f32.xlu0 %v6673
        %v6675 = vpop.xlane.xlu0 %6674
        %v6676 = vsub.f32 %v6668, %v6675
        %v6677 = vmul.f32 %v6676, 1.442695
        %v6678 = vpow.pop %v6677
        %v6679 = vsel %vm6267, %v6678, 0.0
        %6680 = vadd.xlane.f32.xlu0 %v6679
        %v6681 = vpop.xlane.xlu0 %6680
        %v6682 = vrcp.pop %v6681
        %v6683 = vmul.f32 %v6678, %v6682
        %v6684 = vpack.c.bf16 %v6683, %v6683
        %v6686 = vsel %vm6267, %v6684, 0
        %v6689 = vsel %vm6283, %v6632, 0
        %6691 = vmatprep.subr.bf16.mxu0 0
        %6692 = vmatpush1.bf16.msra.mxu0 0
        %6693 = vmatprep.subr.bf16.mxu0 0
        %6694 = vmatpush1.bf16.msra.mxu0 0
        %6695 = vmatprep.subr.bf16.mxu0 0
        %6696 = vmatpush1.bf16.msra.mxu0 0
        %6697 = vmatprep.subr.bf16.mxu0 0
        %6698 = vmatpush1.bf16.msra.mxu0 0
        %6699 = vmatprep.subr.bf16.mxu0 0
        %6700 = vmatpush1.bf16.msra.mxu0 0
        %6701 = vmatprep.subr.bf16.mxu0 0
        %6702 = vmatpush1.bf16.msra.mxu0 0
        %6703 = vmatprep.subr.bf16.mxu0 0
        %6704 = vmatpush1.bf16.msra.mxu0 0
        %6705 = vmatprep.subr.bf16.mxu0 0
        %6706 = vmatpush1.bf16.msra.mxu0 %v6689
        %6707 = vmatprep.subr.bf16.mxu0 0
        %6708 = vmatpush2.bf16.msra.mxu0 0
        %6709 = vmatprep.subr.bf16.mxu0 0
        %6710 = vmatpush2.bf16.msra.mxu0 0
        %6711 = vmatprep.subr.bf16.mxu0 0
        %6712 = vmatpush2.bf16.msra.mxu0 0
        %6713 = vmatprep.subr.bf16.mxu0 0
        %6714 = vmatpush2.bf16.msra.mxu0 0
        %6715 = vmatprep.subr.bf16.mxu0 0
        %6716 = vmatpush2.bf16.msra.mxu0 0
        %6717 = vmatprep.subr.bf16.mxu0 0
        %6718 = vmatpush2.bf16.msra.mxu0 0
        %6719 = vmatprep.subr.bf16.mxu0 0
        %6720 = vmatpush2.bf16.msra.mxu0 0
        %6721 = vmatprep.subr.bf16.mxu0 0
        %6722 = vmatpush2.bf16.msra.mxu0 0
        %6723 = vmatprep.mubr.bf16.mxu0 0
        %6724 = vmatmul.mubr.bf16.gmra.mxu0 %v6686
        %v6725 = vpop.f32.mrf.mxu0
        %v6726 = vadd.f32 0.0, %v6725
        %v6727 = vpop.f32.mrf.mxu0
        %v6728 = vpop.f32.mrf.mxu0
        %v6729 = vpop.f32.mrf.mxu0
        %6730 = vdwg.mxu0
        %v6731 = vpack.c.bf16 %v5482, %v5482
        %v6732 = vpack.c.bf16 %v5810, %v5810
        %v6733 = vpack.c.bf16 %v6138, %v6138
        %6734 = vmatprep.subr.bf16.mxu0 0
        %6735 = vmatpush1.bf16.xpose.msra.mxu0 0
        %6736 = vmatprep.subr.bf16.mxu0 0
        %6737 = vmatpush1.bf16.xpose.msra.mxu0 0
        %6738 = vmatprep.subr.bf16.mxu0 0
        %6739 = vmatpush1.bf16.xpose.msra.mxu0 0
        %6740 = vmatprep.subr.bf16.mxu0 0
        %6741 = vmatpush1.bf16.xpose.msra.mxu0 0
        %6742 = vmatprep.subr.bf16.mxu0 0
        %6743 = vmatpush1.bf16.xpose.msra.mxu0 0
        %6744 = vmatprep.subr.bf16.mxu0 0
        %6745 = vmatpush1.bf16.xpose.msra.mxu0 0
        %6746 = vmatprep.subr.bf16.mxu0 0
        %6747 = vmatpush1.bf16.xpose.msra.mxu0 0
        %6748 = vmatprep.subr.bf16.mxu0 0
        %6749 = vmatpush1.bf16.xpose.msra.mxu0 %v6732
        %6750 = vmatprep.subr.bf16.mxu0 0
        %6751 = vmatpush2.bf16.xpose.msra.mxu0 0
        %6752 = vmatprep.subr.bf16.mxu0 0
        %6753 = vmatpush2.bf16.xpose.msra.mxu0 0
        %6754 = vmatprep.subr.bf16.mxu0 0
        %6755 = vmatpush2.bf16.xpose.msra.mxu0 0
        %6756 = vmatprep.subr.bf16.mxu0 0
        %6757 = vmatpush2.bf16.xpose.msra.mxu0 0
        %6758 = vmatprep.subr.bf16.mxu0 0
        %6759 = vmatpush2.bf16.xpose.msra.mxu0 0
        %6760 = vmatprep.subr.bf16.mxu0 0
        %6761 = vmatpush2.bf16.xpose.msra.mxu0 0
        %6762 = vmatprep.subr.bf16.mxu0 0
        %6763 = vmatpush2.bf16.xpose.msra.mxu0 0
        %6764 = vmatprep.subr.bf16.mxu0 0
        %6765 = vmatpush2.bf16.xpose.msra.mxu0 0
        %6766 = vmatprep.mubr.bf16.mxu0 0
        %6767 = vmatmul.mubr.bf16.gmra.mxu0 %v6731
        %v6768 = vpop.f32.mrf.mxu0
        %v6769 = vadd.f32 0.0, %v6768
        %v6770 = vpop.f32.mrf.mxu0
        %v6771 = vpop.f32.mrf.mxu0
        %v6772 = vpop.f32.mrf.mxu0
        %6773 = vdwg.mxu0
        %v6774 = vsel %vm6267, %v6769, -inf
        %6775 = vmax.xlane.f32.xlu0 %v6774
        %v6776 = vpop.xlane.xlu0 %6775
        %v6777 = vsub.f32 %v6769, %v6776
        %v6778 = vmul.f32 %v6777, 1.442695
        %v6779 = vpow.pop %v6778
        %v6780 = vsel %vm6267, %v6779, 0.0
        %6781 = vadd.xlane.f32.xlu0 %v6780
        %v6782 = vpop.xlane.xlu0 %6781
        %v6783 = vrcp.pop %v6782
        %v6784 = vmul.f32 %v6779, %v6783
        %v6785 = vpack.c.bf16 %v6784, %v6784
        %v6787 = vsel %vm6267, %v6785, 0
        %v6790 = vsel %vm6283, %v6733, 0
        %6792 = vmatprep.subr.bf16.mxu0 0
        %6793 = vmatpush1.bf16.msra.mxu0 0
        %6794 = vmatprep.subr.bf16.mxu0 0
        %6795 = vmatpush1.bf16.msra.mxu0 0
        %6796 = vmatprep.subr.bf16.mxu0 0
        %6797 = vmatpush1.bf16.msra.mxu0 0
        %6798 = vmatprep.subr.bf16.mxu0 0
        %6799 = vmatpush1.bf16.msra.mxu0 0
        %6800 = vmatprep.subr.bf16.mxu0 0
        %6801 = vmatpush1.bf16.msra.mxu0 0
        %6802 = vmatprep.subr.bf16.mxu0 0
        %6803 = vmatpush1.bf16.msra.mxu0 0
        %6804 = vmatprep.subr.bf16.mxu0 0
        %6805 = vmatpush1.bf16.msra.mxu0 0
        %6806 = vmatprep.subr.bf16.mxu0 0
        %6807 = vmatpush1.bf16.msra.mxu0 %v6790
        %6808 = vmatprep.subr.bf16.mxu0 0
        %6809 = vmatpush2.bf16.msra.mxu0 0
        %6810 = vmatprep.subr.bf16.mxu0 0
        %6811 = vmatpush2.bf16.msra.mxu0 0
        %6812 = vmatprep.subr.bf16.mxu0 0
        %6813 = vmatpush2.bf16.msra.mxu0 0
        %6814 = vmatprep.subr.bf16.mxu0 0
        %6815 = vmatpush2.bf16.msra.mxu0 0
        %6816 = vmatprep.subr.bf16.mxu0 0
        %6817 = vmatpush2.bf16.msra.mxu0 0
        %6818 = vmatprep.subr.bf16.mxu0 0
        %6819 = vmatpush2.bf16.msra.mxu0 0
        %6820 = vmatprep.subr.bf16.mxu0 0
        %6821 = vmatpush2.bf16.msra.mxu0 0
        %6822 = vmatprep.subr.bf16.mxu0 0
        %6823 = vmatpush2.bf16.msra.mxu0 0
        %6824 = vmatprep.mubr.bf16.mxu0 0
        %6825 = vmatmul.mubr.bf16.gmra.mxu0 %v6787
        %v6826 = vpop.f32.mrf.mxu0
        %v6827 = vadd.f32 0.0, %v6826
        %v6828 = vpop.f32.mrf.mxu0
        %v6829 = vpop.f32.mrf.mxu0
        %v6830 = vpop.f32.mrf.mxu0
        %6831 = vdwg.mxu0
        %v6832 = vpack.c.bf16 %v5562, %v5562
        %v6833 = vpack.c.bf16 %v5890, %v5890
        %v6834 = vpack.c.bf16 %v6218, %v6218
        %6835 = vmatprep.subr.bf16.mxu0 0
        %6836 = vmatpush1.bf16.xpose.msra.mxu0 0
        %6837 = vmatprep.subr.bf16.mxu0 0
        %6838 = vmatpush1.bf16.xpose.msra.mxu0 0
        %6839 = vmatprep.subr.bf16.mxu0 0
        %6840 = vmatpush1.bf16.xpose.msra.mxu0 0
        %6841 = vmatprep.subr.bf16.mxu0 0
        %6842 = vmatpush1.bf16.xpose.msra.mxu0 0
        %6843 = vmatprep.subr.bf16.mxu0 0
        %6844 = vmatpush1.bf16.xpose.msra.mxu0 0
        %6845 = vmatprep.subr.bf16.mxu0 0
        %6846 = vmatpush1.bf16.xpose.msra.mxu0 0
        %6847 = vmatprep.subr.bf16.mxu0 0
        %6848 = vmatpush1.bf16.xpose.msra.mxu0 0
        %6849 = vmatprep.subr.bf16.mxu0 0
        %6850 = vmatpush1.bf16.xpose.msra.mxu0 %v6833
        %6851 = vmatprep.subr.bf16.mxu0 0
        %6852 = vmatpush2.bf16.xpose.msra.mxu0 0
        %6853 = vmatprep.subr.bf16.mxu0 0
        %6854 = vmatpush2.bf16.xpose.msra.mxu0 0
        %6855 = vmatprep.subr.bf16.mxu0 0
        %6856 = vmatpush2.bf16.xpose.msra.mxu0 0
        %6857 = vmatprep.subr.bf16.mxu0 0
        %6858 = vmatpush2.bf16.xpose.msra.mxu0 0
        %6859 = vmatprep.subr.bf16.mxu0 0
        %6860 = vmatpush2.bf16.xpose.msra.mxu0 0
        %6861 = vmatprep.subr.bf16.mxu0 0
        %6862 = vmatpush2.bf16.xpose.msra.mxu0 0
        %6863 = vmatprep.subr.bf16.mxu0 0
        %6864 = vmatpush2.bf16.xpose.msra.mxu0 0
        %6865 = vmatprep.subr.bf16.mxu0 0
        %6866 = vmatpush2.bf16.xpose.msra.mxu0 0
        %6867 = vmatprep.mubr.bf16.mxu0 0
        %6868 = vmatmul.mubr.bf16.gmra.mxu0 %v6832
        %v6869 = vpop.f32.mrf.mxu0
        %v6870 = vadd.f32 0.0, %v6869
        %v6871 = vpop.f32.mrf.mxu0
        %v6872 = vpop.f32.mrf.mxu0
        %v6873 = vpop.f32.mrf.mxu0
        %6874 = vdwg.mxu0
        %v6875 = vsel %vm6267, %v6870, -inf
        %6876 = vmax.xlane.f32.xlu0 %v6875
        %v6877 = vpop.xlane.xlu0 %6876
        %v6878 = vsub.f32 %v6870, %v6877
        %v6879 = vmul.f32 %v6878, 1.442695
        %v6880 = vpow.pop %v6879
        %v6881 = vsel %vm6267, %v6880, 0.0
        %6882 = vadd.xlane.f32.xlu0 %v6881
        %v6883 = vpop.xlane.xlu0 %6882
        %v6884 = vrcp.pop %v6883
        %v6885 = vmul.f32 %v6880, %v6884
        %v6886 = vpack.c.bf16 %v6885, %v6885
        %v6888 = vsel %vm6267, %v6886, 0
        %v6891 = vsel %vm6283, %v6834, 0
        %6893 = vmatprep.subr.bf16.mxu0 0
        %6894 = vmatpush1.bf16.msra.mxu0 0
        %6895 = vmatprep.subr.bf16.mxu0 0
        %6896 = vmatpush1.bf16.msra.mxu0 0
        %6897 = vmatprep.subr.bf16.mxu0 0
        %6898 = vmatpush1.bf16.msra.mxu0 0
        %6899 = vmatprep.subr.bf16.mxu0 0
        %6900 = vmatpush1.bf16.msra.mxu0 0
        %6901 = vmatprep.subr.bf16.mxu0 0
        %6902 = vmatpush1.bf16.msra.mxu0 0
        %6903 = vmatprep.subr.bf16.mxu0 0
        %6904 = vmatpush1.bf16.msra.mxu0 0
        %6905 = vmatprep.subr.bf16.mxu0 0
        %6906 = vmatpush1.bf16.msra.mxu0 0
        %6907 = vmatprep.subr.bf16.mxu0 0
        %6908 = vmatpush1.bf16.msra.mxu0 %v6891
        %6909 = vmatprep.subr.bf16.mxu0 0
        %6910 = vmatpush2.bf16.msra.mxu0 0
        %6911 = vmatprep.subr.bf16.mxu0 0
        %6912 = vmatpush2.bf16.msra.mxu0 0
        %6913 = vmatprep.subr.bf16.mxu0 0
        %6914 = vmatpush2.bf16.msra.mxu0 0
        %6915 = vmatprep.subr.bf16.mxu0 0
        %6916 = vmatpush2.bf16.msra.mxu0 0
        %6917 = vmatprep.subr.bf16.mxu0 0
        %6918 = vmatpush2.bf16.msra.mxu0 0
        %6919 = vmatprep.subr.bf16.mxu0 0
        %6920 = vmatpush2.bf16.msra.mxu0 0
        %6921 = vmatprep.subr.bf16.mxu0 0
        %6922 = vmatpush2.bf16.msra.mxu0 0
        %6923 = vmatprep.subr.bf16.mxu0 0
        %6924 = vmatpush2.bf16.msra.mxu0 0
        %6925 = vmatprep.mubr.bf16.mxu0 0
        %6926 = vmatmul.mubr.bf16.gmra.mxu0 %v6888
        %v6927 = vpop.f32.mrf.mxu0
        %v6928 = vadd.f32 0.0, %v6927
        %v6929 = vpop.f32.mrf.mxu0
        %v6930 = vpop.f32.mrf.mxu0
        %v6931 = vpop.f32.mrf.mxu0
        %6932 = vdwg.mxu0
        %v6933 = vpack.c.bf16 %v5564, %v5564
        %v6934 = vpack.c.bf16 %v5892, %v5892
        %v6935 = vpack.c.bf16 %v6220, %v6220
        %6936 = vmatprep.subr.bf16.mxu0 0
        %6937 = vmatpush1.bf16.xpose.msra.mxu0 0
        %6938 = vmatprep.subr.bf16.mxu0 0
        %6939 = vmatpush1.bf16.xpose.msra.mxu0 0
        %6940 = vmatprep.subr.bf16.mxu0 0
        %6941 = vmatpush1.bf16.xpose.msra.mxu0 0
        %6942 = vmatprep.subr.bf16.mxu0 0
        %6943 = vmatpush1.bf16.xpose.msra.mxu0 0
        %6944 = vmatprep.subr.bf16.mxu0 0
        %6945 = vmatpush1.bf16.xpose.msra.mxu0 0
        %6946 = vmatprep.subr.bf16.mxu0 0
        %6947 = vmatpush1.bf16.xpose.msra.mxu0 0
        %6948 = vmatprep.subr.bf16.mxu0 0
        %6949 = vmatpush1.bf16.xpose.msra.mxu0 0
        %6950 = vmatprep.subr.bf16.mxu0 0
        %6951 = vmatpush1.bf16.xpose.msra.mxu0 %v6934
        %6952 = vmatprep.subr.bf16.mxu0 0
        %6953 = vmatpush2.bf16.xpose.msra.mxu0 0
        %6954 = vmatprep.subr.bf16.mxu0 0
        %6955 = vmatpush2.bf16.xpose.msra.mxu0 0
        %6956 = vmatprep.subr.bf16.mxu0 0
        %6957 = vmatpush2.bf16.xpose.msra.mxu0 0
        %6958 = vmatprep.subr.bf16.mxu0 0
        %6959 = vmatpush2.bf16.xpose.msra.mxu0 0
        %6960 = vmatprep.subr.bf16.mxu0 0
        %6961 = vmatpush2.bf16.xpose.msra.mxu0 0
        %6962 = vmatprep.subr.bf16.mxu0 0
        %6963 = vmatpush2.bf16.xpose.msra.mxu0 0
        %6964 = vmatprep.subr.bf16.mxu0 0
        %6965 = vmatpush2.bf16.xpose.msra.mxu0 0
        %6966 = vmatprep.subr.bf16.mxu0 0
        %6967 = vmatpush2.bf16.xpose.msra.mxu0 0
        %6968 = vmatprep.mubr.bf16.mxu0 0
        %6969 = vmatmul.mubr.bf16.gmra.mxu0 %v6933
        %v6970 = vpop.f32.mrf.mxu0
        %v6971 = vadd.f32 0.0, %v6970
        %v6972 = vpop.f32.mrf.mxu0
        %v6973 = vpop.f32.mrf.mxu0
        %v6974 = vpop.f32.mrf.mxu0
        %6975 = vdwg.mxu0
        %v6976 = vsel %vm6267, %v6971, -inf
        %6977 = vmax.xlane.f32.xlu0 %v6976
        %v6978 = vpop.xlane.xlu0 %6977
        %v6979 = vsub.f32 %v6971, %v6978
        %v6980 = vmul.f32 %v6979, 1.442695
        %v6981 = vpow.pop %v6980
        %v6982 = vsel %vm6267, %v6981, 0.0
        %6983 = vadd.xlane.f32.xlu0 %v6982
        %v6984 = vpop.xlane.xlu0 %6983
        %v6985 = vrcp.pop %v6984
        %v6986 = vmul.f32 %v6981, %v6985
        %v6987 = vpack.c.bf16 %v6986, %v6986
        %v6989 = vsel %vm6267, %v6987, 0
        %v6992 = vsel %vm6283, %v6935, 0
        %6994 = vmatprep.subr.bf16.mxu0 0
        %6995 = vmatpush1.bf16.msra.mxu0 0
        %6996 = vmatprep.subr.bf16.mxu0 0
        %6997 = vmatpush1.bf16.msra.mxu0 0
        %6998 = vmatprep.subr.bf16.mxu0 0
        %6999 = vmatpush1.bf16.msra.mxu0 0
        %7000 = vmatprep.subr.bf16.mxu0 0
        %7001 = vmatpush1.bf16.msra.mxu0 0
        %7002 = vmatprep.subr.bf16.mxu0 0
        %7003 = vmatpush1.bf16.msra.mxu0 0
        %7004 = vmatprep.subr.bf16.mxu0 0
        %7005 = vmatpush1.bf16.msra.mxu0 0
        %7006 = vmatprep.subr.bf16.mxu0 0
        %7007 = vmatpush1.bf16.msra.mxu0 0
        %7008 = vmatprep.subr.bf16.mxu0 0
        %7009 = vmatpush1.bf16.msra.mxu0 %v6992
        %7010 = vmatprep.subr.bf16.mxu0 0
        %7011 = vmatpush2.bf16.msra.mxu0 0
        %7012 = vmatprep.subr.bf16.mxu0 0
        %7013 = vmatpush2.bf16.msra.mxu0 0
        %7014 = vmatprep.subr.bf16.mxu0 0
        %7015 = vmatpush2.bf16.msra.mxu0 0
        %7016 = vmatprep.subr.bf16.mxu0 0
        %7017 = vmatpush2.bf16.msra.mxu0 0
        %7018 = vmatprep.subr.bf16.mxu0 0
        %7019 = vmatpush2.bf16.msra.mxu0 0
        %7020 = vmatprep.subr.bf16.mxu0 0
        %7021 = vmatpush2.bf16.msra.mxu0 0
        %7022 = vmatprep.subr.bf16.mxu0 0
        %7023 = vmatpush2.bf16.msra.mxu0 0
        %7024 = vmatprep.subr.bf16.mxu0 0
        %7025 = vmatpush2.bf16.msra.mxu0 0
        %7026 = vmatprep.mubr.bf16.mxu0 0
        %7027 = vmatmul.mubr.bf16.gmra.mxu0 %v6989
        %v7028 = vpop.f32.mrf.mxu0
        %v7029 = vadd.f32 0.0, %v7028
        %v7030 = vpop.f32.mrf.mxu0
        %v7031 = vpop.f32.mrf.mxu0
        %v7032 = vpop.f32.mrf.mxu0
        %7033 = vdwg.mxu0
        %v7034 = vpack.c.bf16 %v6322, %v6322
        %v7035 = vpack.c.bf16 %v6423, %v6423
        %v7036 = vpack.c.bf16 %v6524, %v6524
        %v7037 = vpack.c.bf16 %v6625, %v6625
        %v7038 = vpack.c.bf16 %v6726, %v6726
        %v7039 = vpack.c.bf16 %v6827, %v6827
        %v7040 = vpack.c.bf16 %v6928, %v6928
        %v7041 = vpack.c.bf16 %v7029, %v7029
        %v7042 = vld [vmem:[#allocation8] sm:$0xff]
        %v7043 = vld [vmem:[#allocation8 + $0x8] sm:$0xff]
        %v7044 = vld [vmem:[#allocation8 + $0x10] sm:$0xff]
        %v7045 = vld [vmem:[#allocation8 + $0x18] sm:$0xff]
        %v7046 = vld [vmem:[#allocation8 + $0x20] sm:$0xff]
        %v7047 = vld [vmem:[#allocation8 + $0x28] sm:$0xff]
        %v7048 = vld [vmem:[#allocation8 + $0x30] sm:$0xff]
        %v7049 = vld [vmem:[#allocation8 + $0x38] sm:$0xff]
        %v7050 = vld [vmem:[#allocation8 + $0x40] sm:$0xff]
        %v7051 = vld [vmem:[#allocation8 + $0x48] sm:$0xff]
        %v7052 = vld [vmem:[#allocation8 + $0x50] sm:$0xff]
        %v7053 = vld [vmem:[#allocation8 + $0x58] sm:$0xff]
        %v7054 = vld [vmem:[#allocation8 + $0x60] sm:$0xff]
        %v7055 = vld [vmem:[#allocation8 + $0x68] sm:$0xff]
        %v7056 = vld [vmem:[#allocation8 + $0x70] sm:$0xff]
        %v7057 = vld [vmem:[#allocation8 + $0x78] sm:$0xff]
        %v7058 = vld [vmem:[#allocation8 + $0x80] sm:$0xff]
        %v7059 = vld [vmem:[#allocation8 + $0x88] sm:$0xff]
        %v7060 = vld [vmem:[#allocation8 + $0x90] sm:$0xff]
        %v7061 = vld [vmem:[#allocation8 + $0x98] sm:$0xff]
        %v7062 = vld [vmem:[#allocation8 + $0xa0] sm:$0xff]
        %v7063 = vld [vmem:[#allocation8 + $0xa8] sm:$0xff]
        %v7064 = vld [vmem:[#allocation8 + $0xb0] sm:$0xff]
        %v7065 = vld [vmem:[#allocation8 + $0xb8] sm:$0xff]
        %v7066 = vld [vmem:[#allocation8 + $0xc0] sm:$0xff]
        %v7067 = vld [vmem:[#allocation8 + $0xc8] sm:$0xff]
        %v7068 = vld [vmem:[#allocation8 + $0xd0] sm:$0xff]
        %v7069 = vld [vmem:[#allocation8 + $0xd8] sm:$0xff]
        %v7070 = vld [vmem:[#allocation8 + $0xe0] sm:$0xff]
        %v7071 = vld [vmem:[#allocation8 + $0xe8] sm:$0xff]
        %v7072 = vld [vmem:[#allocation8 + $0xf0] sm:$0xff]
        %v7073 = vld [vmem:[#allocation8 + $0xf8] sm:$0xff]
        %v7074 = vld [vmem:[#allocation8 + $0x100] sm:$0xff]
        %v7075 = vld [vmem:[#allocation8 + $0x108] sm:$0xff]
        %v7076 = vld [vmem:[#allocation8 + $0x110] sm:$0xff]
        %v7077 = vld [vmem:[#allocation8 + $0x118] sm:$0xff]
        %v7078 = vld [vmem:[#allocation8 + $0x120] sm:$0xff]
        %v7079 = vld [vmem:[#allocation8 + $0x128] sm:$0xff]
        %v7080 = vld [vmem:[#allocation8 + $0x130] sm:$0xff]
        %v7081 = vld [vmem:[#allocation8 + $0x138] sm:$0xff]
        %v7082 = vld [vmem:[#allocation8 + $0x140] sm:$0xff]
        %v7083 = vld [vmem:[#allocation8 + $0x148] sm:$0xff]
        %v7084 = vld [vmem:[#allocation8 + $0x150] sm:$0xff]
        %v7085 = vld [vmem:[#allocation8 + $0x158] sm:$0xff]
        %v7086 = vld [vmem:[#allocation8 + $0x160] sm:$0xff]
        %v7087 = vld [vmem:[#allocation8 + $0x168] sm:$0xff]
        %v7088 = vld [vmem:[#allocation8 + $0x170] sm:$0xff]
        %v7089 = vld [vmem:[#allocation8 + $0x178] sm:$0xff]
        %v7090 = vld [vmem:[#allocation8 + $0x180] sm:$0xff]
        %v7091 = vld [vmem:[#allocation8 + $0x188] sm:$0xff]
        %v7092 = vld [vmem:[#allocation8 + $0x190] sm:$0xff]
        %v7093 = vld [vmem:[#allocation8 + $0x198] sm:$0xff]
        %v7094 = vld [vmem:[#allocation8 + $0x1a0] sm:$0xff]
        %v7095 = vld [vmem:[#allocation8 + $0x1a8] sm:$0xff]
        %v7096 = vld [vmem:[#allocation8 + $0x1b0] sm:$0xff]
        %v7097 = vld [vmem:[#allocation8 + $0x1b8] sm:$0xff]
        %v7098 = vld [vmem:[#allocation8 + $0x1c0] sm:$0xff]
        %v7099 = vld [vmem:[#allocation8 + $0x1c8] sm:$0xff]
        %v7100 = vld [vmem:[#allocation8 + $0x1d0] sm:$0xff]
        %v7101 = vld [vmem:[#allocation8 + $0x1d8] sm:$0xff]
        %v7102 = vld [vmem:[#allocation8 + $0x1e0] sm:$0xff]
        %v7103 = vld [vmem:[#allocation8 + $0x1e8] sm:$0xff]
        %v7104 = vld [vmem:[#allocation8 + $0x1f0] sm:$0xff]
        %v7105 = vld [vmem:[#allocation8 + $0x1f8] sm:$0xff]
        %v7106 = vld [vmem:[#allocation8 + $0x200] sm:$0xff]
        %v7107 = vld [vmem:[#allocation8 + $0x208] sm:$0xff]
        %v7108 = vld [vmem:[#allocation8 + $0x210] sm:$0xff]
        %v7109 = vld [vmem:[#allocation8 + $0x218] sm:$0xff]
        %v7110 = vld [vmem:[#allocation8 + $0x220] sm:$0xff]
        %v7111 = vld [vmem:[#allocation8 + $0x228] sm:$0xff]
        %v7112 = vld [vmem:[#allocation8 + $0x230] sm:$0xff]
        %v7113 = vld [vmem:[#allocation8 + $0x238] sm:$0xff]
        %v7114 = vld [vmem:[#allocation8 + $0x240] sm:$0xff]
        %v7115 = vld [vmem:[#allocation8 + $0x248] sm:$0xff]
        %v7116 = vld [vmem:[#allocation8 + $0x250] sm:$0xff]
        %v7117 = vld [vmem:[#allocation8 + $0x258] sm:$0xff]
        %v7118 = vld [vmem:[#allocation8 + $0x260] sm:$0xff]
        %v7119 = vld [vmem:[#allocation8 + $0x268] sm:$0xff]
        %v7120 = vld [vmem:[#allocation8 + $0x270] sm:$0xff]
        %v7121 = vld [vmem:[#allocation8 + $0x278] sm:$0xff]
        %v7122 = vld [vmem:[#allocation8 + $0x280] sm:$0xff]
        %v7123 = vld [vmem:[#allocation8 + $0x288] sm:$0xff]
        %v7124 = vld [vmem:[#allocation8 + $0x290] sm:$0xff]
        %v7125 = vld [vmem:[#allocation8 + $0x298] sm:$0xff]
        %v7126 = vld [vmem:[#allocation8 + $0x2a0] sm:$0xff]
        %v7127 = vld [vmem:[#allocation8 + $0x2a8] sm:$0xff]
        %v7128 = vld [vmem:[#allocation8 + $0x2b0] sm:$0xff]
        %v7129 = vld [vmem:[#allocation8 + $0x2b8] sm:$0xff]
        %v7130 = vld [vmem:[#allocation8 + $0x2c0] sm:$0xff]
        %v7131 = vld [vmem:[#allocation8 + $0x2c8] sm:$0xff]
        %v7132 = vld [vmem:[#allocation8 + $0x2d0] sm:$0xff]
        %v7133 = vld [vmem:[#allocation8 + $0x2d8] sm:$0xff]
        %v7134 = vld [vmem:[#allocation8 + $0x2e0] sm:$0xff]
        %v7135 = vld [vmem:[#allocation8 + $0x2e8] sm:$0xff]
        %v7136 = vld [vmem:[#allocation8 + $0x2f0] sm:$0xff]
        %v7137 = vld [vmem:[#allocation8 + $0x2f8] sm:$0xff]
        %v7138 = vld [vmem:[#allocation8 + $0x300] sm:$0xff]
        %v7139 = vld [vmem:[#allocation8 + $0x308] sm:$0xff]
        %v7140 = vld [vmem:[#allocation8 + $0x310] sm:$0xff]
        %v7141 = vld [vmem:[#allocation8 + $0x318] sm:$0xff]
        %v7142 = vld [vmem:[#allocation8 + $0x320] sm:$0xff]
        %v7143 = vld [vmem:[#allocation8 + $0x328] sm:$0xff]
        %v7144 = vld [vmem:[#allocation8 + $0x330] sm:$0xff]
        %v7145 = vld [vmem:[#allocation8 + $0x338] sm:$0xff]
        %v7146 = vld [vmem:[#allocation8 + $0x340] sm:$0xff]
        %v7147 = vld [vmem:[#allocation8 + $0x348] sm:$0xff]
        %v7148 = vld [vmem:[#allocation8 + $0x350] sm:$0xff]
        %v7149 = vld [vmem:[#allocation8 + $0x358] sm:$0xff]
        %v7150 = vld [vmem:[#allocation8 + $0x360] sm:$0xff]
        %v7151 = vld [vmem:[#allocation8 + $0x368] sm:$0xff]
        %v7152 = vld [vmem:[#allocation8 + $0x370] sm:$0xff]
        %v7153 = vld [vmem:[#allocation8 + $0x378] sm:$0xff]
        %v7154 = vld [vmem:[#allocation8 + $0x380] sm:$0xff]
        %v7155 = vld [vmem:[#allocation8 + $0x388] sm:$0xff]
        %v7156 = vld [vmem:[#allocation8 + $0x390] sm:$0xff]
        %v7157 = vld [vmem:[#allocation8 + $0x398] sm:$0xff]
        %v7158 = vld [vmem:[#allocation8 + $0x3a0] sm:$0xff]
        %v7159 = vld [vmem:[#allocation8 + $0x3a8] sm:$0xff]
        %v7160 = vld [vmem:[#allocation8 + $0x3b0] sm:$0xff]
        %v7161 = vld [vmem:[#allocation8 + $0x3b8] sm:$0xff]
        %v7162 = vld [vmem:[#allocation8 + $0x3c0] sm:$0xff]
        %v7163 = vld [vmem:[#allocation8 + $0x3c8] sm:$0xff]
        %v7164 = vld [vmem:[#allocation8 + $0x3d0] sm:$0xff]
        %v7165 = vld [vmem:[#allocation8 + $0x3d8] sm:$0xff]
        %v7166 = vld [vmem:[#allocation8 + $0x3e0] sm:$0xff]
        %v7167 = vld [vmem:[#allocation8 + $0x3e8] sm:$0xff]
        %v7168 = vld [vmem:[#allocation8 + $0x3f0] sm:$0xff]
        %v7169 = vld [vmem:[#allocation8 + $0x3f8] sm:$0xff]
        %v7170 = vld [vmem:[#allocation8 + $0x400] sm:$0xff]
        %v7171 = vld [vmem:[#allocation8 + $0x408] sm:$0xff]
        %v7172 = vld [vmem:[#allocation8 + $0x410] sm:$0xff]
        %v7173 = vld [vmem:[#allocation8 + $0x418] sm:$0xff]
        %v7174 = vld [vmem:[#allocation8 + $0x420] sm:$0xff]
        %v7175 = vld [vmem:[#allocation8 + $0x428] sm:$0xff]
        %v7176 = vld [vmem:[#allocation8 + $0x430] sm:$0xff]
        %v7177 = vld [vmem:[#allocation8 + $0x438] sm:$0xff]
        %v7178 = vld [vmem:[#allocation8 + $0x440] sm:$0xff]
        %v7179 = vld [vmem:[#allocation8 + $0x448] sm:$0xff]
        %v7180 = vld [vmem:[#allocation8 + $0x450] sm:$0xff]
        %v7181 = vld [vmem:[#allocation8 + $0x458] sm:$0xff]
        %v7182 = vld [vmem:[#allocation8 + $0x460] sm:$0xff]
        %v7183 = vld [vmem:[#allocation8 + $0x468] sm:$0xff]
        %v7184 = vld [vmem:[#allocation8 + $0x470] sm:$0xff]
        %v7185 = vld [vmem:[#allocation8 + $0x478] sm:$0xff]
        %v7186 = vld [vmem:[#allocation8 + $0x480] sm:$0xff]
        %v7187 = vld [vmem:[#allocation8 + $0x488] sm:$0xff]
        %v7188 = vld [vmem:[#allocation8 + $0x490] sm:$0xff]
        %v7189 = vld [vmem:[#allocation8 + $0x498] sm:$0xff]
        %v7190 = vld [vmem:[#allocation8 + $0x4a0] sm:$0xff]
        %v7191 = vld [vmem:[#allocation8 + $0x4a8] sm:$0xff]
        %v7192 = vld [vmem:[#allocation8 + $0x4b0] sm:$0xff]
        %v7193 = vld [vmem:[#allocation8 + $0x4b8] sm:$0xff]
        %v7194 = vld [vmem:[#allocation8 + $0x4c0] sm:$0xff]
        %v7195 = vld [vmem:[#allocation8 + $0x4c8] sm:$0xff]
        %v7196 = vld [vmem:[#allocation8 + $0x4d0] sm:$0xff]
        %v7197 = vld [vmem:[#allocation8 + $0x4d8] sm:$0xff]
        %v7198 = vld [vmem:[#allocation8 + $0x4e0] sm:$0xff]
        %v7199 = vld [vmem:[#allocation8 + $0x4e8] sm:$0xff]
        %v7200 = vld [vmem:[#allocation8 + $0x4f0] sm:$0xff]
        %v7201 = vld [vmem:[#allocation8 + $0x4f8] sm:$0xff]
        %v7202 = vld [vmem:[#allocation8 + $0x500] sm:$0xff]
        %v7203 = vld [vmem:[#allocation8 + $0x508] sm:$0xff]
        %v7204 = vld [vmem:[#allocation8 + $0x510] sm:$0xff]
        %v7205 = vld [vmem:[#allocation8 + $0x518] sm:$0xff]
        %v7206 = vld [vmem:[#allocation8 + $0x520] sm:$0xff]
        %v7207 = vld [vmem:[#allocation8 + $0x528] sm:$0xff]
        %v7208 = vld [vmem:[#allocation8 + $0x530] sm:$0xff]
        %v7209 = vld [vmem:[#allocation8 + $0x538] sm:$0xff]
        %v7210 = vld [vmem:[#allocation8 + $0x540] sm:$0xff]
        %v7211 = vld [vmem:[#allocation8 + $0x548] sm:$0xff]
        %v7212 = vld [vmem:[#allocation8 + $0x550] sm:$0xff]
        %v7213 = vld [vmem:[#allocation8 + $0x558] sm:$0xff]
        %v7214 = vld [vmem:[#allocation8 + $0x560] sm:$0xff]
        %v7215 = vld [vmem:[#allocation8 + $0x568] sm:$0xff]
        %v7216 = vld [vmem:[#allocation8 + $0x570] sm:$0xff]
        %v7217 = vld [vmem:[#allocation8 + $0x578] sm:$0xff]
        %v7218 = vld [vmem:[#allocation8 + $0x580] sm:$0xff]
        %v7219 = vld [vmem:[#allocation8 + $0x588] sm:$0xff]
        %v7220 = vld [vmem:[#allocation8 + $0x590] sm:$0xff]
        %v7221 = vld [vmem:[#allocation8 + $0x598] sm:$0xff]
        %v7222 = vld [vmem:[#allocation8 + $0x5a0] sm:$0xff]
        %v7223 = vld [vmem:[#allocation8 + $0x5a8] sm:$0xff]
        %v7224 = vld [vmem:[#allocation8 + $0x5b0] sm:$0xff]
        %v7225 = vld [vmem:[#allocation8 + $0x5b8] sm:$0xff]
        %v7226 = vld [vmem:[#allocation8 + $0x5c0] sm:$0xff]
        %v7227 = vld [vmem:[#allocation8 + $0x5c8] sm:$0xff]
        %v7228 = vld [vmem:[#allocation8 + $0x5d0] sm:$0xff]
        %v7229 = vld [vmem:[#allocation8 + $0x5d8] sm:$0xff]
        %v7230 = vld [vmem:[#allocation8 + $0x5e0] sm:$0xff]
        %v7231 = vld [vmem:[#allocation8 + $0x5e8] sm:$0xff]
        %v7232 = vld [vmem:[#allocation8 + $0x5f0] sm:$0xff]
        %v7233 = vld [vmem:[#allocation8 + $0x5f8] sm:$0xff]
        %v7234 = vld [vmem:[#allocation8 + $0x600] sm:$0xff]
        %v7235 = vld [vmem:[#allocation8 + $0x608] sm:$0xff]
        %v7236 = vld [vmem:[#allocation8 + $0x610] sm:$0xff]
        %v7237 = vld [vmem:[#allocation8 + $0x618] sm:$0xff]
        %v7238 = vld [vmem:[#allocation8 + $0x620] sm:$0xff]
        %v7239 = vld [vmem:[#allocation8 + $0x628] sm:$0xff]
        %v7240 = vld [vmem:[#allocation8 + $0x630] sm:$0xff]
        %v7241 = vld [vmem:[#allocation8 + $0x638] sm:$0xff]
        %v7242 = vld [vmem:[#allocation8 + $0x640] sm:$0xff]
        %v7243 = vld [vmem:[#allocation8 + $0x648] sm:$0xff]
        %v7244 = vld [vmem:[#allocation8 + $0x650] sm:$0xff]
        %v7245 = vld [vmem:[#allocation8 + $0x658] sm:$0xff]
        %v7246 = vld [vmem:[#allocation8 + $0x660] sm:$0xff]
        %v7247 = vld [vmem:[#allocation8 + $0x668] sm:$0xff]
        %v7248 = vld [vmem:[#allocation8 + $0x670] sm:$0xff]
        %v7249 = vld [vmem:[#allocation8 + $0x678] sm:$0xff]
        %v7250 = vld [vmem:[#allocation8 + $0x680] sm:$0xff]
        %v7251 = vld [vmem:[#allocation8 + $0x688] sm:$0xff]
        %v7252 = vld [vmem:[#allocation8 + $0x690] sm:$0xff]
        %v7253 = vld [vmem:[#allocation8 + $0x698] sm:$0xff]
        %v7254 = vld [vmem:[#allocation8 + $0x6a0] sm:$0xff]
        %v7255 = vld [vmem:[#allocation8 + $0x6a8] sm:$0xff]
        %v7256 = vld [vmem:[#allocation8 + $0x6b0] sm:$0xff]
        %v7257 = vld [vmem:[#allocation8 + $0x6b8] sm:$0xff]
        %v7258 = vld [vmem:[#allocation8 + $0x6c0] sm:$0xff]
        %v7259 = vld [vmem:[#allocation8 + $0x6c8] sm:$0xff]
        %v7260 = vld [vmem:[#allocation8 + $0x6d0] sm:$0xff]
        %v7261 = vld [vmem:[#allocation8 + $0x6d8] sm:$0xff]
        %v7262 = vld [vmem:[#allocation8 + $0x6e0] sm:$0xff]
        %v7263 = vld [vmem:[#allocation8 + $0x6e8] sm:$0xff]
        %v7264 = vld [vmem:[#allocation8 + $0x6f0] sm:$0xff]
        %v7265 = vld [vmem:[#allocation8 + $0x6f8] sm:$0xff]
        %v7266 = vld [vmem:[#allocation8 + $0x700] sm:$0xff]
        %v7267 = vld [vmem:[#allocation8 + $0x708] sm:$0xff]
        %v7268 = vld [vmem:[#allocation8 + $0x710] sm:$0xff]
        %v7269 = vld [vmem:[#allocation8 + $0x718] sm:$0xff]
        %v7270 = vld [vmem:[#allocation8 + $0x720] sm:$0xff]
        %v7271 = vld [vmem:[#allocation8 + $0x728] sm:$0xff]
        %v7272 = vld [vmem:[#allocation8 + $0x730] sm:$0xff]
        %v7273 = vld [vmem:[#allocation8 + $0x738] sm:$0xff]
        %v7274 = vld [vmem:[#allocation8 + $0x740] sm:$0xff]
        %v7275 = vld [vmem:[#allocation8 + $0x748] sm:$0xff]
        %v7276 = vld [vmem:[#allocation8 + $0x750] sm:$0xff]
        %v7277 = vld [vmem:[#allocation8 + $0x758] sm:$0xff]
        %v7278 = vld [vmem:[#allocation8 + $0x760] sm:$0xff]
        %v7279 = vld [vmem:[#allocation8 + $0x768] sm:$0xff]
        %v7280 = vld [vmem:[#allocation8 + $0x770] sm:$0xff]
        %v7281 = vld [vmem:[#allocation8 + $0x778] sm:$0xff]
        %v7282 = vld [vmem:[#allocation8 + $0x780] sm:$0xff]
        %v7283 = vld [vmem:[#allocation8 + $0x788] sm:$0xff]
        %v7284 = vld [vmem:[#allocation8 + $0x790] sm:$0xff]
        %v7285 = vld [vmem:[#allocation8 + $0x798] sm:$0xff]
        %v7286 = vld [vmem:[#allocation8 + $0x7a0] sm:$0xff]
        %v7287 = vld [vmem:[#allocation8 + $0x7a8] sm:$0xff]
        %v7288 = vld [vmem:[#allocation8 + $0x7b0] sm:$0xff]
        %v7289 = vld [vmem:[#allocation8 + $0x7b8] sm:$0xff]
        %v7290 = vld [vmem:[#allocation8 + $0x7c0] sm:$0xff]
        %v7291 = vld [vmem:[#allocation8 + $0x7c8] sm:$0xff]
        %v7292 = vld [vmem:[#allocation8 + $0x7d0] sm:$0xff]
        %v7293 = vld [vmem:[#allocation8 + $0x7d8] sm:$0xff]
        %v7294 = vld [vmem:[#allocation8 + $0x7e0] sm:$0xff]
        %v7295 = vld [vmem:[#allocation8 + $0x7e8] sm:$0xff]
        %v7296 = vld [vmem:[#allocation8 + $0x7f0] sm:$0xff]
        %v7297 = vld [vmem:[#allocation8 + $0x7f8] sm:$0xff]
        %v7298 = vld [vmem:[#allocation10] sm:$0xf]
        %v7300 = vlaneseq
        %v7301 = vshrl.u32 %v7300, 7
        %v7302 = vsub.s32 0, %v7301
        %v7303 = vrot.slane %v7298, %v7302
        %v7304 = vlaneseq
        %v7305 = vshrl.u32 %v7304, 7
        %v7306 = vsub.s32 1, %v7305
        %v7307 = vrot.slane %v7298, %v7306
        %v7308 = vlaneseq
        %v7309 = vshrl.u32 %v7308, 7
        %v7310 = vsub.s32 2, %v7309
        %v7311 = vrot.slane %v7298, %v7310
        %v7312 = vlaneseq
        %v7313 = vshrl.u32 %v7312, 7
        %v7314 = vsub.s32 3, %v7313
        %v7315 = vrot.slane %v7298, %v7314
        %v7576 = vunpack.c.l.b16 %v7042
        %v7577 = vunpack.c.h.b16 %v7042
        %v7578 = vunpack.c.l.b16 %v7043
        %v7579 = vunpack.c.h.b16 %v7043
        %v7580 = vunpack.c.l.b16 %v7044
        %v7581 = vunpack.c.h.b16 %v7044
        %v7582 = vunpack.c.l.b16 %v7045
        %v7583 = vunpack.c.h.b16 %v7045
        %v7584 = vunpack.c.l.b16 %v7046
        %v7585 = vunpack.c.h.b16 %v7046
        %v7586 = vunpack.c.l.b16 %v7047
        %v7587 = vunpack.c.h.b16 %v7047
        %v7588 = vunpack.c.l.b16 %v7048
        %v7589 = vunpack.c.h.b16 %v7048
        %v7590 = vunpack.c.l.b16 %v7049
        %v7591 = vunpack.c.h.b16 %v7049
        %v7592 = vunpack.c.l.b16 %v7050
        %v7593 = vunpack.c.h.b16 %v7050
        %v7594 = vunpack.c.l.b16 %v7051
        %v7595 = vunpack.c.h.b16 %v7051
        %v7596 = vunpack.c.l.b16 %v7052
        %v7597 = vunpack.c.h.b16 %v7052
        %v7598 = vunpack.c.l.b16 %v7053
        %v7599 = vunpack.c.h.b16 %v7053
        %v7600 = vunpack.c.l.b16 %v7054
        %v7601 = vunpack.c.h.b16 %v7054
        %v7602 = vunpack.c.l.b16 %v7055
        %v7603 = vunpack.c.h.b16 %v7055
        %v7604 = vunpack.c.l.b16 %v7056
        %v7605 = vunpack.c.h.b16 %v7056
        %v7606 = vunpack.c.l.b16 %v7057
        %v7607 = vunpack.c.h.b16 %v7057
        %v7608 = vunpack.c.l.b16 %v7058
        %v7609 = vunpack.c.h.b16 %v7058
        %v7610 = vunpack.c.l.b16 %v7059
        %v7611 = vunpack.c.h.b16 %v7059
        %v7612 = vunpack.c.l.b16 %v7060
        %v7613 = vunpack.c.h.b16 %v7060
        %v7614 = vunpack.c.l.b16 %v7061
        %v7615 = vunpack.c.h.b16 %v7061
        %v7616 = vunpack.c.l.b16 %v7062
        %v7617 = vunpack.c.h.b16 %v7062
        %v7618 = vunpack.c.l.b16 %v7063
        %v7619 = vunpack.c.h.b16 %v7063
        %v7620 = vunpack.c.l.b16 %v7064
        %v7621 = vunpack.c.h.b16 %v7064
        %v7622 = vunpack.c.l.b16 %v7065
        %v7623 = vunpack.c.h.b16 %v7065
        %v7624 = vunpack.c.l.b16 %v7066
        %v7625 = vunpack.c.h.b16 %v7066
        %v7626 = vunpack.c.l.b16 %v7067
        %v7627 = vunpack.c.h.b16 %v7067
        %v7628 = vunpack.c.l.b16 %v7068
        %v7629 = vunpack.c.h.b16 %v7068
        %v7630 = vunpack.c.l.b16 %v7069
        %v7631 = vunpack.c.h.b16 %v7069
        %v7632 = vunpack.c.l.b16 %v7070
        %v7633 = vunpack.c.h.b16 %v7070
        %v7634 = vunpack.c.l.b16 %v7071
        %v7635 = vunpack.c.h.b16 %v7071
        %v7636 = vunpack.c.l.b16 %v7072
        %v7637 = vunpack.c.h.b16 %v7072
        %v7638 = vunpack.c.l.b16 %v7073
        %v7639 = vunpack.c.h.b16 %v7073
        %v7640 = vunpack.c.l.b16 %v7074
        %v7641 = vunpack.c.h.b16 %v7074
        %v7642 = vunpack.c.l.b16 %v7075
        %v7643 = vunpack.c.h.b16 %v7075
        %v7644 = vunpack.c.l.b16 %v7076
        %v7645 = vunpack.c.h.b16 %v7076
        %v7646 = vunpack.c.l.b16 %v7077
        %v7647 = vunpack.c.h.b16 %v7077
        %v7648 = vunpack.c.l.b16 %v7078
        %v7649 = vunpack.c.h.b16 %v7078
        %v7650 = vunpack.c.l.b16 %v7079
        %v7651 = vunpack.c.h.b16 %v7079
        %v7652 = vunpack.c.l.b16 %v7080
        %v7653 = vunpack.c.h.b16 %v7080
        %v7654 = vunpack.c.l.b16 %v7081
        %v7655 = vunpack.c.h.b16 %v7081
        %v7656 = vunpack.c.l.b16 %v7082
        %v7657 = vunpack.c.h.b16 %v7082
        %v7658 = vunpack.c.l.b16 %v7083
        %v7659 = vunpack.c.h.b16 %v7083
        %v7660 = vunpack.c.l.b16 %v7084
        %v7661 = vunpack.c.h.b16 %v7084
        %v7662 = vunpack.c.l.b16 %v7085
        %v7663 = vunpack.c.h.b16 %v7085
        %v7664 = vunpack.c.l.b16 %v7086
        %v7665 = vunpack.c.h.b16 %v7086
        %v7666 = vunpack.c.l.b16 %v7087
        %v7667 = vunpack.c.h.b16 %v7087
        %v7668 = vunpack.c.l.b16 %v7088
        %v7669 = vunpack.c.h.b16 %v7088
        %v7670 = vunpack.c.l.b16 %v7089
        %v7671 = vunpack.c.h.b16 %v7089
        %v7672 = vunpack.c.l.b16 %v7090
        %v7673 = vunpack.c.h.b16 %v7090
        %v7674 = vunpack.c.l.b16 %v7091
        %v7675 = vunpack.c.h.b16 %v7091
        %v7676 = vunpack.c.l.b16 %v7092
        %v7677 = vunpack.c.h.b16 %v7092
        %v7678 = vunpack.c.l.b16 %v7093
        %v7679 = vunpack.c.h.b16 %v7093
        %v7680 = vunpack.c.l.b16 %v7094
        %v7681 = vunpack.c.h.b16 %v7094
        %v7682 = vunpack.c.l.b16 %v7095
        %v7683 = vunpack.c.h.b16 %v7095
        %v7684 = vunpack.c.l.b16 %v7096
        %v7685 = vunpack.c.h.b16 %v7096
        %v7686 = vunpack.c.l.b16 %v7097
        %v7687 = vunpack.c.h.b16 %v7097
        %v7688 = vunpack.c.l.b16 %v7098
        %v7689 = vunpack.c.h.b16 %v7098
        %v7690 = vunpack.c.l.b16 %v7099
        %v7691 = vunpack.c.h.b16 %v7099
        %v7692 = vunpack.c.l.b16 %v7100
        %v7693 = vunpack.c.h.b16 %v7100
        %v7694 = vunpack.c.l.b16 %v7101
        %v7695 = vunpack.c.h.b16 %v7101
        %v7696 = vunpack.c.l.b16 %v7102
        %v7697 = vunpack.c.h.b16 %v7102
        %v7698 = vunpack.c.l.b16 %v7103
        %v7699 = vunpack.c.h.b16 %v7103
        %v7700 = vunpack.c.l.b16 %v7104
        %v7701 = vunpack.c.h.b16 %v7104
        %v7702 = vunpack.c.l.b16 %v7105
        %v7703 = vunpack.c.h.b16 %v7105
        %v7704 = vunpack.c.l.b16 %v7106
        %v7705 = vunpack.c.h.b16 %v7106
        %v7706 = vunpack.c.l.b16 %v7107
        %v7707 = vunpack.c.h.b16 %v7107
        %v7708 = vunpack.c.l.b16 %v7108
        %v7709 = vunpack.c.h.b16 %v7108
        %v7710 = vunpack.c.l.b16 %v7109
        %v7711 = vunpack.c.h.b16 %v7109
        %v7712 = vunpack.c.l.b16 %v7110
        %v7713 = vunpack.c.h.b16 %v7110
        %v7714 = vunpack.c.l.b16 %v7111
        %v7715 = vunpack.c.h.b16 %v7111
        %v7716 = vunpack.c.l.b16 %v7112
        %v7717 = vunpack.c.h.b16 %v7112
        %v7718 = vunpack.c.l.b16 %v7113
        %v7719 = vunpack.c.h.b16 %v7113
        %v7720 = vunpack.c.l.b16 %v7114
        %v7721 = vunpack.c.h.b16 %v7114
        %v7722 = vunpack.c.l.b16 %v7115
        %v7723 = vunpack.c.h.b16 %v7115
        %v7724 = vunpack.c.l.b16 %v7116
        %v7725 = vunpack.c.h.b16 %v7116
        %v7726 = vunpack.c.l.b16 %v7117
        %v7727 = vunpack.c.h.b16 %v7117
        %v7728 = vunpack.c.l.b16 %v7118
        %v7729 = vunpack.c.h.b16 %v7118
        %v7730 = vunpack.c.l.b16 %v7119
        %v7731 = vunpack.c.h.b16 %v7119
        %v7732 = vunpack.c.l.b16 %v7120
        %v7733 = vunpack.c.h.b16 %v7120
        %v7734 = vunpack.c.l.b16 %v7121
        %v7735 = vunpack.c.h.b16 %v7121
        %v7736 = vunpack.c.l.b16 %v7122
        %v7737 = vunpack.c.h.b16 %v7122
        %v7738 = vunpack.c.l.b16 %v7123
        %v7739 = vunpack.c.h.b16 %v7123
        %v7740 = vunpack.c.l.b16 %v7124
        %v7741 = vunpack.c.h.b16 %v7124
        %v7742 = vunpack.c.l.b16 %v7125
        %v7743 = vunpack.c.h.b16 %v7125
        %v7744 = vunpack.c.l.b16 %v7126
        %v7745 = vunpack.c.h.b16 %v7126
        %v7746 = vunpack.c.l.b16 %v7127
        %v7747 = vunpack.c.h.b16 %v7127
        %v7748 = vunpack.c.l.b16 %v7128
        %v7749 = vunpack.c.h.b16 %v7128
        %v7750 = vunpack.c.l.b16 %v7129
        %v7751 = vunpack.c.h.b16 %v7129
        %v7752 = vunpack.c.l.b16 %v7130
        %v7753 = vunpack.c.h.b16 %v7130
        %v7754 = vunpack.c.l.b16 %v7131
        %v7755 = vunpack.c.h.b16 %v7131
        %v7756 = vunpack.c.l.b16 %v7132
        %v7757 = vunpack.c.h.b16 %v7132
        %v7758 = vunpack.c.l.b16 %v7133
        %v7759 = vunpack.c.h.b16 %v7133
        %v7760 = vunpack.c.l.b16 %v7134
        %v7761 = vunpack.c.h.b16 %v7134
        %v7762 = vunpack.c.l.b16 %v7135
        %v7763 = vunpack.c.h.b16 %v7135
        %v7764 = vunpack.c.l.b16 %v7136
        %v7765 = vunpack.c.h.b16 %v7136
        %v7766 = vunpack.c.l.b16 %v7137
        %v7767 = vunpack.c.h.b16 %v7137
        %v7768 = vunpack.c.l.b16 %v7138
        %v7769 = vunpack.c.h.b16 %v7138
        %v7770 = vunpack.c.l.b16 %v7139
        %v7771 = vunpack.c.h.b16 %v7139
        %v7772 = vunpack.c.l.b16 %v7140
        %v7773 = vunpack.c.h.b16 %v7140
        %v7774 = vunpack.c.l.b16 %v7141
        %v7775 = vunpack.c.h.b16 %v7141
        %v7776 = vunpack.c.l.b16 %v7142
        %v7777 = vunpack.c.h.b16 %v7142
        %v7778 = vunpack.c.l.b16 %v7143
        %v7779 = vunpack.c.h.b16 %v7143
        %v7780 = vunpack.c.l.b16 %v7144
        %v7781 = vunpack.c.h.b16 %v7144
        %v7782 = vunpack.c.l.b16 %v7145
        %v7783 = vunpack.c.h.b16 %v7145
        %v7784 = vunpack.c.l.b16 %v7146
        %v7785 = vunpack.c.h.b16 %v7146
        %v7786 = vunpack.c.l.b16 %v7147
        %v7787 = vunpack.c.h.b16 %v7147
        %v7788 = vunpack.c.l.b16 %v7148
        %v7789 = vunpack.c.h.b16 %v7148
        %v7790 = vunpack.c.l.b16 %v7149
        %v7791 = vunpack.c.h.b16 %v7149
        %v7792 = vunpack.c.l.b16 %v7150
        %v7793 = vunpack.c.h.b16 %v7150
        %v7794 = vunpack.c.l.b16 %v7151
        %v7795 = vunpack.c.h.b16 %v7151
        %v7796 = vunpack.c.l.b16 %v7152
        %v7797 = vunpack.c.h.b16 %v7152
        %v7798 = vunpack.c.l.b16 %v7153
        %v7799 = vunpack.c.h.b16 %v7153
        %v7800 = vunpack.c.l.b16 %v7154
        %v7801 = vunpack.c.h.b16 %v7154
        %v7802 = vunpack.c.l.b16 %v7155
        %v7803 = vunpack.c.h.b16 %v7155
        %v7804 = vunpack.c.l.b16 %v7156
        %v7805 = vunpack.c.h.b16 %v7156
        %v7806 = vunpack.c.l.b16 %v7157
        %v7807 = vunpack.c.h.b16 %v7157
        %v7808 = vunpack.c.l.b16 %v7158
        %v7809 = vunpack.c.h.b16 %v7158
        %v7810 = vunpack.c.l.b16 %v7159
        %v7811 = vunpack.c.h.b16 %v7159
        %v7812 = vunpack.c.l.b16 %v7160
        %v7813 = vunpack.c.h.b16 %v7160
        %v7814 = vunpack.c.l.b16 %v7161
        %v7815 = vunpack.c.h.b16 %v7161
        %v7816 = vunpack.c.l.b16 %v7162
        %v7817 = vunpack.c.h.b16 %v7162
        %v7818 = vunpack.c.l.b16 %v7163
        %v7819 = vunpack.c.h.b16 %v7163
        %v7820 = vunpack.c.l.b16 %v7164
        %v7821 = vunpack.c.h.b16 %v7164
        %v7822 = vunpack.c.l.b16 %v7165
        %v7823 = vunpack.c.h.b16 %v7165
        %v7824 = vunpack.c.l.b16 %v7166
        %v7825 = vunpack.c.h.b16 %v7166
        %v7826 = vunpack.c.l.b16 %v7167
        %v7827 = vunpack.c.h.b16 %v7167
        %v7828 = vunpack.c.l.b16 %v7168
        %v7829 = vunpack.c.h.b16 %v7168
        %v7830 = vunpack.c.l.b16 %v7169
        %v7831 = vunpack.c.h.b16 %v7169
        %v7832 = vunpack.c.l.b16 %v7170
        %v7833 = vunpack.c.h.b16 %v7170
        %v7834 = vunpack.c.l.b16 %v7171
        %v7835 = vunpack.c.h.b16 %v7171
        %v7836 = vunpack.c.l.b16 %v7172
        %v7837 = vunpack.c.h.b16 %v7172
        %v7838 = vunpack.c.l.b16 %v7173
        %v7839 = vunpack.c.h.b16 %v7173
        %v7840 = vunpack.c.l.b16 %v7174
        %v7841 = vunpack.c.h.b16 %v7174
        %v7842 = vunpack.c.l.b16 %v7175
        %v7843 = vunpack.c.h.b16 %v7175
        %v7844 = vunpack.c.l.b16 %v7176
        %v7845 = vunpack.c.h.b16 %v7176
        %v7846 = vunpack.c.l.b16 %v7177
        %v7847 = vunpack.c.h.b16 %v7177
        %v7848 = vunpack.c.l.b16 %v7178
        %v7849 = vunpack.c.h.b16 %v7178
        %v7850 = vunpack.c.l.b16 %v7179
        %v7851 = vunpack.c.h.b16 %v7179
        %v7852 = vunpack.c.l.b16 %v7180
        %v7853 = vunpack.c.h.b16 %v7180
        %v7854 = vunpack.c.l.b16 %v7181
        %v7855 = vunpack.c.h.b16 %v7181
        %v7856 = vunpack.c.l.b16 %v7182
        %v7857 = vunpack.c.h.b16 %v7182
        %v7858 = vunpack.c.l.b16 %v7183
        %v7859 = vunpack.c.h.b16 %v7183
        %v7860 = vunpack.c.l.b16 %v7184
        %v7861 = vunpack.c.h.b16 %v7184
        %v7862 = vunpack.c.l.b16 %v7185
        %v7863 = vunpack.c.h.b16 %v7185
        %v7864 = vunpack.c.l.b16 %v7186
        %v7865 = vunpack.c.h.b16 %v7186
        %v7866 = vunpack.c.l.b16 %v7187
        %v7867 = vunpack.c.h.b16 %v7187
        %v7868 = vunpack.c.l.b16 %v7188
        %v7869 = vunpack.c.h.b16 %v7188
        %v7870 = vunpack.c.l.b16 %v7189
        %v7871 = vunpack.c.h.b16 %v7189
        %v7872 = vunpack.c.l.b16 %v7190
        %v7873 = vunpack.c.h.b16 %v7190
        %v7874 = vunpack.c.l.b16 %v7191
        %v7875 = vunpack.c.h.b16 %v7191
        %v7876 = vunpack.c.l.b16 %v7192
        %v7877 = vunpack.c.h.b16 %v7192
        %v7878 = vunpack.c.l.b16 %v7193
        %v7879 = vunpack.c.h.b16 %v7193
        %v7880 = vunpack.c.l.b16 %v7194
        %v7881 = vunpack.c.h.b16 %v7194
        %v7882 = vunpack.c.l.b16 %v7195
        %v7883 = vunpack.c.h.b16 %v7195
        %v7884 = vunpack.c.l.b16 %v7196
        %v7885 = vunpack.c.h.b16 %v7196
        %v7886 = vunpack.c.l.b16 %v7197
        %v7887 = vunpack.c.h.b16 %v7197
        %v7888 = vunpack.c.l.b16 %v7198
        %v7889 = vunpack.c.h.b16 %v7198
        %v7890 = vunpack.c.l.b16 %v7199
        %v7891 = vunpack.c.h.b16 %v7199
        %v7892 = vunpack.c.l.b16 %v7200
        %v7893 = vunpack.c.h.b16 %v7200
        %v7894 = vunpack.c.l.b16 %v7201
        %v7895 = vunpack.c.h.b16 %v7201
        %v7896 = vunpack.c.l.b16 %v7202
        %v7897 = vunpack.c.h.b16 %v7202
        %v7898 = vunpack.c.l.b16 %v7203
        %v7899 = vunpack.c.h.b16 %v7203
        %v7900 = vunpack.c.l.b16 %v7204
        %v7901 = vunpack.c.h.b16 %v7204
        %v7902 = vunpack.c.l.b16 %v7205
        %v7903 = vunpack.c.h.b16 %v7205
        %v7904 = vunpack.c.l.b16 %v7206
        %v7905 = vunpack.c.h.b16 %v7206
        %v7906 = vunpack.c.l.b16 %v7207
        %v7907 = vunpack.c.h.b16 %v7207
        %v7908 = vunpack.c.l.b16 %v7208
        %v7909 = vunpack.c.h.b16 %v7208
        %v7910 = vunpack.c.l.b16 %v7209
        %v7911 = vunpack.c.h.b16 %v7209
        %v7912 = vunpack.c.l.b16 %v7210
        %v7913 = vunpack.c.h.b16 %v7210
        %v7914 = vunpack.c.l.b16 %v7211
        %v7915 = vunpack.c.h.b16 %v7211
        %v7916 = vunpack.c.l.b16 %v7212
        %v7917 = vunpack.c.h.b16 %v7212
        %v7918 = vunpack.c.l.b16 %v7213
        %v7919 = vunpack.c.h.b16 %v7213
        %v7920 = vunpack.c.l.b16 %v7214
        %v7921 = vunpack.c.h.b16 %v7214
        %v7922 = vunpack.c.l.b16 %v7215
        %v7923 = vunpack.c.h.b16 %v7215
        %v7924 = vunpack.c.l.b16 %v7216
        %v7925 = vunpack.c.h.b16 %v7216
        %v7926 = vunpack.c.l.b16 %v7217
        %v7927 = vunpack.c.h.b16 %v7217
        %v7928 = vunpack.c.l.b16 %v7218
        %v7929 = vunpack.c.h.b16 %v7218
        %v7930 = vunpack.c.l.b16 %v7219
        %v7931 = vunpack.c.h.b16 %v7219
        %v7932 = vunpack.c.l.b16 %v7220
        %v7933 = vunpack.c.h.b16 %v7220
        %v7934 = vunpack.c.l.b16 %v7221
        %v7935 = vunpack.c.h.b16 %v7221
        %v7936 = vunpack.c.l.b16 %v7222
        %v7937 = vunpack.c.h.b16 %v7222
        %v7938 = vunpack.c.l.b16 %v7223
        %v7939 = vunpack.c.h.b16 %v7223
        %v7940 = vunpack.c.l.b16 %v7224
        %v7941 = vunpack.c.h.b16 %v7224
        %v7942 = vunpack.c.l.b16 %v7225
        %v7943 = vunpack.c.h.b16 %v7225
        %v7944 = vunpack.c.l.b16 %v7226
        %v7945 = vunpack.c.h.b16 %v7226
        %v7946 = vunpack.c.l.b16 %v7227
        %v7947 = vunpack.c.h.b16 %v7227
        %v7948 = vunpack.c.l.b16 %v7228
        %v7949 = vunpack.c.h.b16 %v7228
        %v7950 = vunpack.c.l.b16 %v7229
        %v7951 = vunpack.c.h.b16 %v7229
        %v7952 = vunpack.c.l.b16 %v7230
        %v7953 = vunpack.c.h.b16 %v7230
        %v7954 = vunpack.c.l.b16 %v7231
        %v7955 = vunpack.c.h.b16 %v7231
        %v7956 = vunpack.c.l.b16 %v7232
        %v7957 = vunpack.c.h.b16 %v7232
        %v7958 = vunpack.c.l.b16 %v7233
        %v7959 = vunpack.c.h.b16 %v7233
        %v7960 = vunpack.c.l.b16 %v7234
        %v7961 = vunpack.c.h.b16 %v7234
        %v7962 = vunpack.c.l.b16 %v7235
        %v7963 = vunpack.c.h.b16 %v7235
        %v7964 = vunpack.c.l.b16 %v7236
        %v7965 = vunpack.c.h.b16 %v7236
        %v7966 = vunpack.c.l.b16 %v7237
        %v7967 = vunpack.c.h.b16 %v7237
        %v7968 = vunpack.c.l.b16 %v7238
        %v7969 = vunpack.c.h.b16 %v7238
        %v7970 = vunpack.c.l.b16 %v7239
        %v7971 = vunpack.c.h.b16 %v7239
        %v7972 = vunpack.c.l.b16 %v7240
        %v7973 = vunpack.c.h.b16 %v7240
        %v7974 = vunpack.c.l.b16 %v7241
        %v7975 = vunpack.c.h.b16 %v7241
        %v7976 = vunpack.c.l.b16 %v7242
        %v7977 = vunpack.c.h.b16 %v7242
        %v7978 = vunpack.c.l.b16 %v7243
        %v7979 = vunpack.c.h.b16 %v7243
        %v7980 = vunpack.c.l.b16 %v7244
        %v7981 = vunpack.c.h.b16 %v7244
        %v7982 = vunpack.c.l.b16 %v7245
        %v7983 = vunpack.c.h.b16 %v7245
        %v7984 = vunpack.c.l.b16 %v7246
        %v7985 = vunpack.c.h.b16 %v7246
        %v7986 = vunpack.c.l.b16 %v7247
        %v7987 = vunpack.c.h.b16 %v7247
        %v7988 = vunpack.c.l.b16 %v7248
        %v7989 = vunpack.c.h.b16 %v7248
        %v7990 = vunpack.c.l.b16 %v7249
        %v7991 = vunpack.c.h.b16 %v7249
        %v7992 = vunpack.c.l.b16 %v7250
        %v7993 = vunpack.c.h.b16 %v7250
        %v7994 = vunpack.c.l.b16 %v7251
        %v7995 = vunpack.c.h.b16 %v7251
        %v7996 = vunpack.c.l.b16 %v7252
        %v7997 = vunpack.c.h.b16 %v7252
        %v7998 = vunpack.c.l.b16 %v7253
        %v7999 = vunpack.c.h.b16 %v7253
        %v8000 = vunpack.c.l.b16 %v7254
        %v8001 = vunpack.c.h.b16 %v7254
        %v8002 = vunpack.c.l.b16 %v7255
        %v8003 = vunpack.c.h.b16 %v7255
        %v8004 = vunpack.c.l.b16 %v7256
        %v8005 = vunpack.c.h.b16 %v7256
        %v8006 = vunpack.c.l.b16 %v7257
        %v8007 = vunpack.c.h.b16 %v7257
        %v8008 = vunpack.c.l.b16 %v7258
        %v8009 = vunpack.c.h.b16 %v7258
        %v8010 = vunpack.c.l.b16 %v7259
        %v8011 = vunpack.c.h.b16 %v7259
        %v8012 = vunpack.c.l.b16 %v7260
        %v8013 = vunpack.c.h.b16 %v7260
        %v8014 = vunpack.c.l.b16 %v7261
        %v8015 = vunpack.c.h.b16 %v7261
        %v8016 = vunpack.c.l.b16 %v7262
        %v8017 = vunpack.c.h.b16 %v7262
        %v8018 = vunpack.c.l.b16 %v7263
        %v8019 = vunpack.c.h.b16 %v7263
        %v8020 = vunpack.c.l.b16 %v7264
        %v8021 = vunpack.c.h.b16 %v7264
        %v8022 = vunpack.c.l.b16 %v7265
        %v8023 = vunpack.c.h.b16 %v7265
        %v8024 = vunpack.c.l.b16 %v7266
        %v8025 = vunpack.c.h.b16 %v7266
        %v8026 = vunpack.c.l.b16 %v7267
        %v8027 = vunpack.c.h.b16 %v7267
        %v8028 = vunpack.c.l.b16 %v7268
        %v8029 = vunpack.c.h.b16 %v7268
        %v8030 = vunpack.c.l.b16 %v7269
        %v8031 = vunpack.c.h.b16 %v7269
        %v8032 = vunpack.c.l.b16 %v7270
        %v8033 = vunpack.c.h.b16 %v7270
        %v8034 = vunpack.c.l.b16 %v7271
        %v8035 = vunpack.c.h.b16 %v7271
        %v8036 = vunpack.c.l.b16 %v7272
        %v8037 = vunpack.c.h.b16 %v7272
        %v8038 = vunpack.c.l.b16 %v7273
        %v8039 = vunpack.c.h.b16 %v7273
        %v8040 = vunpack.c.l.b16 %v7274
        %v8041 = vunpack.c.h.b16 %v7274
        %v8042 = vunpack.c.l.b16 %v7275
        %v8043 = vunpack.c.h.b16 %v7275
        %v8044 = vunpack.c.l.b16 %v7276
        %v8045 = vunpack.c.h.b16 %v7276
        %v8046 = vunpack.c.l.b16 %v7277
        %v8047 = vunpack.c.h.b16 %v7277
        %v8048 = vunpack.c.l.b16 %v7278
        %v8049 = vunpack.c.h.b16 %v7278
        %v8050 = vunpack.c.l.b16 %v7279
        %v8051 = vunpack.c.h.b16 %v7279
        %v8052 = vunpack.c.l.b16 %v7280
        %v8053 = vunpack.c.h.b16 %v7280
        %v8054 = vunpack.c.l.b16 %v7281
        %v8055 = vunpack.c.h.b16 %v7281
        %v8056 = vunpack.c.l.b16 %v7282
        %v8057 = vunpack.c.h.b16 %v7282
        %v8058 = vunpack.c.l.b16 %v7283
        %v8059 = vunpack.c.h.b16 %v7283
        %v8060 = vunpack.c.l.b16 %v7284
        %v8061 = vunpack.c.h.b16 %v7284
        %v8062 = vunpack.c.l.b16 %v7285
        %v8063 = vunpack.c.h.b16 %v7285
        %v8064 = vunpack.c.l.b16 %v7286
        %v8065 = vunpack.c.h.b16 %v7286
        %v8066 = vunpack.c.l.b16 %v7287
        %v8067 = vunpack.c.h.b16 %v7287
        %v8068 = vunpack.c.l.b16 %v7288
        %v8069 = vunpack.c.h.b16 %v7288
        %v8070 = vunpack.c.l.b16 %v7289
        %v8071 = vunpack.c.h.b16 %v7289
        %v8072 = vunpack.c.l.b16 %v7290
        %v8073 = vunpack.c.h.b16 %v7290
        %v8074 = vunpack.c.l.b16 %v7291
        %v8075 = vunpack.c.h.b16 %v7291
        %v8076 = vunpack.c.l.b16 %v7292
        %v8077 = vunpack.c.h.b16 %v7292
        %v8078 = vunpack.c.l.b16 %v7293
        %v8079 = vunpack.c.h.b16 %v7293
        %v8080 = vunpack.c.l.b16 %v7294
        %v8081 = vunpack.c.h.b16 %v7294
        %v8082 = vunpack.c.l.b16 %v7295
        %v8083 = vunpack.c.h.b16 %v7295
        %v8084 = vunpack.c.l.b16 %v7296
        %v8085 = vunpack.c.h.b16 %v7296
        %v8086 = vunpack.c.l.b16 %v7297
        %v8087 = vunpack.c.h.b16 %v7297
        %v8088 = vpack.c.b16 %v7580, %v7576
        %v8089 = vpack.c.b16 %v7581, %v7577
        %v8090 = vpack.c.b16 %v7582, %v7578
        %v8091 = vpack.c.b16 %v7583, %v7579
        %v8092 = vpack.c.b16 %v7588, %v7584
        %v8093 = vpack.c.b16 %v7589, %v7585
        %v8094 = vpack.c.b16 %v7590, %v7586
        %v8095 = vpack.c.b16 %v7591, %v7587
        %v8096 = vpack.c.b16 %v7596, %v7592
        %v8097 = vpack.c.b16 %v7597, %v7593
        %v8098 = vpack.c.b16 %v7598, %v7594
        %v8099 = vpack.c.b16 %v7599, %v7595
        %v8100 = vpack.c.b16 %v7604, %v7600
        %v8101 = vpack.c.b16 %v7605, %v7601
        %v8102 = vpack.c.b16 %v7606, %v7602
        %v8103 = vpack.c.b16 %v7607, %v7603
        %v8104 = vpack.c.b16 %v7612, %v7608
        %v8105 = vpack.c.b16 %v7613, %v7609
        %v8106 = vpack.c.b16 %v7614, %v7610
        %v8107 = vpack.c.b16 %v7615, %v7611
        %v8108 = vpack.c.b16 %v7620, %v7616
        %v8109 = vpack.c.b16 %v7621, %v7617
        %v8110 = vpack.c.b16 %v7622, %v7618
        %v8111 = vpack.c.b16 %v7623, %v7619
        %v8112 = vpack.c.b16 %v7628, %v7624
        %v8113 = vpack.c.b16 %v7629, %v7625
        %v8114 = vpack.c.b16 %v7630, %v7626
        %v8115 = vpack.c.b16 %v7631, %v7627
        %v8116 = vpack.c.b16 %v7636, %v7632
        %v8117 = vpack.c.b16 %v7637, %v7633
        %v8118 = vpack.c.b16 %v7638, %v7634
        %v8119 = vpack.c.b16 %v7639, %v7635
        %v8120 = vpack.c.b16 %v7644, %v7640
        %v8121 = vpack.c.b16 %v7645, %v7641
        %v8122 = vpack.c.b16 %v7646, %v7642
        %v8123 = vpack.c.b16 %v7647, %v7643
        %v8124 = vpack.c.b16 %v7652, %v7648
        %v8125 = vpack.c.b16 %v7653, %v7649
        %v8126 = vpack.c.b16 %v7654, %v7650
        %v8127 = vpack.c.b16 %v7655, %v7651
        %v8128 = vpack.c.b16 %v7660, %v7656
        %v8129 = vpack.c.b16 %v7661, %v7657
        %v8130 = vpack.c.b16 %v7662, %v7658
        %v8131 = vpack.c.b16 %v7663, %v7659
        %v8132 = vpack.c.b16 %v7668, %v7664
        %v8133 = vpack.c.b16 %v7669, %v7665
        %v8134 = vpack.c.b16 %v7670, %v7666
        %v8135 = vpack.c.b16 %v7671, %v7667
        %v8136 = vpack.c.b16 %v7676, %v7672
        %v8137 = vpack.c.b16 %v7677, %v7673
        %v8138 = vpack.c.b16 %v7678, %v7674
        %v8139 = vpack.c.b16 %v7679, %v7675
        %v8140 = vpack.c.b16 %v7684, %v7680
        %v8141 = vpack.c.b16 %v7685, %v7681
        %v8142 = vpack.c.b16 %v7686, %v7682
        %v8143 = vpack.c.b16 %v7687, %v7683
        %v8144 = vpack.c.b16 %v7692, %v7688
        %v8145 = vpack.c.b16 %v7693, %v7689
        %v8146 = vpack.c.b16 %v7694, %v7690
        %v8147 = vpack.c.b16 %v7695, %v7691
        %v8148 = vpack.c.b16 %v7700, %v7696
        %v8149 = vpack.c.b16 %v7701, %v7697
        %v8150 = vpack.c.b16 %v7702, %v7698
        %v8151 = vpack.c.b16 %v7703, %v7699
        %v8152 = vpack.c.b16 %v7708, %v7704
        %v8153 = vpack.c.b16 %v7709, %v7705
        %v8154 = vpack.c.b16 %v7710, %v7706
        %v8155 = vpack.c.b16 %v7711, %v7707
        %v8156 = vpack.c.b16 %v7716, %v7712
        %v8157 = vpack.c.b16 %v7717, %v7713
        %v8158 = vpack.c.b16 %v7718, %v7714
        %v8159 = vpack.c.b16 %v7719, %v7715
        %v8160 = vpack.c.b16 %v7724, %v7720
        %v8161 = vpack.c.b16 %v7725, %v7721
        %v8162 = vpack.c.b16 %v7726, %v7722
        %v8163 = vpack.c.b16 %v7727, %v7723
        %v8164 = vpack.c.b16 %v7732, %v7728
        %v8165 = vpack.c.b16 %v7733, %v7729
        %v8166 = vpack.c.b16 %v7734, %v7730
        %v8167 = vpack.c.b16 %v7735, %v7731
        %v8168 = vpack.c.b16 %v7740, %v7736
        %v8169 = vpack.c.b16 %v7741, %v7737
        %v8170 = vpack.c.b16 %v7742, %v7738
        %v8171 = vpack.c.b16 %v7743, %v7739
        %v8172 = vpack.c.b16 %v7748, %v7744
        %v8173 = vpack.c.b16 %v7749, %v7745
        %v8174 = vpack.c.b16 %v7750, %v7746
        %v8175 = vpack.c.b16 %v7751, %v7747
        %v8176 = vpack.c.b16 %v7756, %v7752
        %v8177 = vpack.c.b16 %v7757, %v7753
        %v8178 = vpack.c.b16 %v7758, %v7754
        %v8179 = vpack.c.b16 %v7759, %v7755
        %v8180 = vpack.c.b16 %v7764, %v7760
        %v8181 = vpack.c.b16 %v7765, %v7761
        %v8182 = vpack.c.b16 %v7766, %v7762
        %v8183 = vpack.c.b16 %v7767, %v7763
        %v8184 = vpack.c.b16 %v7772, %v7768
        %v8185 = vpack.c.b16 %v7773, %v7769
        %v8186 = vpack.c.b16 %v7774, %v7770
        %v8187 = vpack.c.b16 %v7775, %v7771
        %v8188 = vpack.c.b16 %v7780, %v7776
        %v8189 = vpack.c.b16 %v7781, %v7777
        %v8190 = vpack.c.b16 %v7782, %v7778
        %v8191 = vpack.c.b16 %v7783, %v7779
        %v8192 = vpack.c.b16 %v7788, %v7784
        %v8193 = vpack.c.b16 %v7789, %v7785
        %v8194 = vpack.c.b16 %v7790, %v7786
        %v8195 = vpack.c.b16 %v7791, %v7787
        %v8196 = vpack.c.b16 %v7796, %v7792
        %v8197 = vpack.c.b16 %v7797, %v7793
        %v8198 = vpack.c.b16 %v7798, %v7794
        %v8199 = vpack.c.b16 %v7799, %v7795
        %v8200 = vpack.c.b16 %v7804, %v7800
        %v8201 = vpack.c.b16 %v7805, %v7801
        %v8202 = vpack.c.b16 %v7806, %v7802
        %v8203 = vpack.c.b16 %v7807, %v7803
        %v8204 = vpack.c.b16 %v7812, %v7808
        %v8205 = vpack.c.b16 %v7813, %v7809
        %v8206 = vpack.c.b16 %v7814, %v7810
        %v8207 = vpack.c.b16 %v7815, %v7811
        %v8208 = vpack.c.b16 %v7820, %v7816
        %v8209 = vpack.c.b16 %v7821, %v7817
        %v8210 = vpack.c.b16 %v7822, %v7818
        %v8211 = vpack.c.b16 %v7823, %v7819
        %v8212 = vpack.c.b16 %v7828, %v7824
        %v8213 = vpack.c.b16 %v7829, %v7825
        %v8214 = vpack.c.b16 %v7830, %v7826
        %v8215 = vpack.c.b16 %v7831, %v7827
        %v8216 = vpack.c.b16 %v7836, %v7832
        %v8217 = vpack.c.b16 %v7837, %v7833
        %v8218 = vpack.c.b16 %v7838, %v7834
        %v8219 = vpack.c.b16 %v7839, %v7835
        %v8220 = vpack.c.b16 %v7844, %v7840
        %v8221 = vpack.c.b16 %v7845, %v7841
        %v8222 = vpack.c.b16 %v7846, %v7842
        %v8223 = vpack.c.b16 %v7847, %v7843
        %v8224 = vpack.c.b16 %v7852, %v7848
        %v8225 = vpack.c.b16 %v7853, %v7849
        %v8226 = vpack.c.b16 %v7854, %v7850
        %v8227 = vpack.c.b16 %v7855, %v7851
        %v8228 = vpack.c.b16 %v7860, %v7856
        %v8229 = vpack.c.b16 %v7861, %v7857
        %v8230 = vpack.c.b16 %v7862, %v7858
        %v8231 = vpack.c.b16 %v7863, %v7859
        %v8232 = vpack.c.b16 %v7868, %v7864
        %v8233 = vpack.c.b16 %v7869, %v7865
        %v8234 = vpack.c.b16 %v7870, %v7866
        %v8235 = vpack.c.b16 %v7871, %v7867
        %v8236 = vpack.c.b16 %v7876, %v7872
        %v8237 = vpack.c.b16 %v7877, %v7873
        %v8238 = vpack.c.b16 %v7878, %v7874
        %v8239 = vpack.c.b16 %v7879, %v7875
        %v8240 = vpack.c.b16 %v7884, %v7880
        %v8241 = vpack.c.b16 %v7885, %v7881
        %v8242 = vpack.c.b16 %v7886, %v7882
        %v8243 = vpack.c.b16 %v7887, %v7883
        %v8244 = vpack.c.b16 %v7892, %v7888
        %v8245 = vpack.c.b16 %v7893, %v7889
        %v8246 = vpack.c.b16 %v7894, %v7890
        %v8247 = vpack.c.b16 %v7895, %v7891
        %v8248 = vpack.c.b16 %v7900, %v7896
        %v8249 = vpack.c.b16 %v7901, %v7897
        %v8250 = vpack.c.b16 %v7902, %v7898
        %v8251 = vpack.c.b16 %v7903, %v7899
        %v8252 = vpack.c.b16 %v7908, %v7904
        %v8253 = vpack.c.b16 %v7909, %v7905
        %v8254 = vpack.c.b16 %v7910, %v7906
        %v8255 = vpack.c.b16 %v7911, %v7907
        %v8256 = vpack.c.b16 %v7916, %v7912
        %v8257 = vpack.c.b16 %v7917, %v7913
        %v8258 = vpack.c.b16 %v7918, %v7914
        %v8259 = vpack.c.b16 %v7919, %v7915
        %v8260 = vpack.c.b16 %v7924, %v7920
        %v8261 = vpack.c.b16 %v7925, %v7921
        %v8262 = vpack.c.b16 %v7926, %v7922
        %v8263 = vpack.c.b16 %v7927, %v7923
        %v8264 = vpack.c.b16 %v7932, %v7928
        %v8265 = vpack.c.b16 %v7933, %v7929
        %v8266 = vpack.c.b16 %v7934, %v7930
        %v8267 = vpack.c.b16 %v7935, %v7931
        %v8268 = vpack.c.b16 %v7940, %v7936
        %v8269 = vpack.c.b16 %v7941, %v7937
        %v8270 = vpack.c.b16 %v7942, %v7938
        %v8271 = vpack.c.b16 %v7943, %v7939
        %v8272 = vpack.c.b16 %v7948, %v7944
        %v8273 = vpack.c.b16 %v7949, %v7945
        %v8274 = vpack.c.b16 %v7950, %v7946
        %v8275 = vpack.c.b16 %v7951, %v7947
        %v8276 = vpack.c.b16 %v7956, %v7952
        %v8277 = vpack.c.b16 %v7957, %v7953
        %v8278 = vpack.c.b16 %v7958, %v7954
        %v8279 = vpack.c.b16 %v7959, %v7955
        %v8280 = vpack.c.b16 %v7964, %v7960
        %v8281 = vpack.c.b16 %v7965, %v7961
        %v8282 = vpack.c.b16 %v7966, %v7962
        %v8283 = vpack.c.b16 %v7967, %v7963
        %v8284 = vpack.c.b16 %v7972, %v7968
        %v8285 = vpack.c.b16 %v7973, %v7969
        %v8286 = vpack.c.b16 %v7974, %v7970
        %v8287 = vpack.c.b16 %v7975, %v7971
        %v8288 = vpack.c.b16 %v7980, %v7976
        %v8289 = vpack.c.b16 %v7981, %v7977
        %v8290 = vpack.c.b16 %v7982, %v7978
        %v8291 = vpack.c.b16 %v7983, %v7979
        %v8292 = vpack.c.b16 %v7988, %v7984
        %v8293 = vpack.c.b16 %v7989, %v7985
        %v8294 = vpack.c.b16 %v7990, %v7986
        %v8295 = vpack.c.b16 %v7991, %v7987
        %v8296 = vpack.c.b16 %v7996, %v7992
        %v8297 = vpack.c.b16 %v7997, %v7993
        %v8298 = vpack.c.b16 %v7998, %v7994
        %v8299 = vpack.c.b16 %v7999, %v7995
        %v8300 = vpack.c.b16 %v8004, %v8000
        %v8301 = vpack.c.b16 %v8005, %v8001
        %v8302 = vpack.c.b16 %v8006, %v8002
        %v8303 = vpack.c.b16 %v8007, %v8003
        %v8304 = vpack.c.b16 %v8012, %v8008
        %v8305 = vpack.c.b16 %v8013, %v8009
        %v8306 = vpack.c.b16 %v8014, %v8010
        %v8307 = vpack.c.b16 %v8015, %v8011
        %v8308 = vpack.c.b16 %v8020, %v8016
        %v8309 = vpack.c.b16 %v8021, %v8017
        %v8310 = vpack.c.b16 %v8022, %v8018
        %v8311 = vpack.c.b16 %v8023, %v8019
        %v8312 = vpack.c.b16 %v8028, %v8024
        %v8313 = vpack.c.b16 %v8029, %v8025
        %v8314 = vpack.c.b16 %v8030, %v8026
        %v8315 = vpack.c.b16 %v8031, %v8027
        %v8316 = vpack.c.b16 %v8036, %v8032
        %v8317 = vpack.c.b16 %v8037, %v8033
        %v8318 = vpack.c.b16 %v8038, %v8034
        %v8319 = vpack.c.b16 %v8039, %v8035
        %v8320 = vpack.c.b16 %v8044, %v8040
        %v8321 = vpack.c.b16 %v8045, %v8041
        %v8322 = vpack.c.b16 %v8046, %v8042
        %v8323 = vpack.c.b16 %v8047, %v8043
        %v8324 = vpack.c.b16 %v8052, %v8048
        %v8325 = vpack.c.b16 %v8053, %v8049
        %v8326 = vpack.c.b16 %v8054, %v8050
        %v8327 = vpack.c.b16 %v8055, %v8051
        %v8328 = vpack.c.b16 %v8060, %v8056
        %v8329 = vpack.c.b16 %v8061, %v8057
        %v8330 = vpack.c.b16 %v8062, %v8058
        %v8331 = vpack.c.b16 %v8063, %v8059
        %v8332 = vpack.c.b16 %v8068, %v8064
        %v8333 = vpack.c.b16 %v8069, %v8065
        %v8334 = vpack.c.b16 %v8070, %v8066
        %v8335 = vpack.c.b16 %v8071, %v8067
        %v8336 = vpack.c.b16 %v8076, %v8072
        %v8337 = vpack.c.b16 %v8077, %v8073
        %v8338 = vpack.c.b16 %v8078, %v8074
        %v8339 = vpack.c.b16 %v8079, %v8075
        %v8340 = vpack.c.b16 %v8084, %v8080
        %v8341 = vpack.c.b16 %v8085, %v8081
        %v8342 = vpack.c.b16 %v8086, %v8082
        %v8343 = vpack.c.b16 %v8087, %v8083
        %8600 = vmatprep.subr.bf16.mxu0 %v8117
        %8601 = vmatpush1.bf16.msra.mxu0 %v8116
        %8602 = vmatprep.subr.bf16.mxu0 %v8113
        %8603 = vmatpush1.bf16.msra.mxu0 %v8112
        %8604 = vmatprep.subr.bf16.mxu0 %v8109
        %8605 = vmatpush1.bf16.msra.mxu0 %v8108
        %8606 = vmatprep.subr.bf16.mxu0 %v8105
        %8607 = vmatpush1.bf16.msra.mxu0 %v8104
        %8608 = vmatprep.subr.bf16.mxu0 %v8101
        %8609 = vmatpush1.bf16.msra.mxu0 %v8100
        %8610 = vmatprep.subr.bf16.mxu0 %v8097
        %8611 = vmatpush1.bf16.msra.mxu0 %v8096
        %8612 = vmatprep.subr.bf16.mxu0 %v8093
        %8613 = vmatpush1.bf16.msra.mxu0 %v8092
        %8614 = vmatprep.subr.bf16.mxu0 %v8089
        %8615 = vmatpush1.bf16.msra.mxu0 %v8088
        %8616 = vmatprep.subr.bf16.mxu0 %v8149
        %8617 = vmatpush2.bf16.msra.mxu0 %v8148
        %8618 = vmatprep.subr.bf16.mxu0 %v8145
        %8619 = vmatpush2.bf16.msra.mxu0 %v8144
        %8620 = vmatprep.subr.bf16.mxu0 %v8141
        %8621 = vmatpush2.bf16.msra.mxu0 %v8140
        %8622 = vmatprep.subr.bf16.mxu0 %v8137
        %8623 = vmatpush2.bf16.msra.mxu0 %v8136
        %8624 = vmatprep.subr.bf16.mxu0 %v8133
        %8625 = vmatpush2.bf16.msra.mxu0 %v8132
        %8626 = vmatprep.subr.bf16.mxu0 %v8129
        %8627 = vmatpush2.bf16.msra.mxu0 %v8128
        %8628 = vmatprep.subr.bf16.mxu0 %v8125
        %8629 = vmatpush2.bf16.msra.mxu0 %v8124
        %8630 = vmatprep.subr.bf16.mxu0 %v8121
        %8631 = vmatpush2.bf16.msra.mxu0 %v8120
        %8632 = vmatprep.mubr.bf16.mxu0 %v7035
        %8633 = vmatmul.mubr.bf16.gmra.mxu0 %v7034
        %v8634 = vpop.f32.mrf.mxu0
        %v8635 = vadd.f32 %v7303, %v8634
        %v8636 = vpop.f32.mrf.mxu0
        %v8637 = vadd.f32 %v7307, %v8636
        %v8638 = vpop.f32.mrf.mxu0
        %v8639 = vpop.f32.mrf.mxu0
        %8640 = vdwg.mxu0
        %8641 = vmatprep.subr.bf16.mxu0 %v8181
        %8642 = vmatpush1.bf16.msra.mxu0 %v8180
        %8643 = vmatprep.subr.bf16.mxu0 %v8177
        %8644 = vmatpush1.bf16.msra.mxu0 %v8176
        %8645 = vmatprep.subr.bf16.mxu0 %v8173
        %8646 = vmatpush1.bf16.msra.mxu0 %v8172
        %8647 = vmatprep.subr.bf16.mxu0 %v8169
        %8648 = vmatpush1.bf16.msra.mxu0 %v8168
        %8649 = vmatprep.subr.bf16.mxu0 %v8165
        %8650 = vmatpush1.bf16.msra.mxu0 %v8164
        %8651 = vmatprep.subr.bf16.mxu0 %v8161
        %8652 = vmatpush1.bf16.msra.mxu0 %v8160
        %8653 = vmatprep.subr.bf16.mxu0 %v8157
        %8654 = vmatpush1.bf16.msra.mxu0 %v8156
        %8655 = vmatprep.subr.bf16.mxu0 %v8153
        %8656 = vmatpush1.bf16.msra.mxu0 %v8152
        %8657 = vmatprep.subr.bf16.mxu0 %v8213
        %8658 = vmatpush2.bf16.msra.mxu0 %v8212
        %8659 = vmatprep.subr.bf16.mxu0 %v8209
        %8660 = vmatpush2.bf16.msra.mxu0 %v8208
        %8661 = vmatprep.subr.bf16.mxu0 %v8205
        %8662 = vmatpush2.bf16.msra.mxu0 %v8204
        %8663 = vmatprep.subr.bf16.mxu0 %v8201
        %8664 = vmatpush2.bf16.msra.mxu0 %v8200
        %8665 = vmatprep.subr.bf16.mxu0 %v8197
        %8666 = vmatpush2.bf16.msra.mxu0 %v8196
        %8667 = vmatprep.subr.bf16.mxu0 %v8193
        %8668 = vmatpush2.bf16.msra.mxu0 %v8192
        %8669 = vmatprep.subr.bf16.mxu0 %v8189
        %8670 = vmatpush2.bf16.msra.mxu0 %v8188
        %8671 = vmatprep.subr.bf16.mxu0 %v8185
        %8672 = vmatpush2.bf16.msra.mxu0 %v8184
        %8673 = vmatprep.mubr.bf16.mxu0 %v7037
        %8674 = vmatmul.mubr.bf16.gmra.mxu0 %v7036
        %v8675 = vpop.f32.mrf.mxu0
        %v8676 = vadd.f32 %v8635, %v8675
        %v8677 = vpop.f32.mrf.mxu0
        %v8678 = vadd.f32 %v8637, %v8677
        %v8679 = vpop.f32.mrf.mxu0
        %v8680 = vpop.f32.mrf.mxu0
        %8681 = vdwg.mxu0
        %8682 = vmatprep.subr.bf16.mxu0 %v8245
        %8683 = vmatpush1.bf16.msra.mxu0 %v8244
        %8684 = vmatprep.subr.bf16.mxu0 %v8241
        %8685 = vmatpush1.bf16.msra.mxu0 %v8240
        %8686 = vmatprep.subr.bf16.mxu0 %v8237
        %8687 = vmatpush1.bf16.msra.mxu0 %v8236
        %8688 = vmatprep.subr.bf16.mxu0 %v8233
        %8689 = vmatpush1.bf16.msra.mxu0 %v8232
        %8690 = vmatprep.subr.bf16.mxu0 %v8229
        %8691 = vmatpush1.bf16.msra.mxu0 %v8228
        %8692 = vmatprep.subr.bf16.mxu0 %v8225
        %8693 = vmatpush1.bf16.msra.mxu0 %v8224
        %8694 = vmatprep.subr.bf16.mxu0 %v8221
        %8695 = vmatpush1.bf16.msra.mxu0 %v8220
        %8696 = vmatprep.subr.bf16.mxu0 %v8217
        %8697 = vmatpush1.bf16.msra.mxu0 %v8216
        %8698 = vmatprep.subr.bf16.mxu0 %v8277
        %8699 = vmatpush2.bf16.msra.mxu0 %v8276
        %8700 = vmatprep.subr.bf16.mxu0 %v8273
        %8701 = vmatpush2.bf16.msra.mxu0 %v8272
        %8702 = vmatprep.subr.bf16.mxu0 %v8269
        %8703 = vmatpush2.bf16.msra.mxu0 %v8268
        %8704 = vmatprep.subr.bf16.mxu0 %v8265
        %8705 = vmatpush2.bf16.msra.mxu0 %v8264
        %8706 = vmatprep.subr.bf16.mxu0 %v8261
        %8707 = vmatpush2.bf16.msra.mxu0 %v8260
        %8708 = vmatprep.subr.bf16.mxu0 %v8257
        %8709 = vmatpush2.bf16.msra.mxu0 %v8256
        %8710 = vmatprep.subr.bf16.mxu0 %v8253
        %8711 = vmatpush2.bf16.msra.mxu0 %v8252
        %8712 = vmatprep.subr.bf16.mxu0 %v8249
        %8713 = vmatpush2.bf16.msra.mxu0 %v8248
        %8714 = vmatprep.mubr.bf16.mxu0 %v7039
        %8715 = vmatmul.mubr.bf16.gmra.mxu0 %v7038
        %v8716 = vpop.f32.mrf.mxu0
        %v8717 = vadd.f32 %v8676, %v8716
        %v8718 = vpop.f32.mrf.mxu0
        %v8719 = vadd.f32 %v8678, %v8718
        %v8720 = vpop.f32.mrf.mxu0
        %v8721 = vpop.f32.mrf.mxu0
        %8722 = vdwg.mxu0
        %8723 = vmatprep.subr.bf16.mxu0 %v8309
        %8724 = vmatpush1.bf16.msra.mxu0 %v8308
        %8725 = vmatprep.subr.bf16.mxu0 %v8305
        %8726 = vmatpush1.bf16.msra.mxu0 %v8304
        %8727 = vmatprep.subr.bf16.mxu0 %v8301
        %8728 = vmatpush1.bf16.msra.mxu0 %v8300
        %8729 = vmatprep.subr.bf16.mxu0 %v8297
        %8730 = vmatpush1.bf16.msra.mxu0 %v8296
        %8731 = vmatprep.subr.bf16.mxu0 %v8293
        %8732 = vmatpush1.bf16.msra.mxu0 %v8292
        %8733 = vmatprep.subr.bf16.mxu0 %v8289
        %8734 = vmatpush1.bf16.msra.mxu0 %v8288
        %8735 = vmatprep.subr.bf16.mxu0 %v8285
        %8736 = vmatpush1.bf16.msra.mxu0 %v8284
        %8737 = vmatprep.subr.bf16.mxu0 %v8281
        %8738 = vmatpush1.bf16.msra.mxu0 %v8280
        %8739 = vmatprep.subr.bf16.mxu0 %v8341
        %8740 = vmatpush2.bf16.msra.mxu0 %v8340
        %8741 = vmatprep.subr.bf16.mxu0 %v8337
        %8742 = vmatpush2.bf16.msra.mxu0 %v8336
        %8743 = vmatprep.subr.bf16.mxu0 %v8333
        %8744 = vmatpush2.bf16.msra.mxu0 %v8332
        %8745 = vmatprep.subr.bf16.mxu0 %v8329
        %8746 = vmatpush2.bf16.msra.mxu0 %v8328
        %8747 = vmatprep.subr.bf16.mxu0 %v8325
        %8748 = vmatpush2.bf16.msra.mxu0 %v8324
        %8749 = vmatprep.subr.bf16.mxu0 %v8321
        %8750 = vmatpush2.bf16.msra.mxu0 %v8320
        %8751 = vmatprep.subr.bf16.mxu0 %v8317
        %8752 = vmatpush2.bf16.msra.mxu0 %v8316
        %8753 = vmatprep.subr.bf16.mxu0 %v8313
        %8754 = vmatpush2.bf16.msra.mxu0 %v8312
        %8755 = vmatprep.mubr.bf16.mxu0 %v7041
        %8756 = vmatmul.mubr.bf16.gmra.mxu0 %v7040
        %v8757 = vpop.f32.mrf.mxu0
        %v8758 = vadd.f32 %v8717, %v8757
        %v8759 = vpop.f32.mrf.mxu0
        %v8760 = vadd.f32 %v8719, %v8759
        %v8761 = vpop.f32.mrf.mxu0
        %v8762 = vpop.f32.mrf.mxu0
        %8763 = vdwg.mxu0
        %8764 = vmatprep.subr.bf16.mxu0 %v8119
        %8765 = vmatpush1.bf16.msra.mxu0 %v8118
        %8766 = vmatprep.subr.bf16.mxu0 %v8115
        %8767 = vmatpush1.bf16.msra.mxu0 %v8114
        %8768 = vmatprep.subr.bf16.mxu0 %v8111
        %8769 = vmatpush1.bf16.msra.mxu0 %v8110
        %8770 = vmatprep.subr.bf16.mxu0 %v8107
        %8771 = vmatpush1.bf16.msra.mxu0 %v8106
        %8772 = vmatprep.subr.bf16.mxu0 %v8103
        %8773 = vmatpush1.bf16.msra.mxu0 %v8102
        %8774 = vmatprep.subr.bf16.mxu0 %v8099
        %8775 = vmatpush1.bf16.msra.mxu0 %v8098
        %8776 = vmatprep.subr.bf16.mxu0 %v8095
        %8777 = vmatpush1.bf16.msra.mxu0 %v8094
        %8778 = vmatprep.subr.bf16.mxu0 %v8091
        %8779 = vmatpush1.bf16.msra.mxu0 %v8090
        %8780 = vmatprep.subr.bf16.mxu0 %v8151
        %8781 = vmatpush2.bf16.msra.mxu0 %v8150
        %8782 = vmatprep.subr.bf16.mxu0 %v8147
        %8783 = vmatpush2.bf16.msra.mxu0 %v8146
        %8784 = vmatprep.subr.bf16.mxu0 %v8143
        %8785 = vmatpush2.bf16.msra.mxu0 %v8142
        %8786 = vmatprep.subr.bf16.mxu0 %v8139
        %8787 = vmatpush2.bf16.msra.mxu0 %v8138
        %8788 = vmatprep.subr.bf16.mxu0 %v8135
        %8789 = vmatpush2.bf16.msra.mxu0 %v8134
        %8790 = vmatprep.subr.bf16.mxu0 %v8131
        %8791 = vmatpush2.bf16.msra.mxu0 %v8130
        %8792 = vmatprep.subr.bf16.mxu0 %v8127
        %8793 = vmatpush2.bf16.msra.mxu0 %v8126
        %8794 = vmatprep.subr.bf16.mxu0 %v8123
        %8795 = vmatpush2.bf16.msra.mxu0 %v8122
        %8796 = vmatprep.mubr.bf16.mxu0 %v7035
        %8797 = vmatmul.mubr.bf16.gmra.mxu0 %v7034
        %v8798 = vpop.f32.mrf.mxu0
        %v8799 = vadd.f32 %v7311, %v8798
        %v8800 = vpop.f32.mrf.mxu0
        %v8801 = vadd.f32 %v7315, %v8800
        %v8802 = vpop.f32.mrf.mxu0
        %v8803 = vpop.f32.mrf.mxu0
        %8804 = vdwg.mxu0
        %8805 = vmatprep.subr.bf16.mxu0 %v8183
        %8806 = vmatpush1.bf16.msra.mxu0 %v8182
        %8807 = vmatprep.subr.bf16.mxu0 %v8179
        %8808 = vmatpush1.bf16.msra.mxu0 %v8178
        %8809 = vmatprep.subr.bf16.mxu0 %v8175
        %8810 = vmatpush1.bf16.msra.mxu0 %v8174
        %8811 = vmatprep.subr.bf16.mxu0 %v8171
        %8812 = vmatpush1.bf16.msra.mxu0 %v8170
        %8813 = vmatprep.subr.bf16.mxu0 %v8167
        %8814 = vmatpush1.bf16.msra.mxu0 %v8166
        %8815 = vmatprep.subr.bf16.mxu0 %v8163
        %8816 = vmatpush1.bf16.msra.mxu0 %v8162
        %8817 = vmatprep.subr.bf16.mxu0 %v8159
        %8818 = vmatpush1.bf16.msra.mxu0 %v8158
        %8819 = vmatprep.subr.bf16.mxu0 %v8155
        %8820 = vmatpush1.bf16.msra.mxu0 %v8154
        %8821 = vmatprep.subr.bf16.mxu0 %v8215
        %8822 = vmatpush2.bf16.msra.mxu0 %v8214
        %8823 = vmatprep.subr.bf16.mxu0 %v8211
        %8824 = vmatpush2.bf16.msra.mxu0 %v8210
        %8825 = vmatprep.subr.bf16.mxu0 %v8207
        %8826 = vmatpush2.bf16.msra.mxu0 %v8206
        %8827 = vmatprep.subr.bf16.mxu0 %v8203
        %8828 = vmatpush2.bf16.msra.mxu0 %v8202
        %8829 = vmatprep.subr.bf16.mxu0 %v8199
        %8830 = vmatpush2.bf16.msra.mxu0 %v8198
        %8831 = vmatprep.subr.bf16.mxu0 %v8195
        %8832 = vmatpush2.bf16.msra.mxu0 %v8194
        %8833 = vmatprep.subr.bf16.mxu0 %v8191
        %8834 = vmatpush2.bf16.msra.mxu0 %v8190
        %8835 = vmatprep.subr.bf16.mxu0 %v8187
        %8836 = vmatpush2.bf16.msra.mxu0 %v8186
        %8837 = vmatprep.mubr.bf16.mxu0 %v7037
        %8838 = vmatmul.mubr.bf16.gmra.mxu0 %v7036
        %v8839 = vpop.f32.mrf.mxu0
        %v8840 = vadd.f32 %v8799, %v8839
        %v8841 = vpop.f32.mrf.mxu0
        %v8842 = vadd.f32 %v8801, %v8841
        %v8843 = vpop.f32.mrf.mxu0
        %v8844 = vpop.f32.mrf.mxu0
        %8845 = vdwg.mxu0
        %8846 = vmatprep.subr.bf16.mxu0 %v8247
        %8847 = vmatpush1.bf16.msra.mxu0 %v8246
        %8848 = vmatprep.subr.bf16.mxu0 %v8243
        %8849 = vmatpush1.bf16.msra.mxu0 %v8242
        %8850 = vmatprep.subr.bf16.mxu0 %v8239
        %8851 = vmatpush1.bf16.msra.mxu0 %v8238
        %8852 = vmatprep.subr.bf16.mxu0 %v8235
        %8853 = vmatpush1.bf16.msra.mxu0 %v8234
        %8854 = vmatprep.subr.bf16.mxu0 %v8231
        %8855 = vmatpush1.bf16.msra.mxu0 %v8230
        %8856 = vmatprep.subr.bf16.mxu0 %v8227
        %8857 = vmatpush1.bf16.msra.mxu0 %v8226
        %8858 = vmatprep.subr.bf16.mxu0 %v8223
        %8859 = vmatpush1.bf16.msra.mxu0 %v8222
        %8860 = vmatprep.subr.bf16.mxu0 %v8219
        %8861 = vmatpush1.bf16.msra.mxu0 %v8218
        %8862 = vmatprep.subr.bf16.mxu0 %v8279
        %8863 = vmatpush2.bf16.msra.mxu0 %v8278
        %8864 = vmatprep.subr.bf16.mxu0 %v8275
        %8865 = vmatpush2.bf16.msra.mxu0 %v8274
        %8866 = vmatprep.subr.bf16.mxu0 %v8271
        %8867 = vmatpush2.bf16.msra.mxu0 %v8270
        %8868 = vmatprep.subr.bf16.mxu0 %v8267
        %8869 = vmatpush2.bf16.msra.mxu0 %v8266
        %8870 = vmatprep.subr.bf16.mxu0 %v8263
        %8871 = vmatpush2.bf16.msra.mxu0 %v8262
        %8872 = vmatprep.subr.bf16.mxu0 %v8259
        %8873 = vmatpush2.bf16.msra.mxu0 %v8258
        %8874 = vmatprep.subr.bf16.mxu0 %v8255
        %8875 = vmatpush2.bf16.msra.mxu0 %v8254
        %8876 = vmatprep.subr.bf16.mxu0 %v8251
        %8877 = vmatpush2.bf16.msra.mxu0 %v8250
        %8878 = vmatprep.mubr.bf16.mxu0 %v7039
        %8879 = vmatmul.mubr.bf16.gmra.mxu0 %v7038
        %v8880 = vpop.f32.mrf.mxu0
        %v8881 = vadd.f32 %v8840, %v8880
        %v8882 = vpop.f32.mrf.mxu0
        %v8883 = vadd.f32 %v8842, %v8882
        %v8884 = vpop.f32.mrf.mxu0
        %v8885 = vpop.f32.mrf.mxu0
        %8886 = vdwg.mxu0
        %8887 = vmatprep.subr.bf16.mxu0 %v8311
        %8888 = vmatpush1.bf16.msra.mxu0 %v8310
        %8889 = vmatprep.subr.bf16.mxu0 %v8307
        %8890 = vmatpush1.bf16.msra.mxu0 %v8306
        %8891 = vmatprep.subr.bf16.mxu0 %v8303
        %8892 = vmatpush1.bf16.msra.mxu0 %v8302
        %8893 = vmatprep.subr.bf16.mxu0 %v8299
        %8894 = vmatpush1.bf16.msra.mxu0 %v8298
        %8895 = vmatprep.subr.bf16.mxu0 %v8295
        %8896 = vmatpush1.bf16.msra.mxu0 %v8294
        %8897 = vmatprep.subr.bf16.mxu0 %v8291
        %8898 = vmatpush1.bf16.msra.mxu0 %v8290
        %8899 = vmatprep.subr.bf16.mxu0 %v8287
        %8900 = vmatpush1.bf16.msra.mxu0 %v8286
        %8901 = vmatprep.subr.bf16.mxu0 %v8283
        %8902 = vmatpush1.bf16.msra.mxu0 %v8282
        %8903 = vmatprep.subr.bf16.mxu0 %v8343
        %8904 = vmatpush2.bf16.msra.mxu0 %v8342
        %8905 = vmatprep.subr.bf16.mxu0 %v8339
        %8906 = vmatpush2.bf16.msra.mxu0 %v8338
        %8907 = vmatprep.subr.bf16.mxu0 %v8335
        %8908 = vmatpush2.bf16.msra.mxu0 %v8334
        %8909 = vmatprep.subr.bf16.mxu0 %v8331
        %8910 = vmatpush2.bf16.msra.mxu0 %v8330
        %8911 = vmatprep.subr.bf16.mxu0 %v8327
        %8912 = vmatpush2.bf16.msra.mxu0 %v8326
        %8913 = vmatprep.subr.bf16.mxu0 %v8323
        %8914 = vmatpush2.bf16.msra.mxu0 %v8322
        %8915 = vmatprep.subr.bf16.mxu0 %v8319
        %8916 = vmatpush2.bf16.msra.mxu0 %v8318
        %8917 = vmatprep.subr.bf16.mxu0 %v8315
        %8918 = vmatpush2.bf16.msra.mxu0 %v8314
        %8919 = vmatprep.mubr.bf16.mxu0 %v7041
        %8920 = vmatmul.mubr.bf16.gmra.mxu0 %v7040
        %v8921 = vpop.f32.mrf.mxu0
        %v8922 = vadd.f32 %v8881, %v8921
        %v8923 = vpop.f32.mrf.mxu0
        %v8924 = vadd.f32 %v8883, %v8923
        %v8925 = vpop.f32.mrf.mxu0
        %v8926 = vpop.f32.mrf.mxu0
        %8927 = vdwg.mxu0
        %v8928 = vld [vmem:[#allocation17] ss:$8 sm:$0xf]
        %s8929 = scalar_lea.vmem [#allocation17], 1
        %v8930 = vld [vmem:[%s8929] ss:$8 sm:$0xf]
        %s8931 = scalar_lea.vmem [#allocation17], 2
        %v8932 = vld [vmem:[%s8931] ss:$8 sm:$0xf]
        %s8933 = scalar_lea.vmem [#allocation17], 3
        %v8934 = vld [vmem:[%s8933] ss:$8 sm:$0xf]
        %v8935 = vadd.f32 %v498, %v8758
        %v8936 = vadd.f32 %v499, %v8760
        %v8937 = vadd.f32 %v500, %v8922
        %v8938 = vadd.f32 %v501, %v8924
        %v8939 = vadd.f32 %v8935, %v8936
        %v8940 = vadd.f32 %v8939, %v8937
        %v8941 = vadd.f32 %v8940, %v8938
        %8942 = vadd.xlane.f32.xlu0 %v8941
        %v8943 = vpop.xlane.xlu0 %8942
        %v8944 = vrcp.pop 512.0
        %v8945 = vmul.f32 %v8943, %v8944
        %v8946 = vsub.f32 %v8935, %v8945
        %v8947 = vsub.f32 %v8936, %v8945
        %v8948 = vsub.f32 %v8937, %v8945
        %v8949 = vsub.f32 %v8938, %v8945
        %v8950 = vmul.f32 %v8946, %v8946
        %v8951 = vmul.f32 %v8947, %v8947
        %v8952 = vmul.f32 %v8948, %v8948
        %v8953 = vmul.f32 %v8949, %v8949
        %v8954 = vadd.f32 %v8950, %v8951
        %v8955 = vadd.f32 %v8954, %v8952
        %v8956 = vadd.f32 %v8955, %v8953
        %8957 = vadd.xlane.f32.xlu0 %v8956
        %v8958 = vpop.xlane.xlu0 %8957
        %v8959 = vmul.f32 %v8958, %v8944
        %v8960 = vadd.f32 %v8959, 1e-05
        %v8961 = vrsqrt.pop %v8960
        %v8962 = vmul.f32 %v8946, %v8961
        %v8963 = vmul.f32 %v8947, %v8961
        %v8964 = vmul.f32 %v8948, %v8961
        %v8965 = vmul.f32 %v8949, %v8961
        %v8967 = vlaneseq
        %v8968 = vshrl.u32 %v8967, 7
        %v8969 = vsub.s32 0, %v8968
        %v8970 = vrot.slane %v8928, %v8969
        %v8971 = vlaneseq
        %v8972 = vshrl.u32 %v8971, 7
        %v8973 = vsub.s32 1, %v8972
        %v8974 = vrot.slane %v8928, %v8973
        %v8975 = vlaneseq
        %v8976 = vshrl.u32 %v8975, 7
        %v8977 = vsub.s32 2, %v8976
        %v8978 = vrot.slane %v8928, %v8977
        %v8979 = vlaneseq
        %v8980 = vshrl.u32 %v8979, 7
        %v8981 = vsub.s32 3, %v8980
        %v8982 = vrot.slane %v8928, %v8981
        %v8987 = vmul.f32 %v8962, %v8970
        %v8988 = vmul.f32 %v8963, %v8974
        %v8989 = vmul.f32 %v8964, %v8978
        %v8990 = vmul.f32 %v8965, %v8982
        %v8992 = vlaneseq
        %v8993 = vshrl.u32 %v8992, 7
        %v8994 = vsub.s32 0, %v8993
        %v8995 = vrot.slane %v8930, %v8994
        %v8996 = vlaneseq
        %v8997 = vshrl.u32 %v8996, 7
        %v8998 = vsub.s32 1, %v8997
        %v8999 = vrot.slane %v8930, %v8998
        %v9000 = vlaneseq
        %v9001 = vshrl.u32 %v9000, 7
        %v9002 = vsub.s32 2, %v9001
        %v9003 = vrot.slane %v8930, %v9002
        %v9004 = vlaneseq
        %v9005 = vshrl.u32 %v9004, 7
        %v9006 = vsub.s32 3, %v9005
        %v9007 = vrot.slane %v8930, %v9006
        %v9012 = vadd.f32 %v8987, %v8995
        %v9013 = vadd.f32 %v8988, %v8999
        %v9014 = vadd.f32 %v8989, %v9003
        %v9015 = vadd.f32 %v8990, %v9007
        %v9016 = vpack.c.bf16 %v9012, %v9012
        %v9017 = vpack.c.bf16 %v9013, %v9013
        %v9018 = vpack.c.bf16 %v9014, %v9014
        %v9019 = vpack.c.bf16 %v9015, %v9015
        %v9020 = vld [vmem:[#allocation11] sm:$0xff]
        %v9021 = vld [vmem:[#allocation11 + $0x8] sm:$0xff]
        %v9022 = vld [vmem:[#allocation11 + $0x10] sm:$0xff]
        %v9023 = vld [vmem:[#allocation11 + $0x18] sm:$0xff]
        %v9024 = vld [vmem:[#allocation11 + $0x20] sm:$0xff]
        %v9025 = vld [vmem:[#allocation11 + $0x28] sm:$0xff]
        %v9026 = vld [vmem:[#allocation11 + $0x30] sm:$0xff]
        %v9027 = vld [vmem:[#allocation11 + $0x38] sm:$0xff]
        %v9028 = vld [vmem:[#allocation11 + $0x40] sm:$0xff]
        %v9029 = vld [vmem:[#allocation11 + $0x48] sm:$0xff]
        %v9030 = vld [vmem:[#allocation11 + $0x50] sm:$0xff]
        %v9031 = vld [vmem:[#allocation11 + $0x58] sm:$0xff]
        %v9032 = vld [vmem:[#allocation11 + $0x60] sm:$0xff]
        %v9033 = vld [vmem:[#allocation11 + $0x68] sm:$0xff]
        %v9034 = vld [vmem:[#allocation11 + $0x70] sm:$0xff]
        %v9035 = vld [vmem:[#allocation11 + $0x78] sm:$0xff]
        %v9036 = vld [vmem:[#allocation11 + $0x80] sm:$0xff]
        %v9037 = vld [vmem:[#allocation11 + $0x88] sm:$0xff]
        %v9038 = vld [vmem:[#allocation11 + $0x90] sm:$0xff]
        %v9039 = vld [vmem:[#allocation11 + $0x98] sm:$0xff]
        %v9040 = vld [vmem:[#allocation11 + $0xa0] sm:$0xff]
        %v9041 = vld [vmem:[#allocation11 + $0xa8] sm:$0xff]
        %v9042 = vld [vmem:[#allocation11 + $0xb0] sm:$0xff]
        %v9043 = vld [vmem:[#allocation11 + $0xb8] sm:$0xff]
        %v9044 = vld [vmem:[#allocation11 + $0xc0] sm:$0xff]
        %v9045 = vld [vmem:[#allocation11 + $0xc8] sm:$0xff]
        %v9046 = vld [vmem:[#allocation11 + $0xd0] sm:$0xff]
        %v9047 = vld [vmem:[#allocation11 + $0xd8] sm:$0xff]
        %v9048 = vld [vmem:[#allocation11 + $0xe0] sm:$0xff]
        %v9049 = vld [vmem:[#allocation11 + $0xe8] sm:$0xff]
        %v9050 = vld [vmem:[#allocation11 + $0xf0] sm:$0xff]
        %v9051 = vld [vmem:[#allocation11 + $0xf8] sm:$0xff]
        %v9052 = vld [vmem:[#allocation11 + $0x100] sm:$0xff]
        %v9053 = vld [vmem:[#allocation11 + $0x108] sm:$0xff]
        %v9054 = vld [vmem:[#allocation11 + $0x110] sm:$0xff]
        %v9055 = vld [vmem:[#allocation11 + $0x118] sm:$0xff]
        %v9056 = vld [vmem:[#allocation11 + $0x120] sm:$0xff]
        %v9057 = vld [vmem:[#allocation11 + $0x128] sm:$0xff]
        %v9058 = vld [vmem:[#allocation11 + $0x130] sm:$0xff]
        %v9059 = vld [vmem:[#allocation11 + $0x138] sm:$0xff]
        %v9060 = vld [vmem:[#allocation11 + $0x140] sm:$0xff]
        %v9061 = vld [vmem:[#allocation11 + $0x148] sm:$0xff]
        %v9062 = vld [vmem:[#allocation11 + $0x150] sm:$0xff]
        %v9063 = vld [vmem:[#allocation11 + $0x158] sm:$0xff]
        %v9064 = vld [vmem:[#allocation11 + $0x160] sm:$0xff]
        %v9065 = vld [vmem:[#allocation11 + $0x168] sm:$0xff]
        %v9066 = vld [vmem:[#allocation11 + $0x170] sm:$0xff]
        %v9067 = vld [vmem:[#allocation11 + $0x178] sm:$0xff]
        %v9068 = vld [vmem:[#allocation11 + $0x180] sm:$0xff]
        %v9069 = vld [vmem:[#allocation11 + $0x188] sm:$0xff]
        %v9070 = vld [vmem:[#allocation11 + $0x190] sm:$0xff]
        %v9071 = vld [vmem:[#allocation11 + $0x198] sm:$0xff]
        %v9072 = vld [vmem:[#allocation11 + $0x1a0] sm:$0xff]
        %v9073 = vld [vmem:[#allocation11 + $0x1a8] sm:$0xff]
        %v9074 = vld [vmem:[#allocation11 + $0x1b0] sm:$0xff]
        %v9075 = vld [vmem:[#allocation11 + $0x1b8] sm:$0xff]
        %v9076 = vld [vmem:[#allocation11 + $0x1c0] sm:$0xff]
        %v9077 = vld [vmem:[#allocation11 + $0x1c8] sm:$0xff]
        %v9078 = vld [vmem:[#allocation11 + $0x1d0] sm:$0xff]
        %v9079 = vld [vmem:[#allocation11 + $0x1d8] sm:$0xff]
        %v9080 = vld [vmem:[#allocation11 + $0x1e0] sm:$0xff]
        %v9081 = vld [vmem:[#allocation11 + $0x1e8] sm:$0xff]
        %v9082 = vld [vmem:[#allocation11 + $0x1f0] sm:$0xff]
        %v9083 = vld [vmem:[#allocation11 + $0x1f8] sm:$0xff]
        %v9084 = vld [vmem:[#allocation11 + $0x200] sm:$0xff]
        %v9085 = vld [vmem:[#allocation11 + $0x208] sm:$0xff]
        %v9086 = vld [vmem:[#allocation11 + $0x210] sm:$0xff]
        %v9087 = vld [vmem:[#allocation11 + $0x218] sm:$0xff]
        %v9088 = vld [vmem:[#allocation11 + $0x220] sm:$0xff]
        %v9089 = vld [vmem:[#allocation11 + $0x228] sm:$0xff]
        %v9090 = vld [vmem:[#allocation11 + $0x230] sm:$0xff]
        %v9091 = vld [vmem:[#allocation11 + $0x238] sm:$0xff]
        %v9092 = vld [vmem:[#allocation11 + $0x240] sm:$0xff]
        %v9093 = vld [vmem:[#allocation11 + $0x248] sm:$0xff]
        %v9094 = vld [vmem:[#allocation11 + $0x250] sm:$0xff]
        %v9095 = vld [vmem:[#allocation11 + $0x258] sm:$0xff]
        %v9096 = vld [vmem:[#allocation11 + $0x260] sm:$0xff]
        %v9097 = vld [vmem:[#allocation11 + $0x268] sm:$0xff]
        %v9098 = vld [vmem:[#allocation11 + $0x270] sm:$0xff]
        %v9099 = vld [vmem:[#allocation11 + $0x278] sm:$0xff]
        %v9100 = vld [vmem:[#allocation11 + $0x280] sm:$0xff]
        %v9101 = vld [vmem:[#allocation11 + $0x288] sm:$0xff]
        %v9102 = vld [vmem:[#allocation11 + $0x290] sm:$0xff]
        %v9103 = vld [vmem:[#allocation11 + $0x298] sm:$0xff]
        %v9104 = vld [vmem:[#allocation11 + $0x2a0] sm:$0xff]
        %v9105 = vld [vmem:[#allocation11 + $0x2a8] sm:$0xff]
        %v9106 = vld [vmem:[#allocation11 + $0x2b0] sm:$0xff]
        %v9107 = vld [vmem:[#allocation11 + $0x2b8] sm:$0xff]
        %v9108 = vld [vmem:[#allocation11 + $0x2c0] sm:$0xff]
        %v9109 = vld [vmem:[#allocation11 + $0x2c8] sm:$0xff]
        %v9110 = vld [vmem:[#allocation11 + $0x2d0] sm:$0xff]
        %v9111 = vld [vmem:[#allocation11 + $0x2d8] sm:$0xff]
        %v9112 = vld [vmem:[#allocation11 + $0x2e0] sm:$0xff]
        %v9113 = vld [vmem:[#allocation11 + $0x2e8] sm:$0xff]
        %v9114 = vld [vmem:[#allocation11 + $0x2f0] sm:$0xff]
        %v9115 = vld [vmem:[#allocation11 + $0x2f8] sm:$0xff]
        %v9116 = vld [vmem:[#allocation11 + $0x300] sm:$0xff]
        %v9117 = vld [vmem:[#allocation11 + $0x308] sm:$0xff]
        %v9118 = vld [vmem:[#allocation11 + $0x310] sm:$0xff]
        %v9119 = vld [vmem:[#allocation11 + $0x318] sm:$0xff]
        %v9120 = vld [vmem:[#allocation11 + $0x320] sm:$0xff]
        %v9121 = vld [vmem:[#allocation11 + $0x328] sm:$0xff]
        %v9122 = vld [vmem:[#allocation11 + $0x330] sm:$0xff]
        %v9123 = vld [vmem:[#allocation11 + $0x338] sm:$0xff]
        %v9124 = vld [vmem:[#allocation11 + $0x340] sm:$0xff]
        %v9125 = vld [vmem:[#allocation11 + $0x348] sm:$0xff]
        %v9126 = vld [vmem:[#allocation11 + $0x350] sm:$0xff]
        %v9127 = vld [vmem:[#allocation11 + $0x358] sm:$0xff]
        %v9128 = vld [vmem:[#allocation11 + $0x360] sm:$0xff]
        %v9129 = vld [vmem:[#allocation11 + $0x368] sm:$0xff]
        %v9130 = vld [vmem:[#allocation11 + $0x370] sm:$0xff]
        %v9131 = vld [vmem:[#allocation11 + $0x378] sm:$0xff]
        %v9132 = vld [vmem:[#allocation11 + $0x380] sm:$0xff]
        %v9133 = vld [vmem:[#allocation11 + $0x388] sm:$0xff]
        %v9134 = vld [vmem:[#allocation11 + $0x390] sm:$0xff]
        %v9135 = vld [vmem:[#allocation11 + $0x398] sm:$0xff]
        %v9136 = vld [vmem:[#allocation11 + $0x3a0] sm:$0xff]
        %v9137 = vld [vmem:[#allocation11 + $0x3a8] sm:$0xff]
        %v9138 = vld [vmem:[#allocation11 + $0x3b0] sm:$0xff]
        %v9139 = vld [vmem:[#allocation11 + $0x3b8] sm:$0xff]
        %v9140 = vld [vmem:[#allocation11 + $0x3c0] sm:$0xff]
        %v9141 = vld [vmem:[#allocation11 + $0x3c8] sm:$0xff]
        %v9142 = vld [vmem:[#allocation11 + $0x3d0] sm:$0xff]
        %v9143 = vld [vmem:[#allocation11 + $0x3d8] sm:$0xff]
        %v9144 = vld [vmem:[#allocation11 + $0x3e0] sm:$0xff]
        %v9145 = vld [vmem:[#allocation11 + $0x3e8] sm:$0xff]
        %v9146 = vld [vmem:[#allocation11 + $0x3f0] sm:$0xff]
        %v9147 = vld [vmem:[#allocation11 + $0x3f8] sm:$0xff]
        %v9148 = vld [vmem:[#allocation13] sm:$0xf]
        %v9150 = vlaneseq
        %v9151 = vshrl.u32 %v9150, 7
        %v9152 = vsub.s32 0, %v9151
        %v9153 = vrot.slane %v9148, %v9152
        %v9154 = vlaneseq
        %v9155 = vshrl.u32 %v9154, 7
        %v9156 = vsub.s32 1, %v9155
        %v9157 = vrot.slane %v9148, %v9156
        %v9158 = vlaneseq
        %v9159 = vshrl.u32 %v9158, 7
        %v9160 = vsub.s32 2, %v9159
        %v9161 = vrot.slane %v9148, %v9160
        %v9162 = vlaneseq
        %v9163 = vshrl.u32 %v9162, 7
        %v9164 = vsub.s32 3, %v9163
        %v9165 = vrot.slane %v9148, %v9164
        %v9298 = vunpack.c.l.b16 %v9020
        %v9299 = vunpack.c.h.b16 %v9020
        %v9300 = vunpack.c.l.b16 %v9021
        %v9301 = vunpack.c.h.b16 %v9021
        %v9302 = vunpack.c.l.b16 %v9022
        %v9303 = vunpack.c.h.b16 %v9022
        %v9304 = vunpack.c.l.b16 %v9023
        %v9305 = vunpack.c.h.b16 %v9023
        %v9306 = vunpack.c.l.b16 %v9024
        %v9307 = vunpack.c.h.b16 %v9024
        %v9308 = vunpack.c.l.b16 %v9025
        %v9309 = vunpack.c.h.b16 %v9025
        %v9310 = vunpack.c.l.b16 %v9026
        %v9311 = vunpack.c.h.b16 %v9026
        %v9312 = vunpack.c.l.b16 %v9027
        %v9313 = vunpack.c.h.b16 %v9027
        %v9314 = vunpack.c.l.b16 %v9028
        %v9315 = vunpack.c.h.b16 %v9028
        %v9316 = vunpack.c.l.b16 %v9029
        %v9317 = vunpack.c.h.b16 %v9029
        %v9318 = vunpack.c.l.b16 %v9030
        %v9319 = vunpack.c.h.b16 %v9030
        %v9320 = vunpack.c.l.b16 %v9031
        %v9321 = vunpack.c.h.b16 %v9031
        %v9322 = vunpack.c.l.b16 %v9032
        %v9323 = vunpack.c.h.b16 %v9032
        %v9324 = vunpack.c.l.b16 %v9033
        %v9325 = vunpack.c.h.b16 %v9033
        %v9326 = vunpack.c.l.b16 %v9034
        %v9327 = vunpack.c.h.b16 %v9034
        %v9328 = vunpack.c.l.b16 %v9035
        %v9329 = vunpack.c.h.b16 %v9035
        %v9330 = vunpack.c.l.b16 %v9036
        %v9331 = vunpack.c.h.b16 %v9036
        %v9332 = vunpack.c.l.b16 %v9037
        %v9333 = vunpack.c.h.b16 %v9037
        %v9334 = vunpack.c.l.b16 %v9038
        %v9335 = vunpack.c.h.b16 %v9038
        %v9336 = vunpack.c.l.b16 %v9039
        %v9337 = vunpack.c.h.b16 %v9039
        %v9338 = vunpack.c.l.b16 %v9040
        %v9339 = vunpack.c.h.b16 %v9040
        %v9340 = vunpack.c.l.b16 %v9041
        %v9341 = vunpack.c.h.b16 %v9041
        %v9342 = vunpack.c.l.b16 %v9042
        %v9343 = vunpack.c.h.b16 %v9042
        %v9344 = vunpack.c.l.b16 %v9043
        %v9345 = vunpack.c.h.b16 %v9043
        %v9346 = vunpack.c.l.b16 %v9044
        %v9347 = vunpack.c.h.b16 %v9044
        %v9348 = vunpack.c.l.b16 %v9045
        %v9349 = vunpack.c.h.b16 %v9045
        %v9350 = vunpack.c.l.b16 %v9046
        %v9351 = vunpack.c.h.b16 %v9046
        %v9352 = vunpack.c.l.b16 %v9047
        %v9353 = vunpack.c.h.b16 %v9047
        %v9354 = vunpack.c.l.b16 %v9048
        %v9355 = vunpack.c.h.b16 %v9048
        %v9356 = vunpack.c.l.b16 %v9049
        %v9357 = vunpack.c.h.b16 %v9049
        %v9358 = vunpack.c.l.b16 %v9050
        %v9359 = vunpack.c.h.b16 %v9050
        %v9360 = vunpack.c.l.b16 %v9051
        %v9361 = vunpack.c.h.b16 %v9051
        %v9362 = vunpack.c.l.b16 %v9052
        %v9363 = vunpack.c.h.b16 %v9052
        %v9364 = vunpack.c.l.b16 %v9053
        %v9365 = vunpack.c.h.b16 %v9053
        %v9366 = vunpack.c.l.b16 %v9054
        %v9367 = vunpack.c.h.b16 %v9054
        %v9368 = vunpack.c.l.b16 %v9055
        %v9369 = vunpack.c.h.b16 %v9055
        %v9370 = vunpack.c.l.b16 %v9056
        %v9371 = vunpack.c.h.b16 %v9056
        %v9372 = vunpack.c.l.b16 %v9057
        %v9373 = vunpack.c.h.b16 %v9057
        %v9374 = vunpack.c.l.b16 %v9058
        %v9375 = vunpack.c.h.b16 %v9058
        %v9376 = vunpack.c.l.b16 %v9059
        %v9377 = vunpack.c.h.b16 %v9059
        %v9378 = vunpack.c.l.b16 %v9060
        %v9379 = vunpack.c.h.b16 %v9060
        %v9380 = vunpack.c.l.b16 %v9061
        %v9381 = vunpack.c.h.b16 %v9061
        %v9382 = vunpack.c.l.b16 %v9062
        %v9383 = vunpack.c.h.b16 %v9062
        %v9384 = vunpack.c.l.b16 %v9063
        %v9385 = vunpack.c.h.b16 %v9063
        %v9386 = vunpack.c.l.b16 %v9064
        %v9387 = vunpack.c.h.b16 %v9064
        %v9388 = vunpack.c.l.b16 %v9065
        %v9389 = vunpack.c.h.b16 %v9065
        %v9390 = vunpack.c.l.b16 %v9066
        %v9391 = vunpack.c.h.b16 %v9066
        %v9392 = vunpack.c.l.b16 %v9067
        %v9393 = vunpack.c.h.b16 %v9067
        %v9394 = vunpack.c.l.b16 %v9068
        %v9395 = vunpack.c.h.b16 %v9068
        %v9396 = vunpack.c.l.b16 %v9069
        %v9397 = vunpack.c.h.b16 %v9069
        %v9398 = vunpack.c.l.b16 %v9070
        %v9399 = vunpack.c.h.b16 %v9070
        %v9400 = vunpack.c.l.b16 %v9071
        %v9401 = vunpack.c.h.b16 %v9071
        %v9402 = vunpack.c.l.b16 %v9072
        %v9403 = vunpack.c.h.b16 %v9072
        %v9404 = vunpack.c.l.b16 %v9073
        %v9405 = vunpack.c.h.b16 %v9073
        %v9406 = vunpack.c.l.b16 %v9074
        %v9407 = vunpack.c.h.b16 %v9074
        %v9408 = vunpack.c.l.b16 %v9075
        %v9409 = vunpack.c.h.b16 %v9075
        %v9410 = vunpack.c.l.b16 %v9076
        %v9411 = vunpack.c.h.b16 %v9076
        %v9412 = vunpack.c.l.b16 %v9077
        %v9413 = vunpack.c.h.b16 %v9077
        %v9414 = vunpack.c.l.b16 %v9078
        %v9415 = vunpack.c.h.b16 %v9078
        %v9416 = vunpack.c.l.b16 %v9079
        %v9417 = vunpack.c.h.b16 %v9079
        %v9418 = vunpack.c.l.b16 %v9080
        %v9419 = vunpack.c.h.b16 %v9080
        %v9420 = vunpack.c.l.b16 %v9081
        %v9421 = vunpack.c.h.b16 %v9081
        %v9422 = vunpack.c.l.b16 %v9082
        %v9423 = vunpack.c.h.b16 %v9082
        %v9424 = vunpack.c.l.b16 %v9083
        %v9425 = vunpack.c.h.b16 %v9083
        %v9426 = vunpack.c.l.b16 %v9084
        %v9427 = vunpack.c.h.b16 %v9084
        %v9428 = vunpack.c.l.b16 %v9085
        %v9429 = vunpack.c.h.b16 %v9085
        %v9430 = vunpack.c.l.b16 %v9086
        %v9431 = vunpack.c.h.b16 %v9086
        %v9432 = vunpack.c.l.b16 %v9087
        %v9433 = vunpack.c.h.b16 %v9087
        %v9434 = vunpack.c.l.b16 %v9088
        %v9435 = vunpack.c.h.b16 %v9088
        %v9436 = vunpack.c.l.b16 %v9089
        %v9437 = vunpack.c.h.b16 %v9089
        %v9438 = vunpack.c.l.b16 %v9090
        %v9439 = vunpack.c.h.b16 %v9090
        %v9440 = vunpack.c.l.b16 %v9091
        %v9441 = vunpack.c.h.b16 %v9091
        %v9442 = vunpack.c.l.b16 %v9092
        %v9443 = vunpack.c.h.b16 %v9092
        %v9444 = vunpack.c.l.b16 %v9093
        %v9445 = vunpack.c.h.b16 %v9093
        %v9446 = vunpack.c.l.b16 %v9094
        %v9447 = vunpack.c.h.b16 %v9094
        %v9448 = vunpack.c.l.b16 %v9095
        %v9449 = vunpack.c.h.b16 %v9095
        %v9450 = vunpack.c.l.b16 %v9096
        %v9451 = vunpack.c.h.b16 %v9096
        %v9452 = vunpack.c.l.b16 %v9097
        %v9453 = vunpack.c.h.b16 %v9097
        %v9454 = vunpack.c.l.b16 %v9098
        %v9455 = vunpack.c.h.b16 %v9098
        %v9456 = vunpack.c.l.b16 %v9099
        %v9457 = vunpack.c.h.b16 %v9099
        %v9458 = vunpack.c.l.b16 %v9100
        %v9459 = vunpack.c.h.b16 %v9100
        %v9460 = vunpack.c.l.b16 %v9101
        %v9461 = vunpack.c.h.b16 %v9101
        %v9462 = vunpack.c.l.b16 %v9102
        %v9463 = vunpack.c.h.b16 %v9102
        %v9464 = vunpack.c.l.b16 %v9103
        %v9465 = vunpack.c.h.b16 %v9103
        %v9466 = vunpack.c.l.b16 %v9104
        %v9467 = vunpack.c.h.b16 %v9104
        %v9468 = vunpack.c.l.b16 %v9105
        %v9469 = vunpack.c.h.b16 %v9105
        %v9470 = vunpack.c.l.b16 %v9106
        %v9471 = vunpack.c.h.b16 %v9106
        %v9472 = vunpack.c.l.b16 %v9107
        %v9473 = vunpack.c.h.b16 %v9107
        %v9474 = vunpack.c.l.b16 %v9108
        %v9475 = vunpack.c.h.b16 %v9108
        %v9476 = vunpack.c.l.b16 %v9109
        %v9477 = vunpack.c.h.b16 %v9109
        %v9478 = vunpack.c.l.b16 %v9110
        %v9479 = vunpack.c.h.b16 %v9110
        %v9480 = vunpack.c.l.b16 %v9111
        %v9481 = vunpack.c.h.b16 %v9111
        %v9482 = vunpack.c.l.b16 %v9112
        %v9483 = vunpack.c.h.b16 %v9112
        %v9484 = vunpack.c.l.b16 %v9113
        %v9485 = vunpack.c.h.b16 %v9113
        %v9486 = vunpack.c.l.b16 %v9114
        %v9487 = vunpack.c.h.b16 %v9114
        %v9488 = vunpack.c.l.b16 %v9115
        %v9489 = vunpack.c.h.b16 %v9115
        %v9490 = vunpack.c.l.b16 %v9116
        %v9491 = vunpack.c.h.b16 %v9116
        %v9492 = vunpack.c.l.b16 %v9117
        %v9493 = vunpack.c.h.b16 %v9117
        %v9494 = vunpack.c.l.b16 %v9118
        %v9495 = vunpack.c.h.b16 %v9118
        %v9496 = vunpack.c.l.b16 %v9119
        %v9497 = vunpack.c.h.b16 %v9119
        %v9498 = vunpack.c.l.b16 %v9120
        %v9499 = vunpack.c.h.b16 %v9120
        %v9500 = vunpack.c.l.b16 %v9121
        %v9501 = vunpack.c.h.b16 %v9121
        %v9502 = vunpack.c.l.b16 %v9122
        %v9503 = vunpack.c.h.b16 %v9122
        %v9504 = vunpack.c.l.b16 %v9123
        %v9505 = vunpack.c.h.b16 %v9123
        %v9506 = vunpack.c.l.b16 %v9124
        %v9507 = vunpack.c.h.b16 %v9124
        %v9508 = vunpack.c.l.b16 %v9125
        %v9509 = vunpack.c.h.b16 %v9125
        %v9510 = vunpack.c.l.b16 %v9126
        %v9511 = vunpack.c.h.b16 %v9126
        %v9512 = vunpack.c.l.b16 %v9127
        %v9513 = vunpack.c.h.b16 %v9127
        %v9514 = vunpack.c.l.b16 %v9128
        %v9515 = vunpack.c.h.b16 %v9128
        %v9516 = vunpack.c.l.b16 %v9129
        %v9517 = vunpack.c.h.b16 %v9129
        %v9518 = vunpack.c.l.b16 %v9130
        %v9519 = vunpack.c.h.b16 %v9130
        %v9520 = vunpack.c.l.b16 %v9131
        %v9521 = vunpack.c.h.b16 %v9131
        %v9522 = vunpack.c.l.b16 %v9132
        %v9523 = vunpack.c.h.b16 %v9132
        %v9524 = vunpack.c.l.b16 %v9133
        %v9525 = vunpack.c.h.b16 %v9133
        %v9526 = vunpack.c.l.b16 %v9134
        %v9527 = vunpack.c.h.b16 %v9134
        %v9528 = vunpack.c.l.b16 %v9135
        %v9529 = vunpack.c.h.b16 %v9135
        %v9530 = vunpack.c.l.b16 %v9136
        %v9531 = vunpack.c.h.b16 %v9136
        %v9532 = vunpack.c.l.b16 %v9137
        %v9533 = vunpack.c.h.b16 %v9137
        %v9534 = vunpack.c.l.b16 %v9138
        %v9535 = vunpack.c.h.b16 %v9138
        %v9536 = vunpack.c.l.b16 %v9139
        %v9537 = vunpack.c.h.b16 %v9139
        %v9538 = vunpack.c.l.b16 %v9140
        %v9539 = vunpack.c.h.b16 %v9140
        %v9540 = vunpack.c.l.b16 %v9141
        %v9541 = vunpack.c.h.b16 %v9141
        %v9542 = vunpack.c.l.b16 %v9142
        %v9543 = vunpack.c.h.b16 %v9142
        %v9544 = vunpack.c.l.b16 %v9143
        %v9545 = vunpack.c.h.b16 %v9143
        %v9546 = vunpack.c.l.b16 %v9144
        %v9547 = vunpack.c.h.b16 %v9144
        %v9548 = vunpack.c.l.b16 %v9145
        %v9549 = vunpack.c.h.b16 %v9145
        %v9550 = vunpack.c.l.b16 %v9146
        %v9551 = vunpack.c.h.b16 %v9146
        %v9552 = vunpack.c.l.b16 %v9147
        %v9553 = vunpack.c.h.b16 %v9147
        %v9554 = vpack.c.b16 %v9302, %v9298
        %v9555 = vpack.c.b16 %v9303, %v9299
        %v9556 = vpack.c.b16 %v9304, %v9300
        %v9557 = vpack.c.b16 %v9305, %v9301
        %v9558 = vpack.c.b16 %v9310, %v9306
        %v9559 = vpack.c.b16 %v9311, %v9307
        %v9560 = vpack.c.b16 %v9312, %v9308
        %v9561 = vpack.c.b16 %v9313, %v9309
        %v9562 = vpack.c.b16 %v9318, %v9314
        %v9563 = vpack.c.b16 %v9319, %v9315
        %v9564 = vpack.c.b16 %v9320, %v9316
        %v9565 = vpack.c.b16 %v9321, %v9317
        %v9566 = vpack.c.b16 %v9326, %v9322
        %v9567 = vpack.c.b16 %v9327, %v9323
        %v9568 = vpack.c.b16 %v9328, %v9324
        %v9569 = vpack.c.b16 %v9329, %v9325
        %v9570 = vpack.c.b16 %v9334, %v9330
        %v9571 = vpack.c.b16 %v9335, %v9331
        %v9572 = vpack.c.b16 %v9336, %v9332
        %v9573 = vpack.c.b16 %v9337, %v9333
        %v9574 = vpack.c.b16 %v9342, %v9338
        %v9575 = vpack.c.b16 %v9343, %v9339
        %v9576 = vpack.c.b16 %v9344, %v9340
        %v9577 = vpack.c.b16 %v9345, %v9341
        %v9578 = vpack.c.b16 %v9350, %v9346
        %v9579 = vpack.c.b16 %v9351, %v9347
        %v9580 = vpack.c.b16 %v9352, %v9348
        %v9581 = vpack.c.b16 %v9353, %v9349
        %v9582 = vpack.c.b16 %v9358, %v9354
        %v9583 = vpack.c.b16 %v9359, %v9355
        %v9584 = vpack.c.b16 %v9360, %v9356
        %v9585 = vpack.c.b16 %v9361, %v9357
        %v9586 = vpack.c.b16 %v9366, %v9362
        %v9587 = vpack.c.b16 %v9367, %v9363
        %v9588 = vpack.c.b16 %v9368, %v9364
        %v9589 = vpack.c.b16 %v9369, %v9365
        %v9590 = vpack.c.b16 %v9374, %v9370
        %v9591 = vpack.c.b16 %v9375, %v9371
        %v9592 = vpack.c.b16 %v9376, %v9372
        %v9593 = vpack.c.b16 %v9377, %v9373
        %v9594 = vpack.c.b16 %v9382, %v9378
        %v9595 = vpack.c.b16 %v9383, %v9379
        %v9596 = vpack.c.b16 %v9384, %v9380
        %v9597 = vpack.c.b16 %v9385, %v9381
        %v9598 = vpack.c.b16 %v9390, %v9386
        %v9599 = vpack.c.b16 %v9391, %v9387
        %v9600 = vpack.c.b16 %v9392, %v9388
        %v9601 = vpack.c.b16 %v9393, %v9389
        %v9602 = vpack.c.b16 %v9398, %v9394
        %v9603 = vpack.c.b16 %v9399, %v9395
        %v9604 = vpack.c.b16 %v9400, %v9396
        %v9605 = vpack.c.b16 %v9401, %v9397
        %v9606 = vpack.c.b16 %v9406, %v9402
        %v9607 = vpack.c.b16 %v9407, %v9403
        %v9608 = vpack.c.b16 %v9408, %v9404
        %v9609 = vpack.c.b16 %v9409, %v9405
        %v9610 = vpack.c.b16 %v9414, %v9410
        %v9611 = vpack.c.b16 %v9415, %v9411
        %v9612 = vpack.c.b16 %v9416, %v9412
        %v9613 = vpack.c.b16 %v9417, %v9413
        %v9614 = vpack.c.b16 %v9422, %v9418
        %v9615 = vpack.c.b16 %v9423, %v9419
        %v9616 = vpack.c.b16 %v9424, %v9420
        %v9617 = vpack.c.b16 %v9425, %v9421
        %v9618 = vpack.c.b16 %v9430, %v9426
        %v9619 = vpack.c.b16 %v9431, %v9427
        %v9620 = vpack.c.b16 %v9432, %v9428
        %v9621 = vpack.c.b16 %v9433, %v9429
        %v9622 = vpack.c.b16 %v9438, %v9434
        %v9623 = vpack.c.b16 %v9439, %v9435
        %v9624 = vpack.c.b16 %v9440, %v9436
        %v9625 = vpack.c.b16 %v9441, %v9437
        %v9626 = vpack.c.b16 %v9446, %v9442
        %v9627 = vpack.c.b16 %v9447, %v9443
        %v9628 = vpack.c.b16 %v9448, %v9444
        %v9629 = vpack.c.b16 %v9449, %v9445
        %v9630 = vpack.c.b16 %v9454, %v9450
        %v9631 = vpack.c.b16 %v9455, %v9451
        %v9632 = vpack.c.b16 %v9456, %v9452
        %v9633 = vpack.c.b16 %v9457, %v9453
        %v9634 = vpack.c.b16 %v9462, %v9458
        %v9635 = vpack.c.b16 %v9463, %v9459
        %v9636 = vpack.c.b16 %v9464, %v9460
        %v9637 = vpack.c.b16 %v9465, %v9461
        %v9638 = vpack.c.b16 %v9470, %v9466
        %v9639 = vpack.c.b16 %v9471, %v9467
        %v9640 = vpack.c.b16 %v9472, %v9468
        %v9641 = vpack.c.b16 %v9473, %v9469
        %v9642 = vpack.c.b16 %v9478, %v9474
        %v9643 = vpack.c.b16 %v9479, %v9475
        %v9644 = vpack.c.b16 %v9480, %v9476
        %v9645 = vpack.c.b16 %v9481, %v9477
        %v9646 = vpack.c.b16 %v9486, %v9482
        %v9647 = vpack.c.b16 %v9487, %v9483
        %v9648 = vpack.c.b16 %v9488, %v9484
        %v9649 = vpack.c.b16 %v9489, %v9485
        %v9650 = vpack.c.b16 %v9494, %v9490
        %v9651 = vpack.c.b16 %v9495, %v9491
        %v9652 = vpack.c.b16 %v9496, %v9492
        %v9653 = vpack.c.b16 %v9497, %v9493
        %v9654 = vpack.c.b16 %v9502, %v9498
        %v9655 = vpack.c.b16 %v9503, %v9499
        %v9656 = vpack.c.b16 %v9504, %v9500
        %v9657 = vpack.c.b16 %v9505, %v9501
        %v9658 = vpack.c.b16 %v9510, %v9506
        %v9659 = vpack.c.b16 %v9511, %v9507
        %v9660 = vpack.c.b16 %v9512, %v9508
        %v9661 = vpack.c.b16 %v9513, %v9509
        %v9662 = vpack.c.b16 %v9518, %v9514
        %v9663 = vpack.c.b16 %v9519, %v9515
        %v9664 = vpack.c.b16 %v9520, %v9516
        %v9665 = vpack.c.b16 %v9521, %v9517
        %v9666 = vpack.c.b16 %v9526, %v9522
        %v9667 = vpack.c.b16 %v9527, %v9523
        %v9668 = vpack.c.b16 %v9528, %v9524
        %v9669 = vpack.c.b16 %v9529, %v9525
        %v9670 = vpack.c.b16 %v9534, %v9530
        %v9671 = vpack.c.b16 %v9535, %v9531
        %v9672 = vpack.c.b16 %v9536, %v9532
        %v9673 = vpack.c.b16 %v9537, %v9533
        %v9674 = vpack.c.b16 %v9542, %v9538
        %v9675 = vpack.c.b16 %v9543, %v9539
        %v9676 = vpack.c.b16 %v9544, %v9540
        %v9677 = vpack.c.b16 %v9545, %v9541
        %v9678 = vpack.c.b16 %v9550, %v9546
        %v9679 = vpack.c.b16 %v9551, %v9547
        %v9680 = vpack.c.b16 %v9552, %v9548
        %v9681 = vpack.c.b16 %v9553, %v9549
        %9810 = vmatprep.subr.bf16.mxu0 %v9583
        %9811 = vmatpush1.bf16.msra.mxu0 %v9582
        %9812 = vmatprep.subr.bf16.mxu0 %v9579
        %9813 = vmatpush1.bf16.msra.mxu0 %v9578
        %9814 = vmatprep.subr.bf16.mxu0 %v9575
        %9815 = vmatpush1.bf16.msra.mxu0 %v9574
        %9816 = vmatprep.subr.bf16.mxu0 %v9571
        %9817 = vmatpush1.bf16.msra.mxu0 %v9570
        %9818 = vmatprep.subr.bf16.mxu0 %v9567
        %9819 = vmatpush1.bf16.msra.mxu0 %v9566
        %9820 = vmatprep.subr.bf16.mxu0 %v9563
        %9821 = vmatpush1.bf16.msra.mxu0 %v9562
        %9822 = vmatprep.subr.bf16.mxu0 %v9559
        %9823 = vmatpush1.bf16.msra.mxu0 %v9558
        %9824 = vmatprep.subr.bf16.mxu0 %v9555
        %9825 = vmatpush1.bf16.msra.mxu0 %v9554
        %9826 = vmatprep.subr.bf16.mxu0 %v9615
        %9827 = vmatpush2.bf16.msra.mxu0 %v9614
        %9828 = vmatprep.subr.bf16.mxu0 %v9611
        %9829 = vmatpush2.bf16.msra.mxu0 %v9610
        %9830 = vmatprep.subr.bf16.mxu0 %v9607
        %9831 = vmatpush2.bf16.msra.mxu0 %v9606
        %9832 = vmatprep.subr.bf16.mxu0 %v9603
        %9833 = vmatpush2.bf16.msra.mxu0 %v9602
        %9834 = vmatprep.subr.bf16.mxu0 %v9599
        %9835 = vmatpush2.bf16.msra.mxu0 %v9598
        %9836 = vmatprep.subr.bf16.mxu0 %v9595
        %9837 = vmatpush2.bf16.msra.mxu0 %v9594
        %9838 = vmatprep.subr.bf16.mxu0 %v9591
        %9839 = vmatpush2.bf16.msra.mxu0 %v9590
        %9840 = vmatprep.subr.bf16.mxu0 %v9587
        %9841 = vmatpush2.bf16.msra.mxu0 %v9586
        %9842 = vmatprep.mubr.bf16.mxu0 %v9017
        %9843 = vmatmul.mubr.bf16.gmra.mxu0 %v9016
        %v9844 = vpop.f32.mrf.mxu0
        %v9845 = vadd.f32 %v9153, %v9844
        %v9846 = vpop.f32.mrf.mxu0
        %v9847 = vadd.f32 %v9157, %v9846
        %v9848 = vpop.f32.mrf.mxu0
        %v9849 = vpop.f32.mrf.mxu0
        %9850 = vdwg.mxu0
        %9851 = vmatprep.subr.bf16.mxu0 %v9647
        %9852 = vmatpush1.bf16.msra.mxu0 %v9646
        %9853 = vmatprep.subr.bf16.mxu0 %v9643
        %9854 = vmatpush1.bf16.msra.mxu0 %v9642
        %9855 = vmatprep.subr.bf16.mxu0 %v9639
        %9856 = vmatpush1.bf16.msra.mxu0 %v9638
        %9857 = vmatprep.subr.bf16.mxu0 %v9635
        %9858 = vmatpush1.bf16.msra.mxu0 %v9634
        %9859 = vmatprep.subr.bf16.mxu0 %v9631
        %9860 = vmatpush1.bf16.msra.mxu0 %v9630
        %9861 = vmatprep.subr.bf16.mxu0 %v9627
        %9862 = vmatpush1.bf16.msra.mxu0 %v9626
        %9863 = vmatprep.subr.bf16.mxu0 %v9623
        %9864 = vmatpush1.bf16.msra.mxu0 %v9622
        %9865 = vmatprep.subr.bf16.mxu0 %v9619
        %9866 = vmatpush1.bf16.msra.mxu0 %v9618
        %9867 = vmatprep.subr.bf16.mxu0 %v9679
        %9868 = vmatpush2.bf16.msra.mxu0 %v9678
        %9869 = vmatprep.subr.bf16.mxu0 %v9675
        %9870 = vmatpush2.bf16.msra.mxu0 %v9674
        %9871 = vmatprep.subr.bf16.mxu0 %v9671
        %9872 = vmatpush2.bf16.msra.mxu0 %v9670
        %9873 = vmatprep.subr.bf16.mxu0 %v9667
        %9874 = vmatpush2.bf16.msra.mxu0 %v9666
        %9875 = vmatprep.subr.bf16.mxu0 %v9663
        %9876 = vmatpush2.bf16.msra.mxu0 %v9662
        %9877 = vmatprep.subr.bf16.mxu0 %v9659
        %9878 = vmatpush2.bf16.msra.mxu0 %v9658
        %9879 = vmatprep.subr.bf16.mxu0 %v9655
        %9880 = vmatpush2.bf16.msra.mxu0 %v9654
        %9881 = vmatprep.subr.bf16.mxu0 %v9651
        %9882 = vmatpush2.bf16.msra.mxu0 %v9650
        %9883 = vmatprep.mubr.bf16.mxu0 %v9019
        %9884 = vmatmul.mubr.bf16.gmra.mxu0 %v9018
        %v9885 = vpop.f32.mrf.mxu0
        %v9886 = vadd.f32 %v9845, %v9885
        %v9887 = vpop.f32.mrf.mxu0
        %v9888 = vadd.f32 %v9847, %v9887
        %v9889 = vpop.f32.mrf.mxu0
        %v9890 = vpop.f32.mrf.mxu0
        %9891 = vdwg.mxu0
        %9892 = vmatprep.subr.bf16.mxu0 %v9585
        %9893 = vmatpush1.bf16.msra.mxu0 %v9584
        %9894 = vmatprep.subr.bf16.mxu0 %v9581
        %9895 = vmatpush1.bf16.msra.mxu0 %v9580
        %9896 = vmatprep.subr.bf16.mxu0 %v9577
        %9897 = vmatpush1.bf16.msra.mxu0 %v9576
        %9898 = vmatprep.subr.bf16.mxu0 %v9573
        %9899 = vmatpush1.bf16.msra.mxu0 %v9572
        %9900 = vmatprep.subr.bf16.mxu0 %v9569
        %9901 = vmatpush1.bf16.msra.mxu0 %v9568
        %9902 = vmatprep.subr.bf16.mxu0 %v9565
        %9903 = vmatpush1.bf16.msra.mxu0 %v9564
        %9904 = vmatprep.subr.bf16.mxu0 %v9561
        %9905 = vmatpush1.bf16.msra.mxu0 %v9560
        %9906 = vmatprep.subr.bf16.mxu0 %v9557
        %9907 = vmatpush1.bf16.msra.mxu0 %v9556
        %9908 = vmatprep.subr.bf16.mxu0 %v9617
        %9909 = vmatpush2.bf16.msra.mxu0 %v9616
        %9910 = vmatprep.subr.bf16.mxu0 %v9613
        %9911 = vmatpush2.bf16.msra.mxu0 %v9612
        %9912 = vmatprep.subr.bf16.mxu0 %v9609
        %9913 = vmatpush2.bf16.msra.mxu0 %v9608
        %9914 = vmatprep.subr.bf16.mxu0 %v9605
        %9915 = vmatpush2.bf16.msra.mxu0 %v9604
        %9916 = vmatprep.subr.bf16.mxu0 %v9601
        %9917 = vmatpush2.bf16.msra.mxu0 %v9600
        %9918 = vmatprep.subr.bf16.mxu0 %v9597
        %9919 = vmatpush2.bf16.msra.mxu0 %v9596
        %9920 = vmatprep.subr.bf16.mxu0 %v9593
        %9921 = vmatpush2.bf16.msra.mxu0 %v9592
        %9922 = vmatprep.subr.bf16.mxu0 %v9589
        %9923 = vmatpush2.bf16.msra.mxu0 %v9588
        %9924 = vmatprep.mubr.bf16.mxu0 %v9017
        %9925 = vmatmul.mubr.bf16.gmra.mxu0 %v9016
        %v9926 = vpop.f32.mrf.mxu0
        %v9927 = vadd.f32 %v9161, %v9926
        %v9928 = vpop.f32.mrf.mxu0
        %v9929 = vadd.f32 %v9165, %v9928
        %v9930 = vpop.f32.mrf.mxu0
        %v9931 = vpop.f32.mrf.mxu0
        %9932 = vdwg.mxu0
        %9933 = vmatprep.subr.bf16.mxu0 %v9649
        %9934 = vmatpush1.bf16.msra.mxu0 %v9648
        %9935 = vmatprep.subr.bf16.mxu0 %v9645
        %9936 = vmatpush1.bf16.msra.mxu0 %v9644
        %9937 = vmatprep.subr.bf16.mxu0 %v9641
        %9938 = vmatpush1.bf16.msra.mxu0 %v9640
        %9939 = vmatprep.subr.bf16.mxu0 %v9637
        %9940 = vmatpush1.bf16.msra.mxu0 %v9636
        %9941 = vmatprep.subr.bf16.mxu0 %v9633
        %9942 = vmatpush1.bf16.msra.mxu0 %v9632
        %9943 = vmatprep.subr.bf16.mxu0 %v9629
        %9944 = vmatpush1.bf16.msra.mxu0 %v9628
        %9945 = vmatprep.subr.bf16.mxu0 %v9625
        %9946 = vmatpush1.bf16.msra.mxu0 %v9624
        %9947 = vmatprep.subr.bf16.mxu0 %v9621
        %9948 = vmatpush1.bf16.msra.mxu0 %v9620
        %9949 = vmatprep.subr.bf16.mxu0 %v9681
        %9950 = vmatpush2.bf16.msra.mxu0 %v9680
        %9951 = vmatprep.subr.bf16.mxu0 %v9677
        %9952 = vmatpush2.bf16.msra.mxu0 %v9676
        %9953 = vmatprep.subr.bf16.mxu0 %v9673
        %9954 = vmatpush2.bf16.msra.mxu0 %v9672
        %9955 = vmatprep.subr.bf16.mxu0 %v9669
        %9956 = vmatpush2.bf16.msra.mxu0 %v9668
        %9957 = vmatprep.subr.bf16.mxu0 %v9665
        %9958 = vmatpush2.bf16.msra.mxu0 %v9664
        %9959 = vmatprep.subr.bf16.mxu0 %v9661
        %9960 = vmatpush2.bf16.msra.mxu0 %v9660
        %9961 = vmatprep.subr.bf16.mxu0 %v9657
        %9962 = vmatpush2.bf16.msra.mxu0 %v9656
        %9963 = vmatprep.subr.bf16.mxu0 %v9653
        %9964 = vmatpush2.bf16.msra.mxu0 %v9652
        %9965 = vmatprep.mubr.bf16.mxu0 %v9019
        %9966 = vmatmul.mubr.bf16.gmra.mxu0 %v9018
        %v9967 = vpop.f32.mrf.mxu0
        %v9968 = vadd.f32 %v9927, %v9967
        %v9969 = vpop.f32.mrf.mxu0
        %v9970 = vadd.f32 %v9929, %v9969
        %v9971 = vpop.f32.mrf.mxu0
        %v9972 = vpop.f32.mrf.mxu0
        %9973 = vdwg.mxu0
        %v9974 = vmax.f32 %v9886, 0.0
        %v9975 = vmax.f32 %v9888, 0.0
        %v9976 = vmax.f32 %v9968, 0.0
        %v9977 = vmax.f32 %v9970, 0.0
        %v9978 = vpack.c.bf16 %v9974, %v9974
        %v9979 = vpack.c.bf16 %v9975, %v9975
        %v9980 = vpack.c.bf16 %v9976, %v9976
        %v9981 = vpack.c.bf16 %v9977, %v9977
        %v9982 = vld [vmem:[#allocation14] sm:$0xff]
        %v9983 = vld [vmem:[#allocation14 + $0x8] sm:$0xff]
        %v9984 = vld [vmem:[#allocation14 + $0x10] sm:$0xff]
        %v9985 = vld [vmem:[#allocation14 + $0x18] sm:$0xff]
        %v9986 = vld [vmem:[#allocation14 + $0x20] sm:$0xff]
        %v9987 = vld [vmem:[#allocation14 + $0x28] sm:$0xff]
        %v9988 = vld [vmem:[#allocation14 + $0x30] sm:$0xff]
        %v9989 = vld [vmem:[#allocation14 + $0x38] sm:$0xff]
        %v9990 = vld [vmem:[#allocation14 + $0x40] sm:$0xff]
        %v9991 = vld [vmem:[#allocation14 + $0x48] sm:$0xff]
        %v9992 = vld [vmem:[#allocation14 + $0x50] sm:$0xff]
        %v9993 = vld [vmem:[#allocation14 + $0x58] sm:$0xff]
        %v9994 = vld [vmem:[#allocation14 + $0x60] sm:$0xff]
        %v9995 = vld [vmem:[#allocation14 + $0x68] sm:$0xff]
        %v9996 = vld [vmem:[#allocation14 + $0x70] sm:$0xff]
        %v9997 = vld [vmem:[#allocation14 + $0x78] sm:$0xff]
        %v9998 = vld [vmem:[#allocation14 + $0x80] sm:$0xff]
        %v9999 = vld [vmem:[#allocation14 + $0x88] sm:$0xff]
        %v10000 = vld [vmem:[#allocation14 + $0x90] sm:$0xff]
        %v10001 = vld [vmem:[#allocation14 + $0x98] sm:$0xff]
        %v10002 = vld [vmem:[#allocation14 + $0xa0] sm:$0xff]
        %v10003 = vld [vmem:[#allocation14 + $0xa8] sm:$0xff]
        %v10004 = vld [vmem:[#allocation14 + $0xb0] sm:$0xff]
        %v10005 = vld [vmem:[#allocation14 + $0xb8] sm:$0xff]
        %v10006 = vld [vmem:[#allocation14 + $0xc0] sm:$0xff]
        %v10007 = vld [vmem:[#allocation14 + $0xc8] sm:$0xff]
        %v10008 = vld [vmem:[#allocation14 + $0xd0] sm:$0xff]
        %v10009 = vld [vmem:[#allocation14 + $0xd8] sm:$0xff]
        %v10010 = vld [vmem:[#allocation14 + $0xe0] sm:$0xff]
        %v10011 = vld [vmem:[#allocation14 + $0xe8] sm:$0xff]
        %v10012 = vld [vmem:[#allocation14 + $0xf0] sm:$0xff]
        %v10013 = vld [vmem:[#allocation14 + $0xf8] sm:$0xff]
        %v10014 = vld [vmem:[#allocation14 + $0x100] sm:$0xff]
        %v10015 = vld [vmem:[#allocation14 + $0x108] sm:$0xff]
        %v10016 = vld [vmem:[#allocation14 + $0x110] sm:$0xff]
        %v10017 = vld [vmem:[#allocation14 + $0x118] sm:$0xff]
        %v10018 = vld [vmem:[#allocation14 + $0x120] sm:$0xff]
        %v10019 = vld [vmem:[#allocation14 + $0x128] sm:$0xff]
        %v10020 = vld [vmem:[#allocation14 + $0x130] sm:$0xff]
        %v10021 = vld [vmem:[#allocation14 + $0x138] sm:$0xff]
        %v10022 = vld [vmem:[#allocation14 + $0x140] sm:$0xff]
        %v10023 = vld [vmem:[#allocation14 + $0x148] sm:$0xff]
        %v10024 = vld [vmem:[#allocation14 + $0x150] sm:$0xff]
        %v10025 = vld [vmem:[#allocation14 + $0x158] sm:$0xff]
        %v10026 = vld [vmem:[#allocation14 + $0x160] sm:$0xff]
        %v10027 = vld [vmem:[#allocation14 + $0x168] sm:$0xff]
        %v10028 = vld [vmem:[#allocation14 + $0x170] sm:$0xff]
        %v10029 = vld [vmem:[#allocation14 + $0x178] sm:$0xff]
        %v10030 = vld [vmem:[#allocation14 + $0x180] sm:$0xff]
        %v10031 = vld [vmem:[#allocation14 + $0x188] sm:$0xff]
        %v10032 = vld [vmem:[#allocation14 + $0x190] sm:$0xff]
        %v10033 = vld [vmem:[#allocation14 + $0x198] sm:$0xff]
        %v10034 = vld [vmem:[#allocation14 + $0x1a0] sm:$0xff]
        %v10035 = vld [vmem:[#allocation14 + $0x1a8] sm:$0xff]
        %v10036 = vld [vmem:[#allocation14 + $0x1b0] sm:$0xff]
        %v10037 = vld [vmem:[#allocation14 + $0x1b8] sm:$0xff]
        %v10038 = vld [vmem:[#allocation14 + $0x1c0] sm:$0xff]
        %v10039 = vld [vmem:[#allocation14 + $0x1c8] sm:$0xff]
        %v10040 = vld [vmem:[#allocation14 + $0x1d0] sm:$0xff]
        %v10041 = vld [vmem:[#allocation14 + $0x1d8] sm:$0xff]
        %v10042 = vld [vmem:[#allocation14 + $0x1e0] sm:$0xff]
        %v10043 = vld [vmem:[#allocation14 + $0x1e8] sm:$0xff]
        %v10044 = vld [vmem:[#allocation14 + $0x1f0] sm:$0xff]
        %v10045 = vld [vmem:[#allocation14 + $0x1f8] sm:$0xff]
        %v10046 = vld [vmem:[#allocation14 + $0x200] sm:$0xff]
        %v10047 = vld [vmem:[#allocation14 + $0x208] sm:$0xff]
        %v10048 = vld [vmem:[#allocation14 + $0x210] sm:$0xff]
        %v10049 = vld [vmem:[#allocation14 + $0x218] sm:$0xff]
        %v10050 = vld [vmem:[#allocation14 + $0x220] sm:$0xff]
        %v10051 = vld [vmem:[#allocation14 + $0x228] sm:$0xff]
        %v10052 = vld [vmem:[#allocation14 + $0x230] sm:$0xff]
        %v10053 = vld [vmem:[#allocation14 + $0x238] sm:$0xff]
        %v10054 = vld [vmem:[#allocation14 + $0x240] sm:$0xff]
        %v10055 = vld [vmem:[#allocation14 + $0x248] sm:$0xff]
        %v10056 = vld [vmem:[#allocation14 + $0x250] sm:$0xff]
        %v10057 = vld [vmem:[#allocation14 + $0x258] sm:$0xff]
        %v10058 = vld [vmem:[#allocation14 + $0x260] sm:$0xff]
        %v10059 = vld [vmem:[#allocation14 + $0x268] sm:$0xff]
        %v10060 = vld [vmem:[#allocation14 + $0x270] sm:$0xff]
        %v10061 = vld [vmem:[#allocation14 + $0x278] sm:$0xff]
        %v10062 = vld [vmem:[#allocation14 + $0x280] sm:$0xff]
        %v10063 = vld [vmem:[#allocation14 + $0x288] sm:$0xff]
        %v10064 = vld [vmem:[#allocation14 + $0x290] sm:$0xff]
        %v10065 = vld [vmem:[#allocation14 + $0x298] sm:$0xff]
        %v10066 = vld [vmem:[#allocation14 + $0x2a0] sm:$0xff]
        %v10067 = vld [vmem:[#allocation14 + $0x2a8] sm:$0xff]
        %v10068 = vld [vmem:[#allocation14 + $0x2b0] sm:$0xff]
        %v10069 = vld [vmem:[#allocation14 + $0x2b8] sm:$0xff]
        %v10070 = vld [vmem:[#allocation14 + $0x2c0] sm:$0xff]
        %v10071 = vld [vmem:[#allocation14 + $0x2c8] sm:$0xff]
        %v10072 = vld [vmem:[#allocation14 + $0x2d0] sm:$0xff]
        %v10073 = vld [vmem:[#allocation14 + $0x2d8] sm:$0xff]
        %v10074 = vld [vmem:[#allocation14 + $0x2e0] sm:$0xff]
        %v10075 = vld [vmem:[#allocation14 + $0x2e8] sm:$0xff]
        %v10076 = vld [vmem:[#allocation14 + $0x2f0] sm:$0xff]
        %v10077 = vld [vmem:[#allocation14 + $0x2f8] sm:$0xff]
        %v10078 = vld [vmem:[#allocation14 + $0x300] sm:$0xff]
        %v10079 = vld [vmem:[#allocation14 + $0x308] sm:$0xff]
        %v10080 = vld [vmem:[#allocation14 + $0x310] sm:$0xff]
        %v10081 = vld [vmem:[#allocation14 + $0x318] sm:$0xff]
        %v10082 = vld [vmem:[#allocation14 + $0x320] sm:$0xff]
        %v10083 = vld [vmem:[#allocation14 + $0x328] sm:$0xff]
        %v10084 = vld [vmem:[#allocation14 + $0x330] sm:$0xff]
        %v10085 = vld [vmem:[#allocation14 + $0x338] sm:$0xff]
        %v10086 = vld [vmem:[#allocation14 + $0x340] sm:$0xff]
        %v10087 = vld [vmem:[#allocation14 + $0x348] sm:$0xff]
        %v10088 = vld [vmem:[#allocation14 + $0x350] sm:$0xff]
        %v10089 = vld [vmem:[#allocation14 + $0x358] sm:$0xff]
        %v10090 = vld [vmem:[#allocation14 + $0x360] sm:$0xff]
        %v10091 = vld [vmem:[#allocation14 + $0x368] sm:$0xff]
        %v10092 = vld [vmem:[#allocation14 + $0x370] sm:$0xff]
        %v10093 = vld [vmem:[#allocation14 + $0x378] sm:$0xff]
        %v10094 = vld [vmem:[#allocation14 + $0x380] sm:$0xff]
        %v10095 = vld [vmem:[#allocation14 + $0x388] sm:$0xff]
        %v10096 = vld [vmem:[#allocation14 + $0x390] sm:$0xff]
        %v10097 = vld [vmem:[#allocation14 + $0x398] sm:$0xff]
        %v10098 = vld [vmem:[#allocation14 + $0x3a0] sm:$0xff]
        %v10099 = vld [vmem:[#allocation14 + $0x3a8] sm:$0xff]
        %v10100 = vld [vmem:[#allocation14 + $0x3b0] sm:$0xff]
        %v10101 = vld [vmem:[#allocation14 + $0x3b8] sm:$0xff]
        %v10102 = vld [vmem:[#allocation14 + $0x3c0] sm:$0xff]
        %v10103 = vld [vmem:[#allocation14 + $0x3c8] sm:$0xff]
        %v10104 = vld [vmem:[#allocation14 + $0x3d0] sm:$0xff]
        %v10105 = vld [vmem:[#allocation14 + $0x3d8] sm:$0xff]
        %v10106 = vld [vmem:[#allocation14 + $0x3e0] sm:$0xff]
        %v10107 = vld [vmem:[#allocation14 + $0x3e8] sm:$0xff]
        %v10108 = vld [vmem:[#allocation14 + $0x3f0] sm:$0xff]
        %v10109 = vld [vmem:[#allocation14 + $0x3f8] sm:$0xff]
        %v10110 = vld [vmem:[#allocation16] sm:$0xf]
        %v10112 = vlaneseq
        %v10113 = vshrl.u32 %v10112, 7
        %v10114 = vsub.s32 0, %v10113
        %v10115 = vrot.slane %v10110, %v10114
        %v10116 = vlaneseq
        %v10117 = vshrl.u32 %v10116, 7
        %v10118 = vsub.s32 1, %v10117
        %v10119 = vrot.slane %v10110, %v10118
        %v10120 = vlaneseq
        %v10121 = vshrl.u32 %v10120, 7
        %v10122 = vsub.s32 2, %v10121
        %v10123 = vrot.slane %v10110, %v10122
        %v10124 = vlaneseq
        %v10125 = vshrl.u32 %v10124, 7
        %v10126 = vsub.s32 3, %v10125
        %v10127 = vrot.slane %v10110, %v10126
        %v10260 = vunpack.c.l.b16 %v9982
        %v10261 = vunpack.c.h.b16 %v9982
        %v10262 = vunpack.c.l.b16 %v9983
        %v10263 = vunpack.c.h.b16 %v9983
        %v10264 = vunpack.c.l.b16 %v9984
        %v10265 = vunpack.c.h.b16 %v9984
        %v10266 = vunpack.c.l.b16 %v9985
        %v10267 = vunpack.c.h.b16 %v9985
        %v10268 = vunpack.c.l.b16 %v9986
        %v10269 = vunpack.c.h.b16 %v9986
        %v10270 = vunpack.c.l.b16 %v9987
        %v10271 = vunpack.c.h.b16 %v9987
        %v10272 = vunpack.c.l.b16 %v9988
        %v10273 = vunpack.c.h.b16 %v9988
        %v10274 = vunpack.c.l.b16 %v9989
        %v10275 = vunpack.c.h.b16 %v9989
        %v10276 = vunpack.c.l.b16 %v9990
        %v10277 = vunpack.c.h.b16 %v9990
        %v10278 = vunpack.c.l.b16 %v9991
        %v10279 = vunpack.c.h.b16 %v9991
        %v10280 = vunpack.c.l.b16 %v9992
        %v10281 = vunpack.c.h.b16 %v9992
        %v10282 = vunpack.c.l.b16 %v9993
        %v10283 = vunpack.c.h.b16 %v9993
        %v10284 = vunpack.c.l.b16 %v9994
        %v10285 = vunpack.c.h.b16 %v9994
        %v10286 = vunpack.c.l.b16 %v9995
        %v10287 = vunpack.c.h.b16 %v9995
        %v10288 = vunpack.c.l.b16 %v9996
        %v10289 = vunpack.c.h.b16 %v9996
        %v10290 = vunpack.c.l.b16 %v9997
        %v10291 = vunpack.c.h.b16 %v9997
        %v10292 = vunpack.c.l.b16 %v9998
        %v10293 = vunpack.c.h.b16 %v9998
        %v10294 = vunpack.c.l.b16 %v9999
        %v10295 = vunpack.c.h.b16 %v9999
        %v10296 = vunpack.c.l.b16 %v10000
        %v10297 = vunpack.c.h.b16 %v10000
        %v10298 = vunpack.c.l.b16 %v10001
        %v10299 = vunpack.c.h.b16 %v10001
        %v10300 = vunpack.c.l.b16 %v10002
        %v10301 = vunpack.c.h.b16 %v10002
        %v10302 = vunpack.c.l.b16 %v10003
        %v10303 = vunpack.c.h.b16 %v10003
        %v10304 = vunpack.c.l.b16 %v10004
        %v10305 = vunpack.c.h.b16 %v10004
        %v10306 = vunpack.c.l.b16 %v10005
        %v10307 = vunpack.c.h.b16 %v10005
        %v10308 = vunpack.c.l.b16 %v10006
        %v10309 = vunpack.c.h.b16 %v10006
        %v10310 = vunpack.c.l.b16 %v10007
        %v10311 = vunpack.c.h.b16 %v10007
        %v10312 = vunpack.c.l.b16 %v10008
        %v10313 = vunpack.c.h.b16 %v10008
        %v10314 = vunpack.c.l.b16 %v10009
        %v10315 = vunpack.c.h.b16 %v10009
        %v10316 = vunpack.c.l.b16 %v10010
        %v10317 = vunpack.c.h.b16 %v10010
        %v10318 = vunpack.c.l.b16 %v10011
        %v10319 = vunpack.c.h.b16 %v10011
        %v10320 = vunpack.c.l.b16 %v10012
        %v10321 = vunpack.c.h.b16 %v10012
        %v10322 = vunpack.c.l.b16 %v10013
        %v10323 = vunpack.c.h.b16 %v10013
        %v10324 = vunpack.c.l.b16 %v10014
        %v10325 = vunpack.c.h.b16 %v10014
        %v10326 = vunpack.c.l.b16 %v10015
        %v10327 = vunpack.c.h.b16 %v10015
        %v10328 = vunpack.c.l.b16 %v10016
        %v10329 = vunpack.c.h.b16 %v10016
        %v10330 = vunpack.c.l.b16 %v10017
        %v10331 = vunpack.c.h.b16 %v10017
        %v10332 = vunpack.c.l.b16 %v10018
        %v10333 = vunpack.c.h.b16 %v10018
        %v10334 = vunpack.c.l.b16 %v10019
        %v10335 = vunpack.c.h.b16 %v10019
        %v10336 = vunpack.c.l.b16 %v10020
        %v10337 = vunpack.c.h.b16 %v10020
        %v10338 = vunpack.c.l.b16 %v10021
        %v10339 = vunpack.c.h.b16 %v10021
        %v10340 = vunpack.c.l.b16 %v10022
        %v10341 = vunpack.c.h.b16 %v10022
        %v10342 = vunpack.c.l.b16 %v10023
        %v10343 = vunpack.c.h.b16 %v10023
        %v10344 = vunpack.c.l.b16 %v10024
        %v10345 = vunpack.c.h.b16 %v10024
        %v10346 = vunpack.c.l.b16 %v10025
        %v10347 = vunpack.c.h.b16 %v10025
        %v10348 = vunpack.c.l.b16 %v10026
        %v10349 = vunpack.c.h.b16 %v10026
        %v10350 = vunpack.c.l.b16 %v10027
        %v10351 = vunpack.c.h.b16 %v10027
        %v10352 = vunpack.c.l.b16 %v10028
        %v10353 = vunpack.c.h.b16 %v10028
        %v10354 = vunpack.c.l.b16 %v10029
        %v10355 = vunpack.c.h.b16 %v10029
        %v10356 = vunpack.c.l.b16 %v10030
        %v10357 = vunpack.c.h.b16 %v10030
        %v10358 = vunpack.c.l.b16 %v10031
        %v10359 = vunpack.c.h.b16 %v10031
        %v10360 = vunpack.c.l.b16 %v10032
        %v10361 = vunpack.c.h.b16 %v10032
        %v10362 = vunpack.c.l.b16 %v10033
        %v10363 = vunpack.c.h.b16 %v10033
        %v10364 = vunpack.c.l.b16 %v10034
        %v10365 = vunpack.c.h.b16 %v10034
        %v10366 = vunpack.c.l.b16 %v10035
        %v10367 = vunpack.c.h.b16 %v10035
        %v10368 = vunpack.c.l.b16 %v10036
        %v10369 = vunpack.c.h.b16 %v10036
        %v10370 = vunpack.c.l.b16 %v10037
        %v10371 = vunpack.c.h.b16 %v10037
        %v10372 = vunpack.c.l.b16 %v10038
        %v10373 = vunpack.c.h.b16 %v10038
        %v10374 = vunpack.c.l.b16 %v10039
        %v10375 = vunpack.c.h.b16 %v10039
        %v10376 = vunpack.c.l.b16 %v10040
        %v10377 = vunpack.c.h.b16 %v10040
        %v10378 = vunpack.c.l.b16 %v10041
        %v10379 = vunpack.c.h.b16 %v10041
        %v10380 = vunpack.c.l.b16 %v10042
        %v10381 = vunpack.c.h.b16 %v10042
        %v10382 = vunpack.c.l.b16 %v10043
        %v10383 = vunpack.c.h.b16 %v10043
        %v10384 = vunpack.c.l.b16 %v10044
        %v10385 = vunpack.c.h.b16 %v10044
        %v10386 = vunpack.c.l.b16 %v10045
        %v10387 = vunpack.c.h.b16 %v10045
        %v10388 = vunpack.c.l.b16 %v10046
        %v10389 = vunpack.c.h.b16 %v10046
        %v10390 = vunpack.c.l.b16 %v10047
        %v10391 = vunpack.c.h.b16 %v10047
        %v10392 = vunpack.c.l.b16 %v10048
        %v10393 = vunpack.c.h.b16 %v10048
        %v10394 = vunpack.c.l.b16 %v10049
        %v10395 = vunpack.c.h.b16 %v10049
        %v10396 = vunpack.c.l.b16 %v10050
        %v10397 = vunpack.c.h.b16 %v10050
        %v10398 = vunpack.c.l.b16 %v10051
        %v10399 = vunpack.c.h.b16 %v10051
        %v10400 = vunpack.c.l.b16 %v10052
        %v10401 = vunpack.c.h.b16 %v10052
        %v10402 = vunpack.c.l.b16 %v10053
        %v10403 = vunpack.c.h.b16 %v10053
        %v10404 = vunpack.c.l.b16 %v10054
        %v10405 = vunpack.c.h.b16 %v10054
        %v10406 = vunpack.c.l.b16 %v10055
        %v10407 = vunpack.c.h.b16 %v10055
        %v10408 = vunpack.c.l.b16 %v10056
        %v10409 = vunpack.c.h.b16 %v10056
        %v10410 = vunpack.c.l.b16 %v10057
        %v10411 = vunpack.c.h.b16 %v10057
        %v10412 = vunpack.c.l.b16 %v10058
        %v10413 = vunpack.c.h.b16 %v10058
        %v10414 = vunpack.c.l.b16 %v10059
        %v10415 = vunpack.c.h.b16 %v10059
        %v10416 = vunpack.c.l.b16 %v10060
        %v10417 = vunpack.c.h.b16 %v10060
        %v10418 = vunpack.c.l.b16 %v10061
        %v10419 = vunpack.c.h.b16 %v10061
        %v10420 = vunpack.c.l.b16 %v10062
        %v10421 = vunpack.c.h.b16 %v10062
        %v10422 = vunpack.c.l.b16 %v10063
        %v10423 = vunpack.c.h.b16 %v10063
        %v10424 = vunpack.c.l.b16 %v10064
        %v10425 = vunpack.c.h.b16 %v10064
        %v10426 = vunpack.c.l.b16 %v10065
        %v10427 = vunpack.c.h.b16 %v10065
        %v10428 = vunpack.c.l.b16 %v10066
        %v10429 = vunpack.c.h.b16 %v10066
        %v10430 = vunpack.c.l.b16 %v10067
        %v10431 = vunpack.c.h.b16 %v10067
        %v10432 = vunpack.c.l.b16 %v10068
        %v10433 = vunpack.c.h.b16 %v10068
        %v10434 = vunpack.c.l.b16 %v10069
        %v10435 = vunpack.c.h.b16 %v10069
        %v10436 = vunpack.c.l.b16 %v10070
        %v10437 = vunpack.c.h.b16 %v10070
        %v10438 = vunpack.c.l.b16 %v10071
        %v10439 = vunpack.c.h.b16 %v10071
        %v10440 = vunpack.c.l.b16 %v10072
        %v10441 = vunpack.c.h.b16 %v10072
        %v10442 = vunpack.c.l.b16 %v10073
        %v10443 = vunpack.c.h.b16 %v10073
        %v10444 = vunpack.c.l.b16 %v10074
        %v10445 = vunpack.c.h.b16 %v10074
        %v10446 = vunpack.c.l.b16 %v10075
        %v10447 = vunpack.c.h.b16 %v10075
        %v10448 = vunpack.c.l.b16 %v10076
        %v10449 = vunpack.c.h.b16 %v10076
        %v10450 = vunpack.c.l.b16 %v10077
        %v10451 = vunpack.c.h.b16 %v10077
        %v10452 = vunpack.c.l.b16 %v10078
        %v10453 = vunpack.c.h.b16 %v10078
        %v10454 = vunpack.c.l.b16 %v10079
        %v10455 = vunpack.c.h.b16 %v10079
        %v10456 = vunpack.c.l.b16 %v10080
        %v10457 = vunpack.c.h.b16 %v10080
        %v10458 = vunpack.c.l.b16 %v10081
        %v10459 = vunpack.c.h.b16 %v10081
        %v10460 = vunpack.c.l.b16 %v10082
        %v10461 = vunpack.c.h.b16 %v10082
        %v10462 = vunpack.c.l.b16 %v10083
        %v10463 = vunpack.c.h.b16 %v10083
        %v10464 = vunpack.c.l.b16 %v10084
        %v10465 = vunpack.c.h.b16 %v10084
        %v10466 = vunpack.c.l.b16 %v10085
        %v10467 = vunpack.c.h.b16 %v10085
        %v10468 = vunpack.c.l.b16 %v10086
        %v10469 = vunpack.c.h.b16 %v10086
        %v10470 = vunpack.c.l.b16 %v10087
        %v10471 = vunpack.c.h.b16 %v10087
        %v10472 = vunpack.c.l.b16 %v10088
        %v10473 = vunpack.c.h.b16 %v10088
        %v10474 = vunpack.c.l.b16 %v10089
        %v10475 = vunpack.c.h.b16 %v10089
        %v10476 = vunpack.c.l.b16 %v10090
        %v10477 = vunpack.c.h.b16 %v10090
        %v10478 = vunpack.c.l.b16 %v10091
        %v10479 = vunpack.c.h.b16 %v10091
        %v10480 = vunpack.c.l.b16 %v10092
        %v10481 = vunpack.c.h.b16 %v10092
        %v10482 = vunpack.c.l.b16 %v10093
        %v10483 = vunpack.c.h.b16 %v10093
        %v10484 = vunpack.c.l.b16 %v10094
        %v10485 = vunpack.c.h.b16 %v10094
        %v10486 = vunpack.c.l.b16 %v10095
        %v10487 = vunpack.c.h.b16 %v10095
        %v10488 = vunpack.c.l.b16 %v10096
        %v10489 = vunpack.c.h.b16 %v10096
        %v10490 = vunpack.c.l.b16 %v10097
        %v10491 = vunpack.c.h.b16 %v10097
        %v10492 = vunpack.c.l.b16 %v10098
        %v10493 = vunpack.c.h.b16 %v10098
        %v10494 = vunpack.c.l.b16 %v10099
        %v10495 = vunpack.c.h.b16 %v10099
        %v10496 = vunpack.c.l.b16 %v10100
        %v10497 = vunpack.c.h.b16 %v10100
        %v10498 = vunpack.c.l.b16 %v10101
        %v10499 = vunpack.c.h.b16 %v10101
        %v10500 = vunpack.c.l.b16 %v10102
        %v10501 = vunpack.c.h.b16 %v10102
        %v10502 = vunpack.c.l.b16 %v10103
        %v10503 = vunpack.c.h.b16 %v10103
        %v10504 = vunpack.c.l.b16 %v10104
        %v10505 = vunpack.c.h.b16 %v10104
        %v10506 = vunpack.c.l.b16 %v10105
        %v10507 = vunpack.c.h.b16 %v10105
        %v10508 = vunpack.c.l.b16 %v10106
        %v10509 = vunpack.c.h.b16 %v10106
        %v10510 = vunpack.c.l.b16 %v10107
        %v10511 = vunpack.c.h.b16 %v10107
        %v10512 = vunpack.c.l.b16 %v10108
        %v10513 = vunpack.c.h.b16 %v10108
        %v10514 = vunpack.c.l.b16 %v10109
        %v10515 = vunpack.c.h.b16 %v10109
        %v10516 = vpack.c.b16 %v10264, %v10260
        %v10517 = vpack.c.b16 %v10265, %v10261
        %v10518 = vpack.c.b16 %v10266, %v10262
        %v10519 = vpack.c.b16 %v10267, %v10263
        %v10520 = vpack.c.b16 %v10272, %v10268
        %v10521 = vpack.c.b16 %v10273, %v10269
        %v10522 = vpack.c.b16 %v10274, %v10270
        %v10523 = vpack.c.b16 %v10275, %v10271
        %v10524 = vpack.c.b16 %v10280, %v10276
        %v10525 = vpack.c.b16 %v10281, %v10277
        %v10526 = vpack.c.b16 %v10282, %v10278
        %v10527 = vpack.c.b16 %v10283, %v10279
        %v10528 = vpack.c.b16 %v10288, %v10284
        %v10529 = vpack.c.b16 %v10289, %v10285
        %v10530 = vpack.c.b16 %v10290, %v10286
        %v10531 = vpack.c.b16 %v10291, %v10287
        %v10532 = vpack.c.b16 %v10296, %v10292
        %v10533 = vpack.c.b16 %v10297, %v10293
        %v10534 = vpack.c.b16 %v10298, %v10294
        %v10535 = vpack.c.b16 %v10299, %v10295
        %v10536 = vpack.c.b16 %v10304, %v10300
        %v10537 = vpack.c.b16 %v10305, %v10301
        %v10538 = vpack.c.b16 %v10306, %v10302
        %v10539 = vpack.c.b16 %v10307, %v10303
        %v10540 = vpack.c.b16 %v10312, %v10308
        %v10541 = vpack.c.b16 %v10313, %v10309
        %v10542 = vpack.c.b16 %v10314, %v10310
        %v10543 = vpack.c.b16 %v10315, %v10311
        %v10544 = vpack.c.b16 %v10320, %v10316
        %v10545 = vpack.c.b16 %v10321, %v10317
        %v10546 = vpack.c.b16 %v10322, %v10318
        %v10547 = vpack.c.b16 %v10323, %v10319
        %v10548 = vpack.c.b16 %v10328, %v10324
        %v10549 = vpack.c.b16 %v10329, %v10325
        %v10550 = vpack.c.b16 %v10330, %v10326
        %v10551 = vpack.c.b16 %v10331, %v10327
        %v10552 = vpack.c.b16 %v10336, %v10332
        %v10553 = vpack.c.b16 %v10337, %v10333
        %v10554 = vpack.c.b16 %v10338, %v10334
        %v10555 = vpack.c.b16 %v10339, %v10335
        %v10556 = vpack.c.b16 %v10344, %v10340
        %v10557 = vpack.c.b16 %v10345, %v10341
        %v10558 = vpack.c.b16 %v10346, %v10342
        %v10559 = vpack.c.b16 %v10347, %v10343
        %v10560 = vpack.c.b16 %v10352, %v10348
        %v10561 = vpack.c.b16 %v10353, %v10349
        %v10562 = vpack.c.b16 %v10354, %v10350
        %v10563 = vpack.c.b16 %v10355, %v10351
        %v10564 = vpack.c.b16 %v10360, %v10356
        %v10565 = vpack.c.b16 %v10361, %v10357
        %v10566 = vpack.c.b16 %v10362, %v10358
        %v10567 = vpack.c.b16 %v10363, %v10359
        %v10568 = vpack.c.b16 %v10368, %v10364
        %v10569 = vpack.c.b16 %v10369, %v10365
        %v10570 = vpack.c.b16 %v10370, %v10366
        %v10571 = vpack.c.b16 %v10371, %v10367
        %v10572 = vpack.c.b16 %v10376, %v10372
        %v10573 = vpack.c.b16 %v10377, %v10373
        %v10574 = vpack.c.b16 %v10378, %v10374
        %v10575 = vpack.c.b16 %v10379, %v10375
        %v10576 = vpack.c.b16 %v10384, %v10380
        %v10577 = vpack.c.b16 %v10385, %v10381
        %v10578 = vpack.c.b16 %v10386, %v10382
        %v10579 = vpack.c.b16 %v10387, %v10383
        %v10580 = vpack.c.b16 %v10392, %v10388
        %v10581 = vpack.c.b16 %v10393, %v10389
        %v10582 = vpack.c.b16 %v10394, %v10390
        %v10583 = vpack.c.b16 %v10395, %v10391
        %v10584 = vpack.c.b16 %v10400, %v10396
        %v10585 = vpack.c.b16 %v10401, %v10397
        %v10586 = vpack.c.b16 %v10402, %v10398
        %v10587 = vpack.c.b16 %v10403, %v10399
        %v10588 = vpack.c.b16 %v10408, %v10404
        %v10589 = vpack.c.b16 %v10409, %v10405
        %v10590 = vpack.c.b16 %v10410, %v10406
        %v10591 = vpack.c.b16 %v10411, %v10407
        %v10592 = vpack.c.b16 %v10416, %v10412
        %v10593 = vpack.c.b16 %v10417, %v10413
        %v10594 = vpack.c.b16 %v10418, %v10414
        %v10595 = vpack.c.b16 %v10419, %v10415
        %v10596 = vpack.c.b16 %v10424, %v10420
        %v10597 = vpack.c.b16 %v10425, %v10421
        %v10598 = vpack.c.b16 %v10426, %v10422
        %v10599 = vpack.c.b16 %v10427, %v10423
        %v10600 = vpack.c.b16 %v10432, %v10428
        %v10601 = vpack.c.b16 %v10433, %v10429
        %v10602 = vpack.c.b16 %v10434, %v10430
        %v10603 = vpack.c.b16 %v10435, %v10431
        %v10604 = vpack.c.b16 %v10440, %v10436
        %v10605 = vpack.c.b16 %v10441, %v10437
        %v10606 = vpack.c.b16 %v10442, %v10438
        %v10607 = vpack.c.b16 %v10443, %v10439
        %v10608 = vpack.c.b16 %v10448, %v10444
        %v10609 = vpack.c.b16 %v10449, %v10445
        %v10610 = vpack.c.b16 %v10450, %v10446
        %v10611 = vpack.c.b16 %v10451, %v10447
        %v10612 = vpack.c.b16 %v10456, %v10452
        %v10613 = vpack.c.b16 %v10457, %v10453
        %v10614 = vpack.c.b16 %v10458, %v10454
        %v10615 = vpack.c.b16 %v10459, %v10455
        %v10616 = vpack.c.b16 %v10464, %v10460
        %v10617 = vpack.c.b16 %v10465, %v10461
        %v10618 = vpack.c.b16 %v10466, %v10462
        %v10619 = vpack.c.b16 %v10467, %v10463
        %v10620 = vpack.c.b16 %v10472, %v10468
        %v10621 = vpack.c.b16 %v10473, %v10469
        %v10622 = vpack.c.b16 %v10474, %v10470
        %v10623 = vpack.c.b16 %v10475, %v10471
        %v10624 = vpack.c.b16 %v10480, %v10476
        %v10625 = vpack.c.b16 %v10481, %v10477
        %v10626 = vpack.c.b16 %v10482, %v10478
        %v10627 = vpack.c.b16 %v10483, %v10479
        %v10628 = vpack.c.b16 %v10488, %v10484
        %v10629 = vpack.c.b16 %v10489, %v10485
        %v10630 = vpack.c.b16 %v10490, %v10486
        %v10631 = vpack.c.b16 %v10491, %v10487
        %v10632 = vpack.c.b16 %v10496, %v10492
        %v10633 = vpack.c.b16 %v10497, %v10493
        %v10634 = vpack.c.b16 %v10498, %v10494
        %v10635 = vpack.c.b16 %v10499, %v10495
        %v10636 = vpack.c.b16 %v10504, %v10500
        %v10637 = vpack.c.b16 %v10505, %v10501
        %v10638 = vpack.c.b16 %v10506, %v10502
        %v10639 = vpack.c.b16 %v10507, %v10503
        %v10640 = vpack.c.b16 %v10512, %v10508
        %v10641 = vpack.c.b16 %v10513, %v10509
        %v10642 = vpack.c.b16 %v10514, %v10510
        %v10643 = vpack.c.b16 %v10515, %v10511
        %10772 = vmatprep.subr.bf16.mxu0 %v10545
        %10773 = vmatpush1.bf16.msra.mxu0 %v10544
        %10774 = vmatprep.subr.bf16.mxu0 %v10541
        %10775 = vmatpush1.bf16.msra.mxu0 %v10540
        %10776 = vmatprep.subr.bf16.mxu0 %v10537
        %10777 = vmatpush1.bf16.msra.mxu0 %v10536
        %10778 = vmatprep.subr.bf16.mxu0 %v10533
        %10779 = vmatpush1.bf16.msra.mxu0 %v10532
        %10780 = vmatprep.subr.bf16.mxu0 %v10529
        %10781 = vmatpush1.bf16.msra.mxu0 %v10528
        %10782 = vmatprep.subr.bf16.mxu0 %v10525
        %10783 = vmatpush1.bf16.msra.mxu0 %v10524
        %10784 = vmatprep.subr.bf16.mxu0 %v10521
        %10785 = vmatpush1.bf16.msra.mxu0 %v10520
        %10786 = vmatprep.subr.bf16.mxu0 %v10517
        %10787 = vmatpush1.bf16.msra.mxu0 %v10516
        %10788 = vmatprep.subr.bf16.mxu0 %v10577
        %10789 = vmatpush2.bf16.msra.mxu0 %v10576
        %10790 = vmatprep.subr.bf16.mxu0 %v10573
        %10791 = vmatpush2.bf16.msra.mxu0 %v10572
        %10792 = vmatprep.subr.bf16.mxu0 %v10569
        %10793 = vmatpush2.bf16.msra.mxu0 %v10568
        %10794 = vmatprep.subr.bf16.mxu0 %v10565
        %10795 = vmatpush2.bf16.msra.mxu0 %v10564
        %10796 = vmatprep.subr.bf16.mxu0 %v10561
        %10797 = vmatpush2.bf16.msra.mxu0 %v10560
        %10798 = vmatprep.subr.bf16.mxu0 %v10557
        %10799 = vmatpush2.bf16.msra.mxu0 %v10556
        %10800 = vmatprep.subr.bf16.mxu0 %v10553
        %10801 = vmatpush2.bf16.msra.mxu0 %v10552
        %10802 = vmatprep.subr.bf16.mxu0 %v10549
        %10803 = vmatpush2.bf16.msra.mxu0 %v10548
        %10804 = vmatprep.mubr.bf16.mxu0 %v9979
        %10805 = vmatmul.mubr.bf16.gmra.mxu0 %v9978
        %v10806 = vpop.f32.mrf.mxu0
        %v10807 = vadd.f32 %v10115, %v10806
        %v10808 = vpop.f32.mrf.mxu0
        %v10809 = vadd.f32 %v10119, %v10808
        %v10810 = vpop.f32.mrf.mxu0
        %v10811 = vpop.f32.mrf.mxu0
        %10812 = vdwg.mxu0
        %10813 = vmatprep.subr.bf16.mxu0 %v10609
        %10814 = vmatpush1.bf16.msra.mxu0 %v10608
        %10815 = vmatprep.subr.bf16.mxu0 %v10605
        %10816 = vmatpush1.bf16.msra.mxu0 %v10604
        %10817 = vmatprep.subr.bf16.mxu0 %v10601
        %10818 = vmatpush1.bf16.msra.mxu0 %v10600
        %10819 = vmatprep.subr.bf16.mxu0 %v10597
        %10820 = vmatpush1.bf16.msra.mxu0 %v10596
        %10821 = vmatprep.subr.bf16.mxu0 %v10593
        %10822 = vmatpush1.bf16.msra.mxu0 %v10592
        %10823 = vmatprep.subr.bf16.mxu0 %v10589
        %10824 = vmatpush1.bf16.msra.mxu0 %v10588
        %10825 = vmatprep.subr.bf16.mxu0 %v10585
        %10826 = vmatpush1.bf16.msra.mxu0 %v10584
        %10827 = vmatprep.subr.bf16.mxu0 %v10581
        %10828 = vmatpush1.bf16.msra.mxu0 %v10580
        %10829 = vmatprep.subr.bf16.mxu0 %v10641
        %10830 = vmatpush2.bf16.msra.mxu0 %v10640
        %10831 = vmatprep.subr.bf16.mxu0 %v10637
        %10832 = vmatpush2.bf16.msra.mxu0 %v10636
        %10833 = vmatprep.subr.bf16.mxu0 %v10633
        %10834 = vmatpush2.bf16.msra.mxu0 %v10632
        %10835 = vmatprep.subr.bf16.mxu0 %v10629
        %10836 = vmatpush2.bf16.msra.mxu0 %v10628
        %10837 = vmatprep.subr.bf16.mxu0 %v10625
        %10838 = vmatpush2.bf16.msra.mxu0 %v10624
        %10839 = vmatprep.subr.bf16.mxu0 %v10621
        %10840 = vmatpush2.bf16.msra.mxu0 %v10620
        %10841 = vmatprep.subr.bf16.mxu0 %v10617
        %10842 = vmatpush2.bf16.msra.mxu0 %v10616
        %10843 = vmatprep.subr.bf16.mxu0 %v10613
        %10844 = vmatpush2.bf16.msra.mxu0 %v10612
        %10845 = vmatprep.mubr.bf16.mxu0 %v9981
        %10846 = vmatmul.mubr.bf16.gmra.mxu0 %v9980
        %v10847 = vpop.f32.mrf.mxu0
        %v10848 = vadd.f32 %v10807, %v10847
        %v10849 = vpop.f32.mrf.mxu0
        %v10850 = vadd.f32 %v10809, %v10849
        %v10851 = vpop.f32.mrf.mxu0
        %v10852 = vpop.f32.mrf.mxu0
        %10853 = vdwg.mxu0
        %10854 = vmatprep.subr.bf16.mxu0 %v10547
        %10855 = vmatpush1.bf16.msra.mxu0 %v10546
        %10856 = vmatprep.subr.bf16.mxu0 %v10543
        %10857 = vmatpush1.bf16.msra.mxu0 %v10542
        %10858 = vmatprep.subr.bf16.mxu0 %v10539
        %10859 = vmatpush1.bf16.msra.mxu0 %v10538
        %10860 = vmatprep.subr.bf16.mxu0 %v10535
        %10861 = vmatpush1.bf16.msra.mxu0 %v10534
        %10862 = vmatprep.subr.bf16.mxu0 %v10531
        %10863 = vmatpush1.bf16.msra.mxu0 %v10530
        %10864 = vmatprep.subr.bf16.mxu0 %v10527
        %10865 = vmatpush1.bf16.msra.mxu0 %v10526
        %10866 = vmatprep.subr.bf16.mxu0 %v10523
        %10867 = vmatpush1.bf16.msra.mxu0 %v10522
        %10868 = vmatprep.subr.bf16.mxu0 %v10519
        %10869 = vmatpush1.bf16.msra.mxu0 %v10518
        %10870 = vmatprep.subr.bf16.mxu0 %v10579
        %10871 = vmatpush2.bf16.msra.mxu0 %v10578
        %10872 = vmatprep.subr.bf16.mxu0 %v10575
        %10873 = vmatpush2.bf16.msra.mxu0 %v10574
        %10874 = vmatprep.subr.bf16.mxu0 %v10571
        %10875 = vmatpush2.bf16.msra.mxu0 %v10570
        %10876 = vmatprep.subr.bf16.mxu0 %v10567
        %10877 = vmatpush2.bf16.msra.mxu0 %v10566
        %10878 = vmatprep.subr.bf16.mxu0 %v10563
        %10879 = vmatpush2.bf16.msra.mxu0 %v10562
        %10880 = vmatprep.subr.bf16.mxu0 %v10559
        %10881 = vmatpush2.bf16.msra.mxu0 %v10558
        %10882 = vmatprep.subr.bf16.mxu0 %v10555
        %10883 = vmatpush2.bf16.msra.mxu0 %v10554
        %10884 = vmatprep.subr.bf16.mxu0 %v10551
        %10885 = vmatpush2.bf16.msra.mxu0 %v10550
        %10886 = vmatprep.mubr.bf16.mxu0 %v9979
        %10887 = vmatmul.mubr.bf16.gmra.mxu0 %v9978
        %v10888 = vpop.f32.mrf.mxu0
        %v10889 = vadd.f32 %v10123, %v10888
        %v10890 = vpop.f32.mrf.mxu0
        %v10891 = vadd.f32 %v10127, %v10890
        %v10892 = vpop.f32.mrf.mxu0
        %v10893 = vpop.f32.mrf.mxu0
        %10894 = vdwg.mxu0
        %10895 = vmatprep.subr.bf16.mxu0 %v10611
        %10896 = vmatpush1.bf16.msra.mxu0 %v10610
        %10897 = vmatprep.subr.bf16.mxu0 %v10607
        %10898 = vmatpush1.bf16.msra.mxu0 %v10606
        %10899 = vmatprep.subr.bf16.mxu0 %v10603
        %10900 = vmatpush1.bf16.msra.mxu0 %v10602
        %10901 = vmatprep.subr.bf16.mxu0 %v10599
        %10902 = vmatpush1.bf16.msra.mxu0 %v10598
        %10903 = vmatprep.subr.bf16.mxu0 %v10595
        %10904 = vmatpush1.bf16.msra.mxu0 %v10594
        %10905 = vmatprep.subr.bf16.mxu0 %v10591
        %10906 = vmatpush1.bf16.msra.mxu0 %v10590
        %10907 = vmatprep.subr.bf16.mxu0 %v10587
        %10908 = vmatpush1.bf16.msra.mxu0 %v10586
        %10909 = vmatprep.subr.bf16.mxu0 %v10583
        %10910 = vmatpush1.bf16.msra.mxu0 %v10582
        %10911 = vmatprep.subr.bf16.mxu0 %v10643
        %10912 = vmatpush2.bf16.msra.mxu0 %v10642
        %10913 = vmatprep.subr.bf16.mxu0 %v10639
        %10914 = vmatpush2.bf16.msra.mxu0 %v10638
        %10915 = vmatprep.subr.bf16.mxu0 %v10635
        %10916 = vmatpush2.bf16.msra.mxu0 %v10634
        %10917 = vmatprep.subr.bf16.mxu0 %v10631
        %10918 = vmatpush2.bf16.msra.mxu0 %v10630
        %10919 = vmatprep.subr.bf16.mxu0 %v10627
        %10920 = vmatpush2.bf16.msra.mxu0 %v10626
        %10921 = vmatprep.subr.bf16.mxu0 %v10623
        %10922 = vmatpush2.bf16.msra.mxu0 %v10622
        %10923 = vmatprep.subr.bf16.mxu0 %v10619
        %10924 = vmatpush2.bf16.msra.mxu0 %v10618
        %10925 = vmatprep.subr.bf16.mxu0 %v10615
        %10926 = vmatpush2.bf16.msra.mxu0 %v10614
        %10927 = vmatprep.mubr.bf16.mxu0 %v9981
        %10928 = vmatmul.mubr.bf16.gmra.mxu0 %v9980
        %v10929 = vpop.f32.mrf.mxu0
        %v10930 = vadd.f32 %v10889, %v10929
        %v10931 = vpop.f32.mrf.mxu0
        %v10932 = vadd.f32 %v10891, %v10931
        %v10933 = vpop.f32.mrf.mxu0
        %v10934 = vpop.f32.mrf.mxu0
        %10935 = vdwg.mxu0
        %v10936 = vadd.f32 %v9012, %v10848
        %v10937 = vadd.f32 %v9013, %v10850
        %v10938 = vadd.f32 %v9014, %v10930
        %v10939 = vadd.f32 %v9015, %v10932
        %v10940 = vadd.f32 %v10936, %v10937
        %v10941 = vadd.f32 %v10940, %v10938
        %v10942 = vadd.f32 %v10941, %v10939
        %10943 = vadd.xlane.f32.xlu0 %v10942
        %v10944 = vpop.xlane.xlu0 %10943
        %v10945 = vmul.f32 %v10944, %v8944
        %v10946 = vsub.f32 %v10936, %v10945
        %v10947 = vsub.f32 %v10937, %v10945
        %v10948 = vsub.f32 %v10938, %v10945
        %v10949 = vsub.f32 %v10939, %v10945
        %v10950 = vmul.f32 %v10946, %v10946
        %v10951 = vmul.f32 %v10947, %v10947
        %v10952 = vmul.f32 %v10948, %v10948
        %v10953 = vmul.f32 %v10949, %v10949
        %v10954 = vadd.f32 %v10950, %v10951
        %v10955 = vadd.f32 %v10954, %v10952
        %v10956 = vadd.f32 %v10955, %v10953
        %10957 = vadd.xlane.f32.xlu0 %v10956
        %v10958 = vpop.xlane.xlu0 %10957
        %v10959 = vmul.f32 %v10958, %v8944
        %v10960 = vadd.f32 %v10959, 1e-05
        %v10961 = vrsqrt.pop %v10960
        %v10962 = vmul.f32 %v10946, %v10961
        %v10963 = vmul.f32 %v10947, %v10961
        %v10964 = vmul.f32 %v10948, %v10961
        %v10965 = vmul.f32 %v10949, %v10961
        %v10967 = vlaneseq
        %v10968 = vshrl.u32 %v10967, 7
        %v10969 = vsub.s32 0, %v10968
        %v10970 = vrot.slane %v8932, %v10969
        %v10971 = vlaneseq
        %v10972 = vshrl.u32 %v10971, 7
        %v10973 = vsub.s32 1, %v10972
        %v10974 = vrot.slane %v8932, %v10973
        %v10975 = vlaneseq
        %v10976 = vshrl.u32 %v10975, 7
        %v10977 = vsub.s32 2, %v10976
        %v10978 = vrot.slane %v8932, %v10977
        %v10979 = vlaneseq
        %v10980 = vshrl.u32 %v10979, 7
        %v10981 = vsub.s32 3, %v10980
        %v10982 = vrot.slane %v8932, %v10981
        %v10987 = vmul.f32 %v10962, %v10970
        %v10988 = vmul.f32 %v10963, %v10974
        %v10989 = vmul.f32 %v10964, %v10978
        %v10990 = vmul.f32 %v10965, %v10982
        %v10992 = vlaneseq
        %v10993 = vshrl.u32 %v10992, 7
        %v10994 = vsub.s32 0, %v10993
        %v10995 = vrot.slane %v8934, %v10994
        %v10996 = vlaneseq
        %v10997 = vshrl.u32 %v10996, 7
        %v10998 = vsub.s32 1, %v10997
        %v10999 = vrot.slane %v8934, %v10998
        %v11000 = vlaneseq
        %v11001 = vshrl.u32 %v11000, 7
        %v11002 = vsub.s32 2, %v11001
        %v11003 = vrot.slane %v8934, %v11002
        %v11004 = vlaneseq
        %v11005 = vshrl.u32 %v11004, 7
        %v11006 = vsub.s32 3, %v11005
        %v11007 = vrot.slane %v8934, %v11006
        %v11012 = vadd.f32 %v10987, %v10995
        %v11013 = vadd.f32 %v10988, %v10999
        %v11014 = vadd.f32 %v10989, %v11003
        %v11015 = vadd.f32 %v10990, %v11007
        %s11016 = scalar_lea.vmem [#allocation17], 4
        %v11017 = vld [vmem:[%s11016] ss:$8 sm:$0xf]
        %s11018 = scalar_lea.vmem [#allocation17], 5
        %v11019 = vld [vmem:[%s11018] ss:$8 sm:$0xf]
        %v11020 = vadd.f32 %v11012, %v11013
        %v11021 = vadd.f32 %v11020, %v11014
        %v11022 = vadd.f32 %v11021, %v11015
        %11023 = vadd.xlane.f32.xlu0 %v11022
        %v11024 = vpop.xlane.xlu0 %11023
        %v11025 = vmul.f32 %v11024, %v8944
        %v11026 = vsub.f32 %v11012, %v11025
        %v11027 = vsub.f32 %v11013, %v11025
        %v11028 = vsub.f32 %v11014, %v11025
        %v11029 = vsub.f32 %v11015, %v11025
        %v11030 = vmul.f32 %v11026, %v11026
        %v11031 = vmul.f32 %v11027, %v11027
        %v11032 = vmul.f32 %v11028, %v11028
        %v11033 = vmul.f32 %v11029, %v11029
        %v11034 = vadd.f32 %v11030, %v11031
        %v11035 = vadd.f32 %v11034, %v11032
        %v11036 = vadd.f32 %v11035, %v11033
        %11037 = vadd.xlane.f32.xlu0 %v11036
        %v11038 = vpop.xlane.xlu0 %11037
        %v11039 = vmul.f32 %v11038, %v8944
        %v11040 = vadd.f32 %v11039, 1e-05
        %v11041 = vrsqrt.pop %v11040
        %v11042 = vmul.f32 %v11026, %v11041
        %v11043 = vmul.f32 %v11027, %v11041
        %v11044 = vmul.f32 %v11028, %v11041
        %v11045 = vmul.f32 %v11029, %v11041
        %v11047 = vlaneseq
        %v11048 = vshrl.u32 %v11047, 7
        %v11049 = vsub.s32 0, %v11048
        %v11050 = vrot.slane %v11017, %v11049
        %v11051 = vlaneseq
        %v11052 = vshrl.u32 %v11051, 7
        %v11053 = vsub.s32 1, %v11052
        %v11054 = vrot.slane %v11017, %v11053
        %v11055 = vlaneseq
        %v11056 = vshrl.u32 %v11055, 7
        %v11057 = vsub.s32 2, %v11056
        %v11058 = vrot.slane %v11017, %v11057
        %v11059 = vlaneseq
        %v11060 = vshrl.u32 %v11059, 7
        %v11061 = vsub.s32 3, %v11060
        %v11062 = vrot.slane %v11017, %v11061
        %v11067 = vmul.f32 %v11042, %v11050
        %v11068 = vmul.f32 %v11043, %v11054
        %v11069 = vmul.f32 %v11044, %v11058
        %v11070 = vmul.f32 %v11045, %v11062
        %v11072 = vlaneseq
        %v11073 = vshrl.u32 %v11072, 7
        %v11074 = vsub.s32 0, %v11073
        %v11075 = vrot.slane %v11019, %v11074
        %v11076 = vlaneseq
        %v11077 = vshrl.u32 %v11076, 7
        %v11078 = vsub.s32 1, %v11077
        %v11079 = vrot.slane %v11019, %v11078
        %v11080 = vlaneseq
        %v11081 = vshrl.u32 %v11080, 7
        %v11082 = vsub.s32 2, %v11081
        %v11083 = vrot.slane %v11019, %v11082
        %v11084 = vlaneseq
        %v11085 = vshrl.u32 %v11084, 7
        %v11086 = vsub.s32 3, %v11085
        %v11087 = vrot.slane %v11019, %v11086
        %v11092 = vadd.f32 %v11067, %v11075
        %v11093 = vadd.f32 %v11068, %v11079
        %v11094 = vadd.f32 %v11069, %v11083
        %v11095 = vadd.f32 %v11070, %v11087
        %11096 = vst [vmem:[%s496] sm:$0xff] %v11092
        %11097 = vst [vmem:[%s496 + $0x8] sm:$0xff] %v11093
        %11098 = vst [vmem:[%s496 + $0x10] sm:$0xff] %v11094
        %11099 = vst [vmem:[%s496 + $0x18] sm:$0xff] %v11095
        %s11100 = sand.u32 %s255, 1
        %s11101 = scalar_lea.sflag [#allocation4], %s11100
        %s11102 = sand.u32 %s255, 1
        %s11103 = smul.addr %s11102, 32
        %s11104 = scalar_lea.vmem [#allocation19], %s11103
        // Predicated region
        $region101: #{global_self_attn_forward.1} parent=59 // pred_check
          %p11105 = pneg %p265
        $region102: #{global_self_attn_forward.1} parent=59 // pred_check_branch
          %11107 = sbr.rel (%p11105) target = $region104
        $region103: #{global_self_attn_forward.1} parent=59 // pred_region
          %s11109 = ssub.s32 512, 512
          %11110 = vsyncadd %s11101, %s11109
          %s11111 = smul.addr %s32, 4
          %s11112 = smul.addr %s11111, 128
          %s11113 = scalar_lea.hbm %s10, %s11112
          %s11115 = sshll.u32 %s11104, 4
          %s11116 = int_to_ptr.vmem [resolvable:$true] %s11115
          %11118 = dma.vmem_to_hbm [thread:$0]  %s11116, 512, %s11113, %s11101
        $region104: #{global_self_attn_forward.1} parent=59 // pred_fallthru
          _
      $region60: #{global_self_attn_forward.1} parent=5 // pred_fallthru
        _
      %p11119 = scmp.le.s32.totalorder 2, %s27
      // Predicated region
      $region105: #{global_self_attn_forward.1} parent=5 // pred_check
        %p11120 = pneg %p11119
      $region106: #{global_self_attn_forward.1} parent=5 // pred_check_branch
        %11122 = sbr.rel (%p11120) target = $region108
      $region107: #{global_self_attn_forward.1} parent=5 // pred_region
        %s11123 = ssub.s32 %s27, 2
        // Predicated region
        $region109: #{global_self_attn_forward.1} parent=107 // pred_check
          %p11124 = pneg %p271
        $region110: #{global_self_attn_forward.1} parent=107 // pred_check_branch
          %11126 = sbr.rel (%p11124) target = $region112
        $region111: #{global_self_attn_forward.1} parent=107 // pred_region
          %s11127 = sand.u32 %s256, 1
          %s11128 = scalar_lea.sflag [#allocation4], %s11127
          %s11129 = sand.u32 %s256, 1
          %s11130 = smul.addr %s11129, 32
          %s11131 = scalar_lea.vmem [#allocation19], %s11130
          %11132 = dma.done %s11128, 512
        $region112: #{global_self_attn_forward.1} parent=107 // pred_fallthru
          _
      $region108: #{global_self_attn_forward.1} parent=5 // pred_fallthru
        _
    $region6: #{global_self_attn_forward.1} parent=1 // loop_footer
      %s31 = sadd.s32 1, %s27
    $region7: #{global_self_attn_forward.1} parent=1 // loop_footer_branch
      %26 = sbr.rel target = $region3
    $region8: #{global_self_attn_forward.1} parent=1 // loop_exit
      _
    %11133 = vsyncpa [#allocation3], 1
    %s11134 = scalar_lea.sflag [#allocation3], 1
    %11135 = vsyncpa %s11134, 1
    %11136 = vsyncpa [#allocation6], 1
    %11137 = vsyncpa [#allocation9], 1
    %11138 = vsyncpa [#allocation12], 1
    %11139 = vsyncpa [#allocation15], 1
    %11140 = vsyncpa [#allocation18], 1
    %11141 = vsyncpa [#allocation4], 1
    %s11142 = scalar_lea.sflag [#allocation4], 1
    %11143 = vsyncpa %s11142, 1

</llo_original>
